<compile_context>
chip_gen: v6e
topology: v6e:2x2x1
jax: 0.10.0
libtpu: 0.0.40
codegen_flags: <defaults>
</compile_context>

<pallas_src>
import functools
from itertools import permutations

import jax
import jax.numpy as jnp
from jax.experimental import pallas as pl
from jax.experimental.pallas import tpu as pltpu

NEG_INF = -1e30  # bias for padded action lanes -> probability 0 after softmax


def _round_up(x, m):
    return ((x + m - 1) // m) * m


# --------------------------------------------------------------------------
# Kernel: one block of B_blk independent forward passes.
# --------------------------------------------------------------------------
def agent_forward_kernel(step_ref, gcn_ref, fc1_ref, fc2_ref, out_ref, *,
                         num_nodes, hidden, step_width, eps):
    N, H, P = num_nodes, hidden, step_width
    HP = fc1_ref.shape[1]                 # lane-padded hidden (multiple of 128)

    step = step_ref[...]                  # (B_blk, P) f32: [x_flat | esn | 0-pad]

    # --- GCNConv: aggregation + input transform + bias in ONE MXU matmul ---
    #   h[b, m*H + f] = sum_{n,c} x[b,n,c] * a_hat[m,n] * wg[c,f] + bg[f]
    # (esn / pad lanes of `step` hit zero rows of the slab -> contribute 0)
    h = jnp.dot(step, gcn_ref[0:P, :], preferred_element_type=jnp.float32)
    h = h + gcn_ref[P:P + 1, :]
    h = jnp.maximum(h, 0.0)               # (B_blk, N*H)

    # --- per-node LayerNorm (affine folded into fc1) + global_add_pool ------
    pooled = jnp.zeros((step.shape[0], H), jnp.float32)
    for n in range(N):                    # static unroll, N is tiny (=8)
        c = h[:, n * H:(n + 1) * H]
        c = c - jnp.mean(c, axis=-1, keepdims=True)
        var = jnp.mean(c * c, axis=-1, keepdims=True)
        pooled = pooled + c * jax.lax.rsqrt(var + eps)

    # --- fc1: cat([pooled, esn]) @ W1 + b1 as two matmuls over one slab -----
    # (the esn part reads the full `step` buffer; x/pad lanes hit zero rows)
    z1 = (jnp.dot(pooled, fc1_ref[0:H, :], preferred_element_type=jnp.float32)
          + jnp.dot(step, fc1_ref[H:H + P, :], preferred_element_type=jnp.float32)
          + fc1_ref[H + P:H + P + 1, :])
    z1 = jnp.maximum(z1, 0.0)             # (B_blk, HP), pad lanes are exactly 0

    # --- fc2 + log_softmax (padded action lanes carry NEG_INF bias) ---------
    logits = (jnp.dot(z1, fc2_ref[0:HP, :], preferred_element_type=jnp.float32)
              + fc2_ref[HP:HP + 1, :])
    m = jnp.max(logits, axis=-1, keepdims=True)
    s = logits - m
    out_ref[...] = s - jnp.log(jnp.sum(jnp.exp(s), axis=-1, keepdims=True))


# --------------------------------------------------------------------------
# Host-side parameter folding (done once; inference-only fold of LayerNorm).
# --------------------------------------------------------------------------
def build_norm_adj(edge_index, num_nodes):
    """Dense D^-1/2 (A + I) D^-1/2, matching PyG GCNConv's gcn_norm (static)."""
    src, dst = edge_index[0], edge_index[1]
    loops = jnp.arange(num_nodes, dtype=src.dtype)
    src = jnp.concatenate([src, loops])
    dst = jnp.concatenate([dst, loops])
    a = jnp.zeros((num_nodes, num_nodes), jnp.float32).at[dst, src].add(1.0)
    deg = jnp.sum(a, axis=1)
    dinv = 1.0 / jnp.sqrt(jnp.maximum(deg, 1e-12))
    return dinv[:, None] * a * dinv[None, :]


def build_slabs(params, a_hat, num_nodes):
    """Fold all static parameters into three lane-padded, VMEM-resident slabs."""
    wg, bg = params["wg"], params["bg"]              # (2,H), (1,H)
    gamma, beta = params["gamma"], params["beta"]    # (1,H) each
    w1, b1 = params["w1"], params["b1"]              # (H+R, H), (1,H)
    w2, b2 = params["w2"], params["b2"]              # (H, A), (1,A)

    N = num_nodes
    H = wg.shape[1]
    R = w1.shape[0] - H
    A = w2.shape[1]
    assert H % 8 == 0, "hidden_dim must be a multiple of 8 for aligned slices"
    P = _round_up(2 * N + R, 128)                    # streaming-buffer width
    HP = _round_up(H, 128)
    AP = _round_up(A, 128)

    # GCN slab: rows [0:2N] = a_hat ⊗ wg, last row = bias tiled per node.
    w_gcn = jnp.einsum("mn,cf->ncmf", a_hat, wg).reshape(2 * N, N * H)
    gcn_slab = jnp.zeros((P + 1, N * H), jnp.float32)
    gcn_slab = gcn_slab.at[:2 * N, :].set(w_gcn)
    gcn_slab = gcn_slab.at[P, :].set(jnp.tile(bg[0], N))

    # fc1 slab: LayerNorm gamma folded into the graph rows, beta into the bias.
    # (valid for inference with frozen params)
    w1g = w1[:H, :] * gamma[0][:, None]
    b1f = b1[0] + N * (beta[0] @ w1[:H, :])
    fc1_slab = jnp.zeros((H + P + 1, HP), jnp.float32)
    fc1_slab = fc1_slab.at[:H, :H].set(w1g)
    fc1_slab = fc1_slab.at[H + 2 * N:H + 2 * N + R, :H].set(w1[H:, :])
    fc1_slab = fc1_slab.at[H + P, :H].set(b1f)

    # fc2 slab: zero-padded weight rows/cols, NEG_INF bias on padded actions.
    fc2_slab = jnp.zeros((HP + 1, AP), jnp.float32)
    fc2_slab = fc2_slab.at[:H, :A].set(w2)
    fc2_slab = fc2_slab.at[HP, :].set(NEG_INF)
    fc2_slab = fc2_slab.at[HP, :A].set(b2[0])

    return gcn_slab, fc1_slab, fc2_slab


# --------------------------------------------------------------------------
# Batched forward wrapper.
# --------------------------------------------------------------------------
def graph_reinforce_forward(node_feats_b, esn_b, gcn_slab, fc1_slab, fc2_slab,
                            *, action_dim, block_b=256):
    """node_feats_b: (B, N, 2), esn_b: (B, R) -> log_probs (B, action_dim).

    block_b=256 fills the v6e/v7x MXU M; use 128 on v5e.
    """
    B, N, _ = node_feats_b.shape
    P = gcn_slab.shape[0] - 1
    NH = gcn_slab.shape[1]
    H = NH // N
    A_pad = fc2_slab.shape[1]
    R = esn_b.shape[1]

    # Pack the two per-step tensors into ONE lane-padded streaming buffer.
    step = jnp.zeros((B, P), jnp.float32)
    step = step.at[:, :2 * N].set(node_feats_b.reshape(B, 2 * N))
    step = step.at[:, 2 * N:2 * N + R].set(esn_b)

    # Pad batch to a block multiple (padded rows compute garbage, sliced off).
    Bp = _round_up(max(B, 1), block_b)
    if Bp != B:
        step = jnp.pad(step, ((0, Bp - B), (0, 0)))

    kernel = functools.partial(agent_forward_kernel, num_nodes=N, hidden=H,
                               step_width=P, eps=1e-5)

    out = pl.pallas_call(
        kernel,
        out_shape=jax.ShapeDtypeStruct((Bp, A_pad), jnp.float32),
        grid=(Bp // block_b,),
        in_specs=[
            pl.BlockSpec((block_b, P), lambda b: (b, 0)),         # streamed
            pl.BlockSpec(gcn_slab.shape, lambda b: (0, 0)),       # resident
            pl.BlockSpec(fc1_slab.shape, lambda b: (0, 0)),       # resident
            pl.BlockSpec(fc2_slab.shape, lambda b: (0, 0)),       # resident
        ],
        out_specs=pl.BlockSpec((block_b, A_pad), lambda b: (b, 0)),
        compiler_params=pltpu.CompilerParams(
            dimension_semantics=("parallel",)),
    )(step, gcn_slab, fc1_slab, fc2_slab)

    return out[:B, :action_dim]


def init_params(key, hidden_dim, reservoir, action_dim):
    ks = jax.random.split(key, 5)

    def uni(k, shape, bound):
        return jax.random.uniform(k, shape, jnp.float32, -bound, bound)

    fan1 = hidden_dim + reservoir
    return {
        "wg": uni(ks[0], (2, hidden_dim), (6.0 / (2 + hidden_dim)) ** 0.5),
        "bg": jnp.zeros((1, hidden_dim), jnp.float32),
        "gamma": jnp.ones((1, hidden_dim), jnp.float32),
        "beta": jnp.zeros((1, hidden_dim), jnp.float32),
        "w1": uni(ks[1], (fan1, hidden_dim), fan1 ** -0.5),
        "b1": uni(ks[2], (1, hidden_dim), fan1 ** -0.5),
        "w2": uni(ks[3], (hidden_dim, action_dim), hidden_dim ** -0.5),
        "b2": uni(ks[4], (1, action_dim), hidden_dim ** -0.5),
    }


if __name__ == "__main__":
    key = jax.random.PRNGKey(0)
    k_state, k_esn, k_params = jax.random.split(key, 3)

    input_dim, action_dim = 8, 4
    hidden_dim, reservoir = 32, 32   # ESN reservoir shrunk from 500 for the demo
    batch, block_b = 512, 256        # environments stepped in parallel

    # --- mirror GraphDataProcessor: index pairs + complete edge set ----------
    index_pairs = [(i, i + 1) for i in range(0, input_dim - 1, 2)]
    index_pairs += [(i, input_dim - i - 1) for i in range(input_dim // 2)]
    num_nodes = len(index_pairs)                                    # = 8
    pair_idx = jnp.array(index_pairs, jnp.int32)                    # (N, 2)
    edge_index = jnp.array(
        list(permutations(range(input_dim), 2)), dtype=jnp.int32).T  # (2, 56)

    # Static per-environment adjacency, folded (with the GCN weight) host-side.
    a_hat = build_norm_adj(edge_index, num_nodes)                   # (8, 8) f32

    params = init_params(k_params, hidden_dim, reservoir, action_dim)
    gcn_slab, fc1_slab, fc2_slab = build_slabs(params, a_hat, num_nodes)

    # --- ESN (kept on-device in the SAME jit as the Pallas forward) ----------
    # TODO(synk): the ESN matvec could be fused into the Pallas kernel itself;
    # keeping it in the same jit already avoids the per-step host round trip.
    ke1, ke2, ke3 = jax.random.split(k_esn, 3)
    esn_w_in = (jax.random.uniform(ke1, (reservoir, input_dim)) - 0.5) * 2.0 / input_dim
    w = jax.random.uniform(ke2, (reservoir, reservoir)) - 0.5
    w = jnp.where(jax.random.uniform(ke3, (reservoir, reservoir)) > 0.5, 0.0, w)
    v = jnp.ones((reservoir,), jnp.float32)
    for _ in range(50):                       # power iteration (one-time init)
        v = w @ v
        v = v / jnp.maximum(jnp.linalg.norm(v), 1e-12)
    esn_w = w * (0.9 / jnp.maximum(jnp.linalg.norm(w @ v), 1e-6))
    leaky_rate = 0.2

    def esn_step(states, prev):
        pre = states @ esn_w_in.T + prev @ esn_w.T
        upd = (1.0 - leaky_rate) * prev + leaky_rate * jnp.tanh(pre)
        nrm = jnp.maximum(jnp.linalg.norm(upd, axis=1, keepdims=True), 1e-6)
        return upd / nrm

    @jax.jit
    def policy_step(states_b, esn_prev_b):
        esn_b = esn_step(states_b, esn_prev_b)           # device-side, same jit
        node_feats_b = states_b[:, pair_idx]             # (B, N, 2)
        log_probs = graph_reinforce_forward(
            node_feats_b, esn_b, gcn_slab, fc1_slab, fc2_slab,
            action_dim=action_dim, block_b=block_b)
        return log_probs, esn_b

    states_b = jax.random.uniform(k_state, (batch, input_dim), jnp.float32)
    esn_prev_b = jnp.zeros((batch, reservoir), jnp.float32)

    log_probs, esn_b = policy_step(states_b, esn_prev_b)
    log_probs = jax.block_until_ready(log_probs)

    assert log_probs.shape == (batch, action_dim)
    # log_softmax sanity: probabilities sum to ~1 per row, no NaNs.
    prob_sums = jnp.sum(jnp.exp(log_probs), axis=1)
    assert bool(jnp.all(jnp.isfinite(log_probs)))
    assert bool(jnp.all(jnp.abs(prob_sums - 1.0) < 1e-3))

    # Reference check of the folded math against a plain-JAX per-sample forward.
    def ref_forward(node_feats, esn):
        xw = node_feats @ params["wg"]
        h = jnp.maximum(a_hat @ xw + params["bg"], 0.0)
        mu = jnp.mean(h, -1, keepdims=True)
        var = jnp.mean((h - mu) ** 2, -1, keepdims=True)
        hn = (h - mu) * jax.lax.rsqrt(var + 1e-5) * params["gamma"] + params["beta"]
        pooled = jnp.sum(hn, 0, keepdims=True)
        x = jnp.concatenate([pooled, esn[None, :]], axis=1)
        z1 = jnp.maximum(x @ params["w1"] + params["b1"], 0.0)
        logits = z1 @ params["w2"] + params["b2"]
        return jax.nn.log_softmax(logits, -1)[0]

    nb = 8
    ref = jax.vmap(ref_forward)(states_b[:nb][:, pair_idx], esn_b[:nb])
    assert bool(jnp.all(jnp.abs(ref - log_probs[:nb]) < 5e-2))

    print("KERNEL_OK")
</pallas_src>

<mosaic_0001>
module attributes {stable_mosaic.version = 11 : i64} {
  func.func @agent_forward_kernel(%arg0: i32, %arg1: memref<256x128xf32, #tpu.memory_space<vmem>>, %arg2: memref<129x256xf32, #tpu.memory_space<vmem>>, %arg3: memref<161x128xf32, #tpu.memory_space<vmem>>, %arg4: memref<129x128xf32, #tpu.memory_space<vmem>>, %arg5: memref<256x128xf32, #tpu.memory_space<vmem>>) attributes {dimension_semantics = [#tpu.dimension_semantics<parallel>], iteration_bounds = array<i64: 2>, scalar_prefetch = 0 : i64, scratch_operands = 0 : i64, tpu.core_type = #tpu.core_type<tc>, window_params = [{transform_indices = @transform_0, window_bounds = array<i64: 256, 128>}, {pipeline_mode = #tpu.pipeline_mode<synchronous>, transform_indices = @transform_1, window_bounds = array<i64: 129, 256>}, {pipeline_mode = #tpu.pipeline_mode<synchronous>, transform_indices = @transform_2, window_bounds = array<i64: 161, 128>}, {pipeline_mode = #tpu.pipeline_mode<synchronous>, transform_indices = @transform_3, window_bounds = array<i64: 129, 128>}, {transform_indices = @transform_4, window_bounds = array<i64: 256, 128>}]} {
    %c0 = arith.constant 0 : index
    %c0_0 = arith.constant 0 : index
    %0 = vector.load %arg1[%c0, %c0_0] : memref<256x128xf32, #tpu.memory_space<vmem>>, vector<256x128xf32>
    %c0_1 = arith.constant 0 : index
    %c0_2 = arith.constant 0 : index
    %1 = vector.load %arg2[%c0_1, %c0_2] : memref<129x256xf32, #tpu.memory_space<vmem>>, vector<128x256xf32>
    %cst = arith.constant dense<0.000000e+00> : vector<256x256xf32>
    %2 = tpu.matmul %0, %1, %cst {dimension_numbers = #tpu.dot_dimension_numbers<[1], [0], [0], [1], [0, 0, 1, 1], [], []>} : vector<256x128xf32>, vector<128x256xf32>, vector<256x256xf32> -> vector<256x256xf32>
    %c128 = arith.constant 128 : index
    %c0_3 = arith.constant 0 : index
    %3 = vector.load %arg2[%c128, %c0_3] : memref<129x256xf32, #tpu.memory_space<vmem>>, vector<1x256xf32>
    %4 = vector.broadcast %3 : vector<1x256xf32> to vector<256x256xf32>
    %5 = arith.addf %2, %4 : vector<256x256xf32>
    %cst_4 = arith.constant 0.000000e+00 : f32
    %6 = vector.broadcast %cst_4 : f32 to vector<256x256xf32>
    %7 = arith.maximumf %5, %6 : vector<256x256xf32>
    %cst_5 = arith.constant 0.000000e+00 : f32
    %8 = vector.broadcast %cst_5 : f32 to vector<256x32xf32>
    %9 = vector.extract_strided_slice %7 {offsets = [0, 0], sizes = [256, 32], strides = [1, 1]} : vector<256x256xf32> to vector<256x32xf32>
    %cst_6 = arith.constant dense<0.000000e+00> : vector<256xf32>
    %10 = vector.multi_reduction <add>, %9, %cst_6 [1] : vector<256x32xf32> to vector<256xf32>
    %11 = vector.shape_cast %10 : vector<256xf32> to vector<256x1xf32>
    %cst_7 = arith.constant 3.200000e+01 : f32
    %12 = vector.broadcast %cst_7 : f32 to vector<256x1xf32>
    %13 = arith.divf %11, %12 : vector<256x1xf32>
    %14 = vector.broadcast %13 : vector<256x1xf32> to vector<256x32xf32>
    %15 = arith.subf %9, %14 : vector<256x32xf32>
    %16 = arith.mulf %15, %15 : vector<256x32xf32>
    %cst_8 = arith.constant dense<0.000000e+00> : vector<256xf32>
    %17 = vector.multi_reduction <add>, %16, %cst_8 [1] : vector<256x32xf32> to vector<256xf32>
    %18 = vector.shape_cast %17 : vector<256xf32> to vector<256x1xf32>
    %cst_9 = arith.constant 3.200000e+01 : f32
    %19 = vector.broadcast %cst_9 : f32 to vector<256x1xf32>
    %20 = arith.divf %18, %19 : vector<256x1xf32>
    %cst_10 = arith.constant 9.99999974E-6 : f32
    %21 = vector.broadcast %cst_10 : f32 to vector<256x1xf32>
    %22 = arith.addf %20, %21 : vector<256x1xf32>
    %23 = math.rsqrt %22 : vector<256x1xf32>
    %24 = vector.broadcast %23 : vector<256x1xf32> to vector<256x32xf32>
    %25 = arith.mulf %15, %24 : vector<256x32xf32>
    %26 = arith.addf %8, %25 : vector<256x32xf32>
    %27 = vector.extract_strided_slice %7 {offsets = [0, 32], sizes = [256, 32], strides = [1, 1]} : vector<256x256xf32> to vector<256x32xf32>
    %cst_11 = arith.constant dense<0.000000e+00> : vector<256xf32>
    %28 = vector.multi_reduction <add>, %27, %cst_11 [1] : vector<256x32xf32> to vector<256xf32>
    %29 = vector.shape_cast %28 : vector<256xf32> to vector<256x1xf32>
    %cst_12 = arith.constant 3.200000e+01 : f32
    %30 = vector.broadcast %cst_12 : f32 to vector<256x1xf32>
    %31 = arith.divf %29, %30 : vector<256x1xf32>
    %32 = vector.broadcast %31 : vector<256x1xf32> to vector<256x32xf32>
    %33 = arith.subf %27, %32 : vector<256x32xf32>
    %34 = arith.mulf %33, %33 : vector<256x32xf32>
    %cst_13 = arith.constant dense<0.000000e+00> : vector<256xf32>
    %35 = vector.multi_reduction <add>, %34, %cst_13 [1] : vector<256x32xf32> to vector<256xf32>
    %36 = vector.shape_cast %35 : vector<256xf32> to vector<256x1xf32>
    %cst_14 = arith.constant 3.200000e+01 : f32
    %37 = vector.broadcast %cst_14 : f32 to vector<256x1xf32>
    %38 = arith.divf %36, %37 : vector<256x1xf32>
    %cst_15 = arith.constant 9.99999974E-6 : f32
    %39 = vector.broadcast %cst_15 : f32 to vector<256x1xf32>
    %40 = arith.addf %38, %39 : vector<256x1xf32>
    %41 = math.rsqrt %40 : vector<256x1xf32>
    %42 = vector.broadcast %41 : vector<256x1xf32> to vector<256x32xf32>
    %43 = arith.mulf %33, %42 : vector<256x32xf32>
    %44 = arith.addf %26, %43 : vector<256x32xf32>
    %45 = vector.extract_strided_slice %7 {offsets = [0, 64], sizes = [256, 32], strides = [1, 1]} : vector<256x256xf32> to vector<256x32xf32>
    %cst_16 = arith.constant dense<0.000000e+00> : vector<256xf32>
    %46 = vector.multi_reduction <add>, %45, %cst_16 [1] : vector<256x32xf32> to vector<256xf32>
    %47 = vector.shape_cast %46 : vector<256xf32> to vector<256x1xf32>
    %cst_17 = arith.constant 3.200000e+01 : f32
    %48 = vector.broadcast %cst_17 : f32 to vector<256x1xf32>
    %49 = arith.divf %47, %48 : vector<256x1xf32>
    %50 = vector.broadcast %49 : vector<256x1xf32> to vector<256x32xf32>
    %51 = arith.subf %45, %50 : vector<256x32xf32>
    %52 = arith.mulf %51, %51 : vector<256x32xf32>
    %cst_18 = arith.constant dense<0.000000e+00> : vector<256xf32>
    %53 = vector.multi_reduction <add>, %52, %cst_18 [1] : vector<256x32xf32> to vector<256xf32>
    %54 = vector.shape_cast %53 : vector<256xf32> to vector<256x1xf32>
    %cst_19 = arith.constant 3.200000e+01 : f32
    %55 = vector.broadcast %cst_19 : f32 to vector<256x1xf32>
    %56 = arith.divf %54, %55 : vector<256x1xf32>
    %cst_20 = arith.constant 9.99999974E-6 : f32
    %57 = vector.broadcast %cst_20 : f32 to vector<256x1xf32>
    %58 = arith.addf %56, %57 : vector<256x1xf32>
    %59 = math.rsqrt %58 : vector<256x1xf32>
    %60 = vector.broadcast %59 : vector<256x1xf32> to vector<256x32xf32>
    %61 = arith.mulf %51, %60 : vector<256x32xf32>
    %62 = arith.addf %44, %61 : vector<256x32xf32>
    %63 = vector.extract_strided_slice %7 {offsets = [0, 96], sizes = [256, 32], strides = [1, 1]} : vector<256x256xf32> to vector<256x32xf32>
    %cst_21 = arith.constant dense<0.000000e+00> : vector<256xf32>
    %64 = vector.multi_reduction <add>, %63, %cst_21 [1] : vector<256x32xf32> to vector<256xf32>
    %65 = vector.shape_cast %64 : vector<256xf32> to vector<256x1xf32>
    %cst_22 = arith.constant 3.200000e+01 : f32
    %66 = vector.broadcast %cst_22 : f32 to vector<256x1xf32>
    %67 = arith.divf %65, %66 : vector<256x1xf32>
    %68 = vector.broadcast %67 : vector<256x1xf32> to vector<256x32xf32>
    %69 = arith.subf %63, %68 : vector<256x32xf32>
    %70 = arith.mulf %69, %69 : vector<256x32xf32>
    %cst_23 = arith.constant dense<0.000000e+00> : vector<256xf32>
    %71 = vector.multi_reduction <add>, %70, %cst_23 [1] : vector<256x32xf32> to vector<256xf32>
    %72 = vector.shape_cast %71 : vector<256xf32> to vector<256x1xf32>
    %cst_24 = arith.constant 3.200000e+01 : f32
    %73 = vector.broadcast %cst_24 : f32 to vector<256x1xf32>
    %74 = arith.divf %72, %73 : vector<256x1xf32>
    %cst_25 = arith.constant 9.99999974E-6 : f32
    %75 = vector.broadcast %cst_25 : f32 to vector<256x1xf32>
    %76 = arith.addf %74, %75 : vector<256x1xf32>
    %77 = math.rsqrt %76 : vector<256x1xf32>
    %78 = vector.broadcast %77 : vector<256x1xf32> to vector<256x32xf32>
    %79 = arith.mulf %69, %78 : vector<256x32xf32>
    %80 = arith.addf %62, %79 : vector<256x32xf32>
    %81 = vector.extract_strided_slice %7 {offsets = [0, 128], sizes = [256, 32], strides = [1, 1]} : vector<256x256xf32> to vector<256x32xf32>
    %cst_26 = arith.constant dense<0.000000e+00> : vector<256xf32>
    %82 = vector.multi_reduction <add>, %81, %cst_26 [1] : vector<256x32xf32> to vector<256xf32>
    %83 = vector.shape_cast %82 : vector<256xf32> to vector<256x1xf32>
    %cst_27 = arith.constant 3.200000e+01 : f32
    %84 = vector.broadcast %cst_27 : f32 to vector<256x1xf32>
    %85 = arith.divf %83, %84 : vector<256x1xf32>
    %86 = vector.broadcast %85 : vector<256x1xf32> to vector<256x32xf32>
    %87 = arith.subf %81, %86 : vector<256x32xf32>
    %88 = arith.mulf %87, %87 : vector<256x32xf32>
    %cst_28 = arith.constant dense<0.000000e+00> : vector<256xf32>
    %89 = vector.multi_reduction <add>, %88, %cst_28 [1] : vector<256x32xf32> to vector<256xf32>
    %90 = vector.shape_cast %89 : vector<256xf32> to vector<256x1xf32>
    %cst_29 = arith.constant 3.200000e+01 : f32
    %91 = vector.broadcast %cst_29 : f32 to vector<256x1xf32>
    %92 = arith.divf %90, %91 : vector<256x1xf32>
    %cst_30 = arith.constant 9.99999974E-6 : f32
    %93 = vector.broadcast %cst_30 : f32 to vector<256x1xf32>
    %94 = arith.addf %92, %93 : vector<256x1xf32>
    %95 = math.rsqrt %94 : vector<256x1xf32>
    %96 = vector.broadcast %95 : vector<256x1xf32> to vector<256x32xf32>
    %97 = arith.mulf %87, %96 : vector<256x32xf32>
    %98 = arith.addf %80, %97 : vector<256x32xf32>
    %99 = vector.extract_strided_slice %7 {offsets = [0, 160], sizes = [256, 32], strides = [1, 1]} : vector<256x256xf32> to vector<256x32xf32>
    %cst_31 = arith.constant dense<0.000000e+00> : vector<256xf32>
    %100 = vector.multi_reduction <add>, %99, %cst_31 [1] : vector<256x32xf32> to vector<256xf32>
    %101 = vector.shape_cast %100 : vector<256xf32> to vector<256x1xf32>
    %cst_32 = arith.constant 3.200000e+01 : f32
    %102 = vector.broadcast %cst_32 : f32 to vector<256x1xf32>
    %103 = arith.divf %101, %102 : vector<256x1xf32>
    %104 = vector.broadcast %103 : vector<256x1xf32> to vector<256x32xf32>
    %105 = arith.subf %99, %104 : vector<256x32xf32>
    %106 = arith.mulf %105, %105 : vector<256x32xf32>
    %cst_33 = arith.constant dense<0.000000e+00> : vector<256xf32>
    %107 = vector.multi_reduction <add>, %106, %cst_33 [1] : vector<256x32xf32> to vector<256xf32>
    %108 = vector.shape_cast %107 : vector<256xf32> to vector<256x1xf32>
    %cst_34 = arith.constant 3.200000e+01 : f32
    %109 = vector.broadcast %cst_34 : f32 to vector<256x1xf32>
    %110 = arith.divf %108, %109 : vector<256x1xf32>
    %cst_35 = arith.constant 9.99999974E-6 : f32
    %111 = vector.broadcast %cst_35 : f32 to vector<256x1xf32>
    %112 = arith.addf %110, %111 : vector<256x1xf32>
    %113 = math.rsqrt %112 : vector<256x1xf32>
    %114 = vector.broadcast %113 : vector<256x1xf32> to vector<256x32xf32>
    %115 = arith.mulf %105, %114 : vector<256x32xf32>
    %116 = arith.addf %98, %115 : vector<256x32xf32>
    %117 = vector.extract_strided_slice %7 {offsets = [0, 192], sizes = [256, 32], strides = [1, 1]} : vector<256x256xf32> to vector<256x32xf32>
    %cst_36 = arith.constant dense<0.000000e+00> : vector<256xf32>
    %118 = vector.multi_reduction <add>, %117, %cst_36 [1] : vector<256x32xf32> to vector<256xf32>
    %119 = vector.shape_cast %118 : vector<256xf32> to vector<256x1xf32>
    %cst_37 = arith.constant 3.200000e+01 : f32
    %120 = vector.broadcast %cst_37 : f32 to vector<256x1xf32>
    %121 = arith.divf %119, %120 : vector<256x1xf32>
    %122 = vector.broadcast %121 : vector<256x1xf32> to vector<256x32xf32>
    %123 = arith.subf %117, %122 : vector<256x32xf32>
    %124 = arith.mulf %123, %123 : vector<256x32xf32>
    %cst_38 = arith.constant dense<0.000000e+00> : vector<256xf32>
    %125 = vector.multi_reduction <add>, %124, %cst_38 [1] : vector<256x32xf32> to vector<256xf32>
    %126 = vector.shape_cast %125 : vector<256xf32> to vector<256x1xf32>
    %cst_39 = arith.constant 3.200000e+01 : f32
    %127 = vector.broadcast %cst_39 : f32 to vector<256x1xf32>
    %128 = arith.divf %126, %127 : vector<256x1xf32>
    %cst_40 = arith.constant 9.99999974E-6 : f32
    %129 = vector.broadcast %cst_40 : f32 to vector<256x1xf32>
    %130 = arith.addf %128, %129 : vector<256x1xf32>
    %131 = math.rsqrt %130 : vector<256x1xf32>
    %132 = vector.broadcast %131 : vector<256x1xf32> to vector<256x32xf32>
    %133 = arith.mulf %123, %132 : vector<256x32xf32>
    %134 = arith.addf %116, %133 : vector<256x32xf32>
    %135 = vector.extract_strided_slice %7 {offsets = [0, 224], sizes = [256, 32], strides = [1, 1]} : vector<256x256xf32> to vector<256x32xf32>
    %cst_41 = arith.constant dense<0.000000e+00> : vector<256xf32>
    %136 = vector.multi_reduction <add>, %135, %cst_41 [1] : vector<256x32xf32> to vector<256xf32>
    %137 = vector.shape_cast %136 : vector<256xf32> to vector<256x1xf32>
    %cst_42 = arith.constant 3.200000e+01 : f32
    %138 = vector.broadcast %cst_42 : f32 to vector<256x1xf32>
    %139 = arith.divf %137, %138 : vector<256x1xf32>
    %140 = vector.broadcast %139 : vector<256x1xf32> to vector<256x32xf32>
    %141 = arith.subf %135, %140 : vector<256x32xf32>
    %142 = arith.mulf %141, %141 : vector<256x32xf32>
    %cst_43 = arith.constant dense<0.000000e+00> : vector<256xf32>
    %143 = vector.multi_reduction <add>, %142, %cst_43 [1] : vector<256x32xf32> to vector<256xf32>
    %144 = vector.shape_cast %143 : vector<256xf32> to vector<256x1xf32>
    %cst_44 = arith.constant 3.200000e+01 : f32
    %145 = vector.broadcast %cst_44 : f32 to vector<256x1xf32>
    %146 = arith.divf %144, %145 : vector<256x1xf32>
    %cst_45 = arith.constant 9.99999974E-6 : f32
    %147 = vector.broadcast %cst_45 : f32 to vector<256x1xf32>
    %148 = arith.addf %146, %147 : vector<256x1xf32>
    %149 = math.rsqrt %148 : vector<256x1xf32>
    %150 = vector.broadcast %149 : vector<256x1xf32> to vector<256x32xf32>
    %151 = arith.mulf %141, %150 : vector<256x32xf32>
    %152 = arith.addf %134, %151 : vector<256x32xf32>
    %c0_46 = arith.constant 0 : index
    %c0_47 = arith.constant 0 : index
    %153 = vector.load %arg3[%c0_46, %c0_47] : memref<161x128xf32, #tpu.memory_space<vmem>>, vector<32x128xf32>
    %cst_48 = arith.constant dense<0.000000e+00> : vector<256x128xf32>
    %154 = tpu.matmul %152, %153, %cst_48 {dimension_numbers = #tpu.dot_dimension_numbers<[1], [0], [0], [1], [0, 0, 1, 1], [], []>} : vector<256x32xf32>, vector<32x128xf32>, vector<256x128xf32> -> vector<256x128xf32>
    %c32 = arith.constant 32 : index
    %c0_49 = arith.constant 0 : index
    %155 = vector.load %arg3[%c32, %c0_49] : memref<161x128xf32, #tpu.memory_space<vmem>>, vector<128x128xf32>
    %cst_50 = arith.constant dense<0.000000e+00> : vector<256x128xf32>
    %156 = tpu.matmul %0, %155, %cst_50 {dimension_numbers = #tpu.dot_dimension_numbers<[1], [0], [0], [1], [0, 0, 1, 1], [], []>} : vector<256x128xf32>, vector<128x128xf32>, vector<256x128xf32> -> vector<256x128xf32>
    %157 = arith.addf %154, %156 : vector<256x128xf32>
    %c160 = arith.constant 160 : index
    %c0_51 = arith.constant 0 : index
    %158 = vector.load %arg3[%c160, %c0_51] : memref<161x128xf32, #tpu.memory_space<vmem>>, vector<1x128xf32>
    %159 = vector.broadcast %158 : vector<1x128xf32> to vector<256x128xf32>
    %160 = arith.addf %157, %159 : vector<256x128xf32>
    %cst_52 = arith.constant 0.000000e+00 : f32
    %161 = vector.broadcast %cst_52 : f32 to vector<256x128xf32>
    %162 = arith.maximumf %160, %161 : vector<256x128xf32>
    %c0_53 = arith.constant 0 : index
    %c0_54 = arith.constant 0 : index
    %163 = vector.load %arg4[%c0_53, %c0_54] : memref<129x128xf32, #tpu.memory_space<vmem>>, vector<128x128xf32>
    %cst_55 = arith.constant dense<0.000000e+00> : vector<256x128xf32>
    %164 = tpu.matmul %162, %163, %cst_55 {dimension_numbers = #tpu.dot_dimension_numbers<[1], [0], [0], [1], [0, 0, 1, 1], [], []>} : vector<256x128xf32>, vector<128x128xf32>, vector<256x128xf32> -> vector<256x128xf32>
    %c128_56 = arith.constant 128 : index
    %c0_57 = arith.constant 0 : index
    %165 = vector.load %arg4[%c128_56, %c0_57] : memref<129x128xf32, #tpu.memory_space<vmem>>, vector<1x128xf32>
    %166 = vector.broadcast %165 : vector<1x128xf32> to vector<256x128xf32>
    %167 = arith.addf %164, %166 : vector<256x128xf32>
    %cst_58 = arith.constant dense<0xFF800000> : vector<256xf32>
    %168 = vector.multi_reduction <maximumf>, %167, %cst_58 [1] : vector<256x128xf32> to vector<256xf32>
    %169 = vector.shape_cast %168 : vector<256xf32> to vector<256x1xf32>
    %170 = vector.broadcast %169 : vector<256x1xf32> to vector<256x128xf32>
    %171 = arith.subf %167, %170 : vector<256x128xf32>
    %172 = math.exp %171 : vector<256x128xf32>
    %cst_59 = arith.constant dense<0.000000e+00> : vector<256xf32>
    %173 = vector.multi_reduction <add>, %172, %cst_59 [1] : vector<256x128xf32> to vector<256xf32>
    %174 = vector.shape_cast %173 : vector<256xf32> to vector<256x1xf32>
    %175 = math.log %174 : vector<256x1xf32>
    %176 = vector.broadcast %175 : vector<256x1xf32> to vector<256x128xf32>
    %177 = arith.subf %171, %176 : vector<256x128xf32>
    %c0_60 = arith.constant 0 : index
    %c0_61 = arith.constant 0 : index
    %178 = vector.load %arg5[%c0_60, %c0_61] : memref<256x128xf32, #tpu.memory_space<vmem>>, vector<256x128xf32>
    tpu.vector_store %arg5[%c0_60, %c0_61], %177 {strides = array<i32>} : memref<256x128xf32, #tpu.memory_space<vmem>>, vector<256x128xf32>,
    return
  }
  func.func @transform_0(%arg0: i32) -> (i32, i32) {
    %c0_i32 = arith.constant 0 : i32
    %c0_i32_0 = arith.constant 0 : i32
    return %arg0, %c0_i32 : i32, i32
  }
  func.func @transform_1(%arg0: i32) -> (i32, i32) {
    %c0_i32 = arith.constant 0 : i32
    %c0_i32_0 = arith.constant 0 : i32
    %c0_i32_1 = arith.constant 0 : i32
    return %c0_i32, %c0_i32_0 : i32, i32
  }
  func.func @transform_2(%arg0: i32) -> (i32, i32) {
    %c0_i32 = arith.constant 0 : i32
    %c0_i32_0 = arith.constant 0 : i32
    %c0_i32_1 = arith.constant 0 : i32
    return %c0_i32, %c0_i32_0 : i32, i32
  }
  func.func @transform_3(%arg0: i32) -> (i32, i32) {
    %c0_i32 = arith.constant 0 : i32
    %c0_i32_0 = arith.constant 0 : i32
    %c0_i32_1 = arith.constant 0 : i32
    return %c0_i32, %c0_i32_0 : i32, i32
  }
  func.func @transform_4(%arg0: i32) -> (i32, i32) {
    %c0_i32 = arith.constant 0 : i32
    %c0_i32_0 = arith.constant 0 : i32
    return %arg0, %c0_i32 : i32, i32
  }
}

</mosaic_0001>

<llo_original>
// kernel: policy_step.1
$region0: #{policy_step.1}
  #allocation0 [shape = 'u32[]', space=smem, size = 0x4, offset = 0x4, fixed_abs, tag = 'smem constant byte address 0x4 - core index']
  #allocation1 [shape = 'u32[144,128]{1,0:T(1,128)}', space=vmem, size = 0x12000, scoped, tag = 'internal scratch']
  %s0 = inlined_call_operand.vmem [shape: f32[512,128], index: 0, kind: input, shape index: {}]
  %s1 = inlined_call_operand.vmem [shape: f32[129,256], index: 1, kind: input, shape index: {}]
  %s2 = inlined_call_operand.vmem [shape: f32[161,128], index: 2, kind: input, shape index: {}]
  %s3 = inlined_call_operand.vmem [shape: f32[129,128], index: 3, kind: input, shape index: {}]
  %s4 = inlined_call_operand.vmem [shape: f32[512,128], index: 4, kind: output, shape index: {}]
  %s5 = sld [smem:[#allocation0]]
  $region49: #{policy_step.1} parent=0
    _
  %s7 = ssub.s32 1, %s5
  %s8 = scalar_select 0, %s7, %s5
  loop: start=0, step=1, limit=4
  $region2: #{policy_step.1} parent=0 // loop_pre_header
    _
  $region3: #{policy_step.1} parent=0 // loop_header
    %s10 = sphi 0, %s14
    %p11 = scmp.ge.s32.totalorder %s10, 4
    %s20 = sphi 0, %s22
    %s23 = sphi 0, %s20
    %s24 = sphi 0, %s23
    %s40 = sphi 0, %s24
    %s44 = sphi 0, %s44
    %s46 = sphi 0, %s44
    %s47 = sphi 0, %s46
    %s61 = sphi 0, %s47
    %s65 = sphi 0, %s65
    %s67 = sphi 0, %s65
    %s68 = sphi 0, %s67
    %s82 = sphi 0, %s68
    %s86 = sphi 0, %s86
    %s88 = sphi 0, %s86
    %s89 = sphi 0, %s88
    %s103 = sphi 0, %s89
    %s109 = sphi 0, %s111
    %s112 = sphi 0, %s109
    %s113 = sphi 0, %s112
    %s129 = sphi 0, %s113
  $region4: #{policy_step.1} parent=0 // loop_header_branch
    %13 = sbr.rel (%p11) target = $region8
  $region5: #{policy_step.1} parent=0 // loop_body
    %s15 = ssub.s32 %s10, 1
    %s16 = ssub.s32 %s10, 2
    %s17 = sadd.s32 %s10, 1
    %s18 = ssub.s32 %s10, %s17
    %p19 = scmp.eq.s32.totalorder %s18, 0
    %s21 = sadd.s32 %s20, 1
    %s22 = scalar_select %p19, %s20, %s21
    %p25 = pneg %p19
    %p26 = scmp.eq.s32.totalorder %s10, 1
    %p27 = por %p25, %p26
    %p28 = scmp.ne.s32.totalorder %s20, %s23
    %p29 = scmp.eq.s32.totalorder %s10, 0
    %p30 = por %p28, %p29
    %p31 = scmp.ne.s32.totalorder %s20, %s23
    %p32 = scmp.eq.s32.totalorder %s15, 1
    %p33 = por %p31, %p32
    %p34 = scmp.ne.s32.totalorder %s23, %s24
    %p35 = scmp.eq.s32.totalorder %s15, 0
    %p36 = por %p34, %p35
    %p37 = scmp.ne.s32.totalorder %s23, %s24
    %p38 = scmp.eq.s32.totalorder %s16, 1
    %p39 = por %p37, %p38
    %p41 = scmp.ne.s32.totalorder %s24, %s40
    %p42 = scmp.eq.s32.totalorder %s16, 0
    %p43 = por %p41, %p42
    %s45 = sadd.s32 %s44, 1
    %p48 = scmp.eq.s32.totalorder %s10, 1
    %p49 = scmp.ne.s32.totalorder %s44, %s46
    %p50 = scmp.eq.s32.totalorder %s10, 0
    %p51 = por %p49, %p50
    %p52 = scmp.ne.s32.totalorder %s44, %s46
    %p53 = scmp.eq.s32.totalorder %s15, 1
    %p54 = por %p52, %p53
    %p55 = scmp.ne.s32.totalorder %s46, %s47
    %p56 = scmp.eq.s32.totalorder %s15, 0
    %p57 = por %p55, %p56
    %p58 = scmp.ne.s32.totalorder %s46, %s47
    %p59 = scmp.eq.s32.totalorder %s16, 1
    %p60 = por %p58, %p59
    %p62 = scmp.ne.s32.totalorder %s47, %s61
    %p63 = scmp.eq.s32.totalorder %s16, 0
    %p64 = por %p62, %p63
    %s66 = sadd.s32 %s65, 1
    %p69 = scmp.eq.s32.totalorder %s10, 1
    %p70 = scmp.ne.s32.totalorder %s65, %s67
    %p71 = scmp.eq.s32.totalorder %s10, 0
    %p72 = por %p70, %p71
    %p73 = scmp.ne.s32.totalorder %s65, %s67
    %p74 = scmp.eq.s32.totalorder %s15, 1
    %p75 = por %p73, %p74
    %p76 = scmp.ne.s32.totalorder %s67, %s68
    %p77 = scmp.eq.s32.totalorder %s15, 0
    %p78 = por %p76, %p77
    %p79 = scmp.ne.s32.totalorder %s67, %s68
    %p80 = scmp.eq.s32.totalorder %s16, 1
    %p81 = por %p79, %p80
    %p83 = scmp.ne.s32.totalorder %s68, %s82
    %p84 = scmp.eq.s32.totalorder %s16, 0
    %p85 = por %p83, %p84
    %s87 = sadd.s32 %s86, 1
    %p90 = scmp.eq.s32.totalorder %s10, 1
    %p91 = scmp.ne.s32.totalorder %s86, %s88
    %p92 = scmp.eq.s32.totalorder %s10, 0
    %p93 = por %p91, %p92
    %p94 = scmp.ne.s32.totalorder %s86, %s88
    %p95 = scmp.eq.s32.totalorder %s15, 1
    %p96 = por %p94, %p95
    %p97 = scmp.ne.s32.totalorder %s88, %s89
    %p98 = scmp.eq.s32.totalorder %s15, 0
    %p99 = por %p97, %p98
    %p100 = scmp.ne.s32.totalorder %s88, %s89
    %p101 = scmp.eq.s32.totalorder %s16, 1
    %p102 = por %p100, %p101
    %p104 = scmp.ne.s32.totalorder %s89, %s103
    %p105 = scmp.eq.s32.totalorder %s16, 0
    %p106 = por %p104, %p105
    %s107 = ssub.s32 %s10, %s17
    %p108 = scmp.eq.s32.totalorder %s107, 0
    %s110 = sadd.s32 %s109, 1
    %s111 = scalar_select %p108, %s109, %s110
    %p114 = pneg %p108
    %p115 = scmp.eq.s32.totalorder %s10, 1
    %p116 = por %p114, %p115
    %p117 = scmp.ne.s32.totalorder %s109, %s112
    %p118 = scmp.eq.s32.totalorder %s10, 0
    %p119 = por %p117, %p118
    %p120 = scmp.ne.s32.totalorder %s109, %s112
    %p121 = scmp.eq.s32.totalorder %s15, 1
    %p122 = por %p120, %p121
    %p123 = scmp.ne.s32.totalorder %s112, %s113
    %p124 = scmp.eq.s32.totalorder %s15, 0
    %p125 = por %p123, %p124
    %p126 = scmp.ne.s32.totalorder %s112, %s113
    %p127 = scmp.eq.s32.totalorder %s16, 1
    %p128 = por %p126, %p127
    %p130 = scmp.ne.s32.totalorder %s113, %s129
    %p131 = scmp.eq.s32.totalorder %s16, 0
    %p132 = por %p130, %p131
    %p133 = scmp.le.s32.totalorder 1, %s10
    %p134 = scmp.lt.s32.totalorder %s10, 3
    %p135 = pnand %p133, %p134
    %p136 = pneg %p135
    // Predicated region
    $region9: #{policy_step.1} parent=5 // pred_check
      _
    $region10: #{policy_step.1} parent=5 // pred_check_branch
      %138 = sbr.rel (%p135) target = $region12
    $region11: #{policy_step.1} parent=5 // pred_region
      %s139 = ssub.s32 %s10, 1
      // Predicated region
      $region13: #{policy_step.1} parent=11 // pred_check
        %p140 = pneg %p57
      $region14: #{policy_step.1} parent=11 // pred_check_branch
        %142 = sbr.rel (%p140) target = $region16
      $region15: #{policy_step.1} parent=11 // pred_region
        _
      $region16: #{policy_step.1} parent=11 // pred_fallthru
        _
      // Predicated region
      $region17: #{policy_step.1} parent=11 // pred_check
        %p143 = pneg %p78
      $region18: #{policy_step.1} parent=11 // pred_check_branch
        %145 = sbr.rel (%p143) target = $region20
      $region19: #{policy_step.1} parent=11 // pred_region
        _
      $region20: #{policy_step.1} parent=11 // pred_fallthru
        _
      // Predicated region
      $region21: #{policy_step.1} parent=11 // pred_check
        %p146 = pneg %p99
      $region22: #{policy_step.1} parent=11 // pred_check_branch
        %148 = sbr.rel (%p146) target = $region24
      $region23: #{policy_step.1} parent=11 // pred_region
        _
      $region24: #{policy_step.1} parent=11 // pred_fallthru
        _
    $region12: #{policy_step.1} parent=5 // pred_fallthru
      _
    %p149 = scmp.lt.s32.totalorder %s10, 2
    // Predicated region
    $region25: #{policy_step.1} parent=5 // pred_check
      %p150 = pneg %p149
    $region26: #{policy_step.1} parent=5 // pred_check_branch
      %152 = sbr.rel (%p150) target = $region28
    $region27: #{policy_step.1} parent=5 // pred_region
      // Predicated region
      $region29: #{policy_step.1} parent=27 // pred_check
        %p153 = pneg %p30
      $region30: #{policy_step.1} parent=27 // pred_check_branch
        %155 = sbr.rel (%p153) target = $region32
      $region31: #{policy_step.1} parent=27 // pred_region
        %s156 = smul.u32 32, %s10
        %p157 = scmp.lt.s32.totalorder %s156, 63
        %s158 = scalar_select %p157, %s156, 63
        %s159 = smul.addr %s158, 8
        %s160 = scalar_lea.vmem %s0, %s159
        %s161 = smul.u32 32, %s10
      $region32: #{policy_step.1} parent=27 // pred_fallthru
        _
    $region28: #{policy_step.1} parent=5 // pred_fallthru
      _
    %p162 = scmp.le.s32.totalorder 1, %s10
    %p163 = scmp.lt.s32.totalorder %s10, 3
    %p164 = pnand %p162, %p163
    %p165 = pneg %p164
    // Predicated region
    $region33: #{policy_step.1} parent=5 // pred_check
      _
    $region34: #{policy_step.1} parent=5 // pred_check_branch
      %167 = sbr.rel (%p164) target = $region36
    $region35: #{policy_step.1} parent=5 // pred_region
      %s168 = ssub.s32 %s10, 1
      %s169 = smul.u32 32, %s15
      %p170 = scmp.lt.s32.totalorder %s169, 63
      %s171 = scalar_select %p170, %s169, 63
      %s172 = smul.addr %s171, 8
      %s173 = scalar_lea.vmem %s0, %s172
      %p174 = pneg %p36
      %p175 = pneg %p33
      %p176 = pneg %p57
      %p177 = pneg %p54
      %p178 = pneg %p78
      %p179 = pneg %p75
      %p180 = pneg %p99
      %p181 = pneg %p96
      %p182 = pneg %p125
      %p183 = pneg %p122
      %s184 = smul.u32 32, %s15
      %p185 = scmp.lt.s32.totalorder %s184, 63
      %s186 = scalar_select %p185, %s184, 63
      %s187 = smul.addr %s186, 8
      %s188 = scalar_lea.vmem %s4, %s187
      %s189 = smul.u32 32, %s15
      %p190 = scmp.lt.s32.totalorder %s189, 63
      %s191 = scalar_select %p190, %s189, 63
      %s192 = smul.addr %s191, 8
      %s193 = scalar_lea.vmem %s0, %s192
      %s194 = smul.u32 32, %s15
      %s195 = smul.u32 32, %s15
      %p196 = scmp.lt.s32.totalorder %s195, 63
      %s197 = scalar_select %p196, %s195, 63
      %s198 = smul.addr %s197, 8
      %s199 = scalar_lea.vmem %s4, %s198
      %s200 = smul.u32 32, %s15
      %v201 = vld [vmem:[%s193] sm:$0xff]
      %v202 = vld [vmem:[%s193 + $0x8] sm:$0xff]
      %v203 = vld [vmem:[%s193 + $0x10] sm:$0xff]
      %v204 = vld [vmem:[%s193 + $0x18] sm:$0xff]
      %v205 = vld [vmem:[%s193 + $0x20] sm:$0xff]
      %v206 = vld [vmem:[%s193 + $0x28] sm:$0xff]
      %v207 = vld [vmem:[%s193 + $0x30] sm:$0xff]
      %v208 = vld [vmem:[%s193 + $0x38] sm:$0xff]
      %v209 = vld [vmem:[%s193 + $0x40] sm:$0xff]
      %v210 = vld [vmem:[%s193 + $0x48] sm:$0xff]
      %v211 = vld [vmem:[%s193 + $0x50] sm:$0xff]
      %v212 = vld [vmem:[%s193 + $0x58] sm:$0xff]
      %v213 = vld [vmem:[%s193 + $0x60] sm:$0xff]
      %v214 = vld [vmem:[%s193 + $0x68] sm:$0xff]
      %v215 = vld [vmem:[%s193 + $0x70] sm:$0xff]
      %v216 = vld [vmem:[%s193 + $0x78] sm:$0xff]
      %v217 = vld [vmem:[%s193 + $0x80] sm:$0xff]
      %v218 = vld [vmem:[%s193 + $0x88] sm:$0xff]
      %v219 = vld [vmem:[%s193 + $0x90] sm:$0xff]
      %v220 = vld [vmem:[%s193 + $0x98] sm:$0xff]
      %v221 = vld [vmem:[%s193 + $0xa0] sm:$0xff]
      %v222 = vld [vmem:[%s193 + $0xa8] sm:$0xff]
      %v223 = vld [vmem:[%s193 + $0xb0] sm:$0xff]
      %v224 = vld [vmem:[%s193 + $0xb8] sm:$0xff]
      %v225 = vld [vmem:[%s193 + $0xc0] sm:$0xff]
      %v226 = vld [vmem:[%s193 + $0xc8] sm:$0xff]
      %v227 = vld [vmem:[%s193 + $0xd0] sm:$0xff]
      %v228 = vld [vmem:[%s193 + $0xd8] sm:$0xff]
      %v229 = vld [vmem:[%s193 + $0xe0] sm:$0xff]
      %v230 = vld [vmem:[%s193 + $0xe8] sm:$0xff]
      %v231 = vld [vmem:[%s193 + $0xf0] sm:$0xff]
      %v232 = vld [vmem:[%s193 + $0xf8] sm:$0xff]
      %v233 = vld [vmem:[%s1] sm:$0xff]
      %v234 = vld [vmem:[%s1 + $0x8] sm:$0xff]
      %v235 = vld [vmem:[%s1 + $0x10] sm:$0xff]
      %v236 = vld [vmem:[%s1 + $0x18] sm:$0xff]
      %v237 = vld [vmem:[%s1 + $0x20] sm:$0xff]
      %v238 = vld [vmem:[%s1 + $0x28] sm:$0xff]
      %v239 = vld [vmem:[%s1 + $0x30] sm:$0xff]
      %v240 = vld [vmem:[%s1 + $0x38] sm:$0xff]
      %v241 = vld [vmem:[%s1 + $0x40] sm:$0xff]
      %v242 = vld [vmem:[%s1 + $0x48] sm:$0xff]
      %v243 = vld [vmem:[%s1 + $0x50] sm:$0xff]
      %v244 = vld [vmem:[%s1 + $0x58] sm:$0xff]
      %v245 = vld [vmem:[%s1 + $0x60] sm:$0xff]
      %v246 = vld [vmem:[%s1 + $0x68] sm:$0xff]
      %v247 = vld [vmem:[%s1 + $0x70] sm:$0xff]
      %v248 = vld [vmem:[%s1 + $0x78] sm:$0xff]
      %v249 = vld [vmem:[%s1 + $0x80] sm:$0xff]
      %v250 = vld [vmem:[%s1 + $0x88] sm:$0xff]
      %v251 = vld [vmem:[%s1 + $0x90] sm:$0xff]
      %v252 = vld [vmem:[%s1 + $0x98] sm:$0xff]
      %v253 = vld [vmem:[%s1 + $0xa0] sm:$0xff]
      %v254 = vld [vmem:[%s1 + $0xa8] sm:$0xff]
      %v255 = vld [vmem:[%s1 + $0xb0] sm:$0xff]
      %v256 = vld [vmem:[%s1 + $0xb8] sm:$0xff]
      %v257 = vld [vmem:[%s1 + $0xc0] sm:$0xff]
      %v258 = vld [vmem:[%s1 + $0xc8] sm:$0xff]
      %v259 = vld [vmem:[%s1 + $0xd0] sm:$0xff]
      %v260 = vld [vmem:[%s1 + $0xd8] sm:$0xff]
      %v261 = vld [vmem:[%s1 + $0xe0] sm:$0xff]
      %v262 = vld [vmem:[%s1 + $0xe8] sm:$0xff]
      %v263 = vld [vmem:[%s1 + $0xf0] sm:$0xff]
      %v264 = vld [vmem:[%s1 + $0xf8] sm:$0xff]
      %s265 = scalar_lea.vmem %s1, 256
      %v266 = vld [vmem:[%s265] ss:$8 sm:$0x3]
      %v268 = vlaneseq
      %v269 = vshrl.u32 %v268, 7
      %v270 = vsub.s32 0, %v269
      %v271 = vrot.slane %v266, %v270
      %v272 = vlaneseq
      %v273 = vshrl.u32 %v272, 7
      %v274 = vsub.s32 1, %v273
      %v275 = vrot.slane %v266, %v274
      %278 = vmatprep.subr.mxu0 %v264
      %279 = vmatpush1.msra.mxu0 %v263
      %280 = vmatprep.subr.mxu0 %v262
      %281 = vmatpush1.msra.mxu0 %v261
      %282 = vmatprep.subr.mxu0 %v260
      %283 = vmatpush1.msra.mxu0 %v259
      %284 = vmatprep.subr.mxu0 %v258
      %285 = vmatpush1.msra.mxu0 %v257
      %286 = vmatprep.subr.mxu0 %v256
      %287 = vmatpush1.msra.mxu0 %v255
      %288 = vmatprep.subr.mxu0 %v254
      %289 = vmatpush1.msra.mxu0 %v253
      %290 = vmatprep.subr.mxu0 %v252
      %291 = vmatpush1.msra.mxu0 %v251
      %292 = vmatprep.subr.mxu0 %v250
      %293 = vmatpush1.msra.mxu0 %v249
      %294 = vmatprep.subr.mxu0 %v248
      %295 = vmatpush1.msra.mxu0 %v247
      %296 = vmatprep.subr.mxu0 %v246
      %297 = vmatpush1.msra.mxu0 %v245
      %298 = vmatprep.subr.mxu0 %v244
      %299 = vmatpush1.msra.mxu0 %v243
      %300 = vmatprep.subr.mxu0 %v242
      %301 = vmatpush1.msra.mxu0 %v241
      %302 = vmatprep.subr.mxu0 %v240
      %303 = vmatpush1.msra.mxu0 %v239
      %304 = vmatprep.subr.mxu0 %v238
      %305 = vmatpush1.msra.mxu0 %v237
      %306 = vmatprep.subr.mxu0 %v236
      %307 = vmatpush1.msra.mxu0 %v235
      %308 = vmatprep.subr.mxu0 %v234
      %309 = vmatpush1.msra.mxu0 %v233
      %310 = vmatprep.subr.mxu0 0.0
      %311 = vmatpush2.msra.mxu0 0.0
      %312 = vmatprep.subr.mxu0 0.0
      %313 = vmatpush2.msra.mxu0 0.0
      %314 = vmatprep.subr.mxu0 0.0
      %315 = vmatpush2.msra.mxu0 0.0
      %316 = vmatprep.subr.mxu0 0.0
      %317 = vmatpush2.msra.mxu0 0.0
      %318 = vmatprep.subr.mxu0 0.0
      %319 = vmatpush2.msra.mxu0 0.0
      %320 = vmatprep.subr.mxu0 0.0
      %321 = vmatpush2.msra.mxu0 0.0
      %322 = vmatprep.subr.mxu0 0.0
      %323 = vmatpush2.msra.mxu0 0.0
      %324 = vmatprep.subr.mxu0 0.0
      %325 = vmatpush2.msra.mxu0 0.0
      %326 = vmatprep.subr.mxu0 0.0
      %327 = vmatpush2.msra.mxu0 0.0
      %328 = vmatprep.subr.mxu0 0.0
      %329 = vmatpush2.msra.mxu0 0.0
      %330 = vmatprep.subr.mxu0 0.0
      %331 = vmatpush2.msra.mxu0 0.0
      %332 = vmatprep.subr.mxu0 0.0
      %333 = vmatpush2.msra.mxu0 0.0
      %334 = vmatprep.subr.mxu0 0.0
      %335 = vmatpush2.msra.mxu0 0.0
      %336 = vmatprep.subr.mxu0 0.0
      %337 = vmatpush2.msra.mxu0 0.0
      %338 = vmatprep.subr.mxu0 0.0
      %339 = vmatpush2.msra.mxu0 0.0
      %340 = vmatprep.subr.mxu0 0.0
      %341 = vmatpush2.msra.mxu0 0.0
      %342 = vmatprep.mubr.f32.mxu0 0.0
      %343 = vmatmul.mubr.f32.gmra.mxu0 %v201
      %v344 = vpop.f32.mrf.mxu0
      %v345 = vadd.f32 %v271, %v344
      %v346 = vpop.f32.mrf.mxu0
      %v347 = vadd.f32 %v275, %v346
      %348 = vmatprep.mubr.f32.mxu0 0.0
      %349 = vmatmul.mubr.f32.gmra.mxu0 %v202
      %v350 = vpop.f32.mrf.mxu0
      %v351 = vadd.f32 %v271, %v350
      %v352 = vpop.f32.mrf.mxu0
      %v353 = vadd.f32 %v275, %v352
      %354 = vmatprep.mubr.f32.mxu0 0.0
      %355 = vmatmul.mubr.f32.gmra.mxu0 %v203
      %v356 = vpop.f32.mrf.mxu0
      %v357 = vadd.f32 %v271, %v356
      %v358 = vpop.f32.mrf.mxu0
      %v359 = vadd.f32 %v275, %v358
      %360 = vmatprep.mubr.f32.mxu0 0.0
      %361 = vmatmul.mubr.f32.gmra.mxu0 %v204
      %v362 = vpop.f32.mrf.mxu0
      %v363 = vadd.f32 %v271, %v362
      %v364 = vpop.f32.mrf.mxu0
      %v365 = vadd.f32 %v275, %v364
      %366 = vmatprep.mubr.f32.mxu0 0.0
      %367 = vmatmul.mubr.f32.gmra.mxu0 %v205
      %v368 = vpop.f32.mrf.mxu0
      %v369 = vadd.f32 %v271, %v368
      %v370 = vpop.f32.mrf.mxu0
      %v371 = vadd.f32 %v275, %v370
      %372 = vmatprep.mubr.f32.mxu0 0.0
      %373 = vmatmul.mubr.f32.gmra.mxu0 %v206
      %v374 = vpop.f32.mrf.mxu0
      %v375 = vadd.f32 %v271, %v374
      %v376 = vpop.f32.mrf.mxu0
      %v377 = vadd.f32 %v275, %v376
      %378 = vmatprep.mubr.f32.mxu0 0.0
      %379 = vmatmul.mubr.f32.gmra.mxu0 %v207
      %v380 = vpop.f32.mrf.mxu0
      %v381 = vadd.f32 %v271, %v380
      %v382 = vpop.f32.mrf.mxu0
      %v383 = vadd.f32 %v275, %v382
      %384 = vmatprep.mubr.f32.mxu0 0.0
      %385 = vmatmul.mubr.f32.gmra.mxu0 %v208
      %v386 = vpop.f32.mrf.mxu0
      %v387 = vadd.f32 %v271, %v386
      %v388 = vpop.f32.mrf.mxu0
      %v389 = vadd.f32 %v275, %v388
      %390 = vmatprep.mubr.f32.mxu0 0.0
      %391 = vmatmul.mubr.f32.gmra.mxu0 %v209
      %v392 = vpop.f32.mrf.mxu0
      %v393 = vadd.f32 %v271, %v392
      %v394 = vpop.f32.mrf.mxu0
      %v395 = vadd.f32 %v275, %v394
      %396 = vmatprep.mubr.f32.mxu0 0.0
      %397 = vmatmul.mubr.f32.gmra.mxu0 %v210
      %v398 = vpop.f32.mrf.mxu0
      %v399 = vadd.f32 %v271, %v398
      %v400 = vpop.f32.mrf.mxu0
      %v401 = vadd.f32 %v275, %v400
      %402 = vmatprep.mubr.f32.mxu0 0.0
      %403 = vmatmul.mubr.f32.gmra.mxu0 %v211
      %v404 = vpop.f32.mrf.mxu0
      %v405 = vadd.f32 %v271, %v404
      %v406 = vpop.f32.mrf.mxu0
      %v407 = vadd.f32 %v275, %v406
      %408 = vmatprep.mubr.f32.mxu0 0.0
      %409 = vmatmul.mubr.f32.gmra.mxu0 %v212
      %v410 = vpop.f32.mrf.mxu0
      %v411 = vadd.f32 %v271, %v410
      %v412 = vpop.f32.mrf.mxu0
      %v413 = vadd.f32 %v275, %v412
      %414 = vmatprep.mubr.f32.mxu0 0.0
      %415 = vmatmul.mubr.f32.gmra.mxu0 %v213
      %v416 = vpop.f32.mrf.mxu0
      %v417 = vadd.f32 %v271, %v416
      %v418 = vpop.f32.mrf.mxu0
      %v419 = vadd.f32 %v275, %v418
      %420 = vmatprep.mubr.f32.mxu0 0.0
      %421 = vmatmul.mubr.f32.gmra.mxu0 %v214
      %v422 = vpop.f32.mrf.mxu0
      %v423 = vadd.f32 %v271, %v422
      %v424 = vpop.f32.mrf.mxu0
      %v425 = vadd.f32 %v275, %v424
      %426 = vmatprep.mubr.f32.mxu0 0.0
      %427 = vmatmul.mubr.f32.gmra.mxu0 %v215
      %v428 = vpop.f32.mrf.mxu0
      %v429 = vadd.f32 %v271, %v428
      %v430 = vpop.f32.mrf.mxu0
      %v431 = vadd.f32 %v275, %v430
      %432 = vmatprep.mubr.f32.mxu0 0.0
      %433 = vmatmul.mubr.f32.gmra.mxu0 %v216
      %v434 = vpop.f32.mrf.mxu0
      %v435 = vadd.f32 %v271, %v434
      %v436 = vpop.f32.mrf.mxu0
      %v437 = vadd.f32 %v275, %v436
      %438 = vmatprep.mubr.f32.mxu0 0.0
      %439 = vmatmul.mubr.f32.gmra.mxu0 %v217
      %v440 = vpop.f32.mrf.mxu0
      %v441 = vadd.f32 %v271, %v440
      %v442 = vpop.f32.mrf.mxu0
      %v443 = vadd.f32 %v275, %v442
      %444 = vmatprep.mubr.f32.mxu0 0.0
      %445 = vmatmul.mubr.f32.gmra.mxu0 %v218
      %v446 = vpop.f32.mrf.mxu0
      %v447 = vadd.f32 %v271, %v446
      %v448 = vpop.f32.mrf.mxu0
      %v449 = vadd.f32 %v275, %v448
      %450 = vmatprep.mubr.f32.mxu0 0.0
      %451 = vmatmul.mubr.f32.gmra.mxu0 %v219
      %v452 = vpop.f32.mrf.mxu0
      %v453 = vadd.f32 %v271, %v452
      %v454 = vpop.f32.mrf.mxu0
      %v455 = vadd.f32 %v275, %v454
      %456 = vmatprep.mubr.f32.mxu0 0.0
      %457 = vmatmul.mubr.f32.gmra.mxu0 %v220
      %v458 = vpop.f32.mrf.mxu0
      %v459 = vadd.f32 %v271, %v458
      %v460 = vpop.f32.mrf.mxu0
      %v461 = vadd.f32 %v275, %v460
      %462 = vmatprep.mubr.f32.mxu0 0.0
      %463 = vmatmul.mubr.f32.gmra.mxu0 %v221
      %v464 = vpop.f32.mrf.mxu0
      %v465 = vadd.f32 %v271, %v464
      %v466 = vpop.f32.mrf.mxu0
      %v467 = vadd.f32 %v275, %v466
      %468 = vmatprep.mubr.f32.mxu0 0.0
      %469 = vmatmul.mubr.f32.gmra.mxu0 %v222
      %v470 = vpop.f32.mrf.mxu0
      %v471 = vadd.f32 %v271, %v470
      %v472 = vpop.f32.mrf.mxu0
      %v473 = vadd.f32 %v275, %v472
      %474 = vmatprep.mubr.f32.mxu0 0.0
      %475 = vmatmul.mubr.f32.gmra.mxu0 %v223
      %v476 = vpop.f32.mrf.mxu0
      %v477 = vadd.f32 %v271, %v476
      %v478 = vpop.f32.mrf.mxu0
      %v479 = vadd.f32 %v275, %v478
      %480 = vmatprep.mubr.f32.mxu0 0.0
      %481 = vmatmul.mubr.f32.gmra.mxu0 %v224
      %v482 = vpop.f32.mrf.mxu0
      %v483 = vadd.f32 %v271, %v482
      %v484 = vpop.f32.mrf.mxu0
      %v485 = vadd.f32 %v275, %v484
      %486 = vmatprep.mubr.f32.mxu0 0.0
      %487 = vmatmul.mubr.f32.gmra.mxu0 %v225
      %v488 = vpop.f32.mrf.mxu0
      %v489 = vadd.f32 %v271, %v488
      %v490 = vpop.f32.mrf.mxu0
      %v491 = vadd.f32 %v275, %v490
      %492 = vmatprep.mubr.f32.mxu0 0.0
      %493 = vmatmul.mubr.f32.gmra.mxu0 %v226
      %v494 = vpop.f32.mrf.mxu0
      %v495 = vadd.f32 %v271, %v494
      %v496 = vpop.f32.mrf.mxu0
      %v497 = vadd.f32 %v275, %v496
      %498 = vmatprep.mubr.f32.mxu0 0.0
      %499 = vmatmul.mubr.f32.gmra.mxu0 %v227
      %v500 = vpop.f32.mrf.mxu0
      %v501 = vadd.f32 %v271, %v500
      %v502 = vpop.f32.mrf.mxu0
      %v503 = vadd.f32 %v275, %v502
      %504 = vmatprep.mubr.f32.mxu0 0.0
      %505 = vmatmul.mubr.f32.gmra.mxu0 %v228
      %v506 = vpop.f32.mrf.mxu0
      %v507 = vadd.f32 %v271, %v506
      %v508 = vpop.f32.mrf.mxu0
      %v509 = vadd.f32 %v275, %v508
      %510 = vmatprep.mubr.f32.mxu0 0.0
      %511 = vmatmul.mubr.f32.gmra.mxu0 %v229
      %v512 = vpop.f32.mrf.mxu0
      %v513 = vadd.f32 %v271, %v512
      %v514 = vpop.f32.mrf.mxu0
      %v515 = vadd.f32 %v275, %v514
      %516 = vmatprep.mubr.f32.mxu0 0.0
      %517 = vmatmul.mubr.f32.gmra.mxu0 %v230
      %v518 = vpop.f32.mrf.mxu0
      %v519 = vadd.f32 %v271, %v518
      %v520 = vpop.f32.mrf.mxu0
      %v521 = vadd.f32 %v275, %v520
      %522 = vmatprep.mubr.f32.mxu0 0.0
      %523 = vmatmul.mubr.f32.gmra.mxu0 %v231
      %v524 = vpop.f32.mrf.mxu0
      %v525 = vadd.f32 %v271, %v524
      %v526 = vpop.f32.mrf.mxu0
      %v527 = vadd.f32 %v275, %v526
      %528 = vmatprep.mubr.f32.mxu0 0.0
      %529 = vmatmul.mubr.f32.gmra.mxu0 %v232
      %v530 = vpop.f32.mrf.mxu0
      %v531 = vadd.f32 %v271, %v530
      %v532 = vpop.f32.mrf.mxu0
      %v533 = vadd.f32 %v275, %v532
      %534 = vdwg.mxu0
      %v535 = vmax.f32 %v345, 0.0
      %v536 = vmax.f32 %v347, 0.0
      %v537 = vmax.f32 %v351, 0.0
      %v538 = vmax.f32 %v353, 0.0
      %v539 = vmax.f32 %v357, 0.0
      %v540 = vmax.f32 %v359, 0.0
      %v541 = vmax.f32 %v363, 0.0
      %v542 = vmax.f32 %v365, 0.0
      %v543 = vmax.f32 %v369, 0.0
      %v544 = vmax.f32 %v371, 0.0
      %v545 = vmax.f32 %v375, 0.0
      %v546 = vmax.f32 %v377, 0.0
      %v547 = vmax.f32 %v381, 0.0
      %v548 = vmax.f32 %v383, 0.0
      %v549 = vmax.f32 %v387, 0.0
      %v550 = vmax.f32 %v389, 0.0
      %v551 = vmax.f32 %v393, 0.0
      %v552 = vmax.f32 %v395, 0.0
      %v553 = vmax.f32 %v399, 0.0
      %v554 = vmax.f32 %v401, 0.0
      %v555 = vmax.f32 %v405, 0.0
      %v556 = vmax.f32 %v407, 0.0
      %v557 = vmax.f32 %v411, 0.0
      %v558 = vmax.f32 %v413, 0.0
      %v559 = vmax.f32 %v417, 0.0
      %v560 = vmax.f32 %v419, 0.0
      %v561 = vmax.f32 %v423, 0.0
      %v562 = vmax.f32 %v425, 0.0
      %v563 = vmax.f32 %v429, 0.0
      %v564 = vmax.f32 %v431, 0.0
      %v565 = vmax.f32 %v435, 0.0
      %v566 = vmax.f32 %v437, 0.0
      %v567 = vmax.f32 %v441, 0.0
      %v568 = vmax.f32 %v443, 0.0
      %v569 = vmax.f32 %v447, 0.0
      %v570 = vmax.f32 %v449, 0.0
      %v571 = vmax.f32 %v453, 0.0
      %v572 = vmax.f32 %v455, 0.0
      %v573 = vmax.f32 %v459, 0.0
      %v574 = vmax.f32 %v461, 0.0
      %v575 = vmax.f32 %v465, 0.0
      %v576 = vmax.f32 %v467, 0.0
      %v577 = vmax.f32 %v471, 0.0
      %v578 = vmax.f32 %v473, 0.0
      %v579 = vmax.f32 %v477, 0.0
      %v580 = vmax.f32 %v479, 0.0
      %v581 = vmax.f32 %v483, 0.0
      %v582 = vmax.f32 %v485, 0.0
      %v583 = vmax.f32 %v489, 0.0
      %v584 = vmax.f32 %v491, 0.0
      %v585 = vmax.f32 %v495, 0.0
      %v586 = vmax.f32 %v497, 0.0
      %v587 = vmax.f32 %v501, 0.0
      %v588 = vmax.f32 %v503, 0.0
      %v589 = vmax.f32 %v507, 0.0
      %v590 = vmax.f32 %v509, 0.0
      %v591 = vmax.f32 %v513, 0.0
      %v592 = vmax.f32 %v515, 0.0
      %v593 = vmax.f32 %v519, 0.0
      %v594 = vmax.f32 %v521, 0.0
      %v595 = vmax.f32 %v525, 0.0
      %v596 = vmax.f32 %v527, 0.0
      %v597 = vmax.f32 %v531, 0.0
      %v598 = vmax.f32 %v533, 0.0
      %vm599 = vcmask 261120
      %v600 = vsel %vm599, %v535, 0.0
      %601 = vadd.xlane.f32.xlu0 %v600
      %v602 = vpop.xlane.xlu0 %601
      %v603 = vsel %vm599, %v537, 0.0
      %604 = vadd.xlane.f32.xlu0 %v603
      %v605 = vpop.xlane.xlu0 %604
      %v606 = vsel %vm599, %v539, 0.0
      %607 = vadd.xlane.f32.xlu0 %v606
      %v608 = vpop.xlane.xlu0 %607
      %v609 = vsel %vm599, %v541, 0.0
      %610 = vadd.xlane.f32.xlu0 %v609
      %v611 = vpop.xlane.xlu0 %610
      %v612 = vsel %vm599, %v543, 0.0
      %613 = vadd.xlane.f32.xlu0 %v612
      %v614 = vpop.xlane.xlu0 %613
      %v615 = vsel %vm599, %v545, 0.0
      %616 = vadd.xlane.f32.xlu0 %v615
      %v617 = vpop.xlane.xlu0 %616
      %v618 = vsel %vm599, %v547, 0.0
      %619 = vadd.xlane.f32.xlu0 %v618
      %v620 = vpop.xlane.xlu0 %619
      %v621 = vsel %vm599, %v549, 0.0
      %622 = vadd.xlane.f32.xlu0 %v621
      %v623 = vpop.xlane.xlu0 %622
      %v624 = vsel %vm599, %v551, 0.0
      %625 = vadd.xlane.f32.xlu0 %v624
      %v626 = vpop.xlane.xlu0 %625
      %v627 = vsel %vm599, %v553, 0.0
      %628 = vadd.xlane.f32.xlu0 %v627
      %v629 = vpop.xlane.xlu0 %628
      %v630 = vsel %vm599, %v555, 0.0
      %631 = vadd.xlane.f32.xlu0 %v630
      %v632 = vpop.xlane.xlu0 %631
      %v633 = vsel %vm599, %v557, 0.0
      %634 = vadd.xlane.f32.xlu0 %v633
      %v635 = vpop.xlane.xlu0 %634
      %v636 = vsel %vm599, %v559, 0.0
      %637 = vadd.xlane.f32.xlu0 %v636
      %v638 = vpop.xlane.xlu0 %637
      %v639 = vsel %vm599, %v561, 0.0
      %640 = vadd.xlane.f32.xlu0 %v639
      %v641 = vpop.xlane.xlu0 %640
      %v642 = vsel %vm599, %v563, 0.0
      %643 = vadd.xlane.f32.xlu0 %v642
      %v644 = vpop.xlane.xlu0 %643
      %v645 = vsel %vm599, %v565, 0.0
      %646 = vadd.xlane.f32.xlu0 %v645
      %v647 = vpop.xlane.xlu0 %646
      %v648 = vsel %vm599, %v567, 0.0
      %649 = vadd.xlane.f32.xlu0 %v648
      %v650 = vpop.xlane.xlu0 %649
      %v651 = vsel %vm599, %v569, 0.0
      %652 = vadd.xlane.f32.xlu0 %v651
      %v653 = vpop.xlane.xlu0 %652
      %v654 = vsel %vm599, %v571, 0.0
      %655 = vadd.xlane.f32.xlu0 %v654
      %v656 = vpop.xlane.xlu0 %655
      %v657 = vsel %vm599, %v573, 0.0
      %658 = vadd.xlane.f32.xlu0 %v657
      %v659 = vpop.xlane.xlu0 %658
      %v660 = vsel %vm599, %v575, 0.0
      %661 = vadd.xlane.f32.xlu0 %v660
      %v662 = vpop.xlane.xlu0 %661
      %v663 = vsel %vm599, %v577, 0.0
      %664 = vadd.xlane.f32.xlu0 %v663
      %v665 = vpop.xlane.xlu0 %664
      %v666 = vsel %vm599, %v579, 0.0
      %667 = vadd.xlane.f32.xlu0 %v666
      %v668 = vpop.xlane.xlu0 %667
      %v669 = vsel %vm599, %v581, 0.0
      %670 = vadd.xlane.f32.xlu0 %v669
      %v671 = vpop.xlane.xlu0 %670
      %v672 = vsel %vm599, %v583, 0.0
      %673 = vadd.xlane.f32.xlu0 %v672
      %v674 = vpop.xlane.xlu0 %673
      %v675 = vsel %vm599, %v585, 0.0
      %676 = vadd.xlane.f32.xlu0 %v675
      %v677 = vpop.xlane.xlu0 %676
      %v678 = vsel %vm599, %v587, 0.0
      %679 = vadd.xlane.f32.xlu0 %v678
      %v680 = vpop.xlane.xlu0 %679
      %v681 = vsel %vm599, %v589, 0.0
      %682 = vadd.xlane.f32.xlu0 %v681
      %v683 = vpop.xlane.xlu0 %682
      %v684 = vsel %vm599, %v591, 0.0
      %685 = vadd.xlane.f32.xlu0 %v684
      %v686 = vpop.xlane.xlu0 %685
      %v687 = vsel %vm599, %v593, 0.0
      %688 = vadd.xlane.f32.xlu0 %v687
      %v689 = vpop.xlane.xlu0 %688
      %v690 = vsel %vm599, %v595, 0.0
      %691 = vadd.xlane.f32.xlu0 %v690
      %v692 = vpop.xlane.xlu0 %691
      %v693 = vsel %vm599, %v597, 0.0
      %694 = vadd.xlane.f32.xlu0 %v693
      %v695 = vpop.xlane.xlu0 %694
      %v696 = vrcp.pop 32.0
      %v697 = vmul.f32 %v602, %v696
      %v698 = vmul.f32 %v605, %v696
      %v699 = vmul.f32 %v608, %v696
      %v700 = vmul.f32 %v611, %v696
      %v701 = vmul.f32 %v614, %v696
      %v702 = vmul.f32 %v617, %v696
      %v703 = vmul.f32 %v620, %v696
      %v704 = vmul.f32 %v623, %v696
      %v705 = vmul.f32 %v626, %v696
      %v706 = vmul.f32 %v629, %v696
      %v707 = vmul.f32 %v632, %v696
      %v708 = vmul.f32 %v635, %v696
      %v709 = vmul.f32 %v638, %v696
      %v710 = vmul.f32 %v641, %v696
      %v711 = vmul.f32 %v644, %v696
      %v712 = vmul.f32 %v647, %v696
      %v713 = vmul.f32 %v650, %v696
      %v714 = vmul.f32 %v653, %v696
      %v715 = vmul.f32 %v656, %v696
      %v716 = vmul.f32 %v659, %v696
      %v717 = vmul.f32 %v662, %v696
      %v718 = vmul.f32 %v665, %v696
      %v719 = vmul.f32 %v668, %v696
      %v720 = vmul.f32 %v671, %v696
      %v721 = vmul.f32 %v674, %v696
      %v722 = vmul.f32 %v677, %v696
      %v723 = vmul.f32 %v680, %v696
      %v724 = vmul.f32 %v683, %v696
      %v725 = vmul.f32 %v686, %v696
      %v726 = vmul.f32 %v689, %v696
      %v727 = vmul.f32 %v692, %v696
      %v728 = vmul.f32 %v695, %v696
      %v729 = vsub.f32 %v535, %v697
      %v730 = vsub.f32 %v537, %v698
      %v731 = vsub.f32 %v539, %v699
      %v732 = vsub.f32 %v541, %v700
      %v733 = vsub.f32 %v543, %v701
      %v734 = vsub.f32 %v545, %v702
      %v735 = vsub.f32 %v547, %v703
      %v736 = vsub.f32 %v549, %v704
      %v737 = vsub.f32 %v551, %v705
      %v738 = vsub.f32 %v553, %v706
      %v739 = vsub.f32 %v555, %v707
      %v740 = vsub.f32 %v557, %v708
      %v741 = vsub.f32 %v559, %v709
      %v742 = vsub.f32 %v561, %v710
      %v743 = vsub.f32 %v563, %v711
      %v744 = vsub.f32 %v565, %v712
      %v745 = vsub.f32 %v567, %v713
      %v746 = vsub.f32 %v569, %v714
      %v747 = vsub.f32 %v571, %v715
      %v748 = vsub.f32 %v573, %v716
      %v749 = vsub.f32 %v575, %v717
      %v750 = vsub.f32 %v577, %v718
      %v751 = vsub.f32 %v579, %v719
      %v752 = vsub.f32 %v581, %v720
      %v753 = vsub.f32 %v583, %v721
      %v754 = vsub.f32 %v585, %v722
      %v755 = vsub.f32 %v587, %v723
      %v756 = vsub.f32 %v589, %v724
      %v757 = vsub.f32 %v591, %v725
      %v758 = vsub.f32 %v593, %v726
      %v759 = vsub.f32 %v595, %v727
      %v760 = vsub.f32 %v597, %v728
      %v761 = vmul.f32 %v729, %v729
      %v762 = vmul.f32 %v730, %v730
      %v763 = vmul.f32 %v731, %v731
      %v764 = vmul.f32 %v732, %v732
      %v765 = vmul.f32 %v733, %v733
      %v766 = vmul.f32 %v734, %v734
      %v767 = vmul.f32 %v735, %v735
      %v768 = vmul.f32 %v736, %v736
      %v769 = vmul.f32 %v737, %v737
      %v770 = vmul.f32 %v738, %v738
      %v771 = vmul.f32 %v739, %v739
      %v772 = vmul.f32 %v740, %v740
      %v773 = vmul.f32 %v741, %v741
      %v774 = vmul.f32 %v742, %v742
      %v775 = vmul.f32 %v743, %v743
      %v776 = vmul.f32 %v744, %v744
      %v777 = vmul.f32 %v745, %v745
      %v778 = vmul.f32 %v746, %v746
      %v779 = vmul.f32 %v747, %v747
      %v780 = vmul.f32 %v748, %v748
      %v781 = vmul.f32 %v749, %v749
      %v782 = vmul.f32 %v750, %v750
      %v783 = vmul.f32 %v751, %v751
      %v784 = vmul.f32 %v752, %v752
      %v785 = vmul.f32 %v753, %v753
      %v786 = vmul.f32 %v754, %v754
      %v787 = vmul.f32 %v755, %v755
      %v788 = vmul.f32 %v756, %v756
      %v789 = vmul.f32 %v757, %v757
      %v790 = vmul.f32 %v758, %v758
      %v791 = vmul.f32 %v759, %v759
      %v792 = vmul.f32 %v760, %v760
      %v793 = vsel %vm599, %v761, 0.0
      %794 = vadd.xlane.f32.xlu0 %v793
      %v795 = vpop.xlane.xlu0 %794
      %v796 = vsel %vm599, %v762, 0.0
      %797 = vadd.xlane.f32.xlu0 %v796
      %v798 = vpop.xlane.xlu0 %797
      %v799 = vsel %vm599, %v763, 0.0
      %800 = vadd.xlane.f32.xlu0 %v799
      %v801 = vpop.xlane.xlu0 %800
      %v802 = vsel %vm599, %v764, 0.0
      %803 = vadd.xlane.f32.xlu0 %v802
      %v804 = vpop.xlane.xlu0 %803
      %v805 = vsel %vm599, %v765, 0.0
      %806 = vadd.xlane.f32.xlu0 %v805
      %v807 = vpop.xlane.xlu0 %806
      %v808 = vsel %vm599, %v766, 0.0
      %809 = vadd.xlane.f32.xlu0 %v808
      %v810 = vpop.xlane.xlu0 %809
      %v811 = vsel %vm599, %v767, 0.0
      %812 = vadd.xlane.f32.xlu0 %v811
      %v813 = vpop.xlane.xlu0 %812
      %v814 = vsel %vm599, %v768, 0.0
      %815 = vadd.xlane.f32.xlu0 %v814
      %v816 = vpop.xlane.xlu0 %815
      %v817 = vsel %vm599, %v769, 0.0
      %818 = vadd.xlane.f32.xlu0 %v817
      %v819 = vpop.xlane.xlu0 %818
      %v820 = vsel %vm599, %v770, 0.0
      %821 = vadd.xlane.f32.xlu0 %v820
      %v822 = vpop.xlane.xlu0 %821
      %v823 = vsel %vm599, %v771, 0.0
      %824 = vadd.xlane.f32.xlu0 %v823
      %v825 = vpop.xlane.xlu0 %824
      %v826 = vsel %vm599, %v772, 0.0
      %827 = vadd.xlane.f32.xlu0 %v826
      %v828 = vpop.xlane.xlu0 %827
      %v829 = vsel %vm599, %v773, 0.0
      %830 = vadd.xlane.f32.xlu0 %v829
      %v831 = vpop.xlane.xlu0 %830
      %v832 = vsel %vm599, %v774, 0.0
      %833 = vadd.xlane.f32.xlu0 %v832
      %v834 = vpop.xlane.xlu0 %833
      %v835 = vsel %vm599, %v775, 0.0
      %836 = vadd.xlane.f32.xlu0 %v835
      %v837 = vpop.xlane.xlu0 %836
      %v838 = vsel %vm599, %v776, 0.0
      %839 = vadd.xlane.f32.xlu0 %v838
      %v840 = vpop.xlane.xlu0 %839
      %v841 = vsel %vm599, %v777, 0.0
      %842 = vadd.xlane.f32.xlu0 %v841
      %v843 = vpop.xlane.xlu0 %842
      %v844 = vsel %vm599, %v778, 0.0
      %845 = vadd.xlane.f32.xlu0 %v844
      %v846 = vpop.xlane.xlu0 %845
      %v847 = vsel %vm599, %v779, 0.0
      %848 = vadd.xlane.f32.xlu0 %v847
      %v849 = vpop.xlane.xlu0 %848
      %v850 = vsel %vm599, %v780, 0.0
      %851 = vadd.xlane.f32.xlu0 %v850
      %v852 = vpop.xlane.xlu0 %851
      %v853 = vsel %vm599, %v781, 0.0
      %854 = vadd.xlane.f32.xlu0 %v853
      %v855 = vpop.xlane.xlu0 %854
      %v856 = vsel %vm599, %v782, 0.0
      %857 = vadd.xlane.f32.xlu0 %v856
      %v858 = vpop.xlane.xlu0 %857
      %v859 = vsel %vm599, %v783, 0.0
      %860 = vadd.xlane.f32.xlu0 %v859
      %v861 = vpop.xlane.xlu0 %860
      %v862 = vsel %vm599, %v784, 0.0
      %863 = vadd.xlane.f32.xlu0 %v862
      %v864 = vpop.xlane.xlu0 %863
      %v865 = vsel %vm599, %v785, 0.0
      %866 = vadd.xlane.f32.xlu0 %v865
      %v867 = vpop.xlane.xlu0 %866
      %v868 = vsel %vm599, %v786, 0.0
      %869 = vadd.xlane.f32.xlu0 %v868
      %v870 = vpop.xlane.xlu0 %869
      %v871 = vsel %vm599, %v787, 0.0
      %872 = vadd.xlane.f32.xlu0 %v871
      %v873 = vpop.xlane.xlu0 %872
      %v874 = vsel %vm599, %v788, 0.0
      %875 = vadd.xlane.f32.xlu0 %v874
      %v876 = vpop.xlane.xlu0 %875
      %v877 = vsel %vm599, %v789, 0.0
      %878 = vadd.xlane.f32.xlu0 %v877
      %v879 = vpop.xlane.xlu0 %878
      %v880 = vsel %vm599, %v790, 0.0
      %881 = vadd.xlane.f32.xlu0 %v880
      %v882 = vpop.xlane.xlu0 %881
      %v883 = vsel %vm599, %v791, 0.0
      %884 = vadd.xlane.f32.xlu0 %v883
      %v885 = vpop.xlane.xlu0 %884
      %v886 = vsel %vm599, %v792, 0.0
      %887 = vadd.xlane.f32.xlu0 %v886
      %v888 = vpop.xlane.xlu0 %887
      %v889 = vmul.f32 %v795, %v696
      %v890 = vmul.f32 %v798, %v696
      %v891 = vmul.f32 %v801, %v696
      %v892 = vmul.f32 %v804, %v696
      %v893 = vmul.f32 %v807, %v696
      %v894 = vmul.f32 %v810, %v696
      %v895 = vmul.f32 %v813, %v696
      %v896 = vmul.f32 %v816, %v696
      %v897 = vmul.f32 %v819, %v696
      %v898 = vmul.f32 %v822, %v696
      %v899 = vmul.f32 %v825, %v696
      %v900 = vmul.f32 %v828, %v696
      %v901 = vmul.f32 %v831, %v696
      %v902 = vmul.f32 %v834, %v696
      %v903 = vmul.f32 %v837, %v696
      %v904 = vmul.f32 %v840, %v696
      %v905 = vmul.f32 %v843, %v696
      %v906 = vmul.f32 %v846, %v696
      %v907 = vmul.f32 %v849, %v696
      %v908 = vmul.f32 %v852, %v696
      %v909 = vmul.f32 %v855, %v696
      %v910 = vmul.f32 %v858, %v696
      %v911 = vmul.f32 %v861, %v696
      %v912 = vmul.f32 %v864, %v696
      %v913 = vmul.f32 %v867, %v696
      %v914 = vmul.f32 %v870, %v696
      %v915 = vmul.f32 %v873, %v696
      %v916 = vmul.f32 %v876, %v696
      %v917 = vmul.f32 %v879, %v696
      %v918 = vmul.f32 %v882, %v696
      %v919 = vmul.f32 %v885, %v696
      %v920 = vmul.f32 %v888, %v696
      %v921 = vadd.f32 %v889, 1e-05
      %v922 = vadd.f32 %v890, 1e-05
      %v923 = vadd.f32 %v891, 1e-05
      %v924 = vadd.f32 %v892, 1e-05
      %v925 = vadd.f32 %v893, 1e-05
      %v926 = vadd.f32 %v894, 1e-05
      %v927 = vadd.f32 %v895, 1e-05
      %v928 = vadd.f32 %v896, 1e-05
      %v929 = vadd.f32 %v897, 1e-05
      %v930 = vadd.f32 %v898, 1e-05
      %v931 = vadd.f32 %v899, 1e-05
      %v932 = vadd.f32 %v900, 1e-05
      %v933 = vadd.f32 %v901, 1e-05
      %v934 = vadd.f32 %v902, 1e-05
      %v935 = vadd.f32 %v903, 1e-05
      %v936 = vadd.f32 %v904, 1e-05
      %v937 = vadd.f32 %v905, 1e-05
      %v938 = vadd.f32 %v906, 1e-05
      %v939 = vadd.f32 %v907, 1e-05
      %v940 = vadd.f32 %v908, 1e-05
      %v941 = vadd.f32 %v909, 1e-05
      %v942 = vadd.f32 %v910, 1e-05
      %v943 = vadd.f32 %v911, 1e-05
      %v944 = vadd.f32 %v912, 1e-05
      %v945 = vadd.f32 %v913, 1e-05
      %v946 = vadd.f32 %v914, 1e-05
      %v947 = vadd.f32 %v915, 1e-05
      %v948 = vadd.f32 %v916, 1e-05
      %v949 = vadd.f32 %v917, 1e-05
      %v950 = vadd.f32 %v918, 1e-05
      %v951 = vadd.f32 %v919, 1e-05
      %v952 = vadd.f32 %v920, 1e-05
      %v953 = vrsqrt.pop %v921
      %v954 = vrsqrt.pop %v922
      %v955 = vrsqrt.pop %v923
      %v956 = vrsqrt.pop %v924
      %v957 = vrsqrt.pop %v925
      %v958 = vrsqrt.pop %v926
      %v959 = vrsqrt.pop %v927
      %v960 = vrsqrt.pop %v928
      %v961 = vrsqrt.pop %v929
      %v962 = vrsqrt.pop %v930
      %v963 = vrsqrt.pop %v931
      %v964 = vrsqrt.pop %v932
      %v965 = vrsqrt.pop %v933
      %v966 = vrsqrt.pop %v934
      %v967 = vrsqrt.pop %v935
      %v968 = vrsqrt.pop %v936
      %v969 = vrsqrt.pop %v937
      %v970 = vrsqrt.pop %v938
      %v971 = vrsqrt.pop %v939
      %v972 = vrsqrt.pop %v940
      %v973 = vrsqrt.pop %v941
      %v974 = vrsqrt.pop %v942
      %v975 = vrsqrt.pop %v943
      %v976 = vrsqrt.pop %v944
      %v977 = vrsqrt.pop %v945
      %v978 = vrsqrt.pop %v946
      %v979 = vrsqrt.pop %v947
      %v980 = vrsqrt.pop %v948
      %v981 = vrsqrt.pop %v949
      %v982 = vrsqrt.pop %v950
      %v983 = vrsqrt.pop %v951
      %v984 = vrsqrt.pop %v952
      %v985 = vmul.f32 %v729, %v953
      %v986 = vmul.f32 %v730, %v954
      %v987 = vmul.f32 %v731, %v955
      %v988 = vmul.f32 %v732, %v956
      %v989 = vmul.f32 %v733, %v957
      %v990 = vmul.f32 %v734, %v958
      %v991 = vmul.f32 %v735, %v959
      %v992 = vmul.f32 %v736, %v960
      %v993 = vmul.f32 %v737, %v961
      %v994 = vmul.f32 %v738, %v962
      %v995 = vmul.f32 %v739, %v963
      %v996 = vmul.f32 %v740, %v964
      %v997 = vmul.f32 %v741, %v965
      %v998 = vmul.f32 %v742, %v966
      %v999 = vmul.f32 %v743, %v967
      %v1000 = vmul.f32 %v744, %v968
      %v1001 = vmul.f32 %v745, %v969
      %v1002 = vmul.f32 %v746, %v970
      %v1003 = vmul.f32 %v747, %v971
      %v1004 = vmul.f32 %v748, %v972
      %v1005 = vmul.f32 %v749, %v973
      %v1006 = vmul.f32 %v750, %v974
      %v1007 = vmul.f32 %v751, %v975
      %v1008 = vmul.f32 %v752, %v976
      %v1009 = vmul.f32 %v753, %v977
      %v1010 = vmul.f32 %v754, %v978
      %v1011 = vmul.f32 %v755, %v979
      %v1012 = vmul.f32 %v756, %v980
      %v1013 = vmul.f32 %v757, %v981
      %v1014 = vmul.f32 %v758, %v982
      %v1015 = vmul.f32 %v759, %v983
      %v1016 = vmul.f32 %v760, %v984
      %v1017 = vadd.f32 %v985, 0.0
      %v1018 = vadd.f32 %v986, 0.0
      %v1019 = vadd.f32 %v987, 0.0
      %v1020 = vadd.f32 %v988, 0.0
      %v1021 = vadd.f32 %v989, 0.0
      %v1022 = vadd.f32 %v990, 0.0
      %v1023 = vadd.f32 %v991, 0.0
      %v1024 = vadd.f32 %v992, 0.0
      %v1025 = vadd.f32 %v993, 0.0
      %v1026 = vadd.f32 %v994, 0.0
      %v1027 = vadd.f32 %v995, 0.0
      %v1028 = vadd.f32 %v996, 0.0
      %v1029 = vadd.f32 %v997, 0.0
      %v1030 = vadd.f32 %v998, 0.0
      %v1031 = vadd.f32 %v999, 0.0
      %v1032 = vadd.f32 %v1000, 0.0
      %v1033 = vadd.f32 %v1001, 0.0
      %v1034 = vadd.f32 %v1002, 0.0
      %v1035 = vadd.f32 %v1003, 0.0
      %v1036 = vadd.f32 %v1004, 0.0
      %v1037 = vadd.f32 %v1005, 0.0
      %v1038 = vadd.f32 %v1006, 0.0
      %v1039 = vadd.f32 %v1007, 0.0
      %v1040 = vadd.f32 %v1008, 0.0
      %v1041 = vadd.f32 %v1009, 0.0
      %v1042 = vadd.f32 %v1010, 0.0
      %v1043 = vadd.f32 %v1011, 0.0
      %v1044 = vadd.f32 %v1012, 0.0
      %v1045 = vadd.f32 %v1013, 0.0
      %v1046 = vadd.f32 %v1014, 0.0
      %v1047 = vadd.f32 %v1015, 0.0
      %v1048 = vadd.f32 %v1016, 0.0
      %1081 = vrot.lane.b32.xlu0 %v535, 96
      %v1082 = vpop.permute.xlu0 %1081
      %1083 = vrot.lane.b32.xlu0 %v537, 96
      %v1084 = vpop.permute.xlu0 %1083
      %1085 = vrot.lane.b32.xlu0 %v539, 96
      %v1086 = vpop.permute.xlu0 %1085
      %1087 = vrot.lane.b32.xlu0 %v541, 96
      %v1088 = vpop.permute.xlu0 %1087
      %1089 = vrot.lane.b32.xlu0 %v543, 96
      %v1090 = vpop.permute.xlu0 %1089
      %1091 = vrot.lane.b32.xlu0 %v545, 96
      %v1092 = vpop.permute.xlu0 %1091
      %1093 = vrot.lane.b32.xlu0 %v547, 96
      %v1094 = vpop.permute.xlu0 %1093
      %1095 = vrot.lane.b32.xlu0 %v549, 96
      %v1096 = vpop.permute.xlu0 %1095
      %1097 = vrot.lane.b32.xlu0 %v551, 96
      %v1098 = vpop.permute.xlu0 %1097
      %1099 = vrot.lane.b32.xlu0 %v553, 96
      %v1100 = vpop.permute.xlu0 %1099
      %1101 = vrot.lane.b32.xlu0 %v555, 96
      %v1102 = vpop.permute.xlu0 %1101
      %1103 = vrot.lane.b32.xlu0 %v557, 96
      %v1104 = vpop.permute.xlu0 %1103
      %1105 = vrot.lane.b32.xlu0 %v559, 96
      %v1106 = vpop.permute.xlu0 %1105
      %1107 = vrot.lane.b32.xlu0 %v561, 96
      %v1108 = vpop.permute.xlu0 %1107
      %1109 = vrot.lane.b32.xlu0 %v563, 96
      %v1110 = vpop.permute.xlu0 %1109
      %1111 = vrot.lane.b32.xlu0 %v565, 96
      %v1112 = vpop.permute.xlu0 %1111
      %1113 = vrot.lane.b32.xlu0 %v567, 96
      %v1114 = vpop.permute.xlu0 %1113
      %1115 = vrot.lane.b32.xlu0 %v569, 96
      %v1116 = vpop.permute.xlu0 %1115
      %1117 = vrot.lane.b32.xlu0 %v571, 96
      %v1118 = vpop.permute.xlu0 %1117
      %1119 = vrot.lane.b32.xlu0 %v573, 96
      %v1120 = vpop.permute.xlu0 %1119
      %1121 = vrot.lane.b32.xlu0 %v575, 96
      %v1122 = vpop.permute.xlu0 %1121
      %1123 = vrot.lane.b32.xlu0 %v577, 96
      %v1124 = vpop.permute.xlu0 %1123
      %1125 = vrot.lane.b32.xlu0 %v579, 96
      %v1126 = vpop.permute.xlu0 %1125
      %1127 = vrot.lane.b32.xlu0 %v581, 96
      %v1128 = vpop.permute.xlu0 %1127
      %1129 = vrot.lane.b32.xlu0 %v583, 96
      %v1130 = vpop.permute.xlu0 %1129
      %1131 = vrot.lane.b32.xlu0 %v585, 96
      %v1132 = vpop.permute.xlu0 %1131
      %1133 = vrot.lane.b32.xlu0 %v587, 96
      %v1134 = vpop.permute.xlu0 %1133
      %1135 = vrot.lane.b32.xlu0 %v589, 96
      %v1136 = vpop.permute.xlu0 %1135
      %1137 = vrot.lane.b32.xlu0 %v591, 96
      %v1138 = vpop.permute.xlu0 %1137
      %1139 = vrot.lane.b32.xlu0 %v593, 96
      %v1140 = vpop.permute.xlu0 %1139
      %1141 = vrot.lane.b32.xlu0 %v595, 96
      %v1142 = vpop.permute.xlu0 %1141
      %1143 = vrot.lane.b32.xlu0 %v597, 96
      %v1144 = vpop.permute.xlu0 %1143
      %v1177 = vsel %vm599, %v1082, 0.0
      %1178 = vadd.xlane.f32.xlu0 %v1177
      %v1179 = vpop.xlane.xlu0 %1178
      %v1180 = vsel %vm599, %v1084, 0.0
      %1181 = vadd.xlane.f32.xlu0 %v1180
      %v1182 = vpop.xlane.xlu0 %1181
      %v1183 = vsel %vm599, %v1086, 0.0
      %1184 = vadd.xlane.f32.xlu0 %v1183
      %v1185 = vpop.xlane.xlu0 %1184
      %v1186 = vsel %vm599, %v1088, 0.0
      %1187 = vadd.xlane.f32.xlu0 %v1186
      %v1188 = vpop.xlane.xlu0 %1187
      %v1189 = vsel %vm599, %v1090, 0.0
      %1190 = vadd.xlane.f32.xlu0 %v1189
      %v1191 = vpop.xlane.xlu0 %1190
      %v1192 = vsel %vm599, %v1092, 0.0
      %1193 = vadd.xlane.f32.xlu0 %v1192
      %v1194 = vpop.xlane.xlu0 %1193
      %v1195 = vsel %vm599, %v1094, 0.0
      %1196 = vadd.xlane.f32.xlu0 %v1195
      %v1197 = vpop.xlane.xlu0 %1196
      %v1198 = vsel %vm599, %v1096, 0.0
      %1199 = vadd.xlane.f32.xlu0 %v1198
      %v1200 = vpop.xlane.xlu0 %1199
      %v1201 = vsel %vm599, %v1098, 0.0
      %1202 = vadd.xlane.f32.xlu0 %v1201
      %v1203 = vpop.xlane.xlu0 %1202
      %v1204 = vsel %vm599, %v1100, 0.0
      %1205 = vadd.xlane.f32.xlu0 %v1204
      %v1206 = vpop.xlane.xlu0 %1205
      %v1207 = vsel %vm599, %v1102, 0.0
      %1208 = vadd.xlane.f32.xlu0 %v1207
      %v1209 = vpop.xlane.xlu0 %1208
      %v1210 = vsel %vm599, %v1104, 0.0
      %1211 = vadd.xlane.f32.xlu0 %v1210
      %v1212 = vpop.xlane.xlu0 %1211
      %v1213 = vsel %vm599, %v1106, 0.0
      %1214 = vadd.xlane.f32.xlu0 %v1213
      %v1215 = vpop.xlane.xlu0 %1214
      %v1216 = vsel %vm599, %v1108, 0.0
      %1217 = vadd.xlane.f32.xlu0 %v1216
      %v1218 = vpop.xlane.xlu0 %1217
      %v1219 = vsel %vm599, %v1110, 0.0
      %1220 = vadd.xlane.f32.xlu0 %v1219
      %v1221 = vpop.xlane.xlu0 %1220
      %v1222 = vsel %vm599, %v1112, 0.0
      %1223 = vadd.xlane.f32.xlu0 %v1222
      %v1224 = vpop.xlane.xlu0 %1223
      %v1225 = vsel %vm599, %v1114, 0.0
      %1226 = vadd.xlane.f32.xlu0 %v1225
      %v1227 = vpop.xlane.xlu0 %1226
      %v1228 = vsel %vm599, %v1116, 0.0
      %1229 = vadd.xlane.f32.xlu0 %v1228
      %v1230 = vpop.xlane.xlu0 %1229
      %v1231 = vsel %vm599, %v1118, 0.0
      %1232 = vadd.xlane.f32.xlu0 %v1231
      %v1233 = vpop.xlane.xlu0 %1232
      %v1234 = vsel %vm599, %v1120, 0.0
      %1235 = vadd.xlane.f32.xlu0 %v1234
      %v1236 = vpop.xlane.xlu0 %1235
      %v1237 = vsel %vm599, %v1122, 0.0
      %1238 = vadd.xlane.f32.xlu0 %v1237
      %v1239 = vpop.xlane.xlu0 %1238
      %v1240 = vsel %vm599, %v1124, 0.0
      %1241 = vadd.xlane.f32.xlu0 %v1240
      %v1242 = vpop.xlane.xlu0 %1241
      %v1243 = vsel %vm599, %v1126, 0.0
      %1244 = vadd.xlane.f32.xlu0 %v1243
      %v1245 = vpop.xlane.xlu0 %1244
      %v1246 = vsel %vm599, %v1128, 0.0
      %1247 = vadd.xlane.f32.xlu0 %v1246
      %v1248 = vpop.xlane.xlu0 %1247
      %v1249 = vsel %vm599, %v1130, 0.0
      %1250 = vadd.xlane.f32.xlu0 %v1249
      %v1251 = vpop.xlane.xlu0 %1250
      %v1252 = vsel %vm599, %v1132, 0.0
      %1253 = vadd.xlane.f32.xlu0 %v1252
      %v1254 = vpop.xlane.xlu0 %1253
      %v1255 = vsel %vm599, %v1134, 0.0
      %1256 = vadd.xlane.f32.xlu0 %v1255
      %v1257 = vpop.xlane.xlu0 %1256
      %v1258 = vsel %vm599, %v1136, 0.0
      %1259 = vadd.xlane.f32.xlu0 %v1258
      %v1260 = vpop.xlane.xlu0 %1259
      %v1261 = vsel %vm599, %v1138, 0.0
      %1262 = vadd.xlane.f32.xlu0 %v1261
      %v1263 = vpop.xlane.xlu0 %1262
      %v1264 = vsel %vm599, %v1140, 0.0
      %1265 = vadd.xlane.f32.xlu0 %v1264
      %v1266 = vpop.xlane.xlu0 %1265
      %v1267 = vsel %vm599, %v1142, 0.0
      %1268 = vadd.xlane.f32.xlu0 %v1267
      %v1269 = vpop.xlane.xlu0 %1268
      %v1270 = vsel %vm599, %v1144, 0.0
      %1271 = vadd.xlane.f32.xlu0 %v1270
      %v1272 = vpop.xlane.xlu0 %1271
      %v1273 = vmul.f32 %v1179, %v696
      %v1274 = vmul.f32 %v1182, %v696
      %v1275 = vmul.f32 %v1185, %v696
      %v1276 = vmul.f32 %v1188, %v696
      %v1277 = vmul.f32 %v1191, %v696
      %v1278 = vmul.f32 %v1194, %v696
      %v1279 = vmul.f32 %v1197, %v696
      %v1280 = vmul.f32 %v1200, %v696
      %v1281 = vmul.f32 %v1203, %v696
      %v1282 = vmul.f32 %v1206, %v696
      %v1283 = vmul.f32 %v1209, %v696
      %v1284 = vmul.f32 %v1212, %v696
      %v1285 = vmul.f32 %v1215, %v696
      %v1286 = vmul.f32 %v1218, %v696
      %v1287 = vmul.f32 %v1221, %v696
      %v1288 = vmul.f32 %v1224, %v696
      %v1289 = vmul.f32 %v1227, %v696
      %v1290 = vmul.f32 %v1230, %v696
      %v1291 = vmul.f32 %v1233, %v696
      %v1292 = vmul.f32 %v1236, %v696
      %v1293 = vmul.f32 %v1239, %v696
      %v1294 = vmul.f32 %v1242, %v696
      %v1295 = vmul.f32 %v1245, %v696
      %v1296 = vmul.f32 %v1248, %v696
      %v1297 = vmul.f32 %v1251, %v696
      %v1298 = vmul.f32 %v1254, %v696
      %v1299 = vmul.f32 %v1257, %v696
      %v1300 = vmul.f32 %v1260, %v696
      %v1301 = vmul.f32 %v1263, %v696
      %v1302 = vmul.f32 %v1266, %v696
      %v1303 = vmul.f32 %v1269, %v696
      %v1304 = vmul.f32 %v1272, %v696
      %v1305 = vsub.f32 %v535, %v1273
      %v1306 = vsub.f32 %v537, %v1274
      %v1307 = vsub.f32 %v539, %v1275
      %v1308 = vsub.f32 %v541, %v1276
      %v1309 = vsub.f32 %v543, %v1277
      %v1310 = vsub.f32 %v545, %v1278
      %v1311 = vsub.f32 %v547, %v1279
      %v1312 = vsub.f32 %v549, %v1280
      %v1313 = vsub.f32 %v551, %v1281
      %v1314 = vsub.f32 %v553, %v1282
      %v1315 = vsub.f32 %v555, %v1283
      %v1316 = vsub.f32 %v557, %v1284
      %v1317 = vsub.f32 %v559, %v1285
      %v1318 = vsub.f32 %v561, %v1286
      %v1319 = vsub.f32 %v563, %v1287
      %v1320 = vsub.f32 %v565, %v1288
      %v1321 = vsub.f32 %v567, %v1289
      %v1322 = vsub.f32 %v569, %v1290
      %v1323 = vsub.f32 %v571, %v1291
      %v1324 = vsub.f32 %v573, %v1292
      %v1325 = vsub.f32 %v575, %v1293
      %v1326 = vsub.f32 %v577, %v1294
      %v1327 = vsub.f32 %v579, %v1295
      %v1328 = vsub.f32 %v581, %v1296
      %v1329 = vsub.f32 %v583, %v1297
      %v1330 = vsub.f32 %v585, %v1298
      %v1331 = vsub.f32 %v587, %v1299
      %v1332 = vsub.f32 %v589, %v1300
      %v1333 = vsub.f32 %v591, %v1301
      %v1334 = vsub.f32 %v593, %v1302
      %v1335 = vsub.f32 %v595, %v1303
      %v1336 = vsub.f32 %v597, %v1304
      %v1337 = vmul.f32 %v1305, %v1305
      %v1338 = vmul.f32 %v1306, %v1306
      %v1339 = vmul.f32 %v1307, %v1307
      %v1340 = vmul.f32 %v1308, %v1308
      %v1341 = vmul.f32 %v1309, %v1309
      %v1342 = vmul.f32 %v1310, %v1310
      %v1343 = vmul.f32 %v1311, %v1311
      %v1344 = vmul.f32 %v1312, %v1312
      %v1345 = vmul.f32 %v1313, %v1313
      %v1346 = vmul.f32 %v1314, %v1314
      %v1347 = vmul.f32 %v1315, %v1315
      %v1348 = vmul.f32 %v1316, %v1316
      %v1349 = vmul.f32 %v1317, %v1317
      %v1350 = vmul.f32 %v1318, %v1318
      %v1351 = vmul.f32 %v1319, %v1319
      %v1352 = vmul.f32 %v1320, %v1320
      %v1353 = vmul.f32 %v1321, %v1321
      %v1354 = vmul.f32 %v1322, %v1322
      %v1355 = vmul.f32 %v1323, %v1323
      %v1356 = vmul.f32 %v1324, %v1324
      %v1357 = vmul.f32 %v1325, %v1325
      %v1358 = vmul.f32 %v1326, %v1326
      %v1359 = vmul.f32 %v1327, %v1327
      %v1360 = vmul.f32 %v1328, %v1328
      %v1361 = vmul.f32 %v1329, %v1329
      %v1362 = vmul.f32 %v1330, %v1330
      %v1363 = vmul.f32 %v1331, %v1331
      %v1364 = vmul.f32 %v1332, %v1332
      %v1365 = vmul.f32 %v1333, %v1333
      %v1366 = vmul.f32 %v1334, %v1334
      %v1367 = vmul.f32 %v1335, %v1335
      %v1368 = vmul.f32 %v1336, %v1336
      %1401 = vrot.lane.b32.xlu0 %v1337, 96
      %v1402 = vpop.permute.xlu0 %1401
      %1403 = vrot.lane.b32.xlu0 %v1338, 96
      %v1404 = vpop.permute.xlu0 %1403
      %1405 = vrot.lane.b32.xlu0 %v1339, 96
      %v1406 = vpop.permute.xlu0 %1405
      %1407 = vrot.lane.b32.xlu0 %v1340, 96
      %v1408 = vpop.permute.xlu0 %1407
      %1409 = vrot.lane.b32.xlu0 %v1341, 96
      %v1410 = vpop.permute.xlu0 %1409
      %1411 = vrot.lane.b32.xlu0 %v1342, 96
      %v1412 = vpop.permute.xlu0 %1411
      %1413 = vrot.lane.b32.xlu0 %v1343, 96
      %v1414 = vpop.permute.xlu0 %1413
      %1415 = vrot.lane.b32.xlu0 %v1344, 96
      %v1416 = vpop.permute.xlu0 %1415
      %1417 = vrot.lane.b32.xlu0 %v1345, 96
      %v1418 = vpop.permute.xlu0 %1417
      %1419 = vrot.lane.b32.xlu0 %v1346, 96
      %v1420 = vpop.permute.xlu0 %1419
      %1421 = vrot.lane.b32.xlu0 %v1347, 96
      %v1422 = vpop.permute.xlu0 %1421
      %1423 = vrot.lane.b32.xlu0 %v1348, 96
      %v1424 = vpop.permute.xlu0 %1423
      %1425 = vrot.lane.b32.xlu0 %v1349, 96
      %v1426 = vpop.permute.xlu0 %1425
      %1427 = vrot.lane.b32.xlu0 %v1350, 96
      %v1428 = vpop.permute.xlu0 %1427
      %1429 = vrot.lane.b32.xlu0 %v1351, 96
      %v1430 = vpop.permute.xlu0 %1429
      %1431 = vrot.lane.b32.xlu0 %v1352, 96
      %v1432 = vpop.permute.xlu0 %1431
      %1433 = vrot.lane.b32.xlu0 %v1353, 96
      %v1434 = vpop.permute.xlu0 %1433
      %1435 = vrot.lane.b32.xlu0 %v1354, 96
      %v1436 = vpop.permute.xlu0 %1435
      %1437 = vrot.lane.b32.xlu0 %v1355, 96
      %v1438 = vpop.permute.xlu0 %1437
      %1439 = vrot.lane.b32.xlu0 %v1356, 96
      %v1440 = vpop.permute.xlu0 %1439
      %1441 = vrot.lane.b32.xlu0 %v1357, 96
      %v1442 = vpop.permute.xlu0 %1441
      %1443 = vrot.lane.b32.xlu0 %v1358, 96
      %v1444 = vpop.permute.xlu0 %1443
      %1445 = vrot.lane.b32.xlu0 %v1359, 96
      %v1446 = vpop.permute.xlu0 %1445
      %1447 = vrot.lane.b32.xlu0 %v1360, 96
      %v1448 = vpop.permute.xlu0 %1447
      %1449 = vrot.lane.b32.xlu0 %v1361, 96
      %v1450 = vpop.permute.xlu0 %1449
      %1451 = vrot.lane.b32.xlu0 %v1362, 96
      %v1452 = vpop.permute.xlu0 %1451
      %1453 = vrot.lane.b32.xlu0 %v1363, 96
      %v1454 = vpop.permute.xlu0 %1453
      %1455 = vrot.lane.b32.xlu0 %v1364, 96
      %v1456 = vpop.permute.xlu0 %1455
      %1457 = vrot.lane.b32.xlu0 %v1365, 96
      %v1458 = vpop.permute.xlu0 %1457
      %1459 = vrot.lane.b32.xlu0 %v1366, 96
      %v1460 = vpop.permute.xlu0 %1459
      %1461 = vrot.lane.b32.xlu0 %v1367, 96
      %v1462 = vpop.permute.xlu0 %1461
      %1463 = vrot.lane.b32.xlu0 %v1368, 96
      %v1464 = vpop.permute.xlu0 %1463
      %v1497 = vsel %vm599, %v1402, 0.0
      %1498 = vadd.xlane.f32.xlu0 %v1497
      %v1499 = vpop.xlane.xlu0 %1498
      %v1500 = vsel %vm599, %v1404, 0.0
      %1501 = vadd.xlane.f32.xlu0 %v1500
      %v1502 = vpop.xlane.xlu0 %1501
      %v1503 = vsel %vm599, %v1406, 0.0
      %1504 = vadd.xlane.f32.xlu0 %v1503
      %v1505 = vpop.xlane.xlu0 %1504
      %v1506 = vsel %vm599, %v1408, 0.0
      %1507 = vadd.xlane.f32.xlu0 %v1506
      %v1508 = vpop.xlane.xlu0 %1507
      %v1509 = vsel %vm599, %v1410, 0.0
      %1510 = vadd.xlane.f32.xlu0 %v1509
      %v1511 = vpop.xlane.xlu0 %1510
      %v1512 = vsel %vm599, %v1412, 0.0
      %1513 = vadd.xlane.f32.xlu0 %v1512
      %v1514 = vpop.xlane.xlu0 %1513
      %v1515 = vsel %vm599, %v1414, 0.0
      %1516 = vadd.xlane.f32.xlu0 %v1515
      %v1517 = vpop.xlane.xlu0 %1516
      %v1518 = vsel %vm599, %v1416, 0.0
      %1519 = vadd.xlane.f32.xlu0 %v1518
      %v1520 = vpop.xlane.xlu0 %1519
      %v1521 = vsel %vm599, %v1418, 0.0
      %1522 = vadd.xlane.f32.xlu0 %v1521
      %v1523 = vpop.xlane.xlu0 %1522
      %v1524 = vsel %vm599, %v1420, 0.0
      %1525 = vadd.xlane.f32.xlu0 %v1524
      %v1526 = vpop.xlane.xlu0 %1525
      %v1527 = vsel %vm599, %v1422, 0.0
      %1528 = vadd.xlane.f32.xlu0 %v1527
      %v1529 = vpop.xlane.xlu0 %1528
      %v1530 = vsel %vm599, %v1424, 0.0
      %1531 = vadd.xlane.f32.xlu0 %v1530
      %v1532 = vpop.xlane.xlu0 %1531
      %v1533 = vsel %vm599, %v1426, 0.0
      %1534 = vadd.xlane.f32.xlu0 %v1533
      %v1535 = vpop.xlane.xlu0 %1534
      %v1536 = vsel %vm599, %v1428, 0.0
      %1537 = vadd.xlane.f32.xlu0 %v1536
      %v1538 = vpop.xlane.xlu0 %1537
      %v1539 = vsel %vm599, %v1430, 0.0
      %1540 = vadd.xlane.f32.xlu0 %v1539
      %v1541 = vpop.xlane.xlu0 %1540
      %v1542 = vsel %vm599, %v1432, 0.0
      %1543 = vadd.xlane.f32.xlu0 %v1542
      %v1544 = vpop.xlane.xlu0 %1543
      %v1545 = vsel %vm599, %v1434, 0.0
      %1546 = vadd.xlane.f32.xlu0 %v1545
      %v1547 = vpop.xlane.xlu0 %1546
      %v1548 = vsel %vm599, %v1436, 0.0
      %1549 = vadd.xlane.f32.xlu0 %v1548
      %v1550 = vpop.xlane.xlu0 %1549
      %v1551 = vsel %vm599, %v1438, 0.0
      %1552 = vadd.xlane.f32.xlu0 %v1551
      %v1553 = vpop.xlane.xlu0 %1552
      %v1554 = vsel %vm599, %v1440, 0.0
      %1555 = vadd.xlane.f32.xlu0 %v1554
      %v1556 = vpop.xlane.xlu0 %1555
      %v1557 = vsel %vm599, %v1442, 0.0
      %1558 = vadd.xlane.f32.xlu0 %v1557
      %v1559 = vpop.xlane.xlu0 %1558
      %v1560 = vsel %vm599, %v1444, 0.0
      %1561 = vadd.xlane.f32.xlu0 %v1560
      %v1562 = vpop.xlane.xlu0 %1561
      %v1563 = vsel %vm599, %v1446, 0.0
      %1564 = vadd.xlane.f32.xlu0 %v1563
      %v1565 = vpop.xlane.xlu0 %1564
      %v1566 = vsel %vm599, %v1448, 0.0
      %1567 = vadd.xlane.f32.xlu0 %v1566
      %v1568 = vpop.xlane.xlu0 %1567
      %v1569 = vsel %vm599, %v1450, 0.0
      %1570 = vadd.xlane.f32.xlu0 %v1569
      %v1571 = vpop.xlane.xlu0 %1570
      %v1572 = vsel %vm599, %v1452, 0.0
      %1573 = vadd.xlane.f32.xlu0 %v1572
      %v1574 = vpop.xlane.xlu0 %1573
      %v1575 = vsel %vm599, %v1454, 0.0
      %1576 = vadd.xlane.f32.xlu0 %v1575
      %v1577 = vpop.xlane.xlu0 %1576
      %v1578 = vsel %vm599, %v1456, 0.0
      %1579 = vadd.xlane.f32.xlu0 %v1578
      %v1580 = vpop.xlane.xlu0 %1579
      %v1581 = vsel %vm599, %v1458, 0.0
      %1582 = vadd.xlane.f32.xlu0 %v1581
      %v1583 = vpop.xlane.xlu0 %1582
      %v1584 = vsel %vm599, %v1460, 0.0
      %1585 = vadd.xlane.f32.xlu0 %v1584
      %v1586 = vpop.xlane.xlu0 %1585
      %v1587 = vsel %vm599, %v1462, 0.0
      %1588 = vadd.xlane.f32.xlu0 %v1587
      %v1589 = vpop.xlane.xlu0 %1588
      %v1590 = vsel %vm599, %v1464, 0.0
      %1591 = vadd.xlane.f32.xlu0 %v1590
      %v1592 = vpop.xlane.xlu0 %1591
      %v1593 = vmul.f32 %v1499, %v696
      %v1594 = vmul.f32 %v1502, %v696
      %v1595 = vmul.f32 %v1505, %v696
      %v1596 = vmul.f32 %v1508, %v696
      %v1597 = vmul.f32 %v1511, %v696
      %v1598 = vmul.f32 %v1514, %v696
      %v1599 = vmul.f32 %v1517, %v696
      %v1600 = vmul.f32 %v1520, %v696
      %v1601 = vmul.f32 %v1523, %v696
      %v1602 = vmul.f32 %v1526, %v696
      %v1603 = vmul.f32 %v1529, %v696
      %v1604 = vmul.f32 %v1532, %v696
      %v1605 = vmul.f32 %v1535, %v696
      %v1606 = vmul.f32 %v1538, %v696
      %v1607 = vmul.f32 %v1541, %v696
      %v1608 = vmul.f32 %v1544, %v696
      %v1609 = vmul.f32 %v1547, %v696
      %v1610 = vmul.f32 %v1550, %v696
      %v1611 = vmul.f32 %v1553, %v696
      %v1612 = vmul.f32 %v1556, %v696
      %v1613 = vmul.f32 %v1559, %v696
      %v1614 = vmul.f32 %v1562, %v696
      %v1615 = vmul.f32 %v1565, %v696
      %v1616 = vmul.f32 %v1568, %v696
      %v1617 = vmul.f32 %v1571, %v696
      %v1618 = vmul.f32 %v1574, %v696
      %v1619 = vmul.f32 %v1577, %v696
      %v1620 = vmul.f32 %v1580, %v696
      %v1621 = vmul.f32 %v1583, %v696
      %v1622 = vmul.f32 %v1586, %v696
      %v1623 = vmul.f32 %v1589, %v696
      %v1624 = vmul.f32 %v1592, %v696
      %v1625 = vadd.f32 %v1593, 1e-05
      %v1626 = vadd.f32 %v1594, 1e-05
      %v1627 = vadd.f32 %v1595, 1e-05
      %v1628 = vadd.f32 %v1596, 1e-05
      %v1629 = vadd.f32 %v1597, 1e-05
      %v1630 = vadd.f32 %v1598, 1e-05
      %v1631 = vadd.f32 %v1599, 1e-05
      %v1632 = vadd.f32 %v1600, 1e-05
      %v1633 = vadd.f32 %v1601, 1e-05
      %v1634 = vadd.f32 %v1602, 1e-05
      %v1635 = vadd.f32 %v1603, 1e-05
      %v1636 = vadd.f32 %v1604, 1e-05
      %v1637 = vadd.f32 %v1605, 1e-05
      %v1638 = vadd.f32 %v1606, 1e-05
      %v1639 = vadd.f32 %v1607, 1e-05
      %v1640 = vadd.f32 %v1608, 1e-05
      %v1641 = vadd.f32 %v1609, 1e-05
      %v1642 = vadd.f32 %v1610, 1e-05
      %v1643 = vadd.f32 %v1611, 1e-05
      %v1644 = vadd.f32 %v1612, 1e-05
      %v1645 = vadd.f32 %v1613, 1e-05
      %v1646 = vadd.f32 %v1614, 1e-05
      %v1647 = vadd.f32 %v1615, 1e-05
      %v1648 = vadd.f32 %v1616, 1e-05
      %v1649 = vadd.f32 %v1617, 1e-05
      %v1650 = vadd.f32 %v1618, 1e-05
      %v1651 = vadd.f32 %v1619, 1e-05
      %v1652 = vadd.f32 %v1620, 1e-05
      %v1653 = vadd.f32 %v1621, 1e-05
      %v1654 = vadd.f32 %v1622, 1e-05
      %v1655 = vadd.f32 %v1623, 1e-05
      %v1656 = vadd.f32 %v1624, 1e-05
      %v1657 = vrsqrt.pop %v1625
      %v1658 = vrsqrt.pop %v1626
      %v1659 = vrsqrt.pop %v1627
      %v1660 = vrsqrt.pop %v1628
      %v1661 = vrsqrt.pop %v1629
      %v1662 = vrsqrt.pop %v1630
      %v1663 = vrsqrt.pop %v1631
      %v1664 = vrsqrt.pop %v1632
      %v1665 = vrsqrt.pop %v1633
      %v1666 = vrsqrt.pop %v1634
      %v1667 = vrsqrt.pop %v1635
      %v1668 = vrsqrt.pop %v1636
      %v1669 = vrsqrt.pop %v1637
      %v1670 = vrsqrt.pop %v1638
      %v1671 = vrsqrt.pop %v1639
      %v1672 = vrsqrt.pop %v1640
      %v1673 = vrsqrt.pop %v1641
      %v1674 = vrsqrt.pop %v1642
      %v1675 = vrsqrt.pop %v1643
      %v1676 = vrsqrt.pop %v1644
      %v1677 = vrsqrt.pop %v1645
      %v1678 = vrsqrt.pop %v1646
      %v1679 = vrsqrt.pop %v1647
      %v1680 = vrsqrt.pop %v1648
      %v1681 = vrsqrt.pop %v1649
      %v1682 = vrsqrt.pop %v1650
      %v1683 = vrsqrt.pop %v1651
      %v1684 = vrsqrt.pop %v1652
      %v1685 = vrsqrt.pop %v1653
      %v1686 = vrsqrt.pop %v1654
      %v1687 = vrsqrt.pop %v1655
      %v1688 = vrsqrt.pop %v1656
      %v1689 = vmul.f32 %v1305, %v1657
      %v1690 = vmul.f32 %v1306, %v1658
      %v1691 = vmul.f32 %v1307, %v1659
      %v1692 = vmul.f32 %v1308, %v1660
      %v1693 = vmul.f32 %v1309, %v1661
      %v1694 = vmul.f32 %v1310, %v1662
      %v1695 = vmul.f32 %v1311, %v1663
      %v1696 = vmul.f32 %v1312, %v1664
      %v1697 = vmul.f32 %v1313, %v1665
      %v1698 = vmul.f32 %v1314, %v1666
      %v1699 = vmul.f32 %v1315, %v1667
      %v1700 = vmul.f32 %v1316, %v1668
      %v1701 = vmul.f32 %v1317, %v1669
      %v1702 = vmul.f32 %v1318, %v1670
      %v1703 = vmul.f32 %v1319, %v1671
      %v1704 = vmul.f32 %v1320, %v1672
      %v1705 = vmul.f32 %v1321, %v1673
      %v1706 = vmul.f32 %v1322, %v1674
      %v1707 = vmul.f32 %v1323, %v1675
      %v1708 = vmul.f32 %v1324, %v1676
      %v1709 = vmul.f32 %v1325, %v1677
      %v1710 = vmul.f32 %v1326, %v1678
      %v1711 = vmul.f32 %v1327, %v1679
      %v1712 = vmul.f32 %v1328, %v1680
      %v1713 = vmul.f32 %v1329, %v1681
      %v1714 = vmul.f32 %v1330, %v1682
      %v1715 = vmul.f32 %v1331, %v1683
      %v1716 = vmul.f32 %v1332, %v1684
      %v1717 = vmul.f32 %v1333, %v1685
      %v1718 = vmul.f32 %v1334, %v1686
      %v1719 = vmul.f32 %v1335, %v1687
      %v1720 = vmul.f32 %v1336, %v1688
      %1753 = vrot.lane.b32.xlu0 %v1689, 96
      %v1754 = vpop.permute.xlu0 %1753
      %1755 = vrot.lane.b32.xlu0 %v1690, 96
      %v1756 = vpop.permute.xlu0 %1755
      %1757 = vrot.lane.b32.xlu0 %v1691, 96
      %v1758 = vpop.permute.xlu0 %1757
      %1759 = vrot.lane.b32.xlu0 %v1692, 96
      %v1760 = vpop.permute.xlu0 %1759
      %1761 = vrot.lane.b32.xlu0 %v1693, 96
      %v1762 = vpop.permute.xlu0 %1761
      %1763 = vrot.lane.b32.xlu0 %v1694, 96
      %v1764 = vpop.permute.xlu0 %1763
      %1765 = vrot.lane.b32.xlu0 %v1695, 96
      %v1766 = vpop.permute.xlu0 %1765
      %1767 = vrot.lane.b32.xlu0 %v1696, 96
      %v1768 = vpop.permute.xlu0 %1767
      %1769 = vrot.lane.b32.xlu0 %v1697, 96
      %v1770 = vpop.permute.xlu0 %1769
      %1771 = vrot.lane.b32.xlu0 %v1698, 96
      %v1772 = vpop.permute.xlu0 %1771
      %1773 = vrot.lane.b32.xlu0 %v1699, 96
      %v1774 = vpop.permute.xlu0 %1773
      %1775 = vrot.lane.b32.xlu0 %v1700, 96
      %v1776 = vpop.permute.xlu0 %1775
      %1777 = vrot.lane.b32.xlu0 %v1701, 96
      %v1778 = vpop.permute.xlu0 %1777
      %1779 = vrot.lane.b32.xlu0 %v1702, 96
      %v1780 = vpop.permute.xlu0 %1779
      %1781 = vrot.lane.b32.xlu0 %v1703, 96
      %v1782 = vpop.permute.xlu0 %1781
      %1783 = vrot.lane.b32.xlu0 %v1704, 96
      %v1784 = vpop.permute.xlu0 %1783
      %1785 = vrot.lane.b32.xlu0 %v1705, 96
      %v1786 = vpop.permute.xlu0 %1785
      %1787 = vrot.lane.b32.xlu0 %v1706, 96
      %v1788 = vpop.permute.xlu0 %1787
      %1789 = vrot.lane.b32.xlu0 %v1707, 96
      %v1790 = vpop.permute.xlu0 %1789
      %1791 = vrot.lane.b32.xlu0 %v1708, 96
      %v1792 = vpop.permute.xlu0 %1791
      %1793 = vrot.lane.b32.xlu0 %v1709, 96
      %v1794 = vpop.permute.xlu0 %1793
      %1795 = vrot.lane.b32.xlu0 %v1710, 96
      %v1796 = vpop.permute.xlu0 %1795
      %1797 = vrot.lane.b32.xlu0 %v1711, 96
      %v1798 = vpop.permute.xlu0 %1797
      %1799 = vrot.lane.b32.xlu0 %v1712, 96
      %v1800 = vpop.permute.xlu0 %1799
      %1801 = vrot.lane.b32.xlu0 %v1713, 96
      %v1802 = vpop.permute.xlu0 %1801
      %1803 = vrot.lane.b32.xlu0 %v1714, 96
      %v1804 = vpop.permute.xlu0 %1803
      %1805 = vrot.lane.b32.xlu0 %v1715, 96
      %v1806 = vpop.permute.xlu0 %1805
      %1807 = vrot.lane.b32.xlu0 %v1716, 96
      %v1808 = vpop.permute.xlu0 %1807
      %1809 = vrot.lane.b32.xlu0 %v1717, 96
      %v1810 = vpop.permute.xlu0 %1809
      %1811 = vrot.lane.b32.xlu0 %v1718, 96
      %v1812 = vpop.permute.xlu0 %1811
      %1813 = vrot.lane.b32.xlu0 %v1719, 96
      %v1814 = vpop.permute.xlu0 %1813
      %1815 = vrot.lane.b32.xlu0 %v1720, 96
      %v1816 = vpop.permute.xlu0 %1815
      %v1849 = vadd.f32 %v1017, %v1754
      %v1850 = vadd.f32 %v1018, %v1756
      %v1851 = vadd.f32 %v1019, %v1758
      %v1852 = vadd.f32 %v1020, %v1760
      %v1853 = vadd.f32 %v1021, %v1762
      %v1854 = vadd.f32 %v1022, %v1764
      %v1855 = vadd.f32 %v1023, %v1766
      %v1856 = vadd.f32 %v1024, %v1768
      %v1857 = vadd.f32 %v1025, %v1770
      %v1858 = vadd.f32 %v1026, %v1772
      %v1859 = vadd.f32 %v1027, %v1774
      %v1860 = vadd.f32 %v1028, %v1776
      %v1861 = vadd.f32 %v1029, %v1778
      %v1862 = vadd.f32 %v1030, %v1780
      %v1863 = vadd.f32 %v1031, %v1782
      %v1864 = vadd.f32 %v1032, %v1784
      %v1865 = vadd.f32 %v1033, %v1786
      %v1866 = vadd.f32 %v1034, %v1788
      %v1867 = vadd.f32 %v1035, %v1790
      %v1868 = vadd.f32 %v1036, %v1792
      %v1869 = vadd.f32 %v1037, %v1794
      %v1870 = vadd.f32 %v1038, %v1796
      %v1871 = vadd.f32 %v1039, %v1798
      %v1872 = vadd.f32 %v1040, %v1800
      %v1873 = vadd.f32 %v1041, %v1802
      %v1874 = vadd.f32 %v1042, %v1804
      %v1875 = vadd.f32 %v1043, %v1806
      %v1876 = vadd.f32 %v1044, %v1808
      %v1877 = vadd.f32 %v1045, %v1810
      %v1878 = vadd.f32 %v1046, %v1812
      %v1879 = vadd.f32 %v1047, %v1814
      %v1880 = vadd.f32 %v1048, %v1816
      %1881 = vrot.lane.b32.xlu0 %v535, 64
      %v1882 = vpop.permute.xlu0 %1881
      %1883 = vrot.lane.b32.xlu0 %v537, 64
      %v1884 = vpop.permute.xlu0 %1883
      %1885 = vrot.lane.b32.xlu0 %v539, 64
      %v1886 = vpop.permute.xlu0 %1885
      %1887 = vrot.lane.b32.xlu0 %v541, 64
      %v1888 = vpop.permute.xlu0 %1887
      %1889 = vrot.lane.b32.xlu0 %v543, 64
      %v1890 = vpop.permute.xlu0 %1889
      %1891 = vrot.lane.b32.xlu0 %v545, 64
      %v1892 = vpop.permute.xlu0 %1891
      %1893 = vrot.lane.b32.xlu0 %v547, 64
      %v1894 = vpop.permute.xlu0 %1893
      %1895 = vrot.lane.b32.xlu0 %v549, 64
      %v1896 = vpop.permute.xlu0 %1895
      %1897 = vrot.lane.b32.xlu0 %v551, 64
      %v1898 = vpop.permute.xlu0 %1897
      %1899 = vrot.lane.b32.xlu0 %v553, 64
      %v1900 = vpop.permute.xlu0 %1899
      %1901 = vrot.lane.b32.xlu0 %v555, 64
      %v1902 = vpop.permute.xlu0 %1901
      %1903 = vrot.lane.b32.xlu0 %v557, 64
      %v1904 = vpop.permute.xlu0 %1903
      %1905 = vrot.lane.b32.xlu0 %v559, 64
      %v1906 = vpop.permute.xlu0 %1905
      %1907 = vrot.lane.b32.xlu0 %v561, 64
      %v1908 = vpop.permute.xlu0 %1907
      %1909 = vrot.lane.b32.xlu0 %v563, 64
      %v1910 = vpop.permute.xlu0 %1909
      %1911 = vrot.lane.b32.xlu0 %v565, 64
      %v1912 = vpop.permute.xlu0 %1911
      %1913 = vrot.lane.b32.xlu0 %v567, 64
      %v1914 = vpop.permute.xlu0 %1913
      %1915 = vrot.lane.b32.xlu0 %v569, 64
      %v1916 = vpop.permute.xlu0 %1915
      %1917 = vrot.lane.b32.xlu0 %v571, 64
      %v1918 = vpop.permute.xlu0 %1917
      %1919 = vrot.lane.b32.xlu0 %v573, 64
      %v1920 = vpop.permute.xlu0 %1919
      %1921 = vrot.lane.b32.xlu0 %v575, 64
      %v1922 = vpop.permute.xlu0 %1921
      %1923 = vrot.lane.b32.xlu0 %v577, 64
      %v1924 = vpop.permute.xlu0 %1923
      %1925 = vrot.lane.b32.xlu0 %v579, 64
      %v1926 = vpop.permute.xlu0 %1925
      %1927 = vrot.lane.b32.xlu0 %v581, 64
      %v1928 = vpop.permute.xlu0 %1927
      %1929 = vrot.lane.b32.xlu0 %v583, 64
      %v1930 = vpop.permute.xlu0 %1929
      %1931 = vrot.lane.b32.xlu0 %v585, 64
      %v1932 = vpop.permute.xlu0 %1931
      %1933 = vrot.lane.b32.xlu0 %v587, 64
      %v1934 = vpop.permute.xlu0 %1933
      %1935 = vrot.lane.b32.xlu0 %v589, 64
      %v1936 = vpop.permute.xlu0 %1935
      %1937 = vrot.lane.b32.xlu0 %v591, 64
      %v1938 = vpop.permute.xlu0 %1937
      %1939 = vrot.lane.b32.xlu0 %v593, 64
      %v1940 = vpop.permute.xlu0 %1939
      %1941 = vrot.lane.b32.xlu0 %v595, 64
      %v1942 = vpop.permute.xlu0 %1941
      %1943 = vrot.lane.b32.xlu0 %v597, 64
      %v1944 = vpop.permute.xlu0 %1943
      %v1977 = vsel %vm599, %v1882, 0.0
      %1978 = vadd.xlane.f32.xlu0 %v1977
      %v1979 = vpop.xlane.xlu0 %1978
      %v1980 = vsel %vm599, %v1884, 0.0
      %1981 = vadd.xlane.f32.xlu0 %v1980
      %v1982 = vpop.xlane.xlu0 %1981
      %v1983 = vsel %vm599, %v1886, 0.0
      %1984 = vadd.xlane.f32.xlu0 %v1983
      %v1985 = vpop.xlane.xlu0 %1984
      %v1986 = vsel %vm599, %v1888, 0.0
      %1987 = vadd.xlane.f32.xlu0 %v1986
      %v1988 = vpop.xlane.xlu0 %1987
      %v1989 = vsel %vm599, %v1890, 0.0
      %1990 = vadd.xlane.f32.xlu0 %v1989
      %v1991 = vpop.xlane.xlu0 %1990
      %v1992 = vsel %vm599, %v1892, 0.0
      %1993 = vadd.xlane.f32.xlu0 %v1992
      %v1994 = vpop.xlane.xlu0 %1993
      %v1995 = vsel %vm599, %v1894, 0.0
      %1996 = vadd.xlane.f32.xlu0 %v1995
      %v1997 = vpop.xlane.xlu0 %1996
      %v1998 = vsel %vm599, %v1896, 0.0
      %1999 = vadd.xlane.f32.xlu0 %v1998
      %v2000 = vpop.xlane.xlu0 %1999
      %v2001 = vsel %vm599, %v1898, 0.0
      %2002 = vadd.xlane.f32.xlu0 %v2001
      %v2003 = vpop.xlane.xlu0 %2002
      %v2004 = vsel %vm599, %v1900, 0.0
      %2005 = vadd.xlane.f32.xlu0 %v2004
      %v2006 = vpop.xlane.xlu0 %2005
      %v2007 = vsel %vm599, %v1902, 0.0
      %2008 = vadd.xlane.f32.xlu0 %v2007
      %v2009 = vpop.xlane.xlu0 %2008
      %v2010 = vsel %vm599, %v1904, 0.0
      %2011 = vadd.xlane.f32.xlu0 %v2010
      %v2012 = vpop.xlane.xlu0 %2011
      %v2013 = vsel %vm599, %v1906, 0.0
      %2014 = vadd.xlane.f32.xlu0 %v2013
      %v2015 = vpop.xlane.xlu0 %2014
      %v2016 = vsel %vm599, %v1908, 0.0
      %2017 = vadd.xlane.f32.xlu0 %v2016
      %v2018 = vpop.xlane.xlu0 %2017
      %v2019 = vsel %vm599, %v1910, 0.0
      %2020 = vadd.xlane.f32.xlu0 %v2019
      %v2021 = vpop.xlane.xlu0 %2020
      %v2022 = vsel %vm599, %v1912, 0.0
      %2023 = vadd.xlane.f32.xlu0 %v2022
      %v2024 = vpop.xlane.xlu0 %2023
      %v2025 = vsel %vm599, %v1914, 0.0
      %2026 = vadd.xlane.f32.xlu0 %v2025
      %v2027 = vpop.xlane.xlu0 %2026
      %v2028 = vsel %vm599, %v1916, 0.0
      %2029 = vadd.xlane.f32.xlu0 %v2028
      %v2030 = vpop.xlane.xlu0 %2029
      %v2031 = vsel %vm599, %v1918, 0.0
      %2032 = vadd.xlane.f32.xlu0 %v2031
      %v2033 = vpop.xlane.xlu0 %2032
      %v2034 = vsel %vm599, %v1920, 0.0
      %2035 = vadd.xlane.f32.xlu0 %v2034
      %v2036 = vpop.xlane.xlu0 %2035
      %v2037 = vsel %vm599, %v1922, 0.0
      %2038 = vadd.xlane.f32.xlu0 %v2037
      %v2039 = vpop.xlane.xlu0 %2038
      %v2040 = vsel %vm599, %v1924, 0.0
      %2041 = vadd.xlane.f32.xlu0 %v2040
      %v2042 = vpop.xlane.xlu0 %2041
      %v2043 = vsel %vm599, %v1926, 0.0
      %2044 = vadd.xlane.f32.xlu0 %v2043
      %v2045 = vpop.xlane.xlu0 %2044
      %v2046 = vsel %vm599, %v1928, 0.0
      %2047 = vadd.xlane.f32.xlu0 %v2046
      %v2048 = vpop.xlane.xlu0 %2047
      %v2049 = vsel %vm599, %v1930, 0.0
      %2050 = vadd.xlane.f32.xlu0 %v2049
      %v2051 = vpop.xlane.xlu0 %2050
      %v2052 = vsel %vm599, %v1932, 0.0
      %2053 = vadd.xlane.f32.xlu0 %v2052
      %v2054 = vpop.xlane.xlu0 %2053
      %v2055 = vsel %vm599, %v1934, 0.0
      %2056 = vadd.xlane.f32.xlu0 %v2055
      %v2057 = vpop.xlane.xlu0 %2056
      %v2058 = vsel %vm599, %v1936, 0.0
      %2059 = vadd.xlane.f32.xlu0 %v2058
      %v2060 = vpop.xlane.xlu0 %2059
      %v2061 = vsel %vm599, %v1938, 0.0
      %2062 = vadd.xlane.f32.xlu0 %v2061
      %v2063 = vpop.xlane.xlu0 %2062
      %v2064 = vsel %vm599, %v1940, 0.0
      %2065 = vadd.xlane.f32.xlu0 %v2064
      %v2066 = vpop.xlane.xlu0 %2065
      %v2067 = vsel %vm599, %v1942, 0.0
      %2068 = vadd.xlane.f32.xlu0 %v2067
      %v2069 = vpop.xlane.xlu0 %2068
      %v2070 = vsel %vm599, %v1944, 0.0
      %2071 = vadd.xlane.f32.xlu0 %v2070
      %v2072 = vpop.xlane.xlu0 %2071
      %v2073 = vmul.f32 %v1979, %v696
      %v2074 = vmul.f32 %v1982, %v696
      %v2075 = vmul.f32 %v1985, %v696
      %v2076 = vmul.f32 %v1988, %v696
      %v2077 = vmul.f32 %v1991, %v696
      %v2078 = vmul.f32 %v1994, %v696
      %v2079 = vmul.f32 %v1997, %v696
      %v2080 = vmul.f32 %v2000, %v696
      %v2081 = vmul.f32 %v2003, %v696
      %v2082 = vmul.f32 %v2006, %v696
      %v2083 = vmul.f32 %v2009, %v696
      %v2084 = vmul.f32 %v2012, %v696
      %v2085 = vmul.f32 %v2015, %v696
      %v2086 = vmul.f32 %v2018, %v696
      %v2087 = vmul.f32 %v2021, %v696
      %v2088 = vmul.f32 %v2024, %v696
      %v2089 = vmul.f32 %v2027, %v696
      %v2090 = vmul.f32 %v2030, %v696
      %v2091 = vmul.f32 %v2033, %v696
      %v2092 = vmul.f32 %v2036, %v696
      %v2093 = vmul.f32 %v2039, %v696
      %v2094 = vmul.f32 %v2042, %v696
      %v2095 = vmul.f32 %v2045, %v696
      %v2096 = vmul.f32 %v2048, %v696
      %v2097 = vmul.f32 %v2051, %v696
      %v2098 = vmul.f32 %v2054, %v696
      %v2099 = vmul.f32 %v2057, %v696
      %v2100 = vmul.f32 %v2060, %v696
      %v2101 = vmul.f32 %v2063, %v696
      %v2102 = vmul.f32 %v2066, %v696
      %v2103 = vmul.f32 %v2069, %v696
      %v2104 = vmul.f32 %v2072, %v696
      %v2105 = vsub.f32 %v535, %v2073
      %v2106 = vsub.f32 %v537, %v2074
      %v2107 = vsub.f32 %v539, %v2075
      %v2108 = vsub.f32 %v541, %v2076
      %v2109 = vsub.f32 %v543, %v2077
      %v2110 = vsub.f32 %v545, %v2078
      %v2111 = vsub.f32 %v547, %v2079
      %v2112 = vsub.f32 %v549, %v2080
      %v2113 = vsub.f32 %v551, %v2081
      %v2114 = vsub.f32 %v553, %v2082
      %v2115 = vsub.f32 %v555, %v2083
      %v2116 = vsub.f32 %v557, %v2084
      %v2117 = vsub.f32 %v559, %v2085
      %v2118 = vsub.f32 %v561, %v2086
      %v2119 = vsub.f32 %v563, %v2087
      %v2120 = vsub.f32 %v565, %v2088
      %v2121 = vsub.f32 %v567, %v2089
      %v2122 = vsub.f32 %v569, %v2090
      %v2123 = vsub.f32 %v571, %v2091
      %v2124 = vsub.f32 %v573, %v2092
      %v2125 = vsub.f32 %v575, %v2093
      %v2126 = vsub.f32 %v577, %v2094
      %v2127 = vsub.f32 %v579, %v2095
      %v2128 = vsub.f32 %v581, %v2096
      %v2129 = vsub.f32 %v583, %v2097
      %v2130 = vsub.f32 %v585, %v2098
      %v2131 = vsub.f32 %v587, %v2099
      %v2132 = vsub.f32 %v589, %v2100
      %v2133 = vsub.f32 %v591, %v2101
      %v2134 = vsub.f32 %v593, %v2102
      %v2135 = vsub.f32 %v595, %v2103
      %v2136 = vsub.f32 %v597, %v2104
      %v2137 = vmul.f32 %v2105, %v2105
      %v2138 = vmul.f32 %v2106, %v2106
      %v2139 = vmul.f32 %v2107, %v2107
      %v2140 = vmul.f32 %v2108, %v2108
      %v2141 = vmul.f32 %v2109, %v2109
      %v2142 = vmul.f32 %v2110, %v2110
      %v2143 = vmul.f32 %v2111, %v2111
      %v2144 = vmul.f32 %v2112, %v2112
      %v2145 = vmul.f32 %v2113, %v2113
      %v2146 = vmul.f32 %v2114, %v2114
      %v2147 = vmul.f32 %v2115, %v2115
      %v2148 = vmul.f32 %v2116, %v2116
      %v2149 = vmul.f32 %v2117, %v2117
      %v2150 = vmul.f32 %v2118, %v2118
      %v2151 = vmul.f32 %v2119, %v2119
      %v2152 = vmul.f32 %v2120, %v2120
      %v2153 = vmul.f32 %v2121, %v2121
      %v2154 = vmul.f32 %v2122, %v2122
      %v2155 = vmul.f32 %v2123, %v2123
      %v2156 = vmul.f32 %v2124, %v2124
      %v2157 = vmul.f32 %v2125, %v2125
      %v2158 = vmul.f32 %v2126, %v2126
      %v2159 = vmul.f32 %v2127, %v2127
      %v2160 = vmul.f32 %v2128, %v2128
      %v2161 = vmul.f32 %v2129, %v2129
      %v2162 = vmul.f32 %v2130, %v2130
      %v2163 = vmul.f32 %v2131, %v2131
      %v2164 = vmul.f32 %v2132, %v2132
      %v2165 = vmul.f32 %v2133, %v2133
      %v2166 = vmul.f32 %v2134, %v2134
      %v2167 = vmul.f32 %v2135, %v2135
      %v2168 = vmul.f32 %v2136, %v2136
      %2201 = vrot.lane.b32.xlu0 %v2137, 64
      %v2202 = vpop.permute.xlu0 %2201
      %2203 = vrot.lane.b32.xlu0 %v2138, 64
      %v2204 = vpop.permute.xlu0 %2203
      %2205 = vrot.lane.b32.xlu0 %v2139, 64
      %v2206 = vpop.permute.xlu0 %2205
      %2207 = vrot.lane.b32.xlu0 %v2140, 64
      %v2208 = vpop.permute.xlu0 %2207
      %2209 = vrot.lane.b32.xlu0 %v2141, 64
      %v2210 = vpop.permute.xlu0 %2209
      %2211 = vrot.lane.b32.xlu0 %v2142, 64
      %v2212 = vpop.permute.xlu0 %2211
      %2213 = vrot.lane.b32.xlu0 %v2143, 64
      %v2214 = vpop.permute.xlu0 %2213
      %2215 = vrot.lane.b32.xlu0 %v2144, 64
      %v2216 = vpop.permute.xlu0 %2215
      %2217 = vrot.lane.b32.xlu0 %v2145, 64
      %v2218 = vpop.permute.xlu0 %2217
      %2219 = vrot.lane.b32.xlu0 %v2146, 64
      %v2220 = vpop.permute.xlu0 %2219
      %2221 = vrot.lane.b32.xlu0 %v2147, 64
      %v2222 = vpop.permute.xlu0 %2221
      %2223 = vrot.lane.b32.xlu0 %v2148, 64
      %v2224 = vpop.permute.xlu0 %2223
      %2225 = vrot.lane.b32.xlu0 %v2149, 64
      %v2226 = vpop.permute.xlu0 %2225
      %2227 = vrot.lane.b32.xlu0 %v2150, 64
      %v2228 = vpop.permute.xlu0 %2227
      %2229 = vrot.lane.b32.xlu0 %v2151, 64
      %v2230 = vpop.permute.xlu0 %2229
      %2231 = vrot.lane.b32.xlu0 %v2152, 64
      %v2232 = vpop.permute.xlu0 %2231
      %2233 = vrot.lane.b32.xlu0 %v2153, 64
      %v2234 = vpop.permute.xlu0 %2233
      %2235 = vrot.lane.b32.xlu0 %v2154, 64
      %v2236 = vpop.permute.xlu0 %2235
      %2237 = vrot.lane.b32.xlu0 %v2155, 64
      %v2238 = vpop.permute.xlu0 %2237
      %2239 = vrot.lane.b32.xlu0 %v2156, 64
      %v2240 = vpop.permute.xlu0 %2239
      %2241 = vrot.lane.b32.xlu0 %v2157, 64
      %v2242 = vpop.permute.xlu0 %2241
      %2243 = vrot.lane.b32.xlu0 %v2158, 64
      %v2244 = vpop.permute.xlu0 %2243
      %2245 = vrot.lane.b32.xlu0 %v2159, 64
      %v2246 = vpop.permute.xlu0 %2245
      %2247 = vrot.lane.b32.xlu0 %v2160, 64
      %v2248 = vpop.permute.xlu0 %2247
      %2249 = vrot.lane.b32.xlu0 %v2161, 64
      %v2250 = vpop.permute.xlu0 %2249
      %2251 = vrot.lane.b32.xlu0 %v2162, 64
      %v2252 = vpop.permute.xlu0 %2251
      %2253 = vrot.lane.b32.xlu0 %v2163, 64
      %v2254 = vpop.permute.xlu0 %2253
      %2255 = vrot.lane.b32.xlu0 %v2164, 64
      %v2256 = vpop.permute.xlu0 %2255
      %2257 = vrot.lane.b32.xlu0 %v2165, 64
      %v2258 = vpop.permute.xlu0 %2257
      %2259 = vrot.lane.b32.xlu0 %v2166, 64
      %v2260 = vpop.permute.xlu0 %2259
      %2261 = vrot.lane.b32.xlu0 %v2167, 64
      %v2262 = vpop.permute.xlu0 %2261
      %2263 = vrot.lane.b32.xlu0 %v2168, 64
      %v2264 = vpop.permute.xlu0 %2263
      %v2297 = vsel %vm599, %v2202, 0.0
      %2298 = vadd.xlane.f32.xlu0 %v2297
      %v2299 = vpop.xlane.xlu0 %2298
      %v2300 = vsel %vm599, %v2204, 0.0
      %2301 = vadd.xlane.f32.xlu0 %v2300
      %v2302 = vpop.xlane.xlu0 %2301
      %v2303 = vsel %vm599, %v2206, 0.0
      %2304 = vadd.xlane.f32.xlu0 %v2303
      %v2305 = vpop.xlane.xlu0 %2304
      %v2306 = vsel %vm599, %v2208, 0.0
      %2307 = vadd.xlane.f32.xlu0 %v2306
      %v2308 = vpop.xlane.xlu0 %2307
      %v2309 = vsel %vm599, %v2210, 0.0
      %2310 = vadd.xlane.f32.xlu0 %v2309
      %v2311 = vpop.xlane.xlu0 %2310
      %v2312 = vsel %vm599, %v2212, 0.0
      %2313 = vadd.xlane.f32.xlu0 %v2312
      %v2314 = vpop.xlane.xlu0 %2313
      %v2315 = vsel %vm599, %v2214, 0.0
      %2316 = vadd.xlane.f32.xlu0 %v2315
      %v2317 = vpop.xlane.xlu0 %2316
      %v2318 = vsel %vm599, %v2216, 0.0
      %2319 = vadd.xlane.f32.xlu0 %v2318
      %v2320 = vpop.xlane.xlu0 %2319
      %v2321 = vsel %vm599, %v2218, 0.0
      %2322 = vadd.xlane.f32.xlu0 %v2321
      %v2323 = vpop.xlane.xlu0 %2322
      %v2324 = vsel %vm599, %v2220, 0.0
      %2325 = vadd.xlane.f32.xlu0 %v2324
      %v2326 = vpop.xlane.xlu0 %2325
      %v2327 = vsel %vm599, %v2222, 0.0
      %2328 = vadd.xlane.f32.xlu0 %v2327
      %v2329 = vpop.xlane.xlu0 %2328
      %v2330 = vsel %vm599, %v2224, 0.0
      %2331 = vadd.xlane.f32.xlu0 %v2330
      %v2332 = vpop.xlane.xlu0 %2331
      %v2333 = vsel %vm599, %v2226, 0.0
      %2334 = vadd.xlane.f32.xlu0 %v2333
      %v2335 = vpop.xlane.xlu0 %2334
      %v2336 = vsel %vm599, %v2228, 0.0
      %2337 = vadd.xlane.f32.xlu0 %v2336
      %v2338 = vpop.xlane.xlu0 %2337
      %v2339 = vsel %vm599, %v2230, 0.0
      %2340 = vadd.xlane.f32.xlu0 %v2339
      %v2341 = vpop.xlane.xlu0 %2340
      %v2342 = vsel %vm599, %v2232, 0.0
      %2343 = vadd.xlane.f32.xlu0 %v2342
      %v2344 = vpop.xlane.xlu0 %2343
      %v2345 = vsel %vm599, %v2234, 0.0
      %2346 = vadd.xlane.f32.xlu0 %v2345
      %v2347 = vpop.xlane.xlu0 %2346
      %v2348 = vsel %vm599, %v2236, 0.0
      %2349 = vadd.xlane.f32.xlu0 %v2348
      %v2350 = vpop.xlane.xlu0 %2349
      %v2351 = vsel %vm599, %v2238, 0.0
      %2352 = vadd.xlane.f32.xlu0 %v2351
      %v2353 = vpop.xlane.xlu0 %2352
      %v2354 = vsel %vm599, %v2240, 0.0
      %2355 = vadd.xlane.f32.xlu0 %v2354
      %v2356 = vpop.xlane.xlu0 %2355
      %v2357 = vsel %vm599, %v2242, 0.0
      %2358 = vadd.xlane.f32.xlu0 %v2357
      %v2359 = vpop.xlane.xlu0 %2358
      %v2360 = vsel %vm599, %v2244, 0.0
      %2361 = vadd.xlane.f32.xlu0 %v2360
      %v2362 = vpop.xlane.xlu0 %2361
      %v2363 = vsel %vm599, %v2246, 0.0
      %2364 = vadd.xlane.f32.xlu0 %v2363
      %v2365 = vpop.xlane.xlu0 %2364
      %v2366 = vsel %vm599, %v2248, 0.0
      %2367 = vadd.xlane.f32.xlu0 %v2366
      %v2368 = vpop.xlane.xlu0 %2367
      %v2369 = vsel %vm599, %v2250, 0.0
      %2370 = vadd.xlane.f32.xlu0 %v2369
      %v2371 = vpop.xlane.xlu0 %2370
      %v2372 = vsel %vm599, %v2252, 0.0
      %2373 = vadd.xlane.f32.xlu0 %v2372
      %v2374 = vpop.xlane.xlu0 %2373
      %v2375 = vsel %vm599, %v2254, 0.0
      %2376 = vadd.xlane.f32.xlu0 %v2375
      %v2377 = vpop.xlane.xlu0 %2376
      %v2378 = vsel %vm599, %v2256, 0.0
      %2379 = vadd.xlane.f32.xlu0 %v2378
      %v2380 = vpop.xlane.xlu0 %2379
      %v2381 = vsel %vm599, %v2258, 0.0
      %2382 = vadd.xlane.f32.xlu0 %v2381
      %v2383 = vpop.xlane.xlu0 %2382
      %v2384 = vsel %vm599, %v2260, 0.0
      %2385 = vadd.xlane.f32.xlu0 %v2384
      %v2386 = vpop.xlane.xlu0 %2385
      %v2387 = vsel %vm599, %v2262, 0.0
      %2388 = vadd.xlane.f32.xlu0 %v2387
      %v2389 = vpop.xlane.xlu0 %2388
      %v2390 = vsel %vm599, %v2264, 0.0
      %2391 = vadd.xlane.f32.xlu0 %v2390
      %v2392 = vpop.xlane.xlu0 %2391
      %v2393 = vmul.f32 %v2299, %v696
      %v2394 = vmul.f32 %v2302, %v696
      %v2395 = vmul.f32 %v2305, %v696
      %v2396 = vmul.f32 %v2308, %v696
      %v2397 = vmul.f32 %v2311, %v696
      %v2398 = vmul.f32 %v2314, %v696
      %v2399 = vmul.f32 %v2317, %v696
      %v2400 = vmul.f32 %v2320, %v696
      %v2401 = vmul.f32 %v2323, %v696
      %v2402 = vmul.f32 %v2326, %v696
      %v2403 = vmul.f32 %v2329, %v696
      %v2404 = vmul.f32 %v2332, %v696
      %v2405 = vmul.f32 %v2335, %v696
      %v2406 = vmul.f32 %v2338, %v696
      %v2407 = vmul.f32 %v2341, %v696
      %v2408 = vmul.f32 %v2344, %v696
      %v2409 = vmul.f32 %v2347, %v696
      %v2410 = vmul.f32 %v2350, %v696
      %v2411 = vmul.f32 %v2353, %v696
      %v2412 = vmul.f32 %v2356, %v696
      %v2413 = vmul.f32 %v2359, %v696
      %v2414 = vmul.f32 %v2362, %v696
      %v2415 = vmul.f32 %v2365, %v696
      %v2416 = vmul.f32 %v2368, %v696
      %v2417 = vmul.f32 %v2371, %v696
      %v2418 = vmul.f32 %v2374, %v696
      %v2419 = vmul.f32 %v2377, %v696
      %v2420 = vmul.f32 %v2380, %v696
      %v2421 = vmul.f32 %v2383, %v696
      %v2422 = vmul.f32 %v2386, %v696
      %v2423 = vmul.f32 %v2389, %v696
      %v2424 = vmul.f32 %v2392, %v696
      %v2425 = vadd.f32 %v2393, 1e-05
      %v2426 = vadd.f32 %v2394, 1e-05
      %v2427 = vadd.f32 %v2395, 1e-05
      %v2428 = vadd.f32 %v2396, 1e-05
      %v2429 = vadd.f32 %v2397, 1e-05
      %v2430 = vadd.f32 %v2398, 1e-05
      %v2431 = vadd.f32 %v2399, 1e-05
      %v2432 = vadd.f32 %v2400, 1e-05
      %v2433 = vadd.f32 %v2401, 1e-05
      %v2434 = vadd.f32 %v2402, 1e-05
      %v2435 = vadd.f32 %v2403, 1e-05
      %v2436 = vadd.f32 %v2404, 1e-05
      %v2437 = vadd.f32 %v2405, 1e-05
      %v2438 = vadd.f32 %v2406, 1e-05
      %v2439 = vadd.f32 %v2407, 1e-05
      %v2440 = vadd.f32 %v2408, 1e-05
      %v2441 = vadd.f32 %v2409, 1e-05
      %v2442 = vadd.f32 %v2410, 1e-05
      %v2443 = vadd.f32 %v2411, 1e-05
      %v2444 = vadd.f32 %v2412, 1e-05
      %v2445 = vadd.f32 %v2413, 1e-05
      %v2446 = vadd.f32 %v2414, 1e-05
      %v2447 = vadd.f32 %v2415, 1e-05
      %v2448 = vadd.f32 %v2416, 1e-05
      %v2449 = vadd.f32 %v2417, 1e-05
      %v2450 = vadd.f32 %v2418, 1e-05
      %v2451 = vadd.f32 %v2419, 1e-05
      %v2452 = vadd.f32 %v2420, 1e-05
      %v2453 = vadd.f32 %v2421, 1e-05
      %v2454 = vadd.f32 %v2422, 1e-05
      %v2455 = vadd.f32 %v2423, 1e-05
      %v2456 = vadd.f32 %v2424, 1e-05
      %v2457 = vrsqrt.pop %v2425
      %v2458 = vrsqrt.pop %v2426
      %v2459 = vrsqrt.pop %v2427
      %v2460 = vrsqrt.pop %v2428
      %v2461 = vrsqrt.pop %v2429
      %v2462 = vrsqrt.pop %v2430
      %v2463 = vrsqrt.pop %v2431
      %v2464 = vrsqrt.pop %v2432
      %v2465 = vrsqrt.pop %v2433
      %v2466 = vrsqrt.pop %v2434
      %v2467 = vrsqrt.pop %v2435
      %v2468 = vrsqrt.pop %v2436
      %v2469 = vrsqrt.pop %v2437
      %v2470 = vrsqrt.pop %v2438
      %v2471 = vrsqrt.pop %v2439
      %v2472 = vrsqrt.pop %v2440
      %v2473 = vrsqrt.pop %v2441
      %v2474 = vrsqrt.pop %v2442
      %v2475 = vrsqrt.pop %v2443
      %v2476 = vrsqrt.pop %v2444
      %v2477 = vrsqrt.pop %v2445
      %v2478 = vrsqrt.pop %v2446
      %v2479 = vrsqrt.pop %v2447
      %v2480 = vrsqrt.pop %v2448
      %v2481 = vrsqrt.pop %v2449
      %v2482 = vrsqrt.pop %v2450
      %v2483 = vrsqrt.pop %v2451
      %v2484 = vrsqrt.pop %v2452
      %v2485 = vrsqrt.pop %v2453
      %v2486 = vrsqrt.pop %v2454
      %v2487 = vrsqrt.pop %v2455
      %v2488 = vrsqrt.pop %v2456
      %v2489 = vmul.f32 %v2105, %v2457
      %v2490 = vmul.f32 %v2106, %v2458
      %v2491 = vmul.f32 %v2107, %v2459
      %v2492 = vmul.f32 %v2108, %v2460
      %v2493 = vmul.f32 %v2109, %v2461
      %v2494 = vmul.f32 %v2110, %v2462
      %v2495 = vmul.f32 %v2111, %v2463
      %v2496 = vmul.f32 %v2112, %v2464
      %v2497 = vmul.f32 %v2113, %v2465
      %v2498 = vmul.f32 %v2114, %v2466
      %v2499 = vmul.f32 %v2115, %v2467
      %v2500 = vmul.f32 %v2116, %v2468
      %v2501 = vmul.f32 %v2117, %v2469
      %v2502 = vmul.f32 %v2118, %v2470
      %v2503 = vmul.f32 %v2119, %v2471
      %v2504 = vmul.f32 %v2120, %v2472
      %v2505 = vmul.f32 %v2121, %v2473
      %v2506 = vmul.f32 %v2122, %v2474
      %v2507 = vmul.f32 %v2123, %v2475
      %v2508 = vmul.f32 %v2124, %v2476
      %v2509 = vmul.f32 %v2125, %v2477
      %v2510 = vmul.f32 %v2126, %v2478
      %v2511 = vmul.f32 %v2127, %v2479
      %v2512 = vmul.f32 %v2128, %v2480
      %v2513 = vmul.f32 %v2129, %v2481
      %v2514 = vmul.f32 %v2130, %v2482
      %v2515 = vmul.f32 %v2131, %v2483
      %v2516 = vmul.f32 %v2132, %v2484
      %v2517 = vmul.f32 %v2133, %v2485
      %v2518 = vmul.f32 %v2134, %v2486
      %v2519 = vmul.f32 %v2135, %v2487
      %v2520 = vmul.f32 %v2136, %v2488
      %2553 = vrot.lane.b32.xlu0 %v2489, 64
      %v2554 = vpop.permute.xlu0 %2553
      %2555 = vrot.lane.b32.xlu0 %v2490, 64
      %v2556 = vpop.permute.xlu0 %2555
      %2557 = vrot.lane.b32.xlu0 %v2491, 64
      %v2558 = vpop.permute.xlu0 %2557
      %2559 = vrot.lane.b32.xlu0 %v2492, 64
      %v2560 = vpop.permute.xlu0 %2559
      %2561 = vrot.lane.b32.xlu0 %v2493, 64
      %v2562 = vpop.permute.xlu0 %2561
      %2563 = vrot.lane.b32.xlu0 %v2494, 64
      %v2564 = vpop.permute.xlu0 %2563
      %2565 = vrot.lane.b32.xlu0 %v2495, 64
      %v2566 = vpop.permute.xlu0 %2565
      %2567 = vrot.lane.b32.xlu0 %v2496, 64
      %v2568 = vpop.permute.xlu0 %2567
      %2569 = vrot.lane.b32.xlu0 %v2497, 64
      %v2570 = vpop.permute.xlu0 %2569
      %2571 = vrot.lane.b32.xlu0 %v2498, 64
      %v2572 = vpop.permute.xlu0 %2571
      %2573 = vrot.lane.b32.xlu0 %v2499, 64
      %v2574 = vpop.permute.xlu0 %2573
      %2575 = vrot.lane.b32.xlu0 %v2500, 64
      %v2576 = vpop.permute.xlu0 %2575
      %2577 = vrot.lane.b32.xlu0 %v2501, 64
      %v2578 = vpop.permute.xlu0 %2577
      %2579 = vrot.lane.b32.xlu0 %v2502, 64
      %v2580 = vpop.permute.xlu0 %2579
      %2581 = vrot.lane.b32.xlu0 %v2503, 64
      %v2582 = vpop.permute.xlu0 %2581
      %2583 = vrot.lane.b32.xlu0 %v2504, 64
      %v2584 = vpop.permute.xlu0 %2583
      %2585 = vrot.lane.b32.xlu0 %v2505, 64
      %v2586 = vpop.permute.xlu0 %2585
      %2587 = vrot.lane.b32.xlu0 %v2506, 64
      %v2588 = vpop.permute.xlu0 %2587
      %2589 = vrot.lane.b32.xlu0 %v2507, 64
      %v2590 = vpop.permute.xlu0 %2589
      %2591 = vrot.lane.b32.xlu0 %v2508, 64
      %v2592 = vpop.permute.xlu0 %2591
      %2593 = vrot.lane.b32.xlu0 %v2509, 64
      %v2594 = vpop.permute.xlu0 %2593
      %2595 = vrot.lane.b32.xlu0 %v2510, 64
      %v2596 = vpop.permute.xlu0 %2595
      %2597 = vrot.lane.b32.xlu0 %v2511, 64
      %v2598 = vpop.permute.xlu0 %2597
      %2599 = vrot.lane.b32.xlu0 %v2512, 64
      %v2600 = vpop.permute.xlu0 %2599
      %2601 = vrot.lane.b32.xlu0 %v2513, 64
      %v2602 = vpop.permute.xlu0 %2601
      %2603 = vrot.lane.b32.xlu0 %v2514, 64
      %v2604 = vpop.permute.xlu0 %2603
      %2605 = vrot.lane.b32.xlu0 %v2515, 64
      %v2606 = vpop.permute.xlu0 %2605
      %2607 = vrot.lane.b32.xlu0 %v2516, 64
      %v2608 = vpop.permute.xlu0 %2607
      %2609 = vrot.lane.b32.xlu0 %v2517, 64
      %v2610 = vpop.permute.xlu0 %2609
      %2611 = vrot.lane.b32.xlu0 %v2518, 64
      %v2612 = vpop.permute.xlu0 %2611
      %2613 = vrot.lane.b32.xlu0 %v2519, 64
      %v2614 = vpop.permute.xlu0 %2613
      %2615 = vrot.lane.b32.xlu0 %v2520, 64
      %v2616 = vpop.permute.xlu0 %2615
      %v2649 = vadd.f32 %v1849, %v2554
      %v2650 = vadd.f32 %v1850, %v2556
      %v2651 = vadd.f32 %v1851, %v2558
      %v2652 = vadd.f32 %v1852, %v2560
      %v2653 = vadd.f32 %v1853, %v2562
      %v2654 = vadd.f32 %v1854, %v2564
      %v2655 = vadd.f32 %v1855, %v2566
      %v2656 = vadd.f32 %v1856, %v2568
      %v2657 = vadd.f32 %v1857, %v2570
      %v2658 = vadd.f32 %v1858, %v2572
      %v2659 = vadd.f32 %v1859, %v2574
      %v2660 = vadd.f32 %v1860, %v2576
      %v2661 = vadd.f32 %v1861, %v2578
      %v2662 = vadd.f32 %v1862, %v2580
      %v2663 = vadd.f32 %v1863, %v2582
      %v2664 = vadd.f32 %v1864, %v2584
      %v2665 = vadd.f32 %v1865, %v2586
      %v2666 = vadd.f32 %v1866, %v2588
      %v2667 = vadd.f32 %v1867, %v2590
      %v2668 = vadd.f32 %v1868, %v2592
      %v2669 = vadd.f32 %v1869, %v2594
      %v2670 = vadd.f32 %v1870, %v2596
      %v2671 = vadd.f32 %v1871, %v2598
      %v2672 = vadd.f32 %v1872, %v2600
      %v2673 = vadd.f32 %v1873, %v2602
      %v2674 = vadd.f32 %v1874, %v2604
      %v2675 = vadd.f32 %v1875, %v2606
      %v2676 = vadd.f32 %v1876, %v2608
      %v2677 = vadd.f32 %v1877, %v2610
      %v2678 = vadd.f32 %v1878, %v2612
      %v2679 = vadd.f32 %v1879, %v2614
      %v2680 = vadd.f32 %v1880, %v2616
      %2681 = vrot.lane.b32.xlu0 %v535, 32
      %v2682 = vpop.permute.xlu0 %2681
      %2683 = vrot.lane.b32.xlu0 %v537, 32
      %v2684 = vpop.permute.xlu0 %2683
      %2685 = vrot.lane.b32.xlu0 %v539, 32
      %v2686 = vpop.permute.xlu0 %2685
      %2687 = vrot.lane.b32.xlu0 %v541, 32
      %v2688 = vpop.permute.xlu0 %2687
      %2689 = vrot.lane.b32.xlu0 %v543, 32
      %v2690 = vpop.permute.xlu0 %2689
      %2691 = vrot.lane.b32.xlu0 %v545, 32
      %v2692 = vpop.permute.xlu0 %2691
      %2693 = vrot.lane.b32.xlu0 %v547, 32
      %v2694 = vpop.permute.xlu0 %2693
      %2695 = vrot.lane.b32.xlu0 %v549, 32
      %v2696 = vpop.permute.xlu0 %2695
      %2697 = vrot.lane.b32.xlu0 %v551, 32
      %v2698 = vpop.permute.xlu0 %2697
      %2699 = vrot.lane.b32.xlu0 %v553, 32
      %v2700 = vpop.permute.xlu0 %2699
      %2701 = vrot.lane.b32.xlu0 %v555, 32
      %v2702 = vpop.permute.xlu0 %2701
      %2703 = vrot.lane.b32.xlu0 %v557, 32
      %v2704 = vpop.permute.xlu0 %2703
      %2705 = vrot.lane.b32.xlu0 %v559, 32
      %v2706 = vpop.permute.xlu0 %2705
      %2707 = vrot.lane.b32.xlu0 %v561, 32
      %v2708 = vpop.permute.xlu0 %2707
      %2709 = vrot.lane.b32.xlu0 %v563, 32
      %v2710 = vpop.permute.xlu0 %2709
      %2711 = vrot.lane.b32.xlu0 %v565, 32
      %v2712 = vpop.permute.xlu0 %2711
      %2713 = vrot.lane.b32.xlu0 %v567, 32
      %v2714 = vpop.permute.xlu0 %2713
      %2715 = vrot.lane.b32.xlu0 %v569, 32
      %v2716 = vpop.permute.xlu0 %2715
      %2717 = vrot.lane.b32.xlu0 %v571, 32
      %v2718 = vpop.permute.xlu0 %2717
      %2719 = vrot.lane.b32.xlu0 %v573, 32
      %v2720 = vpop.permute.xlu0 %2719
      %2721 = vrot.lane.b32.xlu0 %v575, 32
      %v2722 = vpop.permute.xlu0 %2721
      %2723 = vrot.lane.b32.xlu0 %v577, 32
      %v2724 = vpop.permute.xlu0 %2723
      %2725 = vrot.lane.b32.xlu0 %v579, 32
      %v2726 = vpop.permute.xlu0 %2725
      %2727 = vrot.lane.b32.xlu0 %v581, 32
      %v2728 = vpop.permute.xlu0 %2727
      %2729 = vrot.lane.b32.xlu0 %v583, 32
      %v2730 = vpop.permute.xlu0 %2729
      %2731 = vrot.lane.b32.xlu0 %v585, 32
      %v2732 = vpop.permute.xlu0 %2731
      %2733 = vrot.lane.b32.xlu0 %v587, 32
      %v2734 = vpop.permute.xlu0 %2733
      %2735 = vrot.lane.b32.xlu0 %v589, 32
      %v2736 = vpop.permute.xlu0 %2735
      %2737 = vrot.lane.b32.xlu0 %v591, 32
      %v2738 = vpop.permute.xlu0 %2737
      %2739 = vrot.lane.b32.xlu0 %v593, 32
      %v2740 = vpop.permute.xlu0 %2739
      %2741 = vrot.lane.b32.xlu0 %v595, 32
      %v2742 = vpop.permute.xlu0 %2741
      %2743 = vrot.lane.b32.xlu0 %v597, 32
      %v2744 = vpop.permute.xlu0 %2743
      %v2777 = vsel %vm599, %v2682, 0.0
      %2778 = vadd.xlane.f32.xlu0 %v2777
      %v2779 = vpop.xlane.xlu0 %2778
      %v2780 = vsel %vm599, %v2684, 0.0
      %2781 = vadd.xlane.f32.xlu0 %v2780
      %v2782 = vpop.xlane.xlu0 %2781
      %v2783 = vsel %vm599, %v2686, 0.0
      %2784 = vadd.xlane.f32.xlu0 %v2783
      %v2785 = vpop.xlane.xlu0 %2784
      %v2786 = vsel %vm599, %v2688, 0.0
      %2787 = vadd.xlane.f32.xlu0 %v2786
      %v2788 = vpop.xlane.xlu0 %2787
      %v2789 = vsel %vm599, %v2690, 0.0
      %2790 = vadd.xlane.f32.xlu0 %v2789
      %v2791 = vpop.xlane.xlu0 %2790
      %v2792 = vsel %vm599, %v2692, 0.0
      %2793 = vadd.xlane.f32.xlu0 %v2792
      %v2794 = vpop.xlane.xlu0 %2793
      %v2795 = vsel %vm599, %v2694, 0.0
      %2796 = vadd.xlane.f32.xlu0 %v2795
      %v2797 = vpop.xlane.xlu0 %2796
      %v2798 = vsel %vm599, %v2696, 0.0
      %2799 = vadd.xlane.f32.xlu0 %v2798
      %v2800 = vpop.xlane.xlu0 %2799
      %v2801 = vsel %vm599, %v2698, 0.0
      %2802 = vadd.xlane.f32.xlu0 %v2801
      %v2803 = vpop.xlane.xlu0 %2802
      %v2804 = vsel %vm599, %v2700, 0.0
      %2805 = vadd.xlane.f32.xlu0 %v2804
      %v2806 = vpop.xlane.xlu0 %2805
      %v2807 = vsel %vm599, %v2702, 0.0
      %2808 = vadd.xlane.f32.xlu0 %v2807
      %v2809 = vpop.xlane.xlu0 %2808
      %v2810 = vsel %vm599, %v2704, 0.0
      %2811 = vadd.xlane.f32.xlu0 %v2810
      %v2812 = vpop.xlane.xlu0 %2811
      %v2813 = vsel %vm599, %v2706, 0.0
      %2814 = vadd.xlane.f32.xlu0 %v2813
      %v2815 = vpop.xlane.xlu0 %2814
      %v2816 = vsel %vm599, %v2708, 0.0
      %2817 = vadd.xlane.f32.xlu0 %v2816
      %v2818 = vpop.xlane.xlu0 %2817
      %v2819 = vsel %vm599, %v2710, 0.0
      %2820 = vadd.xlane.f32.xlu0 %v2819
      %v2821 = vpop.xlane.xlu0 %2820
      %v2822 = vsel %vm599, %v2712, 0.0
      %2823 = vadd.xlane.f32.xlu0 %v2822
      %v2824 = vpop.xlane.xlu0 %2823
      %v2825 = vsel %vm599, %v2714, 0.0
      %2826 = vadd.xlane.f32.xlu0 %v2825
      %v2827 = vpop.xlane.xlu0 %2826
      %v2828 = vsel %vm599, %v2716, 0.0
      %2829 = vadd.xlane.f32.xlu0 %v2828
      %v2830 = vpop.xlane.xlu0 %2829
      %v2831 = vsel %vm599, %v2718, 0.0
      %2832 = vadd.xlane.f32.xlu0 %v2831
      %v2833 = vpop.xlane.xlu0 %2832
      %v2834 = vsel %vm599, %v2720, 0.0
      %2835 = vadd.xlane.f32.xlu0 %v2834
      %v2836 = vpop.xlane.xlu0 %2835
      %v2837 = vsel %vm599, %v2722, 0.0
      %2838 = vadd.xlane.f32.xlu0 %v2837
      %v2839 = vpop.xlane.xlu0 %2838
      %v2840 = vsel %vm599, %v2724, 0.0
      %2841 = vadd.xlane.f32.xlu0 %v2840
      %v2842 = vpop.xlane.xlu0 %2841
      %v2843 = vsel %vm599, %v2726, 0.0
      %2844 = vadd.xlane.f32.xlu0 %v2843
      %v2845 = vpop.xlane.xlu0 %2844
      %v2846 = vsel %vm599, %v2728, 0.0
      %2847 = vadd.xlane.f32.xlu0 %v2846
      %v2848 = vpop.xlane.xlu0 %2847
      %v2849 = vsel %vm599, %v2730, 0.0
      %2850 = vadd.xlane.f32.xlu0 %v2849
      %v2851 = vpop.xlane.xlu0 %2850
      %v2852 = vsel %vm599, %v2732, 0.0
      %2853 = vadd.xlane.f32.xlu0 %v2852
      %v2854 = vpop.xlane.xlu0 %2853
      %v2855 = vsel %vm599, %v2734, 0.0
      %2856 = vadd.xlane.f32.xlu0 %v2855
      %v2857 = vpop.xlane.xlu0 %2856
      %v2858 = vsel %vm599, %v2736, 0.0
      %2859 = vadd.xlane.f32.xlu0 %v2858
      %v2860 = vpop.xlane.xlu0 %2859
      %v2861 = vsel %vm599, %v2738, 0.0
      %2862 = vadd.xlane.f32.xlu0 %v2861
      %v2863 = vpop.xlane.xlu0 %2862
      %v2864 = vsel %vm599, %v2740, 0.0
      %2865 = vadd.xlane.f32.xlu0 %v2864
      %v2866 = vpop.xlane.xlu0 %2865
      %v2867 = vsel %vm599, %v2742, 0.0
      %2868 = vadd.xlane.f32.xlu0 %v2867
      %v2869 = vpop.xlane.xlu0 %2868
      %v2870 = vsel %vm599, %v2744, 0.0
      %2871 = vadd.xlane.f32.xlu0 %v2870
      %v2872 = vpop.xlane.xlu0 %2871
      %v2873 = vmul.f32 %v2779, %v696
      %v2874 = vmul.f32 %v2782, %v696
      %v2875 = vmul.f32 %v2785, %v696
      %v2876 = vmul.f32 %v2788, %v696
      %v2877 = vmul.f32 %v2791, %v696
      %v2878 = vmul.f32 %v2794, %v696
      %v2879 = vmul.f32 %v2797, %v696
      %v2880 = vmul.f32 %v2800, %v696
      %v2881 = vmul.f32 %v2803, %v696
      %v2882 = vmul.f32 %v2806, %v696
      %v2883 = vmul.f32 %v2809, %v696
      %v2884 = vmul.f32 %v2812, %v696
      %v2885 = vmul.f32 %v2815, %v696
      %v2886 = vmul.f32 %v2818, %v696
      %v2887 = vmul.f32 %v2821, %v696
      %v2888 = vmul.f32 %v2824, %v696
      %v2889 = vmul.f32 %v2827, %v696
      %v2890 = vmul.f32 %v2830, %v696
      %v2891 = vmul.f32 %v2833, %v696
      %v2892 = vmul.f32 %v2836, %v696
      %v2893 = vmul.f32 %v2839, %v696
      %v2894 = vmul.f32 %v2842, %v696
      %v2895 = vmul.f32 %v2845, %v696
      %v2896 = vmul.f32 %v2848, %v696
      %v2897 = vmul.f32 %v2851, %v696
      %v2898 = vmul.f32 %v2854, %v696
      %v2899 = vmul.f32 %v2857, %v696
      %v2900 = vmul.f32 %v2860, %v696
      %v2901 = vmul.f32 %v2863, %v696
      %v2902 = vmul.f32 %v2866, %v696
      %v2903 = vmul.f32 %v2869, %v696
      %v2904 = vmul.f32 %v2872, %v696
      %v2905 = vsub.f32 %v535, %v2873
      %v2906 = vsub.f32 %v537, %v2874
      %v2907 = vsub.f32 %v539, %v2875
      %v2908 = vsub.f32 %v541, %v2876
      %v2909 = vsub.f32 %v543, %v2877
      %v2910 = vsub.f32 %v545, %v2878
      %v2911 = vsub.f32 %v547, %v2879
      %v2912 = vsub.f32 %v549, %v2880
      %v2913 = vsub.f32 %v551, %v2881
      %v2914 = vsub.f32 %v553, %v2882
      %v2915 = vsub.f32 %v555, %v2883
      %v2916 = vsub.f32 %v557, %v2884
      %v2917 = vsub.f32 %v559, %v2885
      %v2918 = vsub.f32 %v561, %v2886
      %v2919 = vsub.f32 %v563, %v2887
      %v2920 = vsub.f32 %v565, %v2888
      %v2921 = vsub.f32 %v567, %v2889
      %v2922 = vsub.f32 %v569, %v2890
      %v2923 = vsub.f32 %v571, %v2891
      %v2924 = vsub.f32 %v573, %v2892
      %v2925 = vsub.f32 %v575, %v2893
      %v2926 = vsub.f32 %v577, %v2894
      %v2927 = vsub.f32 %v579, %v2895
      %v2928 = vsub.f32 %v581, %v2896
      %v2929 = vsub.f32 %v583, %v2897
      %v2930 = vsub.f32 %v585, %v2898
      %v2931 = vsub.f32 %v587, %v2899
      %v2932 = vsub.f32 %v589, %v2900
      %v2933 = vsub.f32 %v591, %v2901
      %v2934 = vsub.f32 %v593, %v2902
      %v2935 = vsub.f32 %v595, %v2903
      %v2936 = vsub.f32 %v597, %v2904
      %v2937 = vmul.f32 %v2905, %v2905
      %v2938 = vmul.f32 %v2906, %v2906
      %v2939 = vmul.f32 %v2907, %v2907
      %v2940 = vmul.f32 %v2908, %v2908
      %v2941 = vmul.f32 %v2909, %v2909
      %v2942 = vmul.f32 %v2910, %v2910
      %v2943 = vmul.f32 %v2911, %v2911
      %v2944 = vmul.f32 %v2912, %v2912
      %v2945 = vmul.f32 %v2913, %v2913
      %v2946 = vmul.f32 %v2914, %v2914
      %v2947 = vmul.f32 %v2915, %v2915
      %v2948 = vmul.f32 %v2916, %v2916
      %v2949 = vmul.f32 %v2917, %v2917
      %v2950 = vmul.f32 %v2918, %v2918
      %v2951 = vmul.f32 %v2919, %v2919
      %v2952 = vmul.f32 %v2920, %v2920
      %v2953 = vmul.f32 %v2921, %v2921
      %v2954 = vmul.f32 %v2922, %v2922
      %v2955 = vmul.f32 %v2923, %v2923
      %v2956 = vmul.f32 %v2924, %v2924
      %v2957 = vmul.f32 %v2925, %v2925
      %v2958 = vmul.f32 %v2926, %v2926
      %v2959 = vmul.f32 %v2927, %v2927
      %v2960 = vmul.f32 %v2928, %v2928
      %v2961 = vmul.f32 %v2929, %v2929
      %v2962 = vmul.f32 %v2930, %v2930
      %v2963 = vmul.f32 %v2931, %v2931
      %v2964 = vmul.f32 %v2932, %v2932
      %v2965 = vmul.f32 %v2933, %v2933
      %v2966 = vmul.f32 %v2934, %v2934
      %v2967 = vmul.f32 %v2935, %v2935
      %v2968 = vmul.f32 %v2936, %v2936
      %3001 = vrot.lane.b32.xlu0 %v2937, 32
      %v3002 = vpop.permute.xlu0 %3001
      %3003 = vrot.lane.b32.xlu0 %v2938, 32
      %v3004 = vpop.permute.xlu0 %3003
      %3005 = vrot.lane.b32.xlu0 %v2939, 32
      %v3006 = vpop.permute.xlu0 %3005
      %3007 = vrot.lane.b32.xlu0 %v2940, 32
      %v3008 = vpop.permute.xlu0 %3007
      %3009 = vrot.lane.b32.xlu0 %v2941, 32
      %v3010 = vpop.permute.xlu0 %3009
      %3011 = vrot.lane.b32.xlu0 %v2942, 32
      %v3012 = vpop.permute.xlu0 %3011
      %3013 = vrot.lane.b32.xlu0 %v2943, 32
      %v3014 = vpop.permute.xlu0 %3013
      %3015 = vrot.lane.b32.xlu0 %v2944, 32
      %v3016 = vpop.permute.xlu0 %3015
      %3017 = vrot.lane.b32.xlu0 %v2945, 32
      %v3018 = vpop.permute.xlu0 %3017
      %3019 = vrot.lane.b32.xlu0 %v2946, 32
      %v3020 = vpop.permute.xlu0 %3019
      %3021 = vrot.lane.b32.xlu0 %v2947, 32
      %v3022 = vpop.permute.xlu0 %3021
      %3023 = vrot.lane.b32.xlu0 %v2948, 32
      %v3024 = vpop.permute.xlu0 %3023
      %3025 = vrot.lane.b32.xlu0 %v2949, 32
      %v3026 = vpop.permute.xlu0 %3025
      %3027 = vrot.lane.b32.xlu0 %v2950, 32
      %v3028 = vpop.permute.xlu0 %3027
      %3029 = vrot.lane.b32.xlu0 %v2951, 32
      %v3030 = vpop.permute.xlu0 %3029
      %3031 = vrot.lane.b32.xlu0 %v2952, 32
      %v3032 = vpop.permute.xlu0 %3031
      %3033 = vrot.lane.b32.xlu0 %v2953, 32
      %v3034 = vpop.permute.xlu0 %3033
      %3035 = vrot.lane.b32.xlu0 %v2954, 32
      %v3036 = vpop.permute.xlu0 %3035
      %3037 = vrot.lane.b32.xlu0 %v2955, 32
      %v3038 = vpop.permute.xlu0 %3037
      %3039 = vrot.lane.b32.xlu0 %v2956, 32
      %v3040 = vpop.permute.xlu0 %3039
      %3041 = vrot.lane.b32.xlu0 %v2957, 32
      %v3042 = vpop.permute.xlu0 %3041
      %3043 = vrot.lane.b32.xlu0 %v2958, 32
      %v3044 = vpop.permute.xlu0 %3043
      %3045 = vrot.lane.b32.xlu0 %v2959, 32
      %v3046 = vpop.permute.xlu0 %3045
      %3047 = vrot.lane.b32.xlu0 %v2960, 32
      %v3048 = vpop.permute.xlu0 %3047
      %3049 = vrot.lane.b32.xlu0 %v2961, 32
      %v3050 = vpop.permute.xlu0 %3049
      %3051 = vrot.lane.b32.xlu0 %v2962, 32
      %v3052 = vpop.permute.xlu0 %3051
      %3053 = vrot.lane.b32.xlu0 %v2963, 32
      %v3054 = vpop.permute.xlu0 %3053
      %3055 = vrot.lane.b32.xlu0 %v2964, 32
      %v3056 = vpop.permute.xlu0 %3055
      %3057 = vrot.lane.b32.xlu0 %v2965, 32
      %v3058 = vpop.permute.xlu0 %3057
      %3059 = vrot.lane.b32.xlu0 %v2966, 32
      %v3060 = vpop.permute.xlu0 %3059
      %3061 = vrot.lane.b32.xlu0 %v2967, 32
      %v3062 = vpop.permute.xlu0 %3061
      %3063 = vrot.lane.b32.xlu0 %v2968, 32
      %v3064 = vpop.permute.xlu0 %3063
      %v3097 = vsel %vm599, %v3002, 0.0
      %3098 = vadd.xlane.f32.xlu0 %v3097
      %v3099 = vpop.xlane.xlu0 %3098
      %v3100 = vsel %vm599, %v3004, 0.0
      %3101 = vadd.xlane.f32.xlu0 %v3100
      %v3102 = vpop.xlane.xlu0 %3101
      %v3103 = vsel %vm599, %v3006, 0.0
      %3104 = vadd.xlane.f32.xlu0 %v3103
      %v3105 = vpop.xlane.xlu0 %3104
      %v3106 = vsel %vm599, %v3008, 0.0
      %3107 = vadd.xlane.f32.xlu0 %v3106
      %v3108 = vpop.xlane.xlu0 %3107
      %v3109 = vsel %vm599, %v3010, 0.0
      %3110 = vadd.xlane.f32.xlu0 %v3109
      %v3111 = vpop.xlane.xlu0 %3110
      %v3112 = vsel %vm599, %v3012, 0.0
      %3113 = vadd.xlane.f32.xlu0 %v3112
      %v3114 = vpop.xlane.xlu0 %3113
      %v3115 = vsel %vm599, %v3014, 0.0
      %3116 = vadd.xlane.f32.xlu0 %v3115
      %v3117 = vpop.xlane.xlu0 %3116
      %v3118 = vsel %vm599, %v3016, 0.0
      %3119 = vadd.xlane.f32.xlu0 %v3118
      %v3120 = vpop.xlane.xlu0 %3119
      %v3121 = vsel %vm599, %v3018, 0.0
      %3122 = vadd.xlane.f32.xlu0 %v3121
      %v3123 = vpop.xlane.xlu0 %3122
      %v3124 = vsel %vm599, %v3020, 0.0
      %3125 = vadd.xlane.f32.xlu0 %v3124
      %v3126 = vpop.xlane.xlu0 %3125
      %v3127 = vsel %vm599, %v3022, 0.0
      %3128 = vadd.xlane.f32.xlu0 %v3127
      %v3129 = vpop.xlane.xlu0 %3128
      %v3130 = vsel %vm599, %v3024, 0.0
      %3131 = vadd.xlane.f32.xlu0 %v3130
      %v3132 = vpop.xlane.xlu0 %3131
      %v3133 = vsel %vm599, %v3026, 0.0
      %3134 = vadd.xlane.f32.xlu0 %v3133
      %v3135 = vpop.xlane.xlu0 %3134
      %v3136 = vsel %vm599, %v3028, 0.0
      %3137 = vadd.xlane.f32.xlu0 %v3136
      %v3138 = vpop.xlane.xlu0 %3137
      %v3139 = vsel %vm599, %v3030, 0.0
      %3140 = vadd.xlane.f32.xlu0 %v3139
      %v3141 = vpop.xlane.xlu0 %3140
      %v3142 = vsel %vm599, %v3032, 0.0
      %3143 = vadd.xlane.f32.xlu0 %v3142
      %v3144 = vpop.xlane.xlu0 %3143
      %v3145 = vsel %vm599, %v3034, 0.0
      %3146 = vadd.xlane.f32.xlu0 %v3145
      %v3147 = vpop.xlane.xlu0 %3146
      %v3148 = vsel %vm599, %v3036, 0.0
      %3149 = vadd.xlane.f32.xlu0 %v3148
      %v3150 = vpop.xlane.xlu0 %3149
      %v3151 = vsel %vm599, %v3038, 0.0
      %3152 = vadd.xlane.f32.xlu0 %v3151
      %v3153 = vpop.xlane.xlu0 %3152
      %v3154 = vsel %vm599, %v3040, 0.0
      %3155 = vadd.xlane.f32.xlu0 %v3154
      %v3156 = vpop.xlane.xlu0 %3155
      %v3157 = vsel %vm599, %v3042, 0.0
      %3158 = vadd.xlane.f32.xlu0 %v3157
      %v3159 = vpop.xlane.xlu0 %3158
      %v3160 = vsel %vm599, %v3044, 0.0
      %3161 = vadd.xlane.f32.xlu0 %v3160
      %v3162 = vpop.xlane.xlu0 %3161
      %v3163 = vsel %vm599, %v3046, 0.0
      %3164 = vadd.xlane.f32.xlu0 %v3163
      %v3165 = vpop.xlane.xlu0 %3164
      %v3166 = vsel %vm599, %v3048, 0.0
      %3167 = vadd.xlane.f32.xlu0 %v3166
      %v3168 = vpop.xlane.xlu0 %3167
      %v3169 = vsel %vm599, %v3050, 0.0
      %3170 = vadd.xlane.f32.xlu0 %v3169
      %v3171 = vpop.xlane.xlu0 %3170
      %v3172 = vsel %vm599, %v3052, 0.0
      %3173 = vadd.xlane.f32.xlu0 %v3172
      %v3174 = vpop.xlane.xlu0 %3173
      %v3175 = vsel %vm599, %v3054, 0.0
      %3176 = vadd.xlane.f32.xlu0 %v3175
      %v3177 = vpop.xlane.xlu0 %3176
      %v3178 = vsel %vm599, %v3056, 0.0
      %3179 = vadd.xlane.f32.xlu0 %v3178
      %v3180 = vpop.xlane.xlu0 %3179
      %v3181 = vsel %vm599, %v3058, 0.0
      %3182 = vadd.xlane.f32.xlu0 %v3181
      %v3183 = vpop.xlane.xlu0 %3182
      %v3184 = vsel %vm599, %v3060, 0.0
      %3185 = vadd.xlane.f32.xlu0 %v3184
      %v3186 = vpop.xlane.xlu0 %3185
      %v3187 = vsel %vm599, %v3062, 0.0
      %3188 = vadd.xlane.f32.xlu0 %v3187
      %v3189 = vpop.xlane.xlu0 %3188
      %v3190 = vsel %vm599, %v3064, 0.0
      %3191 = vadd.xlane.f32.xlu0 %v3190
      %v3192 = vpop.xlane.xlu0 %3191
      %v3193 = vmul.f32 %v3099, %v696
      %v3194 = vmul.f32 %v3102, %v696
      %v3195 = vmul.f32 %v3105, %v696
      %v3196 = vmul.f32 %v3108, %v696
      %v3197 = vmul.f32 %v3111, %v696
      %v3198 = vmul.f32 %v3114, %v696
      %v3199 = vmul.f32 %v3117, %v696
      %v3200 = vmul.f32 %v3120, %v696
      %v3201 = vmul.f32 %v3123, %v696
      %v3202 = vmul.f32 %v3126, %v696
      %v3203 = vmul.f32 %v3129, %v696
      %v3204 = vmul.f32 %v3132, %v696
      %v3205 = vmul.f32 %v3135, %v696
      %v3206 = vmul.f32 %v3138, %v696
      %v3207 = vmul.f32 %v3141, %v696
      %v3208 = vmul.f32 %v3144, %v696
      %v3209 = vmul.f32 %v3147, %v696
      %v3210 = vmul.f32 %v3150, %v696
      %v3211 = vmul.f32 %v3153, %v696
      %v3212 = vmul.f32 %v3156, %v696
      %v3213 = vmul.f32 %v3159, %v696
      %v3214 = vmul.f32 %v3162, %v696
      %v3215 = vmul.f32 %v3165, %v696
      %v3216 = vmul.f32 %v3168, %v696
      %v3217 = vmul.f32 %v3171, %v696
      %v3218 = vmul.f32 %v3174, %v696
      %v3219 = vmul.f32 %v3177, %v696
      %v3220 = vmul.f32 %v3180, %v696
      %v3221 = vmul.f32 %v3183, %v696
      %v3222 = vmul.f32 %v3186, %v696
      %v3223 = vmul.f32 %v3189, %v696
      %v3224 = vmul.f32 %v3192, %v696
      %v3225 = vadd.f32 %v3193, 1e-05
      %v3226 = vadd.f32 %v3194, 1e-05
      %v3227 = vadd.f32 %v3195, 1e-05
      %v3228 = vadd.f32 %v3196, 1e-05
      %v3229 = vadd.f32 %v3197, 1e-05
      %v3230 = vadd.f32 %v3198, 1e-05
      %v3231 = vadd.f32 %v3199, 1e-05
      %v3232 = vadd.f32 %v3200, 1e-05
      %v3233 = vadd.f32 %v3201, 1e-05
      %v3234 = vadd.f32 %v3202, 1e-05
      %v3235 = vadd.f32 %v3203, 1e-05
      %v3236 = vadd.f32 %v3204, 1e-05
      %v3237 = vadd.f32 %v3205, 1e-05
      %v3238 = vadd.f32 %v3206, 1e-05
      %v3239 = vadd.f32 %v3207, 1e-05
      %v3240 = vadd.f32 %v3208, 1e-05
      %v3241 = vadd.f32 %v3209, 1e-05
      %v3242 = vadd.f32 %v3210, 1e-05
      %v3243 = vadd.f32 %v3211, 1e-05
      %v3244 = vadd.f32 %v3212, 1e-05
      %v3245 = vadd.f32 %v3213, 1e-05
      %v3246 = vadd.f32 %v3214, 1e-05
      %v3247 = vadd.f32 %v3215, 1e-05
      %v3248 = vadd.f32 %v3216, 1e-05
      %v3249 = vadd.f32 %v3217, 1e-05
      %v3250 = vadd.f32 %v3218, 1e-05
      %v3251 = vadd.f32 %v3219, 1e-05
      %v3252 = vadd.f32 %v3220, 1e-05
      %v3253 = vadd.f32 %v3221, 1e-05
      %v3254 = vadd.f32 %v3222, 1e-05
      %v3255 = vadd.f32 %v3223, 1e-05
      %v3256 = vadd.f32 %v3224, 1e-05
      %v3257 = vrsqrt.pop %v3225
      %v3258 = vrsqrt.pop %v3226
      %v3259 = vrsqrt.pop %v3227
      %v3260 = vrsqrt.pop %v3228
      %v3261 = vrsqrt.pop %v3229
      %v3262 = vrsqrt.pop %v3230
      %v3263 = vrsqrt.pop %v3231
      %v3264 = vrsqrt.pop %v3232
      %v3265 = vrsqrt.pop %v3233
      %v3266 = vrsqrt.pop %v3234
      %v3267 = vrsqrt.pop %v3235
      %v3268 = vrsqrt.pop %v3236
      %v3269 = vrsqrt.pop %v3237
      %v3270 = vrsqrt.pop %v3238
      %v3271 = vrsqrt.pop %v3239
      %v3272 = vrsqrt.pop %v3240
      %v3273 = vrsqrt.pop %v3241
      %v3274 = vrsqrt.pop %v3242
      %v3275 = vrsqrt.pop %v3243
      %v3276 = vrsqrt.pop %v3244
      %v3277 = vrsqrt.pop %v3245
      %v3278 = vrsqrt.pop %v3246
      %v3279 = vrsqrt.pop %v3247
      %v3280 = vrsqrt.pop %v3248
      %v3281 = vrsqrt.pop %v3249
      %v3282 = vrsqrt.pop %v3250
      %v3283 = vrsqrt.pop %v3251
      %v3284 = vrsqrt.pop %v3252
      %v3285 = vrsqrt.pop %v3253
      %v3286 = vrsqrt.pop %v3254
      %v3287 = vrsqrt.pop %v3255
      %v3288 = vrsqrt.pop %v3256
      %v3289 = vmul.f32 %v2905, %v3257
      %v3290 = vmul.f32 %v2906, %v3258
      %v3291 = vmul.f32 %v2907, %v3259
      %v3292 = vmul.f32 %v2908, %v3260
      %v3293 = vmul.f32 %v2909, %v3261
      %v3294 = vmul.f32 %v2910, %v3262
      %v3295 = vmul.f32 %v2911, %v3263
      %v3296 = vmul.f32 %v2912, %v3264
      %v3297 = vmul.f32 %v2913, %v3265
      %v3298 = vmul.f32 %v2914, %v3266
      %v3299 = vmul.f32 %v2915, %v3267
      %v3300 = vmul.f32 %v2916, %v3268
      %v3301 = vmul.f32 %v2917, %v3269
      %v3302 = vmul.f32 %v2918, %v3270
      %v3303 = vmul.f32 %v2919, %v3271
      %v3304 = vmul.f32 %v2920, %v3272
      %v3305 = vmul.f32 %v2921, %v3273
      %v3306 = vmul.f32 %v2922, %v3274
      %v3307 = vmul.f32 %v2923, %v3275
      %v3308 = vmul.f32 %v2924, %v3276
      %v3309 = vmul.f32 %v2925, %v3277
      %v3310 = vmul.f32 %v2926, %v3278
      %v3311 = vmul.f32 %v2927, %v3279
      %v3312 = vmul.f32 %v2928, %v3280
      %v3313 = vmul.f32 %v2929, %v3281
      %v3314 = vmul.f32 %v2930, %v3282
      %v3315 = vmul.f32 %v2931, %v3283
      %v3316 = vmul.f32 %v2932, %v3284
      %v3317 = vmul.f32 %v2933, %v3285
      %v3318 = vmul.f32 %v2934, %v3286
      %v3319 = vmul.f32 %v2935, %v3287
      %v3320 = vmul.f32 %v2936, %v3288
      %3353 = vrot.lane.b32.xlu0 %v3289, 32
      %v3354 = vpop.permute.xlu0 %3353
      %3355 = vrot.lane.b32.xlu0 %v3290, 32
      %v3356 = vpop.permute.xlu0 %3355
      %3357 = vrot.lane.b32.xlu0 %v3291, 32
      %v3358 = vpop.permute.xlu0 %3357
      %3359 = vrot.lane.b32.xlu0 %v3292, 32
      %v3360 = vpop.permute.xlu0 %3359
      %3361 = vrot.lane.b32.xlu0 %v3293, 32
      %v3362 = vpop.permute.xlu0 %3361
      %3363 = vrot.lane.b32.xlu0 %v3294, 32
      %v3364 = vpop.permute.xlu0 %3363
      %3365 = vrot.lane.b32.xlu0 %v3295, 32
      %v3366 = vpop.permute.xlu0 %3365
      %3367 = vrot.lane.b32.xlu0 %v3296, 32
      %v3368 = vpop.permute.xlu0 %3367
      %3369 = vrot.lane.b32.xlu0 %v3297, 32
      %v3370 = vpop.permute.xlu0 %3369
      %3371 = vrot.lane.b32.xlu0 %v3298, 32
      %v3372 = vpop.permute.xlu0 %3371
      %3373 = vrot.lane.b32.xlu0 %v3299, 32
      %v3374 = vpop.permute.xlu0 %3373
      %3375 = vrot.lane.b32.xlu0 %v3300, 32
      %v3376 = vpop.permute.xlu0 %3375
      %3377 = vrot.lane.b32.xlu0 %v3301, 32
      %v3378 = vpop.permute.xlu0 %3377
      %3379 = vrot.lane.b32.xlu0 %v3302, 32
      %v3380 = vpop.permute.xlu0 %3379
      %3381 = vrot.lane.b32.xlu0 %v3303, 32
      %v3382 = vpop.permute.xlu0 %3381
      %3383 = vrot.lane.b32.xlu0 %v3304, 32
      %v3384 = vpop.permute.xlu0 %3383
      %3385 = vrot.lane.b32.xlu0 %v3305, 32
      %v3386 = vpop.permute.xlu0 %3385
      %3387 = vrot.lane.b32.xlu0 %v3306, 32
      %v3388 = vpop.permute.xlu0 %3387
      %3389 = vrot.lane.b32.xlu0 %v3307, 32
      %v3390 = vpop.permute.xlu0 %3389
      %3391 = vrot.lane.b32.xlu0 %v3308, 32
      %v3392 = vpop.permute.xlu0 %3391
      %3393 = vrot.lane.b32.xlu0 %v3309, 32
      %v3394 = vpop.permute.xlu0 %3393
      %3395 = vrot.lane.b32.xlu0 %v3310, 32
      %v3396 = vpop.permute.xlu0 %3395
      %3397 = vrot.lane.b32.xlu0 %v3311, 32
      %v3398 = vpop.permute.xlu0 %3397
      %3399 = vrot.lane.b32.xlu0 %v3312, 32
      %v3400 = vpop.permute.xlu0 %3399
      %3401 = vrot.lane.b32.xlu0 %v3313, 32
      %v3402 = vpop.permute.xlu0 %3401
      %3403 = vrot.lane.b32.xlu0 %v3314, 32
      %v3404 = vpop.permute.xlu0 %3403
      %3405 = vrot.lane.b32.xlu0 %v3315, 32
      %v3406 = vpop.permute.xlu0 %3405
      %3407 = vrot.lane.b32.xlu0 %v3316, 32
      %v3408 = vpop.permute.xlu0 %3407
      %3409 = vrot.lane.b32.xlu0 %v3317, 32
      %v3410 = vpop.permute.xlu0 %3409
      %3411 = vrot.lane.b32.xlu0 %v3318, 32
      %v3412 = vpop.permute.xlu0 %3411
      %3413 = vrot.lane.b32.xlu0 %v3319, 32
      %v3414 = vpop.permute.xlu0 %3413
      %3415 = vrot.lane.b32.xlu0 %v3320, 32
      %v3416 = vpop.permute.xlu0 %3415
      %v3449 = vadd.f32 %v2649, %v3354
      %v3450 = vadd.f32 %v2650, %v3356
      %v3451 = vadd.f32 %v2651, %v3358
      %v3452 = vadd.f32 %v2652, %v3360
      %v3453 = vadd.f32 %v2653, %v3362
      %v3454 = vadd.f32 %v2654, %v3364
      %v3455 = vadd.f32 %v2655, %v3366
      %v3456 = vadd.f32 %v2656, %v3368
      %v3457 = vadd.f32 %v2657, %v3370
      %v3458 = vadd.f32 %v2658, %v3372
      %v3459 = vadd.f32 %v2659, %v3374
      %v3460 = vadd.f32 %v2660, %v3376
      %v3461 = vadd.f32 %v2661, %v3378
      %v3462 = vadd.f32 %v2662, %v3380
      %v3463 = vadd.f32 %v2663, %v3382
      %v3464 = vadd.f32 %v2664, %v3384
      %v3465 = vadd.f32 %v2665, %v3386
      %v3466 = vadd.f32 %v2666, %v3388
      %v3467 = vadd.f32 %v2667, %v3390
      %v3468 = vadd.f32 %v2668, %v3392
      %v3469 = vadd.f32 %v2669, %v3394
      %v3470 = vadd.f32 %v2670, %v3396
      %v3471 = vadd.f32 %v2671, %v3398
      %v3472 = vadd.f32 %v2672, %v3400
      %v3473 = vadd.f32 %v2673, %v3402
      %v3474 = vadd.f32 %v2674, %v3404
      %v3475 = vadd.f32 %v2675, %v3406
      %v3476 = vadd.f32 %v2676, %v3408
      %v3477 = vadd.f32 %v2677, %v3410
      %v3478 = vadd.f32 %v2678, %v3412
      %v3479 = vadd.f32 %v2679, %v3414
      %v3480 = vadd.f32 %v2680, %v3416
      %v3481 = vsel %vm599, %v536, 0.0
      %3482 = vadd.xlane.f32.xlu0 %v3481
      %v3483 = vpop.xlane.xlu0 %3482
      %v3484 = vsel %vm599, %v538, 0.0
      %3485 = vadd.xlane.f32.xlu0 %v3484
      %v3486 = vpop.xlane.xlu0 %3485
      %v3487 = vsel %vm599, %v540, 0.0
      %3488 = vadd.xlane.f32.xlu0 %v3487
      %v3489 = vpop.xlane.xlu0 %3488
      %v3490 = vsel %vm599, %v542, 0.0
      %3491 = vadd.xlane.f32.xlu0 %v3490
      %v3492 = vpop.xlane.xlu0 %3491
      %v3493 = vsel %vm599, %v544, 0.0
      %3494 = vadd.xlane.f32.xlu0 %v3493
      %v3495 = vpop.xlane.xlu0 %3494
      %v3496 = vsel %vm599, %v546, 0.0
      %3497 = vadd.xlane.f32.xlu0 %v3496
      %v3498 = vpop.xlane.xlu0 %3497
      %v3499 = vsel %vm599, %v548, 0.0
      %3500 = vadd.xlane.f32.xlu0 %v3499
      %v3501 = vpop.xlane.xlu0 %3500
      %v3502 = vsel %vm599, %v550, 0.0
      %3503 = vadd.xlane.f32.xlu0 %v3502
      %v3504 = vpop.xlane.xlu0 %3503
      %v3505 = vsel %vm599, %v552, 0.0
      %3506 = vadd.xlane.f32.xlu0 %v3505
      %v3507 = vpop.xlane.xlu0 %3506
      %v3508 = vsel %vm599, %v554, 0.0
      %3509 = vadd.xlane.f32.xlu0 %v3508
      %v3510 = vpop.xlane.xlu0 %3509
      %v3511 = vsel %vm599, %v556, 0.0
      %3512 = vadd.xlane.f32.xlu0 %v3511
      %v3513 = vpop.xlane.xlu0 %3512
      %v3514 = vsel %vm599, %v558, 0.0
      %3515 = vadd.xlane.f32.xlu0 %v3514
      %v3516 = vpop.xlane.xlu0 %3515
      %v3517 = vsel %vm599, %v560, 0.0
      %3518 = vadd.xlane.f32.xlu0 %v3517
      %v3519 = vpop.xlane.xlu0 %3518
      %v3520 = vsel %vm599, %v562, 0.0
      %3521 = vadd.xlane.f32.xlu0 %v3520
      %v3522 = vpop.xlane.xlu0 %3521
      %v3523 = vsel %vm599, %v564, 0.0
      %3524 = vadd.xlane.f32.xlu0 %v3523
      %v3525 = vpop.xlane.xlu0 %3524
      %v3526 = vsel %vm599, %v566, 0.0
      %3527 = vadd.xlane.f32.xlu0 %v3526
      %v3528 = vpop.xlane.xlu0 %3527
      %v3529 = vsel %vm599, %v568, 0.0
      %3530 = vadd.xlane.f32.xlu0 %v3529
      %v3531 = vpop.xlane.xlu0 %3530
      %v3532 = vsel %vm599, %v570, 0.0
      %3533 = vadd.xlane.f32.xlu0 %v3532
      %v3534 = vpop.xlane.xlu0 %3533
      %v3535 = vsel %vm599, %v572, 0.0
      %3536 = vadd.xlane.f32.xlu0 %v3535
      %v3537 = vpop.xlane.xlu0 %3536
      %v3538 = vsel %vm599, %v574, 0.0
      %3539 = vadd.xlane.f32.xlu0 %v3538
      %v3540 = vpop.xlane.xlu0 %3539
      %v3541 = vsel %vm599, %v576, 0.0
      %3542 = vadd.xlane.f32.xlu0 %v3541
      %v3543 = vpop.xlane.xlu0 %3542
      %v3544 = vsel %vm599, %v578, 0.0
      %3545 = vadd.xlane.f32.xlu0 %v3544
      %v3546 = vpop.xlane.xlu0 %3545
      %v3547 = vsel %vm599, %v580, 0.0
      %3548 = vadd.xlane.f32.xlu0 %v3547
      %v3549 = vpop.xlane.xlu0 %3548
      %v3550 = vsel %vm599, %v582, 0.0
      %3551 = vadd.xlane.f32.xlu0 %v3550
      %v3552 = vpop.xlane.xlu0 %3551
      %v3553 = vsel %vm599, %v584, 0.0
      %3554 = vadd.xlane.f32.xlu0 %v3553
      %v3555 = vpop.xlane.xlu0 %3554
      %v3556 = vsel %vm599, %v586, 0.0
      %3557 = vadd.xlane.f32.xlu0 %v3556
      %v3558 = vpop.xlane.xlu0 %3557
      %v3559 = vsel %vm599, %v588, 0.0
      %3560 = vadd.xlane.f32.xlu0 %v3559
      %v3561 = vpop.xlane.xlu0 %3560
      %v3562 = vsel %vm599, %v590, 0.0
      %3563 = vadd.xlane.f32.xlu0 %v3562
      %v3564 = vpop.xlane.xlu0 %3563
      %v3565 = vsel %vm599, %v592, 0.0
      %3566 = vadd.xlane.f32.xlu0 %v3565
      %v3567 = vpop.xlane.xlu0 %3566
      %v3568 = vsel %vm599, %v594, 0.0
      %3569 = vadd.xlane.f32.xlu0 %v3568
      %v3570 = vpop.xlane.xlu0 %3569
      %v3571 = vsel %vm599, %v596, 0.0
      %3572 = vadd.xlane.f32.xlu0 %v3571
      %v3573 = vpop.xlane.xlu0 %3572
      %v3574 = vsel %vm599, %v598, 0.0
      %3575 = vadd.xlane.f32.xlu0 %v3574
      %v3576 = vpop.xlane.xlu0 %3575
      %v3577 = vmul.f32 %v3483, %v696
      %v3578 = vmul.f32 %v3486, %v696
      %v3579 = vmul.f32 %v3489, %v696
      %v3580 = vmul.f32 %v3492, %v696
      %v3581 = vmul.f32 %v3495, %v696
      %v3582 = vmul.f32 %v3498, %v696
      %v3583 = vmul.f32 %v3501, %v696
      %v3584 = vmul.f32 %v3504, %v696
      %v3585 = vmul.f32 %v3507, %v696
      %v3586 = vmul.f32 %v3510, %v696
      %v3587 = vmul.f32 %v3513, %v696
      %v3588 = vmul.f32 %v3516, %v696
      %v3589 = vmul.f32 %v3519, %v696
      %v3590 = vmul.f32 %v3522, %v696
      %v3591 = vmul.f32 %v3525, %v696
      %v3592 = vmul.f32 %v3528, %v696
      %v3593 = vmul.f32 %v3531, %v696
      %v3594 = vmul.f32 %v3534, %v696
      %v3595 = vmul.f32 %v3537, %v696
      %v3596 = vmul.f32 %v3540, %v696
      %v3597 = vmul.f32 %v3543, %v696
      %v3598 = vmul.f32 %v3546, %v696
      %v3599 = vmul.f32 %v3549, %v696
      %v3600 = vmul.f32 %v3552, %v696
      %v3601 = vmul.f32 %v3555, %v696
      %v3602 = vmul.f32 %v3558, %v696
      %v3603 = vmul.f32 %v3561, %v696
      %v3604 = vmul.f32 %v3564, %v696
      %v3605 = vmul.f32 %v3567, %v696
      %v3606 = vmul.f32 %v3570, %v696
      %v3607 = vmul.f32 %v3573, %v696
      %v3608 = vmul.f32 %v3576, %v696
      %v3609 = vsub.f32 %v536, %v3577
      %v3610 = vsub.f32 %v538, %v3578
      %v3611 = vsub.f32 %v540, %v3579
      %v3612 = vsub.f32 %v542, %v3580
      %v3613 = vsub.f32 %v544, %v3581
      %v3614 = vsub.f32 %v546, %v3582
      %v3615 = vsub.f32 %v548, %v3583
      %v3616 = vsub.f32 %v550, %v3584
      %v3617 = vsub.f32 %v552, %v3585
      %v3618 = vsub.f32 %v554, %v3586
      %v3619 = vsub.f32 %v556, %v3587
      %v3620 = vsub.f32 %v558, %v3588
      %v3621 = vsub.f32 %v560, %v3589
      %v3622 = vsub.f32 %v562, %v3590
      %v3623 = vsub.f32 %v564, %v3591
      %v3624 = vsub.f32 %v566, %v3592
      %v3625 = vsub.f32 %v568, %v3593
      %v3626 = vsub.f32 %v570, %v3594
      %v3627 = vsub.f32 %v572, %v3595
      %v3628 = vsub.f32 %v574, %v3596
      %v3629 = vsub.f32 %v576, %v3597
      %v3630 = vsub.f32 %v578, %v3598
      %v3631 = vsub.f32 %v580, %v3599
      %v3632 = vsub.f32 %v582, %v3600
      %v3633 = vsub.f32 %v584, %v3601
      %v3634 = vsub.f32 %v586, %v3602
      %v3635 = vsub.f32 %v588, %v3603
      %v3636 = vsub.f32 %v590, %v3604
      %v3637 = vsub.f32 %v592, %v3605
      %v3638 = vsub.f32 %v594, %v3606
      %v3639 = vsub.f32 %v596, %v3607
      %v3640 = vsub.f32 %v598, %v3608
      %v3641 = vmul.f32 %v3609, %v3609
      %v3642 = vmul.f32 %v3610, %v3610
      %v3643 = vmul.f32 %v3611, %v3611
      %v3644 = vmul.f32 %v3612, %v3612
      %v3645 = vmul.f32 %v3613, %v3613
      %v3646 = vmul.f32 %v3614, %v3614
      %v3647 = vmul.f32 %v3615, %v3615
      %v3648 = vmul.f32 %v3616, %v3616
      %v3649 = vmul.f32 %v3617, %v3617
      %v3650 = vmul.f32 %v3618, %v3618
      %v3651 = vmul.f32 %v3619, %v3619
      %v3652 = vmul.f32 %v3620, %v3620
      %v3653 = vmul.f32 %v3621, %v3621
      %v3654 = vmul.f32 %v3622, %v3622
      %v3655 = vmul.f32 %v3623, %v3623
      %v3656 = vmul.f32 %v3624, %v3624
      %v3657 = vmul.f32 %v3625, %v3625
      %v3658 = vmul.f32 %v3626, %v3626
      %v3659 = vmul.f32 %v3627, %v3627
      %v3660 = vmul.f32 %v3628, %v3628
      %v3661 = vmul.f32 %v3629, %v3629
      %v3662 = vmul.f32 %v3630, %v3630
      %v3663 = vmul.f32 %v3631, %v3631
      %v3664 = vmul.f32 %v3632, %v3632
      %v3665 = vmul.f32 %v3633, %v3633
      %v3666 = vmul.f32 %v3634, %v3634
      %v3667 = vmul.f32 %v3635, %v3635
      %v3668 = vmul.f32 %v3636, %v3636
      %v3669 = vmul.f32 %v3637, %v3637
      %v3670 = vmul.f32 %v3638, %v3638
      %v3671 = vmul.f32 %v3639, %v3639
      %v3672 = vmul.f32 %v3640, %v3640
      %v3673 = vsel %vm599, %v3641, 0.0
      %3674 = vadd.xlane.f32.xlu0 %v3673
      %v3675 = vpop.xlane.xlu0 %3674
      %v3676 = vsel %vm599, %v3642, 0.0
      %3677 = vadd.xlane.f32.xlu0 %v3676
      %v3678 = vpop.xlane.xlu0 %3677
      %v3679 = vsel %vm599, %v3643, 0.0
      %3680 = vadd.xlane.f32.xlu0 %v3679
      %v3681 = vpop.xlane.xlu0 %3680
      %v3682 = vsel %vm599, %v3644, 0.0
      %3683 = vadd.xlane.f32.xlu0 %v3682
      %v3684 = vpop.xlane.xlu0 %3683
      %v3685 = vsel %vm599, %v3645, 0.0
      %3686 = vadd.xlane.f32.xlu0 %v3685
      %v3687 = vpop.xlane.xlu0 %3686
      %v3688 = vsel %vm599, %v3646, 0.0
      %3689 = vadd.xlane.f32.xlu0 %v3688
      %v3690 = vpop.xlane.xlu0 %3689
      %v3691 = vsel %vm599, %v3647, 0.0
      %3692 = vadd.xlane.f32.xlu0 %v3691
      %v3693 = vpop.xlane.xlu0 %3692
      %v3694 = vsel %vm599, %v3648, 0.0
      %3695 = vadd.xlane.f32.xlu0 %v3694
      %v3696 = vpop.xlane.xlu0 %3695
      %v3697 = vsel %vm599, %v3649, 0.0
      %3698 = vadd.xlane.f32.xlu0 %v3697
      %v3699 = vpop.xlane.xlu0 %3698
      %v3700 = vsel %vm599, %v3650, 0.0
      %3701 = vadd.xlane.f32.xlu0 %v3700
      %v3702 = vpop.xlane.xlu0 %3701
      %v3703 = vsel %vm599, %v3651, 0.0
      %3704 = vadd.xlane.f32.xlu0 %v3703
      %v3705 = vpop.xlane.xlu0 %3704
      %v3706 = vsel %vm599, %v3652, 0.0
      %3707 = vadd.xlane.f32.xlu0 %v3706
      %v3708 = vpop.xlane.xlu0 %3707
      %v3709 = vsel %vm599, %v3653, 0.0
      %3710 = vadd.xlane.f32.xlu0 %v3709
      %v3711 = vpop.xlane.xlu0 %3710
      %v3712 = vsel %vm599, %v3654, 0.0
      %3713 = vadd.xlane.f32.xlu0 %v3712
      %v3714 = vpop.xlane.xlu0 %3713
      %v3715 = vsel %vm599, %v3655, 0.0
      %3716 = vadd.xlane.f32.xlu0 %v3715
      %v3717 = vpop.xlane.xlu0 %3716
      %v3718 = vsel %vm599, %v3656, 0.0
      %3719 = vadd.xlane.f32.xlu0 %v3718
      %v3720 = vpop.xlane.xlu0 %3719
      %v3721 = vsel %vm599, %v3657, 0.0
      %3722 = vadd.xlane.f32.xlu0 %v3721
      %v3723 = vpop.xlane.xlu0 %3722
      %v3724 = vsel %vm599, %v3658, 0.0
      %3725 = vadd.xlane.f32.xlu0 %v3724
      %v3726 = vpop.xlane.xlu0 %3725
      %v3727 = vsel %vm599, %v3659, 0.0
      %3728 = vadd.xlane.f32.xlu0 %v3727
      %v3729 = vpop.xlane.xlu0 %3728
      %v3730 = vsel %vm599, %v3660, 0.0
      %3731 = vadd.xlane.f32.xlu0 %v3730
      %v3732 = vpop.xlane.xlu0 %3731
      %v3733 = vsel %vm599, %v3661, 0.0
      %3734 = vadd.xlane.f32.xlu0 %v3733
      %v3735 = vpop.xlane.xlu0 %3734
      %v3736 = vsel %vm599, %v3662, 0.0
      %3737 = vadd.xlane.f32.xlu0 %v3736
      %v3738 = vpop.xlane.xlu0 %3737
      %v3739 = vsel %vm599, %v3663, 0.0
      %3740 = vadd.xlane.f32.xlu0 %v3739
      %v3741 = vpop.xlane.xlu0 %3740
      %v3742 = vsel %vm599, %v3664, 0.0
      %3743 = vadd.xlane.f32.xlu0 %v3742
      %v3744 = vpop.xlane.xlu0 %3743
      %v3745 = vsel %vm599, %v3665, 0.0
      %3746 = vadd.xlane.f32.xlu0 %v3745
      %v3747 = vpop.xlane.xlu0 %3746
      %v3748 = vsel %vm599, %v3666, 0.0
      %3749 = vadd.xlane.f32.xlu0 %v3748
      %v3750 = vpop.xlane.xlu0 %3749
      %v3751 = vsel %vm599, %v3667, 0.0
      %3752 = vadd.xlane.f32.xlu0 %v3751
      %v3753 = vpop.xlane.xlu0 %3752
      %v3754 = vsel %vm599, %v3668, 0.0
      %3755 = vadd.xlane.f32.xlu0 %v3754
      %v3756 = vpop.xlane.xlu0 %3755
      %v3757 = vsel %vm599, %v3669, 0.0
      %3758 = vadd.xlane.f32.xlu0 %v3757
      %v3759 = vpop.xlane.xlu0 %3758
      %v3760 = vsel %vm599, %v3670, 0.0
      %3761 = vadd.xlane.f32.xlu0 %v3760
      %v3762 = vpop.xlane.xlu0 %3761
      %v3763 = vsel %vm599, %v3671, 0.0
      %3764 = vadd.xlane.f32.xlu0 %v3763
      %v3765 = vpop.xlane.xlu0 %3764
      %v3766 = vsel %vm599, %v3672, 0.0
      %3767 = vadd.xlane.f32.xlu0 %v3766
      %v3768 = vpop.xlane.xlu0 %3767
      %v3769 = vmul.f32 %v3675, %v696
      %v3770 = vmul.f32 %v3678, %v696
      %v3771 = vmul.f32 %v3681, %v696
      %v3772 = vmul.f32 %v3684, %v696
      %v3773 = vmul.f32 %v3687, %v696
      %v3774 = vmul.f32 %v3690, %v696
      %v3775 = vmul.f32 %v3693, %v696
      %v3776 = vmul.f32 %v3696, %v696
      %v3777 = vmul.f32 %v3699, %v696
      %v3778 = vmul.f32 %v3702, %v696
      %v3779 = vmul.f32 %v3705, %v696
      %v3780 = vmul.f32 %v3708, %v696
      %v3781 = vmul.f32 %v3711, %v696
      %v3782 = vmul.f32 %v3714, %v696
      %v3783 = vmul.f32 %v3717, %v696
      %v3784 = vmul.f32 %v3720, %v696
      %v3785 = vmul.f32 %v3723, %v696
      %v3786 = vmul.f32 %v3726, %v696
      %v3787 = vmul.f32 %v3729, %v696
      %v3788 = vmul.f32 %v3732, %v696
      %v3789 = vmul.f32 %v3735, %v696
      %v3790 = vmul.f32 %v3738, %v696
      %v3791 = vmul.f32 %v3741, %v696
      %v3792 = vmul.f32 %v3744, %v696
      %v3793 = vmul.f32 %v3747, %v696
      %v3794 = vmul.f32 %v3750, %v696
      %v3795 = vmul.f32 %v3753, %v696
      %v3796 = vmul.f32 %v3756, %v696
      %v3797 = vmul.f32 %v3759, %v696
      %v3798 = vmul.f32 %v3762, %v696
      %v3799 = vmul.f32 %v3765, %v696
      %v3800 = vmul.f32 %v3768, %v696
      %v3801 = vadd.f32 %v3769, 1e-05
      %v3802 = vadd.f32 %v3770, 1e-05
      %v3803 = vadd.f32 %v3771, 1e-05
      %v3804 = vadd.f32 %v3772, 1e-05
      %v3805 = vadd.f32 %v3773, 1e-05
      %v3806 = vadd.f32 %v3774, 1e-05
      %v3807 = vadd.f32 %v3775, 1e-05
      %v3808 = vadd.f32 %v3776, 1e-05
      %v3809 = vadd.f32 %v3777, 1e-05
      %v3810 = vadd.f32 %v3778, 1e-05
      %v3811 = vadd.f32 %v3779, 1e-05
      %v3812 = vadd.f32 %v3780, 1e-05
      %v3813 = vadd.f32 %v3781, 1e-05
      %v3814 = vadd.f32 %v3782, 1e-05
      %v3815 = vadd.f32 %v3783, 1e-05
      %v3816 = vadd.f32 %v3784, 1e-05
      %v3817 = vadd.f32 %v3785, 1e-05
      %v3818 = vadd.f32 %v3786, 1e-05
      %v3819 = vadd.f32 %v3787, 1e-05
      %v3820 = vadd.f32 %v3788, 1e-05
      %v3821 = vadd.f32 %v3789, 1e-05
      %v3822 = vadd.f32 %v3790, 1e-05
      %v3823 = vadd.f32 %v3791, 1e-05
      %v3824 = vadd.f32 %v3792, 1e-05
      %v3825 = vadd.f32 %v3793, 1e-05
      %v3826 = vadd.f32 %v3794, 1e-05
      %v3827 = vadd.f32 %v3795, 1e-05
      %v3828 = vadd.f32 %v3796, 1e-05
      %v3829 = vadd.f32 %v3797, 1e-05
      %v3830 = vadd.f32 %v3798, 1e-05
      %v3831 = vadd.f32 %v3799, 1e-05
      %v3832 = vadd.f32 %v3800, 1e-05
      %v3833 = vrsqrt.pop %v3801
      %v3834 = vrsqrt.pop %v3802
      %v3835 = vrsqrt.pop %v3803
      %v3836 = vrsqrt.pop %v3804
      %v3837 = vrsqrt.pop %v3805
      %v3838 = vrsqrt.pop %v3806
      %v3839 = vrsqrt.pop %v3807
      %v3840 = vrsqrt.pop %v3808
      %v3841 = vrsqrt.pop %v3809
      %v3842 = vrsqrt.pop %v3810
      %v3843 = vrsqrt.pop %v3811
      %v3844 = vrsqrt.pop %v3812
      %v3845 = vrsqrt.pop %v3813
      %v3846 = vrsqrt.pop %v3814
      %v3847 = vrsqrt.pop %v3815
      %v3848 = vrsqrt.pop %v3816
      %v3849 = vrsqrt.pop %v3817
      %v3850 = vrsqrt.pop %v3818
      %v3851 = vrsqrt.pop %v3819
      %v3852 = vrsqrt.pop %v3820
      %v3853 = vrsqrt.pop %v3821
      %v3854 = vrsqrt.pop %v3822
      %v3855 = vrsqrt.pop %v3823
      %v3856 = vrsqrt.pop %v3824
      %v3857 = vrsqrt.pop %v3825
      %v3858 = vrsqrt.pop %v3826
      %v3859 = vrsqrt.pop %v3827
      %v3860 = vrsqrt.pop %v3828
      %v3861 = vrsqrt.pop %v3829
      %v3862 = vrsqrt.pop %v3830
      %v3863 = vrsqrt.pop %v3831
      %v3864 = vrsqrt.pop %v3832
      %v3865 = vmul.f32 %v3609, %v3833
      %v3866 = vmul.f32 %v3610, %v3834
      %v3867 = vmul.f32 %v3611, %v3835
      %v3868 = vmul.f32 %v3612, %v3836
      %v3869 = vmul.f32 %v3613, %v3837
      %v3870 = vmul.f32 %v3614, %v3838
      %v3871 = vmul.f32 %v3615, %v3839
      %v3872 = vmul.f32 %v3616, %v3840
      %v3873 = vmul.f32 %v3617, %v3841
      %v3874 = vmul.f32 %v3618, %v3842
      %v3875 = vmul.f32 %v3619, %v3843
      %v3876 = vmul.f32 %v3620, %v3844
      %v3877 = vmul.f32 %v3621, %v3845
      %v3878 = vmul.f32 %v3622, %v3846
      %v3879 = vmul.f32 %v3623, %v3847
      %v3880 = vmul.f32 %v3624, %v3848
      %v3881 = vmul.f32 %v3625, %v3849
      %v3882 = vmul.f32 %v3626, %v3850
      %v3883 = vmul.f32 %v3627, %v3851
      %v3884 = vmul.f32 %v3628, %v3852
      %v3885 = vmul.f32 %v3629, %v3853
      %v3886 = vmul.f32 %v3630, %v3854
      %v3887 = vmul.f32 %v3631, %v3855
      %v3888 = vmul.f32 %v3632, %v3856
      %v3889 = vmul.f32 %v3633, %v3857
      %v3890 = vmul.f32 %v3634, %v3858
      %v3891 = vmul.f32 %v3635, %v3859
      %v3892 = vmul.f32 %v3636, %v3860
      %v3893 = vmul.f32 %v3637, %v3861
      %v3894 = vmul.f32 %v3638, %v3862
      %v3895 = vmul.f32 %v3639, %v3863
      %v3896 = vmul.f32 %v3640, %v3864
      %v3897 = vadd.f32 %v3449, %v3865
      %v3898 = vadd.f32 %v3450, %v3866
      %v3899 = vadd.f32 %v3451, %v3867
      %v3900 = vadd.f32 %v3452, %v3868
      %v3901 = vadd.f32 %v3453, %v3869
      %v3902 = vadd.f32 %v3454, %v3870
      %v3903 = vadd.f32 %v3455, %v3871
      %v3904 = vadd.f32 %v3456, %v3872
      %v3905 = vadd.f32 %v3457, %v3873
      %v3906 = vadd.f32 %v3458, %v3874
      %v3907 = vadd.f32 %v3459, %v3875
      %v3908 = vadd.f32 %v3460, %v3876
      %v3909 = vadd.f32 %v3461, %v3877
      %v3910 = vadd.f32 %v3462, %v3878
      %v3911 = vadd.f32 %v3463, %v3879
      %v3912 = vadd.f32 %v3464, %v3880
      %v3913 = vadd.f32 %v3465, %v3881
      %v3914 = vadd.f32 %v3466, %v3882
      %v3915 = vadd.f32 %v3467, %v3883
      %v3916 = vadd.f32 %v3468, %v3884
      %v3917 = vadd.f32 %v3469, %v3885
      %v3918 = vadd.f32 %v3470, %v3886
      %v3919 = vadd.f32 %v3471, %v3887
      %v3920 = vadd.f32 %v3472, %v3888
      %v3921 = vadd.f32 %v3473, %v3889
      %v3922 = vadd.f32 %v3474, %v3890
      %v3923 = vadd.f32 %v3475, %v3891
      %v3924 = vadd.f32 %v3476, %v3892
      %v3925 = vadd.f32 %v3477, %v3893
      %v3926 = vadd.f32 %v3478, %v3894
      %v3927 = vadd.f32 %v3479, %v3895
      %v3928 = vadd.f32 %v3480, %v3896
      %3961 = vrot.lane.b32.xlu0 %v536, 96
      %v3962 = vpop.permute.xlu0 %3961
      %3963 = vrot.lane.b32.xlu0 %v538, 96
      %v3964 = vpop.permute.xlu0 %3963
      %3965 = vrot.lane.b32.xlu0 %v540, 96
      %v3966 = vpop.permute.xlu0 %3965
      %3967 = vrot.lane.b32.xlu0 %v542, 96
      %v3968 = vpop.permute.xlu0 %3967
      %3969 = vrot.lane.b32.xlu0 %v544, 96
      %v3970 = vpop.permute.xlu0 %3969
      %3971 = vrot.lane.b32.xlu0 %v546, 96
      %v3972 = vpop.permute.xlu0 %3971
      %3973 = vrot.lane.b32.xlu0 %v548, 96
      %v3974 = vpop.permute.xlu0 %3973
      %3975 = vrot.lane.b32.xlu0 %v550, 96
      %v3976 = vpop.permute.xlu0 %3975
      %3977 = vrot.lane.b32.xlu0 %v552, 96
      %v3978 = vpop.permute.xlu0 %3977
      %3979 = vrot.lane.b32.xlu0 %v554, 96
      %v3980 = vpop.permute.xlu0 %3979
      %3981 = vrot.lane.b32.xlu0 %v556, 96
      %v3982 = vpop.permute.xlu0 %3981
      %3983 = vrot.lane.b32.xlu0 %v558, 96
      %v3984 = vpop.permute.xlu0 %3983
      %3985 = vrot.lane.b32.xlu0 %v560, 96
      %v3986 = vpop.permute.xlu0 %3985
      %3987 = vrot.lane.b32.xlu0 %v562, 96
      %v3988 = vpop.permute.xlu0 %3987
      %3989 = vrot.lane.b32.xlu0 %v564, 96
      %v3990 = vpop.permute.xlu0 %3989
      %3991 = vrot.lane.b32.xlu0 %v566, 96
      %v3992 = vpop.permute.xlu0 %3991
      %3993 = vrot.lane.b32.xlu0 %v568, 96
      %v3994 = vpop.permute.xlu0 %3993
      %3995 = vrot.lane.b32.xlu0 %v570, 96
      %v3996 = vpop.permute.xlu0 %3995
      %3997 = vrot.lane.b32.xlu0 %v572, 96
      %v3998 = vpop.permute.xlu0 %3997
      %3999 = vrot.lane.b32.xlu0 %v574, 96
      %v4000 = vpop.permute.xlu0 %3999
      %4001 = vrot.lane.b32.xlu0 %v576, 96
      %v4002 = vpop.permute.xlu0 %4001
      %4003 = vrot.lane.b32.xlu0 %v578, 96
      %v4004 = vpop.permute.xlu0 %4003
      %4005 = vrot.lane.b32.xlu0 %v580, 96
      %v4006 = vpop.permute.xlu0 %4005
      %4007 = vrot.lane.b32.xlu0 %v582, 96
      %v4008 = vpop.permute.xlu0 %4007
      %4009 = vrot.lane.b32.xlu0 %v584, 96
      %v4010 = vpop.permute.xlu0 %4009
      %4011 = vrot.lane.b32.xlu0 %v586, 96
      %v4012 = vpop.permute.xlu0 %4011
      %4013 = vrot.lane.b32.xlu0 %v588, 96
      %v4014 = vpop.permute.xlu0 %4013
      %4015 = vrot.lane.b32.xlu0 %v590, 96
      %v4016 = vpop.permute.xlu0 %4015
      %4017 = vrot.lane.b32.xlu0 %v592, 96
      %v4018 = vpop.permute.xlu0 %4017
      %4019 = vrot.lane.b32.xlu0 %v594, 96
      %v4020 = vpop.permute.xlu0 %4019
      %4021 = vrot.lane.b32.xlu0 %v596, 96
      %v4022 = vpop.permute.xlu0 %4021
      %4023 = vrot.lane.b32.xlu0 %v598, 96
      %v4024 = vpop.permute.xlu0 %4023
      %v4057 = vsel %vm599, %v3962, 0.0
      %4058 = vadd.xlane.f32.xlu0 %v4057
      %v4059 = vpop.xlane.xlu0 %4058
      %v4060 = vsel %vm599, %v3964, 0.0
      %4061 = vadd.xlane.f32.xlu0 %v4060
      %v4062 = vpop.xlane.xlu0 %4061
      %v4063 = vsel %vm599, %v3966, 0.0
      %4064 = vadd.xlane.f32.xlu0 %v4063
      %v4065 = vpop.xlane.xlu0 %4064
      %v4066 = vsel %vm599, %v3968, 0.0
      %4067 = vadd.xlane.f32.xlu0 %v4066
      %v4068 = vpop.xlane.xlu0 %4067
      %v4069 = vsel %vm599, %v3970, 0.0
      %4070 = vadd.xlane.f32.xlu0 %v4069
      %v4071 = vpop.xlane.xlu0 %4070
      %v4072 = vsel %vm599, %v3972, 0.0
      %4073 = vadd.xlane.f32.xlu0 %v4072
      %v4074 = vpop.xlane.xlu0 %4073
      %v4075 = vsel %vm599, %v3974, 0.0
      %4076 = vadd.xlane.f32.xlu0 %v4075
      %v4077 = vpop.xlane.xlu0 %4076
      %v4078 = vsel %vm599, %v3976, 0.0
      %4079 = vadd.xlane.f32.xlu0 %v4078
      %v4080 = vpop.xlane.xlu0 %4079
      %v4081 = vsel %vm599, %v3978, 0.0
      %4082 = vadd.xlane.f32.xlu0 %v4081
      %v4083 = vpop.xlane.xlu0 %4082
      %v4084 = vsel %vm599, %v3980, 0.0
      %4085 = vadd.xlane.f32.xlu0 %v4084
      %v4086 = vpop.xlane.xlu0 %4085
      %v4087 = vsel %vm599, %v3982, 0.0
      %4088 = vadd.xlane.f32.xlu0 %v4087
      %v4089 = vpop.xlane.xlu0 %4088
      %v4090 = vsel %vm599, %v3984, 0.0
      %4091 = vadd.xlane.f32.xlu0 %v4090
      %v4092 = vpop.xlane.xlu0 %4091
      %v4093 = vsel %vm599, %v3986, 0.0
      %4094 = vadd.xlane.f32.xlu0 %v4093
      %v4095 = vpop.xlane.xlu0 %4094
      %v4096 = vsel %vm599, %v3988, 0.0
      %4097 = vadd.xlane.f32.xlu0 %v4096
      %v4098 = vpop.xlane.xlu0 %4097
      %v4099 = vsel %vm599, %v3990, 0.0
      %4100 = vadd.xlane.f32.xlu0 %v4099
      %v4101 = vpop.xlane.xlu0 %4100
      %v4102 = vsel %vm599, %v3992, 0.0
      %4103 = vadd.xlane.f32.xlu0 %v4102
      %v4104 = vpop.xlane.xlu0 %4103
      %v4105 = vsel %vm599, %v3994, 0.0
      %4106 = vadd.xlane.f32.xlu0 %v4105
      %v4107 = vpop.xlane.xlu0 %4106
      %v4108 = vsel %vm599, %v3996, 0.0
      %4109 = vadd.xlane.f32.xlu0 %v4108
      %v4110 = vpop.xlane.xlu0 %4109
      %v4111 = vsel %vm599, %v3998, 0.0
      %4112 = vadd.xlane.f32.xlu0 %v4111
      %v4113 = vpop.xlane.xlu0 %4112
      %v4114 = vsel %vm599, %v4000, 0.0
      %4115 = vadd.xlane.f32.xlu0 %v4114
      %v4116 = vpop.xlane.xlu0 %4115
      %v4117 = vsel %vm599, %v4002, 0.0
      %4118 = vadd.xlane.f32.xlu0 %v4117
      %v4119 = vpop.xlane.xlu0 %4118
      %v4120 = vsel %vm599, %v4004, 0.0
      %4121 = vadd.xlane.f32.xlu0 %v4120
      %v4122 = vpop.xlane.xlu0 %4121
      %v4123 = vsel %vm599, %v4006, 0.0
      %4124 = vadd.xlane.f32.xlu0 %v4123
      %v4125 = vpop.xlane.xlu0 %4124
      %v4126 = vsel %vm599, %v4008, 0.0
      %4127 = vadd.xlane.f32.xlu0 %v4126
      %v4128 = vpop.xlane.xlu0 %4127
      %v4129 = vsel %vm599, %v4010, 0.0
      %4130 = vadd.xlane.f32.xlu0 %v4129
      %v4131 = vpop.xlane.xlu0 %4130
      %v4132 = vsel %vm599, %v4012, 0.0
      %4133 = vadd.xlane.f32.xlu0 %v4132
      %v4134 = vpop.xlane.xlu0 %4133
      %v4135 = vsel %vm599, %v4014, 0.0
      %4136 = vadd.xlane.f32.xlu0 %v4135
      %v4137 = vpop.xlane.xlu0 %4136
      %v4138 = vsel %vm599, %v4016, 0.0
      %4139 = vadd.xlane.f32.xlu0 %v4138
      %v4140 = vpop.xlane.xlu0 %4139
      %v4141 = vsel %vm599, %v4018, 0.0
      %4142 = vadd.xlane.f32.xlu0 %v4141
      %v4143 = vpop.xlane.xlu0 %4142
      %v4144 = vsel %vm599, %v4020, 0.0
      %4145 = vadd.xlane.f32.xlu0 %v4144
      %v4146 = vpop.xlane.xlu0 %4145
      %v4147 = vsel %vm599, %v4022, 0.0
      %4148 = vadd.xlane.f32.xlu0 %v4147
      %v4149 = vpop.xlane.xlu0 %4148
      %v4150 = vsel %vm599, %v4024, 0.0
      %4151 = vadd.xlane.f32.xlu0 %v4150
      %v4152 = vpop.xlane.xlu0 %4151
      %v4153 = vmul.f32 %v4059, %v696
      %v4154 = vmul.f32 %v4062, %v696
      %v4155 = vmul.f32 %v4065, %v696
      %v4156 = vmul.f32 %v4068, %v696
      %v4157 = vmul.f32 %v4071, %v696
      %v4158 = vmul.f32 %v4074, %v696
      %v4159 = vmul.f32 %v4077, %v696
      %v4160 = vmul.f32 %v4080, %v696
      %v4161 = vmul.f32 %v4083, %v696
      %v4162 = vmul.f32 %v4086, %v696
      %v4163 = vmul.f32 %v4089, %v696
      %v4164 = vmul.f32 %v4092, %v696
      %v4165 = vmul.f32 %v4095, %v696
      %v4166 = vmul.f32 %v4098, %v696
      %v4167 = vmul.f32 %v4101, %v696
      %v4168 = vmul.f32 %v4104, %v696
      %v4169 = vmul.f32 %v4107, %v696
      %v4170 = vmul.f32 %v4110, %v696
      %v4171 = vmul.f32 %v4113, %v696
      %v4172 = vmul.f32 %v4116, %v696
      %v4173 = vmul.f32 %v4119, %v696
      %v4174 = vmul.f32 %v4122, %v696
      %v4175 = vmul.f32 %v4125, %v696
      %v4176 = vmul.f32 %v4128, %v696
      %v4177 = vmul.f32 %v4131, %v696
      %v4178 = vmul.f32 %v4134, %v696
      %v4179 = vmul.f32 %v4137, %v696
      %v4180 = vmul.f32 %v4140, %v696
      %v4181 = vmul.f32 %v4143, %v696
      %v4182 = vmul.f32 %v4146, %v696
      %v4183 = vmul.f32 %v4149, %v696
      %v4184 = vmul.f32 %v4152, %v696
      %v4185 = vsub.f32 %v536, %v4153
      %v4186 = vsub.f32 %v538, %v4154
      %v4187 = vsub.f32 %v540, %v4155
      %v4188 = vsub.f32 %v542, %v4156
      %v4189 = vsub.f32 %v544, %v4157
      %v4190 = vsub.f32 %v546, %v4158
      %v4191 = vsub.f32 %v548, %v4159
      %v4192 = vsub.f32 %v550, %v4160
      %v4193 = vsub.f32 %v552, %v4161
      %v4194 = vsub.f32 %v554, %v4162
      %v4195 = vsub.f32 %v556, %v4163
      %v4196 = vsub.f32 %v558, %v4164
      %v4197 = vsub.f32 %v560, %v4165
      %v4198 = vsub.f32 %v562, %v4166
      %v4199 = vsub.f32 %v564, %v4167
      %v4200 = vsub.f32 %v566, %v4168
      %v4201 = vsub.f32 %v568, %v4169
      %v4202 = vsub.f32 %v570, %v4170
      %v4203 = vsub.f32 %v572, %v4171
      %v4204 = vsub.f32 %v574, %v4172
      %v4205 = vsub.f32 %v576, %v4173
      %v4206 = vsub.f32 %v578, %v4174
      %v4207 = vsub.f32 %v580, %v4175
      %v4208 = vsub.f32 %v582, %v4176
      %v4209 = vsub.f32 %v584, %v4177
      %v4210 = vsub.f32 %v586, %v4178
      %v4211 = vsub.f32 %v588, %v4179
      %v4212 = vsub.f32 %v590, %v4180
      %v4213 = vsub.f32 %v592, %v4181
      %v4214 = vsub.f32 %v594, %v4182
      %v4215 = vsub.f32 %v596, %v4183
      %v4216 = vsub.f32 %v598, %v4184
      %v4217 = vmul.f32 %v4185, %v4185
      %v4218 = vmul.f32 %v4186, %v4186
      %v4219 = vmul.f32 %v4187, %v4187
      %v4220 = vmul.f32 %v4188, %v4188
      %v4221 = vmul.f32 %v4189, %v4189
      %v4222 = vmul.f32 %v4190, %v4190
      %v4223 = vmul.f32 %v4191, %v4191
      %v4224 = vmul.f32 %v4192, %v4192
      %v4225 = vmul.f32 %v4193, %v4193
      %v4226 = vmul.f32 %v4194, %v4194
      %v4227 = vmul.f32 %v4195, %v4195
      %v4228 = vmul.f32 %v4196, %v4196
      %v4229 = vmul.f32 %v4197, %v4197
      %v4230 = vmul.f32 %v4198, %v4198
      %v4231 = vmul.f32 %v4199, %v4199
      %v4232 = vmul.f32 %v4200, %v4200
      %v4233 = vmul.f32 %v4201, %v4201
      %v4234 = vmul.f32 %v4202, %v4202
      %v4235 = vmul.f32 %v4203, %v4203
      %v4236 = vmul.f32 %v4204, %v4204
      %v4237 = vmul.f32 %v4205, %v4205
      %v4238 = vmul.f32 %v4206, %v4206
      %v4239 = vmul.f32 %v4207, %v4207
      %v4240 = vmul.f32 %v4208, %v4208
      %v4241 = vmul.f32 %v4209, %v4209
      %v4242 = vmul.f32 %v4210, %v4210
      %v4243 = vmul.f32 %v4211, %v4211
      %v4244 = vmul.f32 %v4212, %v4212
      %v4245 = vmul.f32 %v4213, %v4213
      %v4246 = vmul.f32 %v4214, %v4214
      %v4247 = vmul.f32 %v4215, %v4215
      %v4248 = vmul.f32 %v4216, %v4216
      %4281 = vrot.lane.b32.xlu0 %v4217, 96
      %v4282 = vpop.permute.xlu0 %4281
      %4283 = vrot.lane.b32.xlu0 %v4218, 96
      %v4284 = vpop.permute.xlu0 %4283
      %4285 = vrot.lane.b32.xlu0 %v4219, 96
      %v4286 = vpop.permute.xlu0 %4285
      %4287 = vrot.lane.b32.xlu0 %v4220, 96
      %v4288 = vpop.permute.xlu0 %4287
      %4289 = vrot.lane.b32.xlu0 %v4221, 96
      %v4290 = vpop.permute.xlu0 %4289
      %4291 = vrot.lane.b32.xlu0 %v4222, 96
      %v4292 = vpop.permute.xlu0 %4291
      %4293 = vrot.lane.b32.xlu0 %v4223, 96
      %v4294 = vpop.permute.xlu0 %4293
      %4295 = vrot.lane.b32.xlu0 %v4224, 96
      %v4296 = vpop.permute.xlu0 %4295
      %4297 = vrot.lane.b32.xlu0 %v4225, 96
      %v4298 = vpop.permute.xlu0 %4297
      %4299 = vrot.lane.b32.xlu0 %v4226, 96
      %v4300 = vpop.permute.xlu0 %4299
      %4301 = vrot.lane.b32.xlu0 %v4227, 96
      %v4302 = vpop.permute.xlu0 %4301
      %4303 = vrot.lane.b32.xlu0 %v4228, 96
      %v4304 = vpop.permute.xlu0 %4303
      %4305 = vrot.lane.b32.xlu0 %v4229, 96
      %v4306 = vpop.permute.xlu0 %4305
      %4307 = vrot.lane.b32.xlu0 %v4230, 96
      %v4308 = vpop.permute.xlu0 %4307
      %4309 = vrot.lane.b32.xlu0 %v4231, 96
      %v4310 = vpop.permute.xlu0 %4309
      %4311 = vrot.lane.b32.xlu0 %v4232, 96
      %v4312 = vpop.permute.xlu0 %4311
      %4313 = vrot.lane.b32.xlu0 %v4233, 96
      %v4314 = vpop.permute.xlu0 %4313
      %4315 = vrot.lane.b32.xlu0 %v4234, 96
      %v4316 = vpop.permute.xlu0 %4315
      %4317 = vrot.lane.b32.xlu0 %v4235, 96
      %v4318 = vpop.permute.xlu0 %4317
      %4319 = vrot.lane.b32.xlu0 %v4236, 96
      %v4320 = vpop.permute.xlu0 %4319
      %4321 = vrot.lane.b32.xlu0 %v4237, 96
      %v4322 = vpop.permute.xlu0 %4321
      %4323 = vrot.lane.b32.xlu0 %v4238, 96
      %v4324 = vpop.permute.xlu0 %4323
      %4325 = vrot.lane.b32.xlu0 %v4239, 96
      %v4326 = vpop.permute.xlu0 %4325
      %4327 = vrot.lane.b32.xlu0 %v4240, 96
      %v4328 = vpop.permute.xlu0 %4327
      %4329 = vrot.lane.b32.xlu0 %v4241, 96
      %v4330 = vpop.permute.xlu0 %4329
      %4331 = vrot.lane.b32.xlu0 %v4242, 96
      %v4332 = vpop.permute.xlu0 %4331
      %4333 = vrot.lane.b32.xlu0 %v4243, 96
      %v4334 = vpop.permute.xlu0 %4333
      %4335 = vrot.lane.b32.xlu0 %v4244, 96
      %v4336 = vpop.permute.xlu0 %4335
      %4337 = vrot.lane.b32.xlu0 %v4245, 96
      %v4338 = vpop.permute.xlu0 %4337
      %4339 = vrot.lane.b32.xlu0 %v4246, 96
      %v4340 = vpop.permute.xlu0 %4339
      %4341 = vrot.lane.b32.xlu0 %v4247, 96
      %v4342 = vpop.permute.xlu0 %4341
      %4343 = vrot.lane.b32.xlu0 %v4248, 96
      %v4344 = vpop.permute.xlu0 %4343
      %v4377 = vsel %vm599, %v4282, 0.0
      %4378 = vadd.xlane.f32.xlu0 %v4377
      %v4379 = vpop.xlane.xlu0 %4378
      %v4380 = vsel %vm599, %v4284, 0.0
      %4381 = vadd.xlane.f32.xlu0 %v4380
      %v4382 = vpop.xlane.xlu0 %4381
      %v4383 = vsel %vm599, %v4286, 0.0
      %4384 = vadd.xlane.f32.xlu0 %v4383
      %v4385 = vpop.xlane.xlu0 %4384
      %v4386 = vsel %vm599, %v4288, 0.0
      %4387 = vadd.xlane.f32.xlu0 %v4386
      %v4388 = vpop.xlane.xlu0 %4387
      %v4389 = vsel %vm599, %v4290, 0.0
      %4390 = vadd.xlane.f32.xlu0 %v4389
      %v4391 = vpop.xlane.xlu0 %4390
      %v4392 = vsel %vm599, %v4292, 0.0
      %4393 = vadd.xlane.f32.xlu0 %v4392
      %v4394 = vpop.xlane.xlu0 %4393
      %v4395 = vsel %vm599, %v4294, 0.0
      %4396 = vadd.xlane.f32.xlu0 %v4395
      %v4397 = vpop.xlane.xlu0 %4396
      %v4398 = vsel %vm599, %v4296, 0.0
      %4399 = vadd.xlane.f32.xlu0 %v4398
      %v4400 = vpop.xlane.xlu0 %4399
      %v4401 = vsel %vm599, %v4298, 0.0
      %4402 = vadd.xlane.f32.xlu0 %v4401
      %v4403 = vpop.xlane.xlu0 %4402
      %v4404 = vsel %vm599, %v4300, 0.0
      %4405 = vadd.xlane.f32.xlu0 %v4404
      %v4406 = vpop.xlane.xlu0 %4405
      %v4407 = vsel %vm599, %v4302, 0.0
      %4408 = vadd.xlane.f32.xlu0 %v4407
      %v4409 = vpop.xlane.xlu0 %4408
      %v4410 = vsel %vm599, %v4304, 0.0
      %4411 = vadd.xlane.f32.xlu0 %v4410
      %v4412 = vpop.xlane.xlu0 %4411
      %v4413 = vsel %vm599, %v4306, 0.0
      %4414 = vadd.xlane.f32.xlu0 %v4413
      %v4415 = vpop.xlane.xlu0 %4414
      %v4416 = vsel %vm599, %v4308, 0.0
      %4417 = vadd.xlane.f32.xlu0 %v4416
      %v4418 = vpop.xlane.xlu0 %4417
      %v4419 = vsel %vm599, %v4310, 0.0
      %4420 = vadd.xlane.f32.xlu0 %v4419
      %v4421 = vpop.xlane.xlu0 %4420
      %v4422 = vsel %vm599, %v4312, 0.0
      %4423 = vadd.xlane.f32.xlu0 %v4422
      %v4424 = vpop.xlane.xlu0 %4423
      %v4425 = vsel %vm599, %v4314, 0.0
      %4426 = vadd.xlane.f32.xlu0 %v4425
      %v4427 = vpop.xlane.xlu0 %4426
      %v4428 = vsel %vm599, %v4316, 0.0
      %4429 = vadd.xlane.f32.xlu0 %v4428
      %v4430 = vpop.xlane.xlu0 %4429
      %v4431 = vsel %vm599, %v4318, 0.0
      %4432 = vadd.xlane.f32.xlu0 %v4431
      %v4433 = vpop.xlane.xlu0 %4432
      %v4434 = vsel %vm599, %v4320, 0.0
      %4435 = vadd.xlane.f32.xlu0 %v4434
      %v4436 = vpop.xlane.xlu0 %4435
      %v4437 = vsel %vm599, %v4322, 0.0
      %4438 = vadd.xlane.f32.xlu0 %v4437
      %v4439 = vpop.xlane.xlu0 %4438
      %v4440 = vsel %vm599, %v4324, 0.0
      %4441 = vadd.xlane.f32.xlu0 %v4440
      %v4442 = vpop.xlane.xlu0 %4441
      %v4443 = vsel %vm599, %v4326, 0.0
      %4444 = vadd.xlane.f32.xlu0 %v4443
      %v4445 = vpop.xlane.xlu0 %4444
      %v4446 = vsel %vm599, %v4328, 0.0
      %4447 = vadd.xlane.f32.xlu0 %v4446
      %v4448 = vpop.xlane.xlu0 %4447
      %v4449 = vsel %vm599, %v4330, 0.0
      %4450 = vadd.xlane.f32.xlu0 %v4449
      %v4451 = vpop.xlane.xlu0 %4450
      %v4452 = vsel %vm599, %v4332, 0.0
      %4453 = vadd.xlane.f32.xlu0 %v4452
      %v4454 = vpop.xlane.xlu0 %4453
      %v4455 = vsel %vm599, %v4334, 0.0
      %4456 = vadd.xlane.f32.xlu0 %v4455
      %v4457 = vpop.xlane.xlu0 %4456
      %v4458 = vsel %vm599, %v4336, 0.0
      %4459 = vadd.xlane.f32.xlu0 %v4458
      %v4460 = vpop.xlane.xlu0 %4459
      %v4461 = vsel %vm599, %v4338, 0.0
      %4462 = vadd.xlane.f32.xlu0 %v4461
      %v4463 = vpop.xlane.xlu0 %4462
      %v4464 = vsel %vm599, %v4340, 0.0
      %4465 = vadd.xlane.f32.xlu0 %v4464
      %v4466 = vpop.xlane.xlu0 %4465
      %v4467 = vsel %vm599, %v4342, 0.0
      %4468 = vadd.xlane.f32.xlu0 %v4467
      %v4469 = vpop.xlane.xlu0 %4468
      %v4470 = vsel %vm599, %v4344, 0.0
      %4471 = vadd.xlane.f32.xlu0 %v4470
      %v4472 = vpop.xlane.xlu0 %4471
      %v4473 = vmul.f32 %v4379, %v696
      %v4474 = vmul.f32 %v4382, %v696
      %v4475 = vmul.f32 %v4385, %v696
      %v4476 = vmul.f32 %v4388, %v696
      %v4477 = vmul.f32 %v4391, %v696
      %v4478 = vmul.f32 %v4394, %v696
      %v4479 = vmul.f32 %v4397, %v696
      %v4480 = vmul.f32 %v4400, %v696
      %v4481 = vmul.f32 %v4403, %v696
      %v4482 = vmul.f32 %v4406, %v696
      %v4483 = vmul.f32 %v4409, %v696
      %v4484 = vmul.f32 %v4412, %v696
      %v4485 = vmul.f32 %v4415, %v696
      %v4486 = vmul.f32 %v4418, %v696
      %v4487 = vmul.f32 %v4421, %v696
      %v4488 = vmul.f32 %v4424, %v696
      %v4489 = vmul.f32 %v4427, %v696
      %v4490 = vmul.f32 %v4430, %v696
      %v4491 = vmul.f32 %v4433, %v696
      %v4492 = vmul.f32 %v4436, %v696
      %v4493 = vmul.f32 %v4439, %v696
      %v4494 = vmul.f32 %v4442, %v696
      %v4495 = vmul.f32 %v4445, %v696
      %v4496 = vmul.f32 %v4448, %v696
      %v4497 = vmul.f32 %v4451, %v696
      %v4498 = vmul.f32 %v4454, %v696
      %v4499 = vmul.f32 %v4457, %v696
      %v4500 = vmul.f32 %v4460, %v696
      %v4501 = vmul.f32 %v4463, %v696
      %v4502 = vmul.f32 %v4466, %v696
      %v4503 = vmul.f32 %v4469, %v696
      %v4504 = vmul.f32 %v4472, %v696
      %v4505 = vadd.f32 %v4473, 1e-05
      %v4506 = vadd.f32 %v4474, 1e-05
      %v4507 = vadd.f32 %v4475, 1e-05
      %v4508 = vadd.f32 %v4476, 1e-05
      %v4509 = vadd.f32 %v4477, 1e-05
      %v4510 = vadd.f32 %v4478, 1e-05
      %v4511 = vadd.f32 %v4479, 1e-05
      %v4512 = vadd.f32 %v4480, 1e-05
      %v4513 = vadd.f32 %v4481, 1e-05
      %v4514 = vadd.f32 %v4482, 1e-05
      %v4515 = vadd.f32 %v4483, 1e-05
      %v4516 = vadd.f32 %v4484, 1e-05
      %v4517 = vadd.f32 %v4485, 1e-05
      %v4518 = vadd.f32 %v4486, 1e-05
      %v4519 = vadd.f32 %v4487, 1e-05
      %v4520 = vadd.f32 %v4488, 1e-05
      %v4521 = vadd.f32 %v4489, 1e-05
      %v4522 = vadd.f32 %v4490, 1e-05
      %v4523 = vadd.f32 %v4491, 1e-05
      %v4524 = vadd.f32 %v4492, 1e-05
      %v4525 = vadd.f32 %v4493, 1e-05
      %v4526 = vadd.f32 %v4494, 1e-05
      %v4527 = vadd.f32 %v4495, 1e-05
      %v4528 = vadd.f32 %v4496, 1e-05
      %v4529 = vadd.f32 %v4497, 1e-05
      %v4530 = vadd.f32 %v4498, 1e-05
      %v4531 = vadd.f32 %v4499, 1e-05
      %v4532 = vadd.f32 %v4500, 1e-05
      %v4533 = vadd.f32 %v4501, 1e-05
      %v4534 = vadd.f32 %v4502, 1e-05
      %v4535 = vadd.f32 %v4503, 1e-05
      %v4536 = vadd.f32 %v4504, 1e-05
      %v4537 = vrsqrt.pop %v4505
      %v4538 = vrsqrt.pop %v4506
      %v4539 = vrsqrt.pop %v4507
      %v4540 = vrsqrt.pop %v4508
      %v4541 = vrsqrt.pop %v4509
      %v4542 = vrsqrt.pop %v4510
      %v4543 = vrsqrt.pop %v4511
      %v4544 = vrsqrt.pop %v4512
      %v4545 = vrsqrt.pop %v4513
      %v4546 = vrsqrt.pop %v4514
      %v4547 = vrsqrt.pop %v4515
      %v4548 = vrsqrt.pop %v4516
      %v4549 = vrsqrt.pop %v4517
      %v4550 = vrsqrt.pop %v4518
      %v4551 = vrsqrt.pop %v4519
      %v4552 = vrsqrt.pop %v4520
      %v4553 = vrsqrt.pop %v4521
      %v4554 = vrsqrt.pop %v4522
      %v4555 = vrsqrt.pop %v4523
      %v4556 = vrsqrt.pop %v4524
      %v4557 = vrsqrt.pop %v4525
      %v4558 = vrsqrt.pop %v4526
      %v4559 = vrsqrt.pop %v4527
      %v4560 = vrsqrt.pop %v4528
      %v4561 = vrsqrt.pop %v4529
      %v4562 = vrsqrt.pop %v4530
      %v4563 = vrsqrt.pop %v4531
      %v4564 = vrsqrt.pop %v4532
      %v4565 = vrsqrt.pop %v4533
      %v4566 = vrsqrt.pop %v4534
      %v4567 = vrsqrt.pop %v4535
      %v4568 = vrsqrt.pop %v4536
      %v4569 = vmul.f32 %v4185, %v4537
      %v4570 = vmul.f32 %v4186, %v4538
      %v4571 = vmul.f32 %v4187, %v4539
      %v4572 = vmul.f32 %v4188, %v4540
      %v4573 = vmul.f32 %v4189, %v4541
      %v4574 = vmul.f32 %v4190, %v4542
      %v4575 = vmul.f32 %v4191, %v4543
      %v4576 = vmul.f32 %v4192, %v4544
      %v4577 = vmul.f32 %v4193, %v4545
      %v4578 = vmul.f32 %v4194, %v4546
      %v4579 = vmul.f32 %v4195, %v4547
      %v4580 = vmul.f32 %v4196, %v4548
      %v4581 = vmul.f32 %v4197, %v4549
      %v4582 = vmul.f32 %v4198, %v4550
      %v4583 = vmul.f32 %v4199, %v4551
      %v4584 = vmul.f32 %v4200, %v4552
      %v4585 = vmul.f32 %v4201, %v4553
      %v4586 = vmul.f32 %v4202, %v4554
      %v4587 = vmul.f32 %v4203, %v4555
      %v4588 = vmul.f32 %v4204, %v4556
      %v4589 = vmul.f32 %v4205, %v4557
      %v4590 = vmul.f32 %v4206, %v4558
      %v4591 = vmul.f32 %v4207, %v4559
      %v4592 = vmul.f32 %v4208, %v4560
      %v4593 = vmul.f32 %v4209, %v4561
      %v4594 = vmul.f32 %v4210, %v4562
      %v4595 = vmul.f32 %v4211, %v4563
      %v4596 = vmul.f32 %v4212, %v4564
      %v4597 = vmul.f32 %v4213, %v4565
      %v4598 = vmul.f32 %v4214, %v4566
      %v4599 = vmul.f32 %v4215, %v4567
      %v4600 = vmul.f32 %v4216, %v4568
      %4633 = vrot.lane.b32.xlu0 %v4569, 96
      %v4634 = vpop.permute.xlu0 %4633
      %4635 = vrot.lane.b32.xlu0 %v4570, 96
      %v4636 = vpop.permute.xlu0 %4635
      %4637 = vrot.lane.b32.xlu0 %v4571, 96
      %v4638 = vpop.permute.xlu0 %4637
      %4639 = vrot.lane.b32.xlu0 %v4572, 96
      %v4640 = vpop.permute.xlu0 %4639
      %4641 = vrot.lane.b32.xlu0 %v4573, 96
      %v4642 = vpop.permute.xlu0 %4641
      %4643 = vrot.lane.b32.xlu0 %v4574, 96
      %v4644 = vpop.permute.xlu0 %4643
      %4645 = vrot.lane.b32.xlu0 %v4575, 96
      %v4646 = vpop.permute.xlu0 %4645
      %4647 = vrot.lane.b32.xlu0 %v4576, 96
      %v4648 = vpop.permute.xlu0 %4647
      %4649 = vrot.lane.b32.xlu0 %v4577, 96
      %v4650 = vpop.permute.xlu0 %4649
      %4651 = vrot.lane.b32.xlu0 %v4578, 96
      %v4652 = vpop.permute.xlu0 %4651
      %4653 = vrot.lane.b32.xlu0 %v4579, 96
      %v4654 = vpop.permute.xlu0 %4653
      %4655 = vrot.lane.b32.xlu0 %v4580, 96
      %v4656 = vpop.permute.xlu0 %4655
      %4657 = vrot.lane.b32.xlu0 %v4581, 96
      %v4658 = vpop.permute.xlu0 %4657
      %4659 = vrot.lane.b32.xlu0 %v4582, 96
      %v4660 = vpop.permute.xlu0 %4659
      %4661 = vrot.lane.b32.xlu0 %v4583, 96
      %v4662 = vpop.permute.xlu0 %4661
      %4663 = vrot.lane.b32.xlu0 %v4584, 96
      %v4664 = vpop.permute.xlu0 %4663
      %4665 = vrot.lane.b32.xlu0 %v4585, 96
      %v4666 = vpop.permute.xlu0 %4665
      %4667 = vrot.lane.b32.xlu0 %v4586, 96
      %v4668 = vpop.permute.xlu0 %4667
      %4669 = vrot.lane.b32.xlu0 %v4587, 96
      %v4670 = vpop.permute.xlu0 %4669
      %4671 = vrot.lane.b32.xlu0 %v4588, 96
      %v4672 = vpop.permute.xlu0 %4671
      %4673 = vrot.lane.b32.xlu0 %v4589, 96
      %v4674 = vpop.permute.xlu0 %4673
      %4675 = vrot.lane.b32.xlu0 %v4590, 96
      %v4676 = vpop.permute.xlu0 %4675
      %4677 = vrot.lane.b32.xlu0 %v4591, 96
      %v4678 = vpop.permute.xlu0 %4677
      %4679 = vrot.lane.b32.xlu0 %v4592, 96
      %v4680 = vpop.permute.xlu0 %4679
      %4681 = vrot.lane.b32.xlu0 %v4593, 96
      %v4682 = vpop.permute.xlu0 %4681
      %4683 = vrot.lane.b32.xlu0 %v4594, 96
      %v4684 = vpop.permute.xlu0 %4683
      %4685 = vrot.lane.b32.xlu0 %v4595, 96
      %v4686 = vpop.permute.xlu0 %4685
      %4687 = vrot.lane.b32.xlu0 %v4596, 96
      %v4688 = vpop.permute.xlu0 %4687
      %4689 = vrot.lane.b32.xlu0 %v4597, 96
      %v4690 = vpop.permute.xlu0 %4689
      %4691 = vrot.lane.b32.xlu0 %v4598, 96
      %v4692 = vpop.permute.xlu0 %4691
      %4693 = vrot.lane.b32.xlu0 %v4599, 96
      %v4694 = vpop.permute.xlu0 %4693
      %4695 = vrot.lane.b32.xlu0 %v4600, 96
      %v4696 = vpop.permute.xlu0 %4695
      %v4729 = vadd.f32 %v3897, %v4634
      %v4730 = vadd.f32 %v3898, %v4636
      %v4731 = vadd.f32 %v3899, %v4638
      %v4732 = vadd.f32 %v3900, %v4640
      %v4733 = vadd.f32 %v3901, %v4642
      %v4734 = vadd.f32 %v3902, %v4644
      %v4735 = vadd.f32 %v3903, %v4646
      %v4736 = vadd.f32 %v3904, %v4648
      %v4737 = vadd.f32 %v3905, %v4650
      %v4738 = vadd.f32 %v3906, %v4652
      %v4739 = vadd.f32 %v3907, %v4654
      %v4740 = vadd.f32 %v3908, %v4656
      %v4741 = vadd.f32 %v3909, %v4658
      %v4742 = vadd.f32 %v3910, %v4660
      %v4743 = vadd.f32 %v3911, %v4662
      %v4744 = vadd.f32 %v3912, %v4664
      %v4745 = vadd.f32 %v3913, %v4666
      %v4746 = vadd.f32 %v3914, %v4668
      %v4747 = vadd.f32 %v3915, %v4670
      %v4748 = vadd.f32 %v3916, %v4672
      %v4749 = vadd.f32 %v3917, %v4674
      %v4750 = vadd.f32 %v3918, %v4676
      %v4751 = vadd.f32 %v3919, %v4678
      %v4752 = vadd.f32 %v3920, %v4680
      %v4753 = vadd.f32 %v3921, %v4682
      %v4754 = vadd.f32 %v3922, %v4684
      %v4755 = vadd.f32 %v3923, %v4686
      %v4756 = vadd.f32 %v3924, %v4688
      %v4757 = vadd.f32 %v3925, %v4690
      %v4758 = vadd.f32 %v3926, %v4692
      %v4759 = vadd.f32 %v3927, %v4694
      %v4760 = vadd.f32 %v3928, %v4696
      %4761 = vrot.lane.b32.xlu0 %v536, 64
      %v4762 = vpop.permute.xlu0 %4761
      %4763 = vrot.lane.b32.xlu0 %v538, 64
      %v4764 = vpop.permute.xlu0 %4763
      %4765 = vrot.lane.b32.xlu0 %v540, 64
      %v4766 = vpop.permute.xlu0 %4765
      %4767 = vrot.lane.b32.xlu0 %v542, 64
      %v4768 = vpop.permute.xlu0 %4767
      %4769 = vrot.lane.b32.xlu0 %v544, 64
      %v4770 = vpop.permute.xlu0 %4769
      %4771 = vrot.lane.b32.xlu0 %v546, 64
      %v4772 = vpop.permute.xlu0 %4771
      %4773 = vrot.lane.b32.xlu0 %v548, 64
      %v4774 = vpop.permute.xlu0 %4773
      %4775 = vrot.lane.b32.xlu0 %v550, 64
      %v4776 = vpop.permute.xlu0 %4775
      %4777 = vrot.lane.b32.xlu0 %v552, 64
      %v4778 = vpop.permute.xlu0 %4777
      %4779 = vrot.lane.b32.xlu0 %v554, 64
      %v4780 = vpop.permute.xlu0 %4779
      %4781 = vrot.lane.b32.xlu0 %v556, 64
      %v4782 = vpop.permute.xlu0 %4781
      %4783 = vrot.lane.b32.xlu0 %v558, 64
      %v4784 = vpop.permute.xlu0 %4783
      %4785 = vrot.lane.b32.xlu0 %v560, 64
      %v4786 = vpop.permute.xlu0 %4785
      %4787 = vrot.lane.b32.xlu0 %v562, 64
      %v4788 = vpop.permute.xlu0 %4787
      %4789 = vrot.lane.b32.xlu0 %v564, 64
      %v4790 = vpop.permute.xlu0 %4789
      %4791 = vrot.lane.b32.xlu0 %v566, 64
      %v4792 = vpop.permute.xlu0 %4791
      %4793 = vrot.lane.b32.xlu0 %v568, 64
      %v4794 = vpop.permute.xlu0 %4793
      %4795 = vrot.lane.b32.xlu0 %v570, 64
      %v4796 = vpop.permute.xlu0 %4795
      %4797 = vrot.lane.b32.xlu0 %v572, 64
      %v4798 = vpop.permute.xlu0 %4797
      %4799 = vrot.lane.b32.xlu0 %v574, 64
      %v4800 = vpop.permute.xlu0 %4799
      %4801 = vrot.lane.b32.xlu0 %v576, 64
      %v4802 = vpop.permute.xlu0 %4801
      %4803 = vrot.lane.b32.xlu0 %v578, 64
      %v4804 = vpop.permute.xlu0 %4803
      %4805 = vrot.lane.b32.xlu0 %v580, 64
      %v4806 = vpop.permute.xlu0 %4805
      %4807 = vrot.lane.b32.xlu0 %v582, 64
      %v4808 = vpop.permute.xlu0 %4807
      %4809 = vrot.lane.b32.xlu0 %v584, 64
      %v4810 = vpop.permute.xlu0 %4809
      %4811 = vrot.lane.b32.xlu0 %v586, 64
      %v4812 = vpop.permute.xlu0 %4811
      %4813 = vrot.lane.b32.xlu0 %v588, 64
      %v4814 = vpop.permute.xlu0 %4813
      %4815 = vrot.lane.b32.xlu0 %v590, 64
      %v4816 = vpop.permute.xlu0 %4815
      %4817 = vrot.lane.b32.xlu0 %v592, 64
      %v4818 = vpop.permute.xlu0 %4817
      %4819 = vrot.lane.b32.xlu0 %v594, 64
      %v4820 = vpop.permute.xlu0 %4819
      %4821 = vrot.lane.b32.xlu0 %v596, 64
      %v4822 = vpop.permute.xlu0 %4821
      %4823 = vrot.lane.b32.xlu0 %v598, 64
      %v4824 = vpop.permute.xlu0 %4823
      %v4857 = vsel %vm599, %v4762, 0.0
      %4858 = vadd.xlane.f32.xlu0 %v4857
      %v4859 = vpop.xlane.xlu0 %4858
      %v4860 = vsel %vm599, %v4764, 0.0
      %4861 = vadd.xlane.f32.xlu0 %v4860
      %v4862 = vpop.xlane.xlu0 %4861
      %v4863 = vsel %vm599, %v4766, 0.0
      %4864 = vadd.xlane.f32.xlu0 %v4863
      %v4865 = vpop.xlane.xlu0 %4864
      %v4866 = vsel %vm599, %v4768, 0.0
      %4867 = vadd.xlane.f32.xlu0 %v4866
      %v4868 = vpop.xlane.xlu0 %4867
      %v4869 = vsel %vm599, %v4770, 0.0
      %4870 = vadd.xlane.f32.xlu0 %v4869
      %v4871 = vpop.xlane.xlu0 %4870
      %v4872 = vsel %vm599, %v4772, 0.0
      %4873 = vadd.xlane.f32.xlu0 %v4872
      %v4874 = vpop.xlane.xlu0 %4873
      %v4875 = vsel %vm599, %v4774, 0.0
      %4876 = vadd.xlane.f32.xlu0 %v4875
      %v4877 = vpop.xlane.xlu0 %4876
      %v4878 = vsel %vm599, %v4776, 0.0
      %4879 = vadd.xlane.f32.xlu0 %v4878
      %v4880 = vpop.xlane.xlu0 %4879
      %v4881 = vsel %vm599, %v4778, 0.0
      %4882 = vadd.xlane.f32.xlu0 %v4881
      %v4883 = vpop.xlane.xlu0 %4882
      %v4884 = vsel %vm599, %v4780, 0.0
      %4885 = vadd.xlane.f32.xlu0 %v4884
      %v4886 = vpop.xlane.xlu0 %4885
      %v4887 = vsel %vm599, %v4782, 0.0
      %4888 = vadd.xlane.f32.xlu0 %v4887
      %v4889 = vpop.xlane.xlu0 %4888
      %v4890 = vsel %vm599, %v4784, 0.0
      %4891 = vadd.xlane.f32.xlu0 %v4890
      %v4892 = vpop.xlane.xlu0 %4891
      %v4893 = vsel %vm599, %v4786, 0.0
      %4894 = vadd.xlane.f32.xlu0 %v4893
      %v4895 = vpop.xlane.xlu0 %4894
      %v4896 = vsel %vm599, %v4788, 0.0
      %4897 = vadd.xlane.f32.xlu0 %v4896
      %v4898 = vpop.xlane.xlu0 %4897
      %v4899 = vsel %vm599, %v4790, 0.0
      %4900 = vadd.xlane.f32.xlu0 %v4899
      %v4901 = vpop.xlane.xlu0 %4900
      %v4902 = vsel %vm599, %v4792, 0.0
      %4903 = vadd.xlane.f32.xlu0 %v4902
      %v4904 = vpop.xlane.xlu0 %4903
      %v4905 = vsel %vm599, %v4794, 0.0
      %4906 = vadd.xlane.f32.xlu0 %v4905
      %v4907 = vpop.xlane.xlu0 %4906
      %v4908 = vsel %vm599, %v4796, 0.0
      %4909 = vadd.xlane.f32.xlu0 %v4908
      %v4910 = vpop.xlane.xlu0 %4909
      %v4911 = vsel %vm599, %v4798, 0.0
      %4912 = vadd.xlane.f32.xlu0 %v4911
      %v4913 = vpop.xlane.xlu0 %4912
      %v4914 = vsel %vm599, %v4800, 0.0
      %4915 = vadd.xlane.f32.xlu0 %v4914
      %v4916 = vpop.xlane.xlu0 %4915
      %v4917 = vsel %vm599, %v4802, 0.0
      %4918 = vadd.xlane.f32.xlu0 %v4917
      %v4919 = vpop.xlane.xlu0 %4918
      %v4920 = vsel %vm599, %v4804, 0.0
      %4921 = vadd.xlane.f32.xlu0 %v4920
      %v4922 = vpop.xlane.xlu0 %4921
      %v4923 = vsel %vm599, %v4806, 0.0
      %4924 = vadd.xlane.f32.xlu0 %v4923
      %v4925 = vpop.xlane.xlu0 %4924
      %v4926 = vsel %vm599, %v4808, 0.0
      %4927 = vadd.xlane.f32.xlu0 %v4926
      %v4928 = vpop.xlane.xlu0 %4927
      %v4929 = vsel %vm599, %v4810, 0.0
      %4930 = vadd.xlane.f32.xlu0 %v4929
      %v4931 = vpop.xlane.xlu0 %4930
      %v4932 = vsel %vm599, %v4812, 0.0
      %4933 = vadd.xlane.f32.xlu0 %v4932
      %v4934 = vpop.xlane.xlu0 %4933
      %v4935 = vsel %vm599, %v4814, 0.0
      %4936 = vadd.xlane.f32.xlu0 %v4935
      %v4937 = vpop.xlane.xlu0 %4936
      %v4938 = vsel %vm599, %v4816, 0.0
      %4939 = vadd.xlane.f32.xlu0 %v4938
      %v4940 = vpop.xlane.xlu0 %4939
      %v4941 = vsel %vm599, %v4818, 0.0
      %4942 = vadd.xlane.f32.xlu0 %v4941
      %v4943 = vpop.xlane.xlu0 %4942
      %v4944 = vsel %vm599, %v4820, 0.0
      %4945 = vadd.xlane.f32.xlu0 %v4944
      %v4946 = vpop.xlane.xlu0 %4945
      %v4947 = vsel %vm599, %v4822, 0.0
      %4948 = vadd.xlane.f32.xlu0 %v4947
      %v4949 = vpop.xlane.xlu0 %4948
      %v4950 = vsel %vm599, %v4824, 0.0
      %4951 = vadd.xlane.f32.xlu0 %v4950
      %v4952 = vpop.xlane.xlu0 %4951
      %v4953 = vmul.f32 %v4859, %v696
      %v4954 = vmul.f32 %v4862, %v696
      %v4955 = vmul.f32 %v4865, %v696
      %v4956 = vmul.f32 %v4868, %v696
      %v4957 = vmul.f32 %v4871, %v696
      %v4958 = vmul.f32 %v4874, %v696
      %v4959 = vmul.f32 %v4877, %v696
      %v4960 = vmul.f32 %v4880, %v696
      %v4961 = vmul.f32 %v4883, %v696
      %v4962 = vmul.f32 %v4886, %v696
      %v4963 = vmul.f32 %v4889, %v696
      %v4964 = vmul.f32 %v4892, %v696
      %v4965 = vmul.f32 %v4895, %v696
      %v4966 = vmul.f32 %v4898, %v696
      %v4967 = vmul.f32 %v4901, %v696
      %v4968 = vmul.f32 %v4904, %v696
      %v4969 = vmul.f32 %v4907, %v696
      %v4970 = vmul.f32 %v4910, %v696
      %v4971 = vmul.f32 %v4913, %v696
      %v4972 = vmul.f32 %v4916, %v696
      %v4973 = vmul.f32 %v4919, %v696
      %v4974 = vmul.f32 %v4922, %v696
      %v4975 = vmul.f32 %v4925, %v696
      %v4976 = vmul.f32 %v4928, %v696
      %v4977 = vmul.f32 %v4931, %v696
      %v4978 = vmul.f32 %v4934, %v696
      %v4979 = vmul.f32 %v4937, %v696
      %v4980 = vmul.f32 %v4940, %v696
      %v4981 = vmul.f32 %v4943, %v696
      %v4982 = vmul.f32 %v4946, %v696
      %v4983 = vmul.f32 %v4949, %v696
      %v4984 = vmul.f32 %v4952, %v696
      %v4985 = vsub.f32 %v536, %v4953
      %v4986 = vsub.f32 %v538, %v4954
      %v4987 = vsub.f32 %v540, %v4955
      %v4988 = vsub.f32 %v542, %v4956
      %v4989 = vsub.f32 %v544, %v4957
      %v4990 = vsub.f32 %v546, %v4958
      %v4991 = vsub.f32 %v548, %v4959
      %v4992 = vsub.f32 %v550, %v4960
      %v4993 = vsub.f32 %v552, %v4961
      %v4994 = vsub.f32 %v554, %v4962
      %v4995 = vsub.f32 %v556, %v4963
      %v4996 = vsub.f32 %v558, %v4964
      %v4997 = vsub.f32 %v560, %v4965
      %v4998 = vsub.f32 %v562, %v4966
      %v4999 = vsub.f32 %v564, %v4967
      %v5000 = vsub.f32 %v566, %v4968
      %v5001 = vsub.f32 %v568, %v4969
      %v5002 = vsub.f32 %v570, %v4970
      %v5003 = vsub.f32 %v572, %v4971
      %v5004 = vsub.f32 %v574, %v4972
      %v5005 = vsub.f32 %v576, %v4973
      %v5006 = vsub.f32 %v578, %v4974
      %v5007 = vsub.f32 %v580, %v4975
      %v5008 = vsub.f32 %v582, %v4976
      %v5009 = vsub.f32 %v584, %v4977
      %v5010 = vsub.f32 %v586, %v4978
      %v5011 = vsub.f32 %v588, %v4979
      %v5012 = vsub.f32 %v590, %v4980
      %v5013 = vsub.f32 %v592, %v4981
      %v5014 = vsub.f32 %v594, %v4982
      %v5015 = vsub.f32 %v596, %v4983
      %v5016 = vsub.f32 %v598, %v4984
      %v5017 = vmul.f32 %v4985, %v4985
      %v5018 = vmul.f32 %v4986, %v4986
      %v5019 = vmul.f32 %v4987, %v4987
      %v5020 = vmul.f32 %v4988, %v4988
      %v5021 = vmul.f32 %v4989, %v4989
      %v5022 = vmul.f32 %v4990, %v4990
      %v5023 = vmul.f32 %v4991, %v4991
      %v5024 = vmul.f32 %v4992, %v4992
      %v5025 = vmul.f32 %v4993, %v4993
      %v5026 = vmul.f32 %v4994, %v4994
      %v5027 = vmul.f32 %v4995, %v4995
      %v5028 = vmul.f32 %v4996, %v4996
      %v5029 = vmul.f32 %v4997, %v4997
      %v5030 = vmul.f32 %v4998, %v4998
      %v5031 = vmul.f32 %v4999, %v4999
      %v5032 = vmul.f32 %v5000, %v5000
      %v5033 = vmul.f32 %v5001, %v5001
      %v5034 = vmul.f32 %v5002, %v5002
      %v5035 = vmul.f32 %v5003, %v5003
      %v5036 = vmul.f32 %v5004, %v5004
      %v5037 = vmul.f32 %v5005, %v5005
      %v5038 = vmul.f32 %v5006, %v5006
      %v5039 = vmul.f32 %v5007, %v5007
      %v5040 = vmul.f32 %v5008, %v5008
      %v5041 = vmul.f32 %v5009, %v5009
      %v5042 = vmul.f32 %v5010, %v5010
      %v5043 = vmul.f32 %v5011, %v5011
      %v5044 = vmul.f32 %v5012, %v5012
      %v5045 = vmul.f32 %v5013, %v5013
      %v5046 = vmul.f32 %v5014, %v5014
      %v5047 = vmul.f32 %v5015, %v5015
      %v5048 = vmul.f32 %v5016, %v5016
      %5081 = vrot.lane.b32.xlu0 %v5017, 64
      %v5082 = vpop.permute.xlu0 %5081
      %5083 = vrot.lane.b32.xlu0 %v5018, 64
      %v5084 = vpop.permute.xlu0 %5083
      %5085 = vrot.lane.b32.xlu0 %v5019, 64
      %v5086 = vpop.permute.xlu0 %5085
      %5087 = vrot.lane.b32.xlu0 %v5020, 64
      %v5088 = vpop.permute.xlu0 %5087
      %5089 = vrot.lane.b32.xlu0 %v5021, 64
      %v5090 = vpop.permute.xlu0 %5089
      %5091 = vrot.lane.b32.xlu0 %v5022, 64
      %v5092 = vpop.permute.xlu0 %5091
      %5093 = vrot.lane.b32.xlu0 %v5023, 64
      %v5094 = vpop.permute.xlu0 %5093
      %5095 = vrot.lane.b32.xlu0 %v5024, 64
      %v5096 = vpop.permute.xlu0 %5095
      %5097 = vrot.lane.b32.xlu0 %v5025, 64
      %v5098 = vpop.permute.xlu0 %5097
      %5099 = vrot.lane.b32.xlu0 %v5026, 64
      %v5100 = vpop.permute.xlu0 %5099
      %5101 = vrot.lane.b32.xlu0 %v5027, 64
      %v5102 = vpop.permute.xlu0 %5101
      %5103 = vrot.lane.b32.xlu0 %v5028, 64
      %v5104 = vpop.permute.xlu0 %5103
      %5105 = vrot.lane.b32.xlu0 %v5029, 64
      %v5106 = vpop.permute.xlu0 %5105
      %5107 = vrot.lane.b32.xlu0 %v5030, 64
      %v5108 = vpop.permute.xlu0 %5107
      %5109 = vrot.lane.b32.xlu0 %v5031, 64
      %v5110 = vpop.permute.xlu0 %5109
      %5111 = vrot.lane.b32.xlu0 %v5032, 64
      %v5112 = vpop.permute.xlu0 %5111
      %5113 = vrot.lane.b32.xlu0 %v5033, 64
      %v5114 = vpop.permute.xlu0 %5113
      %5115 = vrot.lane.b32.xlu0 %v5034, 64
      %v5116 = vpop.permute.xlu0 %5115
      %5117 = vrot.lane.b32.xlu0 %v5035, 64
      %v5118 = vpop.permute.xlu0 %5117
      %5119 = vrot.lane.b32.xlu0 %v5036, 64
      %v5120 = vpop.permute.xlu0 %5119
      %5121 = vrot.lane.b32.xlu0 %v5037, 64
      %v5122 = vpop.permute.xlu0 %5121
      %5123 = vrot.lane.b32.xlu0 %v5038, 64
      %v5124 = vpop.permute.xlu0 %5123
      %5125 = vrot.lane.b32.xlu0 %v5039, 64
      %v5126 = vpop.permute.xlu0 %5125
      %5127 = vrot.lane.b32.xlu0 %v5040, 64
      %v5128 = vpop.permute.xlu0 %5127
      %5129 = vrot.lane.b32.xlu0 %v5041, 64
      %v5130 = vpop.permute.xlu0 %5129
      %5131 = vrot.lane.b32.xlu0 %v5042, 64
      %v5132 = vpop.permute.xlu0 %5131
      %5133 = vrot.lane.b32.xlu0 %v5043, 64
      %v5134 = vpop.permute.xlu0 %5133
      %5135 = vrot.lane.b32.xlu0 %v5044, 64
      %v5136 = vpop.permute.xlu0 %5135
      %5137 = vrot.lane.b32.xlu0 %v5045, 64
      %v5138 = vpop.permute.xlu0 %5137
      %5139 = vrot.lane.b32.xlu0 %v5046, 64
      %v5140 = vpop.permute.xlu0 %5139
      %5141 = vrot.lane.b32.xlu0 %v5047, 64
      %v5142 = vpop.permute.xlu0 %5141
      %5143 = vrot.lane.b32.xlu0 %v5048, 64
      %v5144 = vpop.permute.xlu0 %5143
      %v5177 = vsel %vm599, %v5082, 0.0
      %5178 = vadd.xlane.f32.xlu0 %v5177
      %v5179 = vpop.xlane.xlu0 %5178
      %v5180 = vsel %vm599, %v5084, 0.0
      %5181 = vadd.xlane.f32.xlu0 %v5180
      %v5182 = vpop.xlane.xlu0 %5181
      %v5183 = vsel %vm599, %v5086, 0.0
      %5184 = vadd.xlane.f32.xlu0 %v5183
      %v5185 = vpop.xlane.xlu0 %5184
      %v5186 = vsel %vm599, %v5088, 0.0
      %5187 = vadd.xlane.f32.xlu0 %v5186
      %v5188 = vpop.xlane.xlu0 %5187
      %v5189 = vsel %vm599, %v5090, 0.0
      %5190 = vadd.xlane.f32.xlu0 %v5189
      %v5191 = vpop.xlane.xlu0 %5190
      %v5192 = vsel %vm599, %v5092, 0.0
      %5193 = vadd.xlane.f32.xlu0 %v5192
      %v5194 = vpop.xlane.xlu0 %5193
      %v5195 = vsel %vm599, %v5094, 0.0
      %5196 = vadd.xlane.f32.xlu0 %v5195
      %v5197 = vpop.xlane.xlu0 %5196
      %v5198 = vsel %vm599, %v5096, 0.0
      %5199 = vadd.xlane.f32.xlu0 %v5198
      %v5200 = vpop.xlane.xlu0 %5199
      %v5201 = vsel %vm599, %v5098, 0.0
      %5202 = vadd.xlane.f32.xlu0 %v5201
      %v5203 = vpop.xlane.xlu0 %5202
      %v5204 = vsel %vm599, %v5100, 0.0
      %5205 = vadd.xlane.f32.xlu0 %v5204
      %v5206 = vpop.xlane.xlu0 %5205
      %v5207 = vsel %vm599, %v5102, 0.0
      %5208 = vadd.xlane.f32.xlu0 %v5207
      %v5209 = vpop.xlane.xlu0 %5208
      %v5210 = vsel %vm599, %v5104, 0.0
      %5211 = vadd.xlane.f32.xlu0 %v5210
      %v5212 = vpop.xlane.xlu0 %5211
      %v5213 = vsel %vm599, %v5106, 0.0
      %5214 = vadd.xlane.f32.xlu0 %v5213
      %v5215 = vpop.xlane.xlu0 %5214
      %v5216 = vsel %vm599, %v5108, 0.0
      %5217 = vadd.xlane.f32.xlu0 %v5216
      %v5218 = vpop.xlane.xlu0 %5217
      %v5219 = vsel %vm599, %v5110, 0.0
      %5220 = vadd.xlane.f32.xlu0 %v5219
      %v5221 = vpop.xlane.xlu0 %5220
      %v5222 = vsel %vm599, %v5112, 0.0
      %5223 = vadd.xlane.f32.xlu0 %v5222
      %v5224 = vpop.xlane.xlu0 %5223
      %v5225 = vsel %vm599, %v5114, 0.0
      %5226 = vadd.xlane.f32.xlu0 %v5225
      %v5227 = vpop.xlane.xlu0 %5226
      %v5228 = vsel %vm599, %v5116, 0.0
      %5229 = vadd.xlane.f32.xlu0 %v5228
      %v5230 = vpop.xlane.xlu0 %5229
      %v5231 = vsel %vm599, %v5118, 0.0
      %5232 = vadd.xlane.f32.xlu0 %v5231
      %v5233 = vpop.xlane.xlu0 %5232
      %v5234 = vsel %vm599, %v5120, 0.0
      %5235 = vadd.xlane.f32.xlu0 %v5234
      %v5236 = vpop.xlane.xlu0 %5235
      %v5237 = vsel %vm599, %v5122, 0.0
      %5238 = vadd.xlane.f32.xlu0 %v5237
      %v5239 = vpop.xlane.xlu0 %5238
      %v5240 = vsel %vm599, %v5124, 0.0
      %5241 = vadd.xlane.f32.xlu0 %v5240
      %v5242 = vpop.xlane.xlu0 %5241
      %v5243 = vsel %vm599, %v5126, 0.0
      %5244 = vadd.xlane.f32.xlu0 %v5243
      %v5245 = vpop.xlane.xlu0 %5244
      %v5246 = vsel %vm599, %v5128, 0.0
      %5247 = vadd.xlane.f32.xlu0 %v5246
      %v5248 = vpop.xlane.xlu0 %5247
      %v5249 = vsel %vm599, %v5130, 0.0
      %5250 = vadd.xlane.f32.xlu0 %v5249
      %v5251 = vpop.xlane.xlu0 %5250
      %v5252 = vsel %vm599, %v5132, 0.0
      %5253 = vadd.xlane.f32.xlu0 %v5252
      %v5254 = vpop.xlane.xlu0 %5253
      %v5255 = vsel %vm599, %v5134, 0.0
      %5256 = vadd.xlane.f32.xlu0 %v5255
      %v5257 = vpop.xlane.xlu0 %5256
      %v5258 = vsel %vm599, %v5136, 0.0
      %5259 = vadd.xlane.f32.xlu0 %v5258
      %v5260 = vpop.xlane.xlu0 %5259
      %v5261 = vsel %vm599, %v5138, 0.0
      %5262 = vadd.xlane.f32.xlu0 %v5261
      %v5263 = vpop.xlane.xlu0 %5262
      %v5264 = vsel %vm599, %v5140, 0.0
      %5265 = vadd.xlane.f32.xlu0 %v5264
      %v5266 = vpop.xlane.xlu0 %5265
      %v5267 = vsel %vm599, %v5142, 0.0
      %5268 = vadd.xlane.f32.xlu0 %v5267
      %v5269 = vpop.xlane.xlu0 %5268
      %v5270 = vsel %vm599, %v5144, 0.0
      %5271 = vadd.xlane.f32.xlu0 %v5270
      %v5272 = vpop.xlane.xlu0 %5271
      %v5273 = vmul.f32 %v5179, %v696
      %v5274 = vmul.f32 %v5182, %v696
      %v5275 = vmul.f32 %v5185, %v696
      %v5276 = vmul.f32 %v5188, %v696
      %v5277 = vmul.f32 %v5191, %v696
      %v5278 = vmul.f32 %v5194, %v696
      %v5279 = vmul.f32 %v5197, %v696
      %v5280 = vmul.f32 %v5200, %v696
      %v5281 = vmul.f32 %v5203, %v696
      %v5282 = vmul.f32 %v5206, %v696
      %v5283 = vmul.f32 %v5209, %v696
      %v5284 = vmul.f32 %v5212, %v696
      %v5285 = vmul.f32 %v5215, %v696
      %v5286 = vmul.f32 %v5218, %v696
      %v5287 = vmul.f32 %v5221, %v696
      %v5288 = vmul.f32 %v5224, %v696
      %v5289 = vmul.f32 %v5227, %v696
      %v5290 = vmul.f32 %v5230, %v696
      %v5291 = vmul.f32 %v5233, %v696
      %v5292 = vmul.f32 %v5236, %v696
      %v5293 = vmul.f32 %v5239, %v696
      %v5294 = vmul.f32 %v5242, %v696
      %v5295 = vmul.f32 %v5245, %v696
      %v5296 = vmul.f32 %v5248, %v696
      %v5297 = vmul.f32 %v5251, %v696
      %v5298 = vmul.f32 %v5254, %v696
      %v5299 = vmul.f32 %v5257, %v696
      %v5300 = vmul.f32 %v5260, %v696
      %v5301 = vmul.f32 %v5263, %v696
      %v5302 = vmul.f32 %v5266, %v696
      %v5303 = vmul.f32 %v5269, %v696
      %v5304 = vmul.f32 %v5272, %v696
      %v5305 = vadd.f32 %v5273, 1e-05
      %v5306 = vadd.f32 %v5274, 1e-05
      %v5307 = vadd.f32 %v5275, 1e-05
      %v5308 = vadd.f32 %v5276, 1e-05
      %v5309 = vadd.f32 %v5277, 1e-05
      %v5310 = vadd.f32 %v5278, 1e-05
      %v5311 = vadd.f32 %v5279, 1e-05
      %v5312 = vadd.f32 %v5280, 1e-05
      %v5313 = vadd.f32 %v5281, 1e-05
      %v5314 = vadd.f32 %v5282, 1e-05
      %v5315 = vadd.f32 %v5283, 1e-05
      %v5316 = vadd.f32 %v5284, 1e-05
      %v5317 = vadd.f32 %v5285, 1e-05
      %v5318 = vadd.f32 %v5286, 1e-05
      %v5319 = vadd.f32 %v5287, 1e-05
      %v5320 = vadd.f32 %v5288, 1e-05
      %v5321 = vadd.f32 %v5289, 1e-05
      %v5322 = vadd.f32 %v5290, 1e-05
      %v5323 = vadd.f32 %v5291, 1e-05
      %v5324 = vadd.f32 %v5292, 1e-05
      %v5325 = vadd.f32 %v5293, 1e-05
      %v5326 = vadd.f32 %v5294, 1e-05
      %v5327 = vadd.f32 %v5295, 1e-05
      %v5328 = vadd.f32 %v5296, 1e-05
      %v5329 = vadd.f32 %v5297, 1e-05
      %v5330 = vadd.f32 %v5298, 1e-05
      %v5331 = vadd.f32 %v5299, 1e-05
      %v5332 = vadd.f32 %v5300, 1e-05
      %v5333 = vadd.f32 %v5301, 1e-05
      %v5334 = vadd.f32 %v5302, 1e-05
      %v5335 = vadd.f32 %v5303, 1e-05
      %v5336 = vadd.f32 %v5304, 1e-05
      %v5337 = vrsqrt.pop %v5305
      %v5338 = vrsqrt.pop %v5306
      %v5339 = vrsqrt.pop %v5307
      %v5340 = vrsqrt.pop %v5308
      %v5341 = vrsqrt.pop %v5309
      %v5342 = vrsqrt.pop %v5310
      %v5343 = vrsqrt.pop %v5311
      %v5344 = vrsqrt.pop %v5312
      %v5345 = vrsqrt.pop %v5313
      %v5346 = vrsqrt.pop %v5314
      %v5347 = vrsqrt.pop %v5315
      %v5348 = vrsqrt.pop %v5316
      %v5349 = vrsqrt.pop %v5317
      %v5350 = vrsqrt.pop %v5318
      %v5351 = vrsqrt.pop %v5319
      %v5352 = vrsqrt.pop %v5320
      %v5353 = vrsqrt.pop %v5321
      %v5354 = vrsqrt.pop %v5322
      %v5355 = vrsqrt.pop %v5323
      %v5356 = vrsqrt.pop %v5324
      %v5357 = vrsqrt.pop %v5325
      %v5358 = vrsqrt.pop %v5326
      %v5359 = vrsqrt.pop %v5327
      %v5360 = vrsqrt.pop %v5328
      %v5361 = vrsqrt.pop %v5329
      %v5362 = vrsqrt.pop %v5330
      %v5363 = vrsqrt.pop %v5331
      %v5364 = vrsqrt.pop %v5332
      %v5365 = vrsqrt.pop %v5333
      %v5366 = vrsqrt.pop %v5334
      %v5367 = vrsqrt.pop %v5335
      %v5368 = vrsqrt.pop %v5336
      %v5369 = vmul.f32 %v4985, %v5337
      %v5370 = vmul.f32 %v4986, %v5338
      %v5371 = vmul.f32 %v4987, %v5339
      %v5372 = vmul.f32 %v4988, %v5340
      %v5373 = vmul.f32 %v4989, %v5341
      %v5374 = vmul.f32 %v4990, %v5342
      %v5375 = vmul.f32 %v4991, %v5343
      %v5376 = vmul.f32 %v4992, %v5344
      %v5377 = vmul.f32 %v4993, %v5345
      %v5378 = vmul.f32 %v4994, %v5346
      %v5379 = vmul.f32 %v4995, %v5347
      %v5380 = vmul.f32 %v4996, %v5348
      %v5381 = vmul.f32 %v4997, %v5349
      %v5382 = vmul.f32 %v4998, %v5350
      %v5383 = vmul.f32 %v4999, %v5351
      %v5384 = vmul.f32 %v5000, %v5352
      %v5385 = vmul.f32 %v5001, %v5353
      %v5386 = vmul.f32 %v5002, %v5354
      %v5387 = vmul.f32 %v5003, %v5355
      %v5388 = vmul.f32 %v5004, %v5356
      %v5389 = vmul.f32 %v5005, %v5357
      %v5390 = vmul.f32 %v5006, %v5358
      %v5391 = vmul.f32 %v5007, %v5359
      %v5392 = vmul.f32 %v5008, %v5360
      %v5393 = vmul.f32 %v5009, %v5361
      %v5394 = vmul.f32 %v5010, %v5362
      %v5395 = vmul.f32 %v5011, %v5363
      %v5396 = vmul.f32 %v5012, %v5364
      %v5397 = vmul.f32 %v5013, %v5365
      %v5398 = vmul.f32 %v5014, %v5366
      %v5399 = vmul.f32 %v5015, %v5367
      %v5400 = vmul.f32 %v5016, %v5368
      %5433 = vrot.lane.b32.xlu0 %v5369, 64
      %v5434 = vpop.permute.xlu0 %5433
      %5435 = vrot.lane.b32.xlu0 %v5370, 64
      %v5436 = vpop.permute.xlu0 %5435
      %5437 = vrot.lane.b32.xlu0 %v5371, 64
      %v5438 = vpop.permute.xlu0 %5437
      %5439 = vrot.lane.b32.xlu0 %v5372, 64
      %v5440 = vpop.permute.xlu0 %5439
      %5441 = vrot.lane.b32.xlu0 %v5373, 64
      %v5442 = vpop.permute.xlu0 %5441
      %5443 = vrot.lane.b32.xlu0 %v5374, 64
      %v5444 = vpop.permute.xlu0 %5443
      %5445 = vrot.lane.b32.xlu0 %v5375, 64
      %v5446 = vpop.permute.xlu0 %5445
      %5447 = vrot.lane.b32.xlu0 %v5376, 64
      %v5448 = vpop.permute.xlu0 %5447
      %5449 = vrot.lane.b32.xlu0 %v5377, 64
      %v5450 = vpop.permute.xlu0 %5449
      %5451 = vrot.lane.b32.xlu0 %v5378, 64
      %v5452 = vpop.permute.xlu0 %5451
      %5453 = vrot.lane.b32.xlu0 %v5379, 64
      %v5454 = vpop.permute.xlu0 %5453
      %5455 = vrot.lane.b32.xlu0 %v5380, 64
      %v5456 = vpop.permute.xlu0 %5455
      %5457 = vrot.lane.b32.xlu0 %v5381, 64
      %v5458 = vpop.permute.xlu0 %5457
      %5459 = vrot.lane.b32.xlu0 %v5382, 64
      %v5460 = vpop.permute.xlu0 %5459
      %5461 = vrot.lane.b32.xlu0 %v5383, 64
      %v5462 = vpop.permute.xlu0 %5461
      %5463 = vrot.lane.b32.xlu0 %v5384, 64
      %v5464 = vpop.permute.xlu0 %5463
      %5465 = vrot.lane.b32.xlu0 %v5385, 64
      %v5466 = vpop.permute.xlu0 %5465
      %5467 = vrot.lane.b32.xlu0 %v5386, 64
      %v5468 = vpop.permute.xlu0 %5467
      %5469 = vrot.lane.b32.xlu0 %v5387, 64
      %v5470 = vpop.permute.xlu0 %5469
      %5471 = vrot.lane.b32.xlu0 %v5388, 64
      %v5472 = vpop.permute.xlu0 %5471
      %5473 = vrot.lane.b32.xlu0 %v5389, 64
      %v5474 = vpop.permute.xlu0 %5473
      %5475 = vrot.lane.b32.xlu0 %v5390, 64
      %v5476 = vpop.permute.xlu0 %5475
      %5477 = vrot.lane.b32.xlu0 %v5391, 64
      %v5478 = vpop.permute.xlu0 %5477
      %5479 = vrot.lane.b32.xlu0 %v5392, 64
      %v5480 = vpop.permute.xlu0 %5479
      %5481 = vrot.lane.b32.xlu0 %v5393, 64
      %v5482 = vpop.permute.xlu0 %5481
      %5483 = vrot.lane.b32.xlu0 %v5394, 64
      %v5484 = vpop.permute.xlu0 %5483
      %5485 = vrot.lane.b32.xlu0 %v5395, 64
      %v5486 = vpop.permute.xlu0 %5485
      %5487 = vrot.lane.b32.xlu0 %v5396, 64
      %v5488 = vpop.permute.xlu0 %5487
      %5489 = vrot.lane.b32.xlu0 %v5397, 64
      %v5490 = vpop.permute.xlu0 %5489
      %5491 = vrot.lane.b32.xlu0 %v5398, 64
      %v5492 = vpop.permute.xlu0 %5491
      %5493 = vrot.lane.b32.xlu0 %v5399, 64
      %v5494 = vpop.permute.xlu0 %5493
      %5495 = vrot.lane.b32.xlu0 %v5400, 64
      %v5496 = vpop.permute.xlu0 %5495
      %v5529 = vadd.f32 %v4729, %v5434
      %v5530 = vadd.f32 %v4730, %v5436
      %v5531 = vadd.f32 %v4731, %v5438
      %v5532 = vadd.f32 %v4732, %v5440
      %v5533 = vadd.f32 %v4733, %v5442
      %v5534 = vadd.f32 %v4734, %v5444
      %v5535 = vadd.f32 %v4735, %v5446
      %v5536 = vadd.f32 %v4736, %v5448
      %v5537 = vadd.f32 %v4737, %v5450
      %v5538 = vadd.f32 %v4738, %v5452
      %v5539 = vadd.f32 %v4739, %v5454
      %v5540 = vadd.f32 %v4740, %v5456
      %v5541 = vadd.f32 %v4741, %v5458
      %v5542 = vadd.f32 %v4742, %v5460
      %v5543 = vadd.f32 %v4743, %v5462
      %v5544 = vadd.f32 %v4744, %v5464
      %v5545 = vadd.f32 %v4745, %v5466
      %v5546 = vadd.f32 %v4746, %v5468
      %v5547 = vadd.f32 %v4747, %v5470
      %v5548 = vadd.f32 %v4748, %v5472
      %v5549 = vadd.f32 %v4749, %v5474
      %v5550 = vadd.f32 %v4750, %v5476
      %v5551 = vadd.f32 %v4751, %v5478
      %v5552 = vadd.f32 %v4752, %v5480
      %v5553 = vadd.f32 %v4753, %v5482
      %v5554 = vadd.f32 %v4754, %v5484
      %v5555 = vadd.f32 %v4755, %v5486
      %v5556 = vadd.f32 %v4756, %v5488
      %v5557 = vadd.f32 %v4757, %v5490
      %v5558 = vadd.f32 %v4758, %v5492
      %v5559 = vadd.f32 %v4759, %v5494
      %v5560 = vadd.f32 %v4760, %v5496
      %5561 = vrot.lane.b32.xlu0 %v536, 32
      %v5562 = vpop.permute.xlu0 %5561
      %5563 = vrot.lane.b32.xlu0 %v538, 32
      %v5564 = vpop.permute.xlu0 %5563
      %5565 = vrot.lane.b32.xlu0 %v540, 32
      %v5566 = vpop.permute.xlu0 %5565
      %5567 = vrot.lane.b32.xlu0 %v542, 32
      %v5568 = vpop.permute.xlu0 %5567
      %5569 = vrot.lane.b32.xlu0 %v544, 32
      %v5570 = vpop.permute.xlu0 %5569
      %5571 = vrot.lane.b32.xlu0 %v546, 32
      %v5572 = vpop.permute.xlu0 %5571
      %5573 = vrot.lane.b32.xlu0 %v548, 32
      %v5574 = vpop.permute.xlu0 %5573
      %5575 = vrot.lane.b32.xlu0 %v550, 32
      %v5576 = vpop.permute.xlu0 %5575
      %5577 = vrot.lane.b32.xlu0 %v552, 32
      %v5578 = vpop.permute.xlu0 %5577
      %5579 = vrot.lane.b32.xlu0 %v554, 32
      %v5580 = vpop.permute.xlu0 %5579
      %5581 = vrot.lane.b32.xlu0 %v556, 32
      %v5582 = vpop.permute.xlu0 %5581
      %5583 = vrot.lane.b32.xlu0 %v558, 32
      %v5584 = vpop.permute.xlu0 %5583
      %5585 = vrot.lane.b32.xlu0 %v560, 32
      %v5586 = vpop.permute.xlu0 %5585
      %5587 = vrot.lane.b32.xlu0 %v562, 32
      %v5588 = vpop.permute.xlu0 %5587
      %5589 = vrot.lane.b32.xlu0 %v564, 32
      %v5590 = vpop.permute.xlu0 %5589
      %5591 = vrot.lane.b32.xlu0 %v566, 32
      %v5592 = vpop.permute.xlu0 %5591
      %5593 = vrot.lane.b32.xlu0 %v568, 32
      %v5594 = vpop.permute.xlu0 %5593
      %5595 = vrot.lane.b32.xlu0 %v570, 32
      %v5596 = vpop.permute.xlu0 %5595
      %5597 = vrot.lane.b32.xlu0 %v572, 32
      %v5598 = vpop.permute.xlu0 %5597
      %5599 = vrot.lane.b32.xlu0 %v574, 32
      %v5600 = vpop.permute.xlu0 %5599
      %5601 = vrot.lane.b32.xlu0 %v576, 32
      %v5602 = vpop.permute.xlu0 %5601
      %5603 = vrot.lane.b32.xlu0 %v578, 32
      %v5604 = vpop.permute.xlu0 %5603
      %5605 = vrot.lane.b32.xlu0 %v580, 32
      %v5606 = vpop.permute.xlu0 %5605
      %5607 = vrot.lane.b32.xlu0 %v582, 32
      %v5608 = vpop.permute.xlu0 %5607
      %5609 = vrot.lane.b32.xlu0 %v584, 32
      %v5610 = vpop.permute.xlu0 %5609
      %5611 = vrot.lane.b32.xlu0 %v586, 32
      %v5612 = vpop.permute.xlu0 %5611
      %5613 = vrot.lane.b32.xlu0 %v588, 32
      %v5614 = vpop.permute.xlu0 %5613
      %5615 = vrot.lane.b32.xlu0 %v590, 32
      %v5616 = vpop.permute.xlu0 %5615
      %5617 = vrot.lane.b32.xlu0 %v592, 32
      %v5618 = vpop.permute.xlu0 %5617
      %5619 = vrot.lane.b32.xlu0 %v594, 32
      %v5620 = vpop.permute.xlu0 %5619
      %5621 = vrot.lane.b32.xlu0 %v596, 32
      %v5622 = vpop.permute.xlu0 %5621
      %5623 = vrot.lane.b32.xlu0 %v598, 32
      %v5624 = vpop.permute.xlu0 %5623
      %v5657 = vsel %vm599, %v5562, 0.0
      %5658 = vadd.xlane.f32.xlu0 %v5657
      %v5659 = vpop.xlane.xlu0 %5658
      %v5660 = vsel %vm599, %v5564, 0.0
      %5661 = vadd.xlane.f32.xlu0 %v5660
      %v5662 = vpop.xlane.xlu0 %5661
      %v5663 = vsel %vm599, %v5566, 0.0
      %5664 = vadd.xlane.f32.xlu0 %v5663
      %v5665 = vpop.xlane.xlu0 %5664
      %v5666 = vsel %vm599, %v5568, 0.0
      %5667 = vadd.xlane.f32.xlu0 %v5666
      %v5668 = vpop.xlane.xlu0 %5667
      %v5669 = vsel %vm599, %v5570, 0.0
      %5670 = vadd.xlane.f32.xlu0 %v5669
      %v5671 = vpop.xlane.xlu0 %5670
      %v5672 = vsel %vm599, %v5572, 0.0
      %5673 = vadd.xlane.f32.xlu0 %v5672
      %v5674 = vpop.xlane.xlu0 %5673
      %v5675 = vsel %vm599, %v5574, 0.0
      %5676 = vadd.xlane.f32.xlu0 %v5675
      %v5677 = vpop.xlane.xlu0 %5676
      %v5678 = vsel %vm599, %v5576, 0.0
      %5679 = vadd.xlane.f32.xlu0 %v5678
      %v5680 = vpop.xlane.xlu0 %5679
      %v5681 = vsel %vm599, %v5578, 0.0
      %5682 = vadd.xlane.f32.xlu0 %v5681
      %v5683 = vpop.xlane.xlu0 %5682
      %v5684 = vsel %vm599, %v5580, 0.0
      %5685 = vadd.xlane.f32.xlu0 %v5684
      %v5686 = vpop.xlane.xlu0 %5685
      %v5687 = vsel %vm599, %v5582, 0.0
      %5688 = vadd.xlane.f32.xlu0 %v5687
      %v5689 = vpop.xlane.xlu0 %5688
      %v5690 = vsel %vm599, %v5584, 0.0
      %5691 = vadd.xlane.f32.xlu0 %v5690
      %v5692 = vpop.xlane.xlu0 %5691
      %v5693 = vsel %vm599, %v5586, 0.0
      %5694 = vadd.xlane.f32.xlu0 %v5693
      %v5695 = vpop.xlane.xlu0 %5694
      %v5696 = vsel %vm599, %v5588, 0.0
      %5697 = vadd.xlane.f32.xlu0 %v5696
      %v5698 = vpop.xlane.xlu0 %5697
      %v5699 = vsel %vm599, %v5590, 0.0
      %5700 = vadd.xlane.f32.xlu0 %v5699
      %v5701 = vpop.xlane.xlu0 %5700
      %v5702 = vsel %vm599, %v5592, 0.0
      %5703 = vadd.xlane.f32.xlu0 %v5702
      %v5704 = vpop.xlane.xlu0 %5703
      %v5705 = vsel %vm599, %v5594, 0.0
      %5706 = vadd.xlane.f32.xlu0 %v5705
      %v5707 = vpop.xlane.xlu0 %5706
      %v5708 = vsel %vm599, %v5596, 0.0
      %5709 = vadd.xlane.f32.xlu0 %v5708
      %v5710 = vpop.xlane.xlu0 %5709
      %v5711 = vsel %vm599, %v5598, 0.0
      %5712 = vadd.xlane.f32.xlu0 %v5711
      %v5713 = vpop.xlane.xlu0 %5712
      %v5714 = vsel %vm599, %v5600, 0.0
      %5715 = vadd.xlane.f32.xlu0 %v5714
      %v5716 = vpop.xlane.xlu0 %5715
      %v5717 = vsel %vm599, %v5602, 0.0
      %5718 = vadd.xlane.f32.xlu0 %v5717
      %v5719 = vpop.xlane.xlu0 %5718
      %v5720 = vsel %vm599, %v5604, 0.0
      %5721 = vadd.xlane.f32.xlu0 %v5720
      %v5722 = vpop.xlane.xlu0 %5721
      %v5723 = vsel %vm599, %v5606, 0.0
      %5724 = vadd.xlane.f32.xlu0 %v5723
      %v5725 = vpop.xlane.xlu0 %5724
      %v5726 = vsel %vm599, %v5608, 0.0
      %5727 = vadd.xlane.f32.xlu0 %v5726
      %v5728 = vpop.xlane.xlu0 %5727
      %v5729 = vsel %vm599, %v5610, 0.0
      %5730 = vadd.xlane.f32.xlu0 %v5729
      %v5731 = vpop.xlane.xlu0 %5730
      %v5732 = vsel %vm599, %v5612, 0.0
      %5733 = vadd.xlane.f32.xlu0 %v5732
      %v5734 = vpop.xlane.xlu0 %5733
      %v5735 = vsel %vm599, %v5614, 0.0
      %5736 = vadd.xlane.f32.xlu0 %v5735
      %v5737 = vpop.xlane.xlu0 %5736
      %v5738 = vsel %vm599, %v5616, 0.0
      %5739 = vadd.xlane.f32.xlu0 %v5738
      %v5740 = vpop.xlane.xlu0 %5739
      %v5741 = vsel %vm599, %v5618, 0.0
      %5742 = vadd.xlane.f32.xlu0 %v5741
      %v5743 = vpop.xlane.xlu0 %5742
      %v5744 = vsel %vm599, %v5620, 0.0
      %5745 = vadd.xlane.f32.xlu0 %v5744
      %v5746 = vpop.xlane.xlu0 %5745
      %v5747 = vsel %vm599, %v5622, 0.0
      %5748 = vadd.xlane.f32.xlu0 %v5747
      %v5749 = vpop.xlane.xlu0 %5748
      %v5750 = vsel %vm599, %v5624, 0.0
      %5751 = vadd.xlane.f32.xlu0 %v5750
      %v5752 = vpop.xlane.xlu0 %5751
      %v5753 = vmul.f32 %v5659, %v696
      %v5754 = vmul.f32 %v5662, %v696
      %v5755 = vmul.f32 %v5665, %v696
      %v5756 = vmul.f32 %v5668, %v696
      %v5757 = vmul.f32 %v5671, %v696
      %v5758 = vmul.f32 %v5674, %v696
      %v5759 = vmul.f32 %v5677, %v696
      %v5760 = vmul.f32 %v5680, %v696
      %v5761 = vmul.f32 %v5683, %v696
      %v5762 = vmul.f32 %v5686, %v696
      %v5763 = vmul.f32 %v5689, %v696
      %v5764 = vmul.f32 %v5692, %v696
      %v5765 = vmul.f32 %v5695, %v696
      %v5766 = vmul.f32 %v5698, %v696
      %v5767 = vmul.f32 %v5701, %v696
      %v5768 = vmul.f32 %v5704, %v696
      %v5769 = vmul.f32 %v5707, %v696
      %v5770 = vmul.f32 %v5710, %v696
      %v5771 = vmul.f32 %v5713, %v696
      %v5772 = vmul.f32 %v5716, %v696
      %v5773 = vmul.f32 %v5719, %v696
      %v5774 = vmul.f32 %v5722, %v696
      %v5775 = vmul.f32 %v5725, %v696
      %v5776 = vmul.f32 %v5728, %v696
      %v5777 = vmul.f32 %v5731, %v696
      %v5778 = vmul.f32 %v5734, %v696
      %v5779 = vmul.f32 %v5737, %v696
      %v5780 = vmul.f32 %v5740, %v696
      %v5781 = vmul.f32 %v5743, %v696
      %v5782 = vmul.f32 %v5746, %v696
      %v5783 = vmul.f32 %v5749, %v696
      %v5784 = vmul.f32 %v5752, %v696
      %v5785 = vsub.f32 %v536, %v5753
      %v5786 = vsub.f32 %v538, %v5754
      %v5787 = vsub.f32 %v540, %v5755
      %v5788 = vsub.f32 %v542, %v5756
      %v5789 = vsub.f32 %v544, %v5757
      %v5790 = vsub.f32 %v546, %v5758
      %v5791 = vsub.f32 %v548, %v5759
      %v5792 = vsub.f32 %v550, %v5760
      %v5793 = vsub.f32 %v552, %v5761
      %v5794 = vsub.f32 %v554, %v5762
      %v5795 = vsub.f32 %v556, %v5763
      %v5796 = vsub.f32 %v558, %v5764
      %v5797 = vsub.f32 %v560, %v5765
      %v5798 = vsub.f32 %v562, %v5766
      %v5799 = vsub.f32 %v564, %v5767
      %v5800 = vsub.f32 %v566, %v5768
      %v5801 = vsub.f32 %v568, %v5769
      %v5802 = vsub.f32 %v570, %v5770
      %v5803 = vsub.f32 %v572, %v5771
      %v5804 = vsub.f32 %v574, %v5772
      %v5805 = vsub.f32 %v576, %v5773
      %v5806 = vsub.f32 %v578, %v5774
      %v5807 = vsub.f32 %v580, %v5775
      %v5808 = vsub.f32 %v582, %v5776
      %v5809 = vsub.f32 %v584, %v5777
      %v5810 = vsub.f32 %v586, %v5778
      %v5811 = vsub.f32 %v588, %v5779
      %v5812 = vsub.f32 %v590, %v5780
      %v5813 = vsub.f32 %v592, %v5781
      %v5814 = vsub.f32 %v594, %v5782
      %v5815 = vsub.f32 %v596, %v5783
      %v5816 = vsub.f32 %v598, %v5784
      %v5817 = vmul.f32 %v5785, %v5785
      %v5818 = vmul.f32 %v5786, %v5786
      %v5819 = vmul.f32 %v5787, %v5787
      %v5820 = vmul.f32 %v5788, %v5788
      %v5821 = vmul.f32 %v5789, %v5789
      %v5822 = vmul.f32 %v5790, %v5790
      %v5823 = vmul.f32 %v5791, %v5791
      %v5824 = vmul.f32 %v5792, %v5792
      %v5825 = vmul.f32 %v5793, %v5793
      %v5826 = vmul.f32 %v5794, %v5794
      %v5827 = vmul.f32 %v5795, %v5795
      %v5828 = vmul.f32 %v5796, %v5796
      %v5829 = vmul.f32 %v5797, %v5797
      %v5830 = vmul.f32 %v5798, %v5798
      %v5831 = vmul.f32 %v5799, %v5799
      %v5832 = vmul.f32 %v5800, %v5800
      %v5833 = vmul.f32 %v5801, %v5801
      %v5834 = vmul.f32 %v5802, %v5802
      %v5835 = vmul.f32 %v5803, %v5803
      %v5836 = vmul.f32 %v5804, %v5804
      %v5837 = vmul.f32 %v5805, %v5805
      %v5838 = vmul.f32 %v5806, %v5806
      %v5839 = vmul.f32 %v5807, %v5807
      %v5840 = vmul.f32 %v5808, %v5808
      %v5841 = vmul.f32 %v5809, %v5809
      %v5842 = vmul.f32 %v5810, %v5810
      %v5843 = vmul.f32 %v5811, %v5811
      %v5844 = vmul.f32 %v5812, %v5812
      %v5845 = vmul.f32 %v5813, %v5813
      %v5846 = vmul.f32 %v5814, %v5814
      %v5847 = vmul.f32 %v5815, %v5815
      %v5848 = vmul.f32 %v5816, %v5816
      %5881 = vrot.lane.b32.xlu0 %v5817, 32
      %v5882 = vpop.permute.xlu0 %5881
      %5883 = vrot.lane.b32.xlu0 %v5818, 32
      %v5884 = vpop.permute.xlu0 %5883
      %5885 = vrot.lane.b32.xlu0 %v5819, 32
      %v5886 = vpop.permute.xlu0 %5885
      %5887 = vrot.lane.b32.xlu0 %v5820, 32
      %v5888 = vpop.permute.xlu0 %5887
      %5889 = vrot.lane.b32.xlu0 %v5821, 32
      %v5890 = vpop.permute.xlu0 %5889
      %5891 = vrot.lane.b32.xlu0 %v5822, 32
      %v5892 = vpop.permute.xlu0 %5891
      %5893 = vrot.lane.b32.xlu0 %v5823, 32
      %v5894 = vpop.permute.xlu0 %5893
      %5895 = vrot.lane.b32.xlu0 %v5824, 32
      %v5896 = vpop.permute.xlu0 %5895
      %5897 = vrot.lane.b32.xlu0 %v5825, 32
      %v5898 = vpop.permute.xlu0 %5897
      %5899 = vrot.lane.b32.xlu0 %v5826, 32
      %v5900 = vpop.permute.xlu0 %5899
      %5901 = vrot.lane.b32.xlu0 %v5827, 32
      %v5902 = vpop.permute.xlu0 %5901
      %5903 = vrot.lane.b32.xlu0 %v5828, 32
      %v5904 = vpop.permute.xlu0 %5903
      %5905 = vrot.lane.b32.xlu0 %v5829, 32
      %v5906 = vpop.permute.xlu0 %5905
      %5907 = vrot.lane.b32.xlu0 %v5830, 32
      %v5908 = vpop.permute.xlu0 %5907
      %5909 = vrot.lane.b32.xlu0 %v5831, 32
      %v5910 = vpop.permute.xlu0 %5909
      %5911 = vrot.lane.b32.xlu0 %v5832, 32
      %v5912 = vpop.permute.xlu0 %5911
      %5913 = vrot.lane.b32.xlu0 %v5833, 32
      %v5914 = vpop.permute.xlu0 %5913
      %5915 = vrot.lane.b32.xlu0 %v5834, 32
      %v5916 = vpop.permute.xlu0 %5915
      %5917 = vrot.lane.b32.xlu0 %v5835, 32
      %v5918 = vpop.permute.xlu0 %5917
      %5919 = vrot.lane.b32.xlu0 %v5836, 32
      %v5920 = vpop.permute.xlu0 %5919
      %5921 = vrot.lane.b32.xlu0 %v5837, 32
      %v5922 = vpop.permute.xlu0 %5921
      %5923 = vrot.lane.b32.xlu0 %v5838, 32
      %v5924 = vpop.permute.xlu0 %5923
      %5925 = vrot.lane.b32.xlu0 %v5839, 32
      %v5926 = vpop.permute.xlu0 %5925
      %5927 = vrot.lane.b32.xlu0 %v5840, 32
      %v5928 = vpop.permute.xlu0 %5927
      %5929 = vrot.lane.b32.xlu0 %v5841, 32
      %v5930 = vpop.permute.xlu0 %5929
      %5931 = vrot.lane.b32.xlu0 %v5842, 32
      %v5932 = vpop.permute.xlu0 %5931
      %5933 = vrot.lane.b32.xlu0 %v5843, 32
      %v5934 = vpop.permute.xlu0 %5933
      %5935 = vrot.lane.b32.xlu0 %v5844, 32
      %v5936 = vpop.permute.xlu0 %5935
      %5937 = vrot.lane.b32.xlu0 %v5845, 32
      %v5938 = vpop.permute.xlu0 %5937
      %5939 = vrot.lane.b32.xlu0 %v5846, 32
      %v5940 = vpop.permute.xlu0 %5939
      %5941 = vrot.lane.b32.xlu0 %v5847, 32
      %v5942 = vpop.permute.xlu0 %5941
      %5943 = vrot.lane.b32.xlu0 %v5848, 32
      %v5944 = vpop.permute.xlu0 %5943
      %v5977 = vsel %vm599, %v5882, 0.0
      %5978 = vadd.xlane.f32.xlu0 %v5977
      %v5979 = vpop.xlane.xlu0 %5978
      %v5980 = vsel %vm599, %v5884, 0.0
      %5981 = vadd.xlane.f32.xlu0 %v5980
      %v5982 = vpop.xlane.xlu0 %5981
      %v5983 = vsel %vm599, %v5886, 0.0
      %5984 = vadd.xlane.f32.xlu0 %v5983
      %v5985 = vpop.xlane.xlu0 %5984
      %v5986 = vsel %vm599, %v5888, 0.0
      %5987 = vadd.xlane.f32.xlu0 %v5986
      %v5988 = vpop.xlane.xlu0 %5987
      %v5989 = vsel %vm599, %v5890, 0.0
      %5990 = vadd.xlane.f32.xlu0 %v5989
      %v5991 = vpop.xlane.xlu0 %5990
      %v5992 = vsel %vm599, %v5892, 0.0
      %5993 = vadd.xlane.f32.xlu0 %v5992
      %v5994 = vpop.xlane.xlu0 %5993
      %v5995 = vsel %vm599, %v5894, 0.0
      %5996 = vadd.xlane.f32.xlu0 %v5995
      %v5997 = vpop.xlane.xlu0 %5996
      %v5998 = vsel %vm599, %v5896, 0.0
      %5999 = vadd.xlane.f32.xlu0 %v5998
      %v6000 = vpop.xlane.xlu0 %5999
      %v6001 = vsel %vm599, %v5898, 0.0
      %6002 = vadd.xlane.f32.xlu0 %v6001
      %v6003 = vpop.xlane.xlu0 %6002
      %v6004 = vsel %vm599, %v5900, 0.0
      %6005 = vadd.xlane.f32.xlu0 %v6004
      %v6006 = vpop.xlane.xlu0 %6005
      %v6007 = vsel %vm599, %v5902, 0.0
      %6008 = vadd.xlane.f32.xlu0 %v6007
      %v6009 = vpop.xlane.xlu0 %6008
      %v6010 = vsel %vm599, %v5904, 0.0
      %6011 = vadd.xlane.f32.xlu0 %v6010
      %v6012 = vpop.xlane.xlu0 %6011
      %v6013 = vsel %vm599, %v5906, 0.0
      %6014 = vadd.xlane.f32.xlu0 %v6013
      %v6015 = vpop.xlane.xlu0 %6014
      %v6016 = vsel %vm599, %v5908, 0.0
      %6017 = vadd.xlane.f32.xlu0 %v6016
      %v6018 = vpop.xlane.xlu0 %6017
      %v6019 = vsel %vm599, %v5910, 0.0
      %6020 = vadd.xlane.f32.xlu0 %v6019
      %v6021 = vpop.xlane.xlu0 %6020
      %v6022 = vsel %vm599, %v5912, 0.0
      %6023 = vadd.xlane.f32.xlu0 %v6022
      %v6024 = vpop.xlane.xlu0 %6023
      %v6025 = vsel %vm599, %v5914, 0.0
      %6026 = vadd.xlane.f32.xlu0 %v6025
      %v6027 = vpop.xlane.xlu0 %6026
      %v6028 = vsel %vm599, %v5916, 0.0
      %6029 = vadd.xlane.f32.xlu0 %v6028
      %v6030 = vpop.xlane.xlu0 %6029
      %v6031 = vsel %vm599, %v5918, 0.0
      %6032 = vadd.xlane.f32.xlu0 %v6031
      %v6033 = vpop.xlane.xlu0 %6032
      %v6034 = vsel %vm599, %v5920, 0.0
      %6035 = vadd.xlane.f32.xlu0 %v6034
      %v6036 = vpop.xlane.xlu0 %6035
      %v6037 = vsel %vm599, %v5922, 0.0
      %6038 = vadd.xlane.f32.xlu0 %v6037
      %v6039 = vpop.xlane.xlu0 %6038
      %v6040 = vsel %vm599, %v5924, 0.0
      %6041 = vadd.xlane.f32.xlu0 %v6040
      %v6042 = vpop.xlane.xlu0 %6041
      %v6043 = vsel %vm599, %v5926, 0.0
      %6044 = vadd.xlane.f32.xlu0 %v6043
      %v6045 = vpop.xlane.xlu0 %6044
      %v6046 = vsel %vm599, %v5928, 0.0
      %6047 = vadd.xlane.f32.xlu0 %v6046
      %v6048 = vpop.xlane.xlu0 %6047
      %v6049 = vsel %vm599, %v5930, 0.0
      %6050 = vadd.xlane.f32.xlu0 %v6049
      %v6051 = vpop.xlane.xlu0 %6050
      %v6052 = vsel %vm599, %v5932, 0.0
      %6053 = vadd.xlane.f32.xlu0 %v6052
      %v6054 = vpop.xlane.xlu0 %6053
      %v6055 = vsel %vm599, %v5934, 0.0
      %6056 = vadd.xlane.f32.xlu0 %v6055
      %v6057 = vpop.xlane.xlu0 %6056
      %v6058 = vsel %vm599, %v5936, 0.0
      %6059 = vadd.xlane.f32.xlu0 %v6058
      %v6060 = vpop.xlane.xlu0 %6059
      %v6061 = vsel %vm599, %v5938, 0.0
      %6062 = vadd.xlane.f32.xlu0 %v6061
      %v6063 = vpop.xlane.xlu0 %6062
      %v6064 = vsel %vm599, %v5940, 0.0
      %6065 = vadd.xlane.f32.xlu0 %v6064
      %v6066 = vpop.xlane.xlu0 %6065
      %v6067 = vsel %vm599, %v5942, 0.0
      %6068 = vadd.xlane.f32.xlu0 %v6067
      %v6069 = vpop.xlane.xlu0 %6068
      %v6070 = vsel %vm599, %v5944, 0.0
      %6071 = vadd.xlane.f32.xlu0 %v6070
      %v6072 = vpop.xlane.xlu0 %6071
      %v6073 = vmul.f32 %v5979, %v696
      %v6074 = vmul.f32 %v5982, %v696
      %v6075 = vmul.f32 %v5985, %v696
      %v6076 = vmul.f32 %v5988, %v696
      %v6077 = vmul.f32 %v5991, %v696
      %v6078 = vmul.f32 %v5994, %v696
      %v6079 = vmul.f32 %v5997, %v696
      %v6080 = vmul.f32 %v6000, %v696
      %v6081 = vmul.f32 %v6003, %v696
      %v6082 = vmul.f32 %v6006, %v696
      %v6083 = vmul.f32 %v6009, %v696
      %v6084 = vmul.f32 %v6012, %v696
      %v6085 = vmul.f32 %v6015, %v696
      %v6086 = vmul.f32 %v6018, %v696
      %v6087 = vmul.f32 %v6021, %v696
      %v6088 = vmul.f32 %v6024, %v696
      %v6089 = vmul.f32 %v6027, %v696
      %v6090 = vmul.f32 %v6030, %v696
      %v6091 = vmul.f32 %v6033, %v696
      %v6092 = vmul.f32 %v6036, %v696
      %v6093 = vmul.f32 %v6039, %v696
      %v6094 = vmul.f32 %v6042, %v696
      %v6095 = vmul.f32 %v6045, %v696
      %v6096 = vmul.f32 %v6048, %v696
      %v6097 = vmul.f32 %v6051, %v696
      %v6098 = vmul.f32 %v6054, %v696
      %v6099 = vmul.f32 %v6057, %v696
      %v6100 = vmul.f32 %v6060, %v696
      %v6101 = vmul.f32 %v6063, %v696
      %v6102 = vmul.f32 %v6066, %v696
      %v6103 = vmul.f32 %v6069, %v696
      %v6104 = vmul.f32 %v6072, %v696
      %v6105 = vadd.f32 %v6073, 1e-05
      %v6106 = vadd.f32 %v6074, 1e-05
      %v6107 = vadd.f32 %v6075, 1e-05
      %v6108 = vadd.f32 %v6076, 1e-05
      %v6109 = vadd.f32 %v6077, 1e-05
      %v6110 = vadd.f32 %v6078, 1e-05
      %v6111 = vadd.f32 %v6079, 1e-05
      %v6112 = vadd.f32 %v6080, 1e-05
      %v6113 = vadd.f32 %v6081, 1e-05
      %v6114 = vadd.f32 %v6082, 1e-05
      %v6115 = vadd.f32 %v6083, 1e-05
      %v6116 = vadd.f32 %v6084, 1e-05
      %v6117 = vadd.f32 %v6085, 1e-05
      %v6118 = vadd.f32 %v6086, 1e-05
      %v6119 = vadd.f32 %v6087, 1e-05
      %v6120 = vadd.f32 %v6088, 1e-05
      %v6121 = vadd.f32 %v6089, 1e-05
      %v6122 = vadd.f32 %v6090, 1e-05
      %v6123 = vadd.f32 %v6091, 1e-05
      %v6124 = vadd.f32 %v6092, 1e-05
      %v6125 = vadd.f32 %v6093, 1e-05
      %v6126 = vadd.f32 %v6094, 1e-05
      %v6127 = vadd.f32 %v6095, 1e-05
      %v6128 = vadd.f32 %v6096, 1e-05
      %v6129 = vadd.f32 %v6097, 1e-05
      %v6130 = vadd.f32 %v6098, 1e-05
      %v6131 = vadd.f32 %v6099, 1e-05
      %v6132 = vadd.f32 %v6100, 1e-05
      %v6133 = vadd.f32 %v6101, 1e-05
      %v6134 = vadd.f32 %v6102, 1e-05
      %v6135 = vadd.f32 %v6103, 1e-05
      %v6136 = vadd.f32 %v6104, 1e-05
      %v6137 = vrsqrt.pop %v6105
      %v6138 = vrsqrt.pop %v6106
      %v6139 = vrsqrt.pop %v6107
      %v6140 = vrsqrt.pop %v6108
      %v6141 = vrsqrt.pop %v6109
      %v6142 = vrsqrt.pop %v6110
      %v6143 = vrsqrt.pop %v6111
      %v6144 = vrsqrt.pop %v6112
      %v6145 = vrsqrt.pop %v6113
      %v6146 = vrsqrt.pop %v6114
      %v6147 = vrsqrt.pop %v6115
      %v6148 = vrsqrt.pop %v6116
      %v6149 = vrsqrt.pop %v6117
      %v6150 = vrsqrt.pop %v6118
      %v6151 = vrsqrt.pop %v6119
      %v6152 = vrsqrt.pop %v6120
      %v6153 = vrsqrt.pop %v6121
      %v6154 = vrsqrt.pop %v6122
      %v6155 = vrsqrt.pop %v6123
      %v6156 = vrsqrt.pop %v6124
      %v6157 = vrsqrt.pop %v6125
      %v6158 = vrsqrt.pop %v6126
      %v6159 = vrsqrt.pop %v6127
      %v6160 = vrsqrt.pop %v6128
      %v6161 = vrsqrt.pop %v6129
      %v6162 = vrsqrt.pop %v6130
      %v6163 = vrsqrt.pop %v6131
      %v6164 = vrsqrt.pop %v6132
      %v6165 = vrsqrt.pop %v6133
      %v6166 = vrsqrt.pop %v6134
      %v6167 = vrsqrt.pop %v6135
      %v6168 = vrsqrt.pop %v6136
      %v6169 = vmul.f32 %v5785, %v6137
      %v6170 = vmul.f32 %v5786, %v6138
      %v6171 = vmul.f32 %v5787, %v6139
      %v6172 = vmul.f32 %v5788, %v6140
      %v6173 = vmul.f32 %v5789, %v6141
      %v6174 = vmul.f32 %v5790, %v6142
      %v6175 = vmul.f32 %v5791, %v6143
      %v6176 = vmul.f32 %v5792, %v6144
      %v6177 = vmul.f32 %v5793, %v6145
      %v6178 = vmul.f32 %v5794, %v6146
      %v6179 = vmul.f32 %v5795, %v6147
      %v6180 = vmul.f32 %v5796, %v6148
      %v6181 = vmul.f32 %v5797, %v6149
      %v6182 = vmul.f32 %v5798, %v6150
      %v6183 = vmul.f32 %v5799, %v6151
      %v6184 = vmul.f32 %v5800, %v6152
      %v6185 = vmul.f32 %v5801, %v6153
      %v6186 = vmul.f32 %v5802, %v6154
      %v6187 = vmul.f32 %v5803, %v6155
      %v6188 = vmul.f32 %v5804, %v6156
      %v6189 = vmul.f32 %v5805, %v6157
      %v6190 = vmul.f32 %v5806, %v6158
      %v6191 = vmul.f32 %v5807, %v6159
      %v6192 = vmul.f32 %v5808, %v6160
      %v6193 = vmul.f32 %v5809, %v6161
      %v6194 = vmul.f32 %v5810, %v6162
      %v6195 = vmul.f32 %v5811, %v6163
      %v6196 = vmul.f32 %v5812, %v6164
      %v6197 = vmul.f32 %v5813, %v6165
      %v6198 = vmul.f32 %v5814, %v6166
      %v6199 = vmul.f32 %v5815, %v6167
      %v6200 = vmul.f32 %v5816, %v6168
      %6233 = vrot.lane.b32.xlu0 %v6169, 32
      %v6234 = vpop.permute.xlu0 %6233
      %6235 = vrot.lane.b32.xlu0 %v6170, 32
      %v6236 = vpop.permute.xlu0 %6235
      %6237 = vrot.lane.b32.xlu0 %v6171, 32
      %v6238 = vpop.permute.xlu0 %6237
      %6239 = vrot.lane.b32.xlu0 %v6172, 32
      %v6240 = vpop.permute.xlu0 %6239
      %6241 = vrot.lane.b32.xlu0 %v6173, 32
      %v6242 = vpop.permute.xlu0 %6241
      %6243 = vrot.lane.b32.xlu0 %v6174, 32
      %v6244 = vpop.permute.xlu0 %6243
      %6245 = vrot.lane.b32.xlu0 %v6175, 32
      %v6246 = vpop.permute.xlu0 %6245
      %6247 = vrot.lane.b32.xlu0 %v6176, 32
      %v6248 = vpop.permute.xlu0 %6247
      %6249 = vrot.lane.b32.xlu0 %v6177, 32
      %v6250 = vpop.permute.xlu0 %6249
      %6251 = vrot.lane.b32.xlu0 %v6178, 32
      %v6252 = vpop.permute.xlu0 %6251
      %6253 = vrot.lane.b32.xlu0 %v6179, 32
      %v6254 = vpop.permute.xlu0 %6253
      %6255 = vrot.lane.b32.xlu0 %v6180, 32
      %v6256 = vpop.permute.xlu0 %6255
      %6257 = vrot.lane.b32.xlu0 %v6181, 32
      %v6258 = vpop.permute.xlu0 %6257
      %6259 = vrot.lane.b32.xlu0 %v6182, 32
      %v6260 = vpop.permute.xlu0 %6259
      %6261 = vrot.lane.b32.xlu0 %v6183, 32
      %v6262 = vpop.permute.xlu0 %6261
      %6263 = vrot.lane.b32.xlu0 %v6184, 32
      %v6264 = vpop.permute.xlu0 %6263
      %6265 = vrot.lane.b32.xlu0 %v6185, 32
      %v6266 = vpop.permute.xlu0 %6265
      %6267 = vrot.lane.b32.xlu0 %v6186, 32
      %v6268 = vpop.permute.xlu0 %6267
      %6269 = vrot.lane.b32.xlu0 %v6187, 32
      %v6270 = vpop.permute.xlu0 %6269
      %6271 = vrot.lane.b32.xlu0 %v6188, 32
      %v6272 = vpop.permute.xlu0 %6271
      %6273 = vrot.lane.b32.xlu0 %v6189, 32
      %v6274 = vpop.permute.xlu0 %6273
      %6275 = vrot.lane.b32.xlu0 %v6190, 32
      %v6276 = vpop.permute.xlu0 %6275
      %6277 = vrot.lane.b32.xlu0 %v6191, 32
      %v6278 = vpop.permute.xlu0 %6277
      %6279 = vrot.lane.b32.xlu0 %v6192, 32
      %v6280 = vpop.permute.xlu0 %6279
      %6281 = vrot.lane.b32.xlu0 %v6193, 32
      %v6282 = vpop.permute.xlu0 %6281
      %6283 = vrot.lane.b32.xlu0 %v6194, 32
      %v6284 = vpop.permute.xlu0 %6283
      %6285 = vrot.lane.b32.xlu0 %v6195, 32
      %v6286 = vpop.permute.xlu0 %6285
      %6287 = vrot.lane.b32.xlu0 %v6196, 32
      %v6288 = vpop.permute.xlu0 %6287
      %6289 = vrot.lane.b32.xlu0 %v6197, 32
      %v6290 = vpop.permute.xlu0 %6289
      %6291 = vrot.lane.b32.xlu0 %v6198, 32
      %v6292 = vpop.permute.xlu0 %6291
      %6293 = vrot.lane.b32.xlu0 %v6199, 32
      %v6294 = vpop.permute.xlu0 %6293
      %6295 = vrot.lane.b32.xlu0 %v6200, 32
      %v6296 = vpop.permute.xlu0 %6295
      %v6329 = vadd.f32 %v5529, %v6234
      %v6330 = vadd.f32 %v5530, %v6236
      %v6331 = vadd.f32 %v5531, %v6238
      %v6332 = vadd.f32 %v5532, %v6240
      %v6333 = vadd.f32 %v5533, %v6242
      %v6334 = vadd.f32 %v5534, %v6244
      %v6335 = vadd.f32 %v5535, %v6246
      %v6336 = vadd.f32 %v5536, %v6248
      %v6337 = vadd.f32 %v5537, %v6250
      %v6338 = vadd.f32 %v5538, %v6252
      %v6339 = vadd.f32 %v5539, %v6254
      %v6340 = vadd.f32 %v5540, %v6256
      %v6341 = vadd.f32 %v5541, %v6258
      %v6342 = vadd.f32 %v5542, %v6260
      %v6343 = vadd.f32 %v5543, %v6262
      %v6344 = vadd.f32 %v5544, %v6264
      %v6345 = vadd.f32 %v5545, %v6266
      %v6346 = vadd.f32 %v5546, %v6268
      %v6347 = vadd.f32 %v5547, %v6270
      %v6348 = vadd.f32 %v5548, %v6272
      %v6349 = vadd.f32 %v5549, %v6274
      %v6350 = vadd.f32 %v5550, %v6276
      %v6351 = vadd.f32 %v5551, %v6278
      %v6352 = vadd.f32 %v5552, %v6280
      %v6353 = vadd.f32 %v5553, %v6282
      %v6354 = vadd.f32 %v5554, %v6284
      %v6355 = vadd.f32 %v5555, %v6286
      %v6356 = vadd.f32 %v5556, %v6288
      %v6357 = vadd.f32 %v5557, %v6290
      %v6358 = vadd.f32 %v5558, %v6292
      %v6359 = vadd.f32 %v5559, %v6294
      %v6360 = vadd.f32 %v5560, %v6296
      %v6361 = vld [vmem:[%s2] sm:$0xff]
      %v6362 = vld [vmem:[%s2 + $0x8] sm:$0xff]
      %v6363 = vld [vmem:[%s2 + $0x10] sm:$0xff]
      %v6364 = vld [vmem:[%s2 + $0x18] sm:$0xff]
      %v6365 = vld [vmem:[%s2 + $0x20] sm:$0xff]
      %v6366 = vld [vmem:[%s2 + $0x28] sm:$0xff]
      %v6367 = vld [vmem:[%s2 + $0x30] sm:$0xff]
      %v6368 = vld [vmem:[%s2 + $0x38] sm:$0xff]
      %v6369 = vld [vmem:[%s2 + $0x40] sm:$0xff]
      %v6370 = vld [vmem:[%s2 + $0x48] sm:$0xff]
      %v6371 = vld [vmem:[%s2 + $0x50] sm:$0xff]
      %v6372 = vld [vmem:[%s2 + $0x58] sm:$0xff]
      %v6373 = vld [vmem:[%s2 + $0x60] sm:$0xff]
      %v6374 = vld [vmem:[%s2 + $0x68] sm:$0xff]
      %v6375 = vld [vmem:[%s2 + $0x70] sm:$0xff]
      %v6376 = vld [vmem:[%s2 + $0x78] sm:$0xff]
      %v6377 = vld [vmem:[%s2 + $0x80] sm:$0xff]
      %v6378 = vld [vmem:[%s2 + $0x88] sm:$0xff]
      %v6379 = vld [vmem:[%s2 + $0x90] sm:$0xff]
      %v6380 = vld [vmem:[%s2 + $0x98] sm:$0xff]
      %6381 = vmatprep.subr.mxu0 0.0
      %6382 = vmatpush1.msra.mxu0 %v6380
      %6383 = vmatprep.subr.mxu0 0.0
      %6384 = vmatpush1.msra.mxu0 %v6379
      %6385 = vmatprep.subr.mxu0 0.0
      %6386 = vmatpush1.msra.mxu0 %v6378
      %6387 = vmatprep.subr.mxu0 0.0
      %6388 = vmatpush1.msra.mxu0 %v6377
      %6389 = vmatprep.subr.mxu0 0.0
      %6390 = vmatpush1.msra.mxu0 %v6376
      %6391 = vmatprep.subr.mxu0 0.0
      %6392 = vmatpush1.msra.mxu0 %v6375
      %6393 = vmatprep.subr.mxu0 0.0
      %6394 = vmatpush1.msra.mxu0 %v6374
      %6395 = vmatprep.subr.mxu0 0.0
      %6396 = vmatpush1.msra.mxu0 %v6373
      %6397 = vmatprep.subr.mxu0 0.0
      %6398 = vmatpush1.msra.mxu0 %v6372
      %6399 = vmatprep.subr.mxu0 0.0
      %6400 = vmatpush1.msra.mxu0 %v6371
      %6401 = vmatprep.subr.mxu0 0.0
      %6402 = vmatpush1.msra.mxu0 %v6370
      %6403 = vmatprep.subr.mxu0 0.0
      %6404 = vmatpush1.msra.mxu0 %v6369
      %6405 = vmatprep.subr.mxu0 0.0
      %6406 = vmatpush1.msra.mxu0 %v6368
      %6407 = vmatprep.subr.mxu0 0.0
      %6408 = vmatpush1.msra.mxu0 %v6367
      %6409 = vmatprep.subr.mxu0 0.0
      %6410 = vmatpush1.msra.mxu0 %v6366
      %6411 = vmatprep.subr.mxu0 0.0
      %6412 = vmatpush1.msra.mxu0 %v6365
      %6413 = vmatprep.subr.mxu0 0.0
      %6414 = vmatpush2.msra.mxu0 0.0
      %6415 = vmatprep.subr.mxu0 0.0
      %6416 = vmatpush2.msra.mxu0 0.0
      %6417 = vmatprep.subr.mxu0 0.0
      %6418 = vmatpush2.msra.mxu0 0.0
      %6419 = vmatprep.subr.mxu0 0.0
      %6420 = vmatpush2.msra.mxu0 0.0
      %6421 = vmatprep.subr.mxu0 0.0
      %6422 = vmatpush2.msra.mxu0 0.0
      %6423 = vmatprep.subr.mxu0 0.0
      %6424 = vmatpush2.msra.mxu0 0.0
      %6425 = vmatprep.subr.mxu0 0.0
      %6426 = vmatpush2.msra.mxu0 0.0
      %6427 = vmatprep.subr.mxu0 0.0
      %6428 = vmatpush2.msra.mxu0 0.0
      %6429 = vmatprep.subr.mxu0 0.0
      %6430 = vmatpush2.msra.mxu0 0.0
      %6431 = vmatprep.subr.mxu0 0.0
      %6432 = vmatpush2.msra.mxu0 0.0
      %6433 = vmatprep.subr.mxu0 0.0
      %6434 = vmatpush2.msra.mxu0 0.0
      %6435 = vmatprep.subr.mxu0 0.0
      %6436 = vmatpush2.msra.mxu0 0.0
      %6437 = vmatprep.subr.mxu0 0.0
      %6438 = vmatpush2.msra.mxu0 0.0
      %6439 = vmatprep.subr.mxu0 0.0
      %6440 = vmatpush2.msra.mxu0 0.0
      %6441 = vmatprep.subr.mxu0 0.0
      %6442 = vmatpush2.msra.mxu0 0.0
      %6443 = vmatprep.subr.mxu0 0.0
      %6444 = vmatpush2.msra.mxu0 0.0
      %6445 = vmatprep.mubr.f32.mxu0 0.0
      %6446 = vmatmul.mubr.f32.gmra.mxu0 %v201
      %v6447 = vpop.f32.mrf.mxu0
      %v6448 = vadd.f32 0.0, %v6447
      %v6449 = vpop.f32.mrf.mxu0
      %6450 = vmatprep.mubr.f32.mxu0 0.0
      %6451 = vmatmul.mubr.f32.gmra.mxu0 %v202
      %v6452 = vpop.f32.mrf.mxu0
      %v6453 = vadd.f32 0.0, %v6452
      %v6454 = vpop.f32.mrf.mxu0
      %6455 = vmatprep.mubr.f32.mxu0 0.0
      %6456 = vmatmul.mubr.f32.gmra.mxu0 %v203
      %v6457 = vpop.f32.mrf.mxu0
      %v6458 = vadd.f32 0.0, %v6457
      %v6459 = vpop.f32.mrf.mxu0
      %6460 = vmatprep.mubr.f32.mxu0 0.0
      %6461 = vmatmul.mubr.f32.gmra.mxu0 %v204
      %v6462 = vpop.f32.mrf.mxu0
      %v6463 = vadd.f32 0.0, %v6462
      %v6464 = vpop.f32.mrf.mxu0
      %6465 = vmatprep.mubr.f32.mxu0 0.0
      %6466 = vmatmul.mubr.f32.gmra.mxu0 %v205
      %v6467 = vpop.f32.mrf.mxu0
      %v6468 = vadd.f32 0.0, %v6467
      %v6469 = vpop.f32.mrf.mxu0
      %6470 = vmatprep.mubr.f32.mxu0 0.0
      %6471 = vmatmul.mubr.f32.gmra.mxu0 %v206
      %v6472 = vpop.f32.mrf.mxu0
      %v6473 = vadd.f32 0.0, %v6472
      %v6474 = vpop.f32.mrf.mxu0
      %6475 = vmatprep.mubr.f32.mxu0 0.0
      %6476 = vmatmul.mubr.f32.gmra.mxu0 %v207
      %v6477 = vpop.f32.mrf.mxu0
      %v6478 = vadd.f32 0.0, %v6477
      %v6479 = vpop.f32.mrf.mxu0
      %6480 = vmatprep.mubr.f32.mxu0 0.0
      %6481 = vmatmul.mubr.f32.gmra.mxu0 %v208
      %v6482 = vpop.f32.mrf.mxu0
      %v6483 = vadd.f32 0.0, %v6482
      %v6484 = vpop.f32.mrf.mxu0
      %6485 = vmatprep.mubr.f32.mxu0 0.0
      %6486 = vmatmul.mubr.f32.gmra.mxu0 %v209
      %v6487 = vpop.f32.mrf.mxu0
      %v6488 = vadd.f32 0.0, %v6487
      %v6489 = vpop.f32.mrf.mxu0
      %6490 = vmatprep.mubr.f32.mxu0 0.0
      %6491 = vmatmul.mubr.f32.gmra.mxu0 %v210
      %v6492 = vpop.f32.mrf.mxu0
      %v6493 = vadd.f32 0.0, %v6492
      %v6494 = vpop.f32.mrf.mxu0
      %6495 = vmatprep.mubr.f32.mxu0 0.0
      %6496 = vmatmul.mubr.f32.gmra.mxu0 %v211
      %v6497 = vpop.f32.mrf.mxu0
      %v6498 = vadd.f32 0.0, %v6497
      %v6499 = vpop.f32.mrf.mxu0
      %6500 = vmatprep.mubr.f32.mxu0 0.0
      %6501 = vmatmul.mubr.f32.gmra.mxu0 %v212
      %v6502 = vpop.f32.mrf.mxu0
      %v6503 = vadd.f32 0.0, %v6502
      %v6504 = vpop.f32.mrf.mxu0
      %6505 = vmatprep.mubr.f32.mxu0 0.0
      %6506 = vmatmul.mubr.f32.gmra.mxu0 %v213
      %v6507 = vpop.f32.mrf.mxu0
      %v6508 = vadd.f32 0.0, %v6507
      %v6509 = vpop.f32.mrf.mxu0
      %6510 = vmatprep.mubr.f32.mxu0 0.0
      %6511 = vmatmul.mubr.f32.gmra.mxu0 %v214
      %v6512 = vpop.f32.mrf.mxu0
      %v6513 = vadd.f32 0.0, %v6512
      %v6514 = vpop.f32.mrf.mxu0
      %6515 = vmatprep.mubr.f32.mxu0 0.0
      %6516 = vmatmul.mubr.f32.gmra.mxu0 %v215
      %v6517 = vpop.f32.mrf.mxu0
      %v6518 = vadd.f32 0.0, %v6517
      %v6519 = vpop.f32.mrf.mxu0
      %6520 = vmatprep.mubr.f32.mxu0 0.0
      %6521 = vmatmul.mubr.f32.gmra.mxu0 %v216
      %v6522 = vpop.f32.mrf.mxu0
      %v6523 = vadd.f32 0.0, %v6522
      %v6524 = vpop.f32.mrf.mxu0
      %6525 = vmatprep.mubr.f32.mxu0 0.0
      %6526 = vmatmul.mubr.f32.gmra.mxu0 %v217
      %v6527 = vpop.f32.mrf.mxu0
      %v6528 = vadd.f32 0.0, %v6527
      %v6529 = vpop.f32.mrf.mxu0
      %6530 = vmatprep.mubr.f32.mxu0 0.0
      %6531 = vmatmul.mubr.f32.gmra.mxu0 %v218
      %v6532 = vpop.f32.mrf.mxu0
      %v6533 = vadd.f32 0.0, %v6532
      %v6534 = vpop.f32.mrf.mxu0
      %6535 = vmatprep.mubr.f32.mxu0 0.0
      %6536 = vmatmul.mubr.f32.gmra.mxu0 %v219
      %v6537 = vpop.f32.mrf.mxu0
      %v6538 = vadd.f32 0.0, %v6537
      %v6539 = vpop.f32.mrf.mxu0
      %6540 = vmatprep.mubr.f32.mxu0 0.0
      %6541 = vmatmul.mubr.f32.gmra.mxu0 %v220
      %v6542 = vpop.f32.mrf.mxu0
      %v6543 = vadd.f32 0.0, %v6542
      %v6544 = vpop.f32.mrf.mxu0
      %6545 = vmatprep.mubr.f32.mxu0 0.0
      %6546 = vmatmul.mubr.f32.gmra.mxu0 %v221
      %v6547 = vpop.f32.mrf.mxu0
      %v6548 = vadd.f32 0.0, %v6547
      %v6549 = vpop.f32.mrf.mxu0
      %6550 = vmatprep.mubr.f32.mxu0 0.0
      %6551 = vmatmul.mubr.f32.gmra.mxu0 %v222
      %v6552 = vpop.f32.mrf.mxu0
      %v6553 = vadd.f32 0.0, %v6552
      %v6554 = vpop.f32.mrf.mxu0
      %6555 = vmatprep.mubr.f32.mxu0 0.0
      %6556 = vmatmul.mubr.f32.gmra.mxu0 %v223
      %v6557 = vpop.f32.mrf.mxu0
      %v6558 = vadd.f32 0.0, %v6557
      %v6559 = vpop.f32.mrf.mxu0
      %6560 = vmatprep.mubr.f32.mxu0 0.0
      %6561 = vmatmul.mubr.f32.gmra.mxu0 %v224
      %v6562 = vpop.f32.mrf.mxu0
      %v6563 = vadd.f32 0.0, %v6562
      %v6564 = vpop.f32.mrf.mxu0
      %6565 = vmatprep.mubr.f32.mxu0 0.0
      %6566 = vmatmul.mubr.f32.gmra.mxu0 %v225
      %v6567 = vpop.f32.mrf.mxu0
      %v6568 = vadd.f32 0.0, %v6567
      %v6569 = vpop.f32.mrf.mxu0
      %6570 = vmatprep.mubr.f32.mxu0 0.0
      %6571 = vmatmul.mubr.f32.gmra.mxu0 %v226
      %v6572 = vpop.f32.mrf.mxu0
      %v6573 = vadd.f32 0.0, %v6572
      %v6574 = vpop.f32.mrf.mxu0
      %6575 = vmatprep.mubr.f32.mxu0 0.0
      %6576 = vmatmul.mubr.f32.gmra.mxu0 %v227
      %v6577 = vpop.f32.mrf.mxu0
      %v6578 = vadd.f32 0.0, %v6577
      %v6579 = vpop.f32.mrf.mxu0
      %6580 = vmatprep.mubr.f32.mxu0 0.0
      %6581 = vmatmul.mubr.f32.gmra.mxu0 %v228
      %v6582 = vpop.f32.mrf.mxu0
      %v6583 = vadd.f32 0.0, %v6582
      %v6584 = vpop.f32.mrf.mxu0
      %6585 = vmatprep.mubr.f32.mxu0 0.0
      %6586 = vmatmul.mubr.f32.gmra.mxu0 %v229
      %v6587 = vpop.f32.mrf.mxu0
      %v6588 = vadd.f32 0.0, %v6587
      %v6589 = vpop.f32.mrf.mxu0
      %6590 = vmatprep.mubr.f32.mxu0 0.0
      %6591 = vmatmul.mubr.f32.gmra.mxu0 %v230
      %v6592 = vpop.f32.mrf.mxu0
      %v6593 = vadd.f32 0.0, %v6592
      %v6594 = vpop.f32.mrf.mxu0
      %6595 = vmatprep.mubr.f32.mxu0 0.0
      %6596 = vmatmul.mubr.f32.gmra.mxu0 %v231
      %v6597 = vpop.f32.mrf.mxu0
      %v6598 = vadd.f32 0.0, %v6597
      %v6599 = vpop.f32.mrf.mxu0
      %6600 = vmatprep.mubr.f32.mxu0 0.0
      %6601 = vmatmul.mubr.f32.gmra.mxu0 %v232
      %v6602 = vpop.f32.mrf.mxu0
      %v6603 = vadd.f32 0.0, %v6602
      %v6604 = vpop.f32.mrf.mxu0
      %6605 = vdwg.mxu0
      %v6607 = vsel %vm599, %v6329, 0
      %v6610 = vsel %vm599, %v6330, 0
      %v6613 = vsel %vm599, %v6331, 0
      %v6616 = vsel %vm599, %v6332, 0
      %v6619 = vsel %vm599, %v6333, 0
      %v6622 = vsel %vm599, %v6334, 0
      %v6625 = vsel %vm599, %v6335, 0
      %v6628 = vsel %vm599, %v6336, 0
      %v6631 = vsel %vm599, %v6337, 0
      %v6634 = vsel %vm599, %v6338, 0
      %v6637 = vsel %vm599, %v6339, 0
      %v6640 = vsel %vm599, %v6340, 0
      %v6643 = vsel %vm599, %v6341, 0
      %v6646 = vsel %vm599, %v6342, 0
      %v6649 = vsel %vm599, %v6343, 0
      %v6652 = vsel %vm599, %v6344, 0
      %v6655 = vsel %vm599, %v6345, 0
      %v6658 = vsel %vm599, %v6346, 0
      %v6661 = vsel %vm599, %v6347, 0
      %v6664 = vsel %vm599, %v6348, 0
      %v6667 = vsel %vm599, %v6349, 0
      %v6670 = vsel %vm599, %v6350, 0
      %v6673 = vsel %vm599, %v6351, 0
      %v6676 = vsel %vm599, %v6352, 0
      %v6679 = vsel %vm599, %v6353, 0
      %v6682 = vsel %vm599, %v6354, 0
      %v6685 = vsel %vm599, %v6355, 0
      %v6688 = vsel %vm599, %v6356, 0
      %v6691 = vsel %vm599, %v6357, 0
      %v6694 = vsel %vm599, %v6358, 0
      %v6697 = vsel %vm599, %v6359, 0
      %v6700 = vsel %vm599, %v6360, 0
      %6702 = vmatprep.subr.mxu0 0.0
      %6703 = vmatpush1.msra.mxu0 0.0
      %6704 = vmatprep.subr.mxu0 0.0
      %6705 = vmatpush1.msra.mxu0 0.0
      %6706 = vmatprep.subr.mxu0 0.0
      %6707 = vmatpush1.msra.mxu0 0.0
      %6708 = vmatprep.subr.mxu0 0.0
      %6709 = vmatpush1.msra.mxu0 0.0
      %6710 = vmatprep.subr.mxu0 0.0
      %6711 = vmatpush1.msra.mxu0 0.0
      %6712 = vmatprep.subr.mxu0 0.0
      %6713 = vmatpush1.msra.mxu0 0.0
      %6714 = vmatprep.subr.mxu0 0.0
      %6715 = vmatpush1.msra.mxu0 0.0
      %6716 = vmatprep.subr.mxu0 0.0
      %6717 = vmatpush1.msra.mxu0 0.0
      %6718 = vmatprep.subr.mxu0 0.0
      %6719 = vmatpush1.msra.mxu0 0.0
      %6720 = vmatprep.subr.mxu0 0.0
      %6721 = vmatpush1.msra.mxu0 0.0
      %6722 = vmatprep.subr.mxu0 0.0
      %6723 = vmatpush1.msra.mxu0 0.0
      %6724 = vmatprep.subr.mxu0 0.0
      %6725 = vmatpush1.msra.mxu0 0.0
      %6726 = vmatprep.subr.mxu0 0.0
      %6727 = vmatpush1.msra.mxu0 %v6364
      %6728 = vmatprep.subr.mxu0 0.0
      %6729 = vmatpush1.msra.mxu0 %v6363
      %6730 = vmatprep.subr.mxu0 0.0
      %6731 = vmatpush1.msra.mxu0 %v6362
      %6732 = vmatprep.subr.mxu0 0.0
      %6733 = vmatpush1.msra.mxu0 %v6361
      %6734 = vmatprep.subr.mxu0 0.0
      %6735 = vmatpush2.msra.mxu0 0.0
      %6736 = vmatprep.subr.mxu0 0.0
      %6737 = vmatpush2.msra.mxu0 0.0
      %6738 = vmatprep.subr.mxu0 0.0
      %6739 = vmatpush2.msra.mxu0 0.0
      %6740 = vmatprep.subr.mxu0 0.0
      %6741 = vmatpush2.msra.mxu0 0.0
      %6742 = vmatprep.subr.mxu0 0.0
      %6743 = vmatpush2.msra.mxu0 0.0
      %6744 = vmatprep.subr.mxu0 0.0
      %6745 = vmatpush2.msra.mxu0 0.0
      %6746 = vmatprep.subr.mxu0 0.0
      %6747 = vmatpush2.msra.mxu0 0.0
      %6748 = vmatprep.subr.mxu0 0.0
      %6749 = vmatpush2.msra.mxu0 0.0
      %6750 = vmatprep.subr.mxu0 0.0
      %6751 = vmatpush2.msra.mxu0 0.0
      %6752 = vmatprep.subr.mxu0 0.0
      %6753 = vmatpush2.msra.mxu0 0.0
      %6754 = vmatprep.subr.mxu0 0.0
      %6755 = vmatpush2.msra.mxu0 0.0
      %6756 = vmatprep.subr.mxu0 0.0
      %6757 = vmatpush2.msra.mxu0 0.0
      %6758 = vmatprep.subr.mxu0 0.0
      %6759 = vmatpush2.msra.mxu0 0.0
      %6760 = vmatprep.subr.mxu0 0.0
      %6761 = vmatpush2.msra.mxu0 0.0
      %6762 = vmatprep.subr.mxu0 0.0
      %6763 = vmatpush2.msra.mxu0 0.0
      %6764 = vmatprep.subr.mxu0 0.0
      %6765 = vmatpush2.msra.mxu0 0.0
      %6766 = vmatprep.mubr.f32.mxu0 0.0
      %6767 = vmatmul.mubr.f32.gmra.mxu0 %v6607
      %v6768 = vpop.f32.mrf.mxu0
      %v6769 = vadd.f32 %v6448, %v6768
      %v6770 = vpop.f32.mrf.mxu0
      %6771 = vmatprep.mubr.f32.mxu0 0.0
      %6772 = vmatmul.mubr.f32.gmra.mxu0 %v6610
      %v6773 = vpop.f32.mrf.mxu0
      %v6774 = vadd.f32 %v6453, %v6773
      %v6775 = vpop.f32.mrf.mxu0
      %6776 = vmatprep.mubr.f32.mxu0 0.0
      %6777 = vmatmul.mubr.f32.gmra.mxu0 %v6613
      %v6778 = vpop.f32.mrf.mxu0
      %v6779 = vadd.f32 %v6458, %v6778
      %v6780 = vpop.f32.mrf.mxu0
      %6781 = vmatprep.mubr.f32.mxu0 0.0
      %6782 = vmatmul.mubr.f32.gmra.mxu0 %v6616
      %v6783 = vpop.f32.mrf.mxu0
      %v6784 = vadd.f32 %v6463, %v6783
      %v6785 = vpop.f32.mrf.mxu0
      %6786 = vmatprep.mubr.f32.mxu0 0.0
      %6787 = vmatmul.mubr.f32.gmra.mxu0 %v6619
      %v6788 = vpop.f32.mrf.mxu0
      %v6789 = vadd.f32 %v6468, %v6788
      %v6790 = vpop.f32.mrf.mxu0
      %6791 = vmatprep.mubr.f32.mxu0 0.0
      %6792 = vmatmul.mubr.f32.gmra.mxu0 %v6622
      %v6793 = vpop.f32.mrf.mxu0
      %v6794 = vadd.f32 %v6473, %v6793
      %v6795 = vpop.f32.mrf.mxu0
      %6796 = vmatprep.mubr.f32.mxu0 0.0
      %6797 = vmatmul.mubr.f32.gmra.mxu0 %v6625
      %v6798 = vpop.f32.mrf.mxu0
      %v6799 = vadd.f32 %v6478, %v6798
      %v6800 = vpop.f32.mrf.mxu0
      %6801 = vmatprep.mubr.f32.mxu0 0.0
      %6802 = vmatmul.mubr.f32.gmra.mxu0 %v6628
      %v6803 = vpop.f32.mrf.mxu0
      %v6804 = vadd.f32 %v6483, %v6803
      %v6805 = vpop.f32.mrf.mxu0
      %6806 = vmatprep.mubr.f32.mxu0 0.0
      %6807 = vmatmul.mubr.f32.gmra.mxu0 %v6631
      %v6808 = vpop.f32.mrf.mxu0
      %v6809 = vadd.f32 %v6488, %v6808
      %v6810 = vpop.f32.mrf.mxu0
      %6811 = vmatprep.mubr.f32.mxu0 0.0
      %6812 = vmatmul.mubr.f32.gmra.mxu0 %v6634
      %v6813 = vpop.f32.mrf.mxu0
      %v6814 = vadd.f32 %v6493, %v6813
      %v6815 = vpop.f32.mrf.mxu0
      %6816 = vmatprep.mubr.f32.mxu0 0.0
      %6817 = vmatmul.mubr.f32.gmra.mxu0 %v6637
      %v6818 = vpop.f32.mrf.mxu0
      %v6819 = vadd.f32 %v6498, %v6818
      %v6820 = vpop.f32.mrf.mxu0
      %6821 = vmatprep.mubr.f32.mxu0 0.0
      %6822 = vmatmul.mubr.f32.gmra.mxu0 %v6640
      %v6823 = vpop.f32.mrf.mxu0
      %v6824 = vadd.f32 %v6503, %v6823
      %v6825 = vpop.f32.mrf.mxu0
      %6826 = vmatprep.mubr.f32.mxu0 0.0
      %6827 = vmatmul.mubr.f32.gmra.mxu0 %v6643
      %v6828 = vpop.f32.mrf.mxu0
      %v6829 = vadd.f32 %v6508, %v6828
      %v6830 = vpop.f32.mrf.mxu0
      %6831 = vmatprep.mubr.f32.mxu0 0.0
      %6832 = vmatmul.mubr.f32.gmra.mxu0 %v6646
      %v6833 = vpop.f32.mrf.mxu0
      %v6834 = vadd.f32 %v6513, %v6833
      %v6835 = vpop.f32.mrf.mxu0
      %6836 = vmatprep.mubr.f32.mxu0 0.0
      %6837 = vmatmul.mubr.f32.gmra.mxu0 %v6649
      %v6838 = vpop.f32.mrf.mxu0
      %v6839 = vadd.f32 %v6518, %v6838
      %v6840 = vpop.f32.mrf.mxu0
      %6841 = vmatprep.mubr.f32.mxu0 0.0
      %6842 = vmatmul.mubr.f32.gmra.mxu0 %v6652
      %v6843 = vpop.f32.mrf.mxu0
      %v6844 = vadd.f32 %v6523, %v6843
      %v6845 = vpop.f32.mrf.mxu0
      %6846 = vmatprep.mubr.f32.mxu0 0.0
      %6847 = vmatmul.mubr.f32.gmra.mxu0 %v6655
      %v6848 = vpop.f32.mrf.mxu0
      %v6849 = vadd.f32 %v6528, %v6848
      %v6850 = vpop.f32.mrf.mxu0
      %6851 = vmatprep.mubr.f32.mxu0 0.0
      %6852 = vmatmul.mubr.f32.gmra.mxu0 %v6658
      %v6853 = vpop.f32.mrf.mxu0
      %v6854 = vadd.f32 %v6533, %v6853
      %v6855 = vpop.f32.mrf.mxu0
      %6856 = vmatprep.mubr.f32.mxu0 0.0
      %6857 = vmatmul.mubr.f32.gmra.mxu0 %v6661
      %v6858 = vpop.f32.mrf.mxu0
      %v6859 = vadd.f32 %v6538, %v6858
      %v6860 = vpop.f32.mrf.mxu0
      %6861 = vmatprep.mubr.f32.mxu0 0.0
      %6862 = vmatmul.mubr.f32.gmra.mxu0 %v6664
      %v6863 = vpop.f32.mrf.mxu0
      %v6864 = vadd.f32 %v6543, %v6863
      %v6865 = vpop.f32.mrf.mxu0
      %6866 = vmatprep.mubr.f32.mxu0 0.0
      %6867 = vmatmul.mubr.f32.gmra.mxu0 %v6667
      %v6868 = vpop.f32.mrf.mxu0
      %v6869 = vadd.f32 %v6548, %v6868
      %v6870 = vpop.f32.mrf.mxu0
      %6871 = vmatprep.mubr.f32.mxu0 0.0
      %6872 = vmatmul.mubr.f32.gmra.mxu0 %v6670
      %v6873 = vpop.f32.mrf.mxu0
      %v6874 = vadd.f32 %v6553, %v6873
      %v6875 = vpop.f32.mrf.mxu0
      %6876 = vmatprep.mubr.f32.mxu0 0.0
      %6877 = vmatmul.mubr.f32.gmra.mxu0 %v6673
      %v6878 = vpop.f32.mrf.mxu0
      %v6879 = vadd.f32 %v6558, %v6878
      %v6880 = vpop.f32.mrf.mxu0
      %6881 = vmatprep.mubr.f32.mxu0 0.0
      %6882 = vmatmul.mubr.f32.gmra.mxu0 %v6676
      %v6883 = vpop.f32.mrf.mxu0
      %v6884 = vadd.f32 %v6563, %v6883
      %v6885 = vpop.f32.mrf.mxu0
      %6886 = vmatprep.mubr.f32.mxu0 0.0
      %6887 = vmatmul.mubr.f32.gmra.mxu0 %v6679
      %v6888 = vpop.f32.mrf.mxu0
      %v6889 = vadd.f32 %v6568, %v6888
      %v6890 = vpop.f32.mrf.mxu0
      %6891 = vmatprep.mubr.f32.mxu0 0.0
      %6892 = vmatmul.mubr.f32.gmra.mxu0 %v6682
      %v6893 = vpop.f32.mrf.mxu0
      %v6894 = vadd.f32 %v6573, %v6893
      %v6895 = vpop.f32.mrf.mxu0
      %6896 = vmatprep.mubr.f32.mxu0 0.0
      %6897 = vmatmul.mubr.f32.gmra.mxu0 %v6685
      %v6898 = vpop.f32.mrf.mxu0
      %v6899 = vadd.f32 %v6578, %v6898
      %v6900 = vpop.f32.mrf.mxu0
      %6901 = vmatprep.mubr.f32.mxu0 0.0
      %6902 = vmatmul.mubr.f32.gmra.mxu0 %v6688
      %v6903 = vpop.f32.mrf.mxu0
      %v6904 = vadd.f32 %v6583, %v6903
      %v6905 = vpop.f32.mrf.mxu0
      %6906 = vmatprep.mubr.f32.mxu0 0.0
      %6907 = vmatmul.mubr.f32.gmra.mxu0 %v6691
      %v6908 = vpop.f32.mrf.mxu0
      %v6909 = vadd.f32 %v6588, %v6908
      %v6910 = vpop.f32.mrf.mxu0
      %6911 = vmatprep.mubr.f32.mxu0 0.0
      %6912 = vmatmul.mubr.f32.gmra.mxu0 %v6694
      %v6913 = vpop.f32.mrf.mxu0
      %v6914 = vadd.f32 %v6593, %v6913
      %v6915 = vpop.f32.mrf.mxu0
      %6916 = vmatprep.mubr.f32.mxu0 0.0
      %6917 = vmatmul.mubr.f32.gmra.mxu0 %v6697
      %v6918 = vpop.f32.mrf.mxu0
      %v6919 = vadd.f32 %v6598, %v6918
      %v6920 = vpop.f32.mrf.mxu0
      %6921 = vmatprep.mubr.f32.mxu0 0.0
      %6922 = vmatmul.mubr.f32.gmra.mxu0 %v6700
      %v6923 = vpop.f32.mrf.mxu0
      %v6924 = vadd.f32 %v6603, %v6923
      %v6925 = vpop.f32.mrf.mxu0
      %6926 = vdwg.mxu0
      %v6927 = vld [vmem:[%s2 + $0xa0] sm:$0x1]
      %v6928 = vlaneseq
      %v6929 = vshrl.u32 %v6928, 7
      %v6930 = vsub.s32 0, %v6929
      %v6931 = vrot.slane %v6927, %v6930
      %v6932 = vadd.f32 %v6769, %v6931
      %v6933 = vadd.f32 %v6774, %v6931
      %v6934 = vadd.f32 %v6779, %v6931
      %v6935 = vadd.f32 %v6784, %v6931
      %v6936 = vadd.f32 %v6789, %v6931
      %v6937 = vadd.f32 %v6794, %v6931
      %v6938 = vadd.f32 %v6799, %v6931
      %v6939 = vadd.f32 %v6804, %v6931
      %v6940 = vadd.f32 %v6809, %v6931
      %v6941 = vadd.f32 %v6814, %v6931
      %v6942 = vadd.f32 %v6819, %v6931
      %v6943 = vadd.f32 %v6824, %v6931
      %v6944 = vadd.f32 %v6829, %v6931
      %v6945 = vadd.f32 %v6834, %v6931
      %v6946 = vadd.f32 %v6839, %v6931
      %v6947 = vadd.f32 %v6844, %v6931
      %v6948 = vadd.f32 %v6849, %v6931
      %v6949 = vadd.f32 %v6854, %v6931
      %v6950 = vadd.f32 %v6859, %v6931
      %v6951 = vadd.f32 %v6864, %v6931
      %v6952 = vadd.f32 %v6869, %v6931
      %v6953 = vadd.f32 %v6874, %v6931
      %v6954 = vadd.f32 %v6879, %v6931
      %v6955 = vadd.f32 %v6884, %v6931
      %v6956 = vadd.f32 %v6889, %v6931
      %v6957 = vadd.f32 %v6894, %v6931
      %v6958 = vadd.f32 %v6899, %v6931
      %v6959 = vadd.f32 %v6904, %v6931
      %v6960 = vadd.f32 %v6909, %v6931
      %v6961 = vadd.f32 %v6914, %v6931
      %v6962 = vadd.f32 %v6919, %v6931
      %v6963 = vadd.f32 %v6924, %v6931
      %v6964 = vmax.f32 %v6932, 0.0
      %v6965 = vmax.f32 %v6933, 0.0
      %v6966 = vmax.f32 %v6934, 0.0
      %v6967 = vmax.f32 %v6935, 0.0
      %v6968 = vmax.f32 %v6936, 0.0
      %v6969 = vmax.f32 %v6937, 0.0
      %v6970 = vmax.f32 %v6938, 0.0
      %v6971 = vmax.f32 %v6939, 0.0
      %v6972 = vmax.f32 %v6940, 0.0
      %v6973 = vmax.f32 %v6941, 0.0
      %v6974 = vmax.f32 %v6942, 0.0
      %v6975 = vmax.f32 %v6943, 0.0
      %v6976 = vmax.f32 %v6944, 0.0
      %v6977 = vmax.f32 %v6945, 0.0
      %v6978 = vmax.f32 %v6946, 0.0
      %v6979 = vmax.f32 %v6947, 0.0
      %v6980 = vmax.f32 %v6948, 0.0
      %v6981 = vmax.f32 %v6949, 0.0
      %v6982 = vmax.f32 %v6950, 0.0
      %v6983 = vmax.f32 %v6951, 0.0
      %v6984 = vmax.f32 %v6952, 0.0
      %v6985 = vmax.f32 %v6953, 0.0
      %v6986 = vmax.f32 %v6954, 0.0
      %v6987 = vmax.f32 %v6955, 0.0
      %v6988 = vmax.f32 %v6956, 0.0
      %v6989 = vmax.f32 %v6957, 0.0
      %v6990 = vmax.f32 %v6958, 0.0
      %v6991 = vmax.f32 %v6959, 0.0
      %v6992 = vmax.f32 %v6960, 0.0
      %v6993 = vmax.f32 %v6961, 0.0
      %v6994 = vmax.f32 %v6962, 0.0
      %v6995 = vmax.f32 %v6963, 0.0
      %v6996 = vld [vmem:[%s3] sm:$0xff]
      %v6997 = vld [vmem:[%s3 + $0x8] sm:$0xff]
      %v6998 = vld [vmem:[%s3 + $0x10] sm:$0xff]
      %v6999 = vld [vmem:[%s3 + $0x18] sm:$0xff]
      %v7000 = vld [vmem:[%s3 + $0x20] sm:$0xff]
      %v7001 = vld [vmem:[%s3 + $0x28] sm:$0xff]
      %v7002 = vld [vmem:[%s3 + $0x30] sm:$0xff]
      %v7003 = vld [vmem:[%s3 + $0x38] sm:$0xff]
      %v7004 = vld [vmem:[%s3 + $0x40] sm:$0xff]
      %v7005 = vld [vmem:[%s3 + $0x48] sm:$0xff]
      %v7006 = vld [vmem:[%s3 + $0x50] sm:$0xff]
      %v7007 = vld [vmem:[%s3 + $0x58] sm:$0xff]
      %v7008 = vld [vmem:[%s3 + $0x60] sm:$0xff]
      %v7009 = vld [vmem:[%s3 + $0x68] sm:$0xff]
      %v7010 = vld [vmem:[%s3 + $0x70] sm:$0xff]
      %v7011 = vld [vmem:[%s3 + $0x78] sm:$0xff]
      %v7012 = vld [vmem:[%s3 + $0x80] sm:$0x1]
      %v7013 = vlaneseq
      %v7014 = vshrl.u32 %v7013, 7
      %v7015 = vsub.s32 0, %v7014
      %v7016 = vrot.slane %v7012, %v7015
      %7017 = vmatprep.subr.mxu0 0.0
      %7018 = vmatpush1.msra.mxu0 %v7011
      %7019 = vmatprep.subr.mxu0 0.0
      %7020 = vmatpush1.msra.mxu0 %v7010
      %7021 = vmatprep.subr.mxu0 0.0
      %7022 = vmatpush1.msra.mxu0 %v7009
      %7023 = vmatprep.subr.mxu0 0.0
      %7024 = vmatpush1.msra.mxu0 %v7008
      %7025 = vmatprep.subr.mxu0 0.0
      %7026 = vmatpush1.msra.mxu0 %v7007
      %7027 = vmatprep.subr.mxu0 0.0
      %7028 = vmatpush1.msra.mxu0 %v7006
      %7029 = vmatprep.subr.mxu0 0.0
      %7030 = vmatpush1.msra.mxu0 %v7005
      %7031 = vmatprep.subr.mxu0 0.0
      %7032 = vmatpush1.msra.mxu0 %v7004
      %7033 = vmatprep.subr.mxu0 0.0
      %7034 = vmatpush1.msra.mxu0 %v7003
      %7035 = vmatprep.subr.mxu0 0.0
      %7036 = vmatpush1.msra.mxu0 %v7002
      %7037 = vmatprep.subr.mxu0 0.0
      %7038 = vmatpush1.msra.mxu0 %v7001
      %7039 = vmatprep.subr.mxu0 0.0
      %7040 = vmatpush1.msra.mxu0 %v7000
      %7041 = vmatprep.subr.mxu0 0.0
      %7042 = vmatpush1.msra.mxu0 %v6999
      %7043 = vmatprep.subr.mxu0 0.0
      %7044 = vmatpush1.msra.mxu0 %v6998
      %7045 = vmatprep.subr.mxu0 0.0
      %7046 = vmatpush1.msra.mxu0 %v6997
      %7047 = vmatprep.subr.mxu0 0.0
      %7048 = vmatpush1.msra.mxu0 %v6996
      %7049 = vmatprep.subr.mxu0 0.0
      %7050 = vmatpush2.msra.mxu0 0.0
      %7051 = vmatprep.subr.mxu0 0.0
      %7052 = vmatpush2.msra.mxu0 0.0
      %7053 = vmatprep.subr.mxu0 0.0
      %7054 = vmatpush2.msra.mxu0 0.0
      %7055 = vmatprep.subr.mxu0 0.0
      %7056 = vmatpush2.msra.mxu0 0.0
      %7057 = vmatprep.subr.mxu0 0.0
      %7058 = vmatpush2.msra.mxu0 0.0
      %7059 = vmatprep.subr.mxu0 0.0
      %7060 = vmatpush2.msra.mxu0 0.0
      %7061 = vmatprep.subr.mxu0 0.0
      %7062 = vmatpush2.msra.mxu0 0.0
      %7063 = vmatprep.subr.mxu0 0.0
      %7064 = vmatpush2.msra.mxu0 0.0
      %7065 = vmatprep.subr.mxu0 0.0
      %7066 = vmatpush2.msra.mxu0 0.0
      %7067 = vmatprep.subr.mxu0 0.0
      %7068 = vmatpush2.msra.mxu0 0.0
      %7069 = vmatprep.subr.mxu0 0.0
      %7070 = vmatpush2.msra.mxu0 0.0
      %7071 = vmatprep.subr.mxu0 0.0
      %7072 = vmatpush2.msra.mxu0 0.0
      %7073 = vmatprep.subr.mxu0 0.0
      %7074 = vmatpush2.msra.mxu0 0.0
      %7075 = vmatprep.subr.mxu0 0.0
      %7076 = vmatpush2.msra.mxu0 0.0
      %7077 = vmatprep.subr.mxu0 0.0
      %7078 = vmatpush2.msra.mxu0 0.0
      %7079 = vmatprep.subr.mxu0 0.0
      %7080 = vmatpush2.msra.mxu0 0.0
      %7081 = vmatprep.mubr.f32.mxu0 0.0
      %7082 = vmatmul.mubr.f32.gmra.mxu0 %v6964
      %v7083 = vpop.f32.mrf.mxu0
      %v7084 = vadd.f32 %v7016, %v7083
      %v7085 = vpop.f32.mrf.mxu0
      %7086 = vmatprep.mubr.f32.mxu0 0.0
      %7087 = vmatmul.mubr.f32.gmra.mxu0 %v6965
      %v7088 = vpop.f32.mrf.mxu0
      %v7089 = vadd.f32 %v7016, %v7088
      %v7090 = vpop.f32.mrf.mxu0
      %7091 = vmatprep.mubr.f32.mxu0 0.0
      %7092 = vmatmul.mubr.f32.gmra.mxu0 %v6966
      %v7093 = vpop.f32.mrf.mxu0
      %v7094 = vadd.f32 %v7016, %v7093
      %v7095 = vpop.f32.mrf.mxu0
      %7096 = vmatprep.mubr.f32.mxu0 0.0
      %7097 = vmatmul.mubr.f32.gmra.mxu0 %v6967
      %v7098 = vpop.f32.mrf.mxu0
      %v7099 = vadd.f32 %v7016, %v7098
      %v7100 = vpop.f32.mrf.mxu0
      %7101 = vmatprep.mubr.f32.mxu0 0.0
      %7102 = vmatmul.mubr.f32.gmra.mxu0 %v6968
      %v7103 = vpop.f32.mrf.mxu0
      %v7104 = vadd.f32 %v7016, %v7103
      %v7105 = vpop.f32.mrf.mxu0
      %7106 = vmatprep.mubr.f32.mxu0 0.0
      %7107 = vmatmul.mubr.f32.gmra.mxu0 %v6969
      %v7108 = vpop.f32.mrf.mxu0
      %v7109 = vadd.f32 %v7016, %v7108
      %v7110 = vpop.f32.mrf.mxu0
      %7111 = vmatprep.mubr.f32.mxu0 0.0
      %7112 = vmatmul.mubr.f32.gmra.mxu0 %v6970
      %v7113 = vpop.f32.mrf.mxu0
      %v7114 = vadd.f32 %v7016, %v7113
      %v7115 = vpop.f32.mrf.mxu0
      %7116 = vmatprep.mubr.f32.mxu0 0.0
      %7117 = vmatmul.mubr.f32.gmra.mxu0 %v6971
      %v7118 = vpop.f32.mrf.mxu0
      %v7119 = vadd.f32 %v7016, %v7118
      %v7120 = vpop.f32.mrf.mxu0
      %7121 = vmatprep.mubr.f32.mxu0 0.0
      %7122 = vmatmul.mubr.f32.gmra.mxu0 %v6972
      %v7123 = vpop.f32.mrf.mxu0
      %v7124 = vadd.f32 %v7016, %v7123
      %v7125 = vpop.f32.mrf.mxu0
      %7126 = vmatprep.mubr.f32.mxu0 0.0
      %7127 = vmatmul.mubr.f32.gmra.mxu0 %v6973
      %v7128 = vpop.f32.mrf.mxu0
      %v7129 = vadd.f32 %v7016, %v7128
      %v7130 = vpop.f32.mrf.mxu0
      %7131 = vmatprep.mubr.f32.mxu0 0.0
      %7132 = vmatmul.mubr.f32.gmra.mxu0 %v6974
      %v7133 = vpop.f32.mrf.mxu0
      %v7134 = vadd.f32 %v7016, %v7133
      %v7135 = vpop.f32.mrf.mxu0
      %7136 = vmatprep.mubr.f32.mxu0 0.0
      %7137 = vmatmul.mubr.f32.gmra.mxu0 %v6975
      %v7138 = vpop.f32.mrf.mxu0
      %v7139 = vadd.f32 %v7016, %v7138
      %v7140 = vpop.f32.mrf.mxu0
      %7141 = vmatprep.mubr.f32.mxu0 0.0
      %7142 = vmatmul.mubr.f32.gmra.mxu0 %v6976
      %v7143 = vpop.f32.mrf.mxu0
      %v7144 = vadd.f32 %v7016, %v7143
      %v7145 = vpop.f32.mrf.mxu0
      %7146 = vmatprep.mubr.f32.mxu0 0.0
      %7147 = vmatmul.mubr.f32.gmra.mxu0 %v6977
      %v7148 = vpop.f32.mrf.mxu0
      %v7149 = vadd.f32 %v7016, %v7148
      %v7150 = vpop.f32.mrf.mxu0
      %7151 = vmatprep.mubr.f32.mxu0 0.0
      %7152 = vmatmul.mubr.f32.gmra.mxu0 %v6978
      %v7153 = vpop.f32.mrf.mxu0
      %v7154 = vadd.f32 %v7016, %v7153
      %v7155 = vpop.f32.mrf.mxu0
      %7156 = vmatprep.mubr.f32.mxu0 0.0
      %7157 = vmatmul.mubr.f32.gmra.mxu0 %v6979
      %v7158 = vpop.f32.mrf.mxu0
      %v7159 = vadd.f32 %v7016, %v7158
      %v7160 = vpop.f32.mrf.mxu0
      %7161 = vmatprep.mubr.f32.mxu0 0.0
      %7162 = vmatmul.mubr.f32.gmra.mxu0 %v6980
      %v7163 = vpop.f32.mrf.mxu0
      %v7164 = vadd.f32 %v7016, %v7163
      %v7165 = vpop.f32.mrf.mxu0
      %7166 = vmatprep.mubr.f32.mxu0 0.0
      %7167 = vmatmul.mubr.f32.gmra.mxu0 %v6981
      %v7168 = vpop.f32.mrf.mxu0
      %v7169 = vadd.f32 %v7016, %v7168
      %v7170 = vpop.f32.mrf.mxu0
      %7171 = vmatprep.mubr.f32.mxu0 0.0
      %7172 = vmatmul.mubr.f32.gmra.mxu0 %v6982
      %v7173 = vpop.f32.mrf.mxu0
      %v7174 = vadd.f32 %v7016, %v7173
      %v7175 = vpop.f32.mrf.mxu0
      %7176 = vmatprep.mubr.f32.mxu0 0.0
      %7177 = vmatmul.mubr.f32.gmra.mxu0 %v6983
      %v7178 = vpop.f32.mrf.mxu0
      %v7179 = vadd.f32 %v7016, %v7178
      %v7180 = vpop.f32.mrf.mxu0
      %7181 = vmatprep.mubr.f32.mxu0 0.0
      %7182 = vmatmul.mubr.f32.gmra.mxu0 %v6984
      %v7183 = vpop.f32.mrf.mxu0
      %v7184 = vadd.f32 %v7016, %v7183
      %v7185 = vpop.f32.mrf.mxu0
      %7186 = vmatprep.mubr.f32.mxu0 0.0
      %7187 = vmatmul.mubr.f32.gmra.mxu0 %v6985
      %v7188 = vpop.f32.mrf.mxu0
      %v7189 = vadd.f32 %v7016, %v7188
      %v7190 = vpop.f32.mrf.mxu0
      %7191 = vmatprep.mubr.f32.mxu0 0.0
      %7192 = vmatmul.mubr.f32.gmra.mxu0 %v6986
      %v7193 = vpop.f32.mrf.mxu0
      %v7194 = vadd.f32 %v7016, %v7193
      %v7195 = vpop.f32.mrf.mxu0
      %7196 = vmatprep.mubr.f32.mxu0 0.0
      %7197 = vmatmul.mubr.f32.gmra.mxu0 %v6987
      %v7198 = vpop.f32.mrf.mxu0
      %v7199 = vadd.f32 %v7016, %v7198
      %v7200 = vpop.f32.mrf.mxu0
      %7201 = vmatprep.mubr.f32.mxu0 0.0
      %7202 = vmatmul.mubr.f32.gmra.mxu0 %v6988
      %v7203 = vpop.f32.mrf.mxu0
      %v7204 = vadd.f32 %v7016, %v7203
      %v7205 = vpop.f32.mrf.mxu0
      %7206 = vmatprep.mubr.f32.mxu0 0.0
      %7207 = vmatmul.mubr.f32.gmra.mxu0 %v6989
      %v7208 = vpop.f32.mrf.mxu0
      %v7209 = vadd.f32 %v7016, %v7208
      %v7210 = vpop.f32.mrf.mxu0
      %7211 = vmatprep.mubr.f32.mxu0 0.0
      %7212 = vmatmul.mubr.f32.gmra.mxu0 %v6990
      %v7213 = vpop.f32.mrf.mxu0
      %v7214 = vadd.f32 %v7016, %v7213
      %v7215 = vpop.f32.mrf.mxu0
      %7216 = vmatprep.mubr.f32.mxu0 0.0
      %7217 = vmatmul.mubr.f32.gmra.mxu0 %v6991
      %v7218 = vpop.f32.mrf.mxu0
      %v7219 = vadd.f32 %v7016, %v7218
      %v7220 = vpop.f32.mrf.mxu0
      %7221 = vmatprep.mubr.f32.mxu0 0.0
      %7222 = vmatmul.mubr.f32.gmra.mxu0 %v6992
      %v7223 = vpop.f32.mrf.mxu0
      %v7224 = vadd.f32 %v7016, %v7223
      %v7225 = vpop.f32.mrf.mxu0
      %7226 = vmatprep.mubr.f32.mxu0 0.0
      %7227 = vmatmul.mubr.f32.gmra.mxu0 %v6993
      %v7228 = vpop.f32.mrf.mxu0
      %v7229 = vadd.f32 %v7016, %v7228
      %v7230 = vpop.f32.mrf.mxu0
      %7231 = vmatprep.mubr.f32.mxu0 0.0
      %7232 = vmatmul.mubr.f32.gmra.mxu0 %v6994
      %v7233 = vpop.f32.mrf.mxu0
      %v7234 = vadd.f32 %v7016, %v7233
      %v7235 = vpop.f32.mrf.mxu0
      %7236 = vmatprep.mubr.f32.mxu0 0.0
      %7237 = vmatmul.mubr.f32.gmra.mxu0 %v6995
      %v7238 = vpop.f32.mrf.mxu0
      %v7239 = vadd.f32 %v7016, %v7238
      %v7240 = vpop.f32.mrf.mxu0
      %7241 = vdwg.mxu0
      %7242 = vmax.xlane.f32.xlu0 %v7084
      %v7243 = vpop.xlane.xlu0 %7242
      %7244 = vmax.xlane.f32.xlu0 %v7089
      %v7245 = vpop.xlane.xlu0 %7244
      %7246 = vmax.xlane.f32.xlu0 %v7094
      %v7247 = vpop.xlane.xlu0 %7246
      %7248 = vmax.xlane.f32.xlu0 %v7099
      %v7249 = vpop.xlane.xlu0 %7248
      %7250 = vmax.xlane.f32.xlu0 %v7104
      %v7251 = vpop.xlane.xlu0 %7250
      %7252 = vmax.xlane.f32.xlu0 %v7109
      %v7253 = vpop.xlane.xlu0 %7252
      %7254 = vmax.xlane.f32.xlu0 %v7114
      %v7255 = vpop.xlane.xlu0 %7254
      %7256 = vmax.xlane.f32.xlu0 %v7119
      %v7257 = vpop.xlane.xlu0 %7256
      %7258 = vmax.xlane.f32.xlu0 %v7124
      %v7259 = vpop.xlane.xlu0 %7258
      %7260 = vmax.xlane.f32.xlu0 %v7129
      %v7261 = vpop.xlane.xlu0 %7260
      %7262 = vmax.xlane.f32.xlu0 %v7134
      %v7263 = vpop.xlane.xlu0 %7262
      %7264 = vmax.xlane.f32.xlu0 %v7139
      %v7265 = vpop.xlane.xlu0 %7264
      %7266 = vmax.xlane.f32.xlu0 %v7144
      %v7267 = vpop.xlane.xlu0 %7266
      %7268 = vmax.xlane.f32.xlu0 %v7149
      %v7269 = vpop.xlane.xlu0 %7268
      %7270 = vmax.xlane.f32.xlu0 %v7154
      %v7271 = vpop.xlane.xlu0 %7270
      %7272 = vmax.xlane.f32.xlu0 %v7159
      %v7273 = vpop.xlane.xlu0 %7272
      %7274 = vmax.xlane.f32.xlu0 %v7164
      %v7275 = vpop.xlane.xlu0 %7274
      %7276 = vmax.xlane.f32.xlu0 %v7169
      %v7277 = vpop.xlane.xlu0 %7276
      %7278 = vmax.xlane.f32.xlu0 %v7174
      %v7279 = vpop.xlane.xlu0 %7278
      %7280 = vmax.xlane.f32.xlu0 %v7179
      %v7281 = vpop.xlane.xlu0 %7280
      %7282 = vmax.xlane.f32.xlu0 %v7184
      %v7283 = vpop.xlane.xlu0 %7282
      %7284 = vmax.xlane.f32.xlu0 %v7189
      %v7285 = vpop.xlane.xlu0 %7284
      %7286 = vmax.xlane.f32.xlu0 %v7194
      %v7287 = vpop.xlane.xlu0 %7286
      %7288 = vmax.xlane.f32.xlu0 %v7199
      %v7289 = vpop.xlane.xlu0 %7288
      %7290 = vmax.xlane.f32.xlu0 %v7204
      %v7291 = vpop.xlane.xlu0 %7290
      %7292 = vmax.xlane.f32.xlu0 %v7209
      %v7293 = vpop.xlane.xlu0 %7292
      %7294 = vmax.xlane.f32.xlu0 %v7214
      %v7295 = vpop.xlane.xlu0 %7294
      %7296 = vmax.xlane.f32.xlu0 %v7219
      %v7297 = vpop.xlane.xlu0 %7296
      %7298 = vmax.xlane.f32.xlu0 %v7224
      %v7299 = vpop.xlane.xlu0 %7298
      %7300 = vmax.xlane.f32.xlu0 %v7229
      %v7301 = vpop.xlane.xlu0 %7300
      %7302 = vmax.xlane.f32.xlu0 %v7234
      %v7303 = vpop.xlane.xlu0 %7302
      %7304 = vmax.xlane.f32.xlu0 %v7239
      %v7305 = vpop.xlane.xlu0 %7304
      %v7306 = vsub.f32 %v7084, %v7243
      %v7307 = vsub.f32 %v7089, %v7245
      %v7308 = vsub.f32 %v7094, %v7247
      %v7309 = vsub.f32 %v7099, %v7249
      %v7310 = vsub.f32 %v7104, %v7251
      %v7311 = vsub.f32 %v7109, %v7253
      %v7312 = vsub.f32 %v7114, %v7255
      %v7313 = vsub.f32 %v7119, %v7257
      %v7314 = vsub.f32 %v7124, %v7259
      %v7315 = vsub.f32 %v7129, %v7261
      %v7316 = vsub.f32 %v7134, %v7263
      %v7317 = vsub.f32 %v7139, %v7265
      %v7318 = vsub.f32 %v7144, %v7267
      %v7319 = vsub.f32 %v7149, %v7269
      %v7320 = vsub.f32 %v7154, %v7271
      %v7321 = vsub.f32 %v7159, %v7273
      %v7322 = vsub.f32 %v7164, %v7275
      %v7323 = vsub.f32 %v7169, %v7277
      %v7324 = vsub.f32 %v7174, %v7279
      %v7325 = vsub.f32 %v7179, %v7281
      %v7326 = vsub.f32 %v7184, %v7283
      %v7327 = vsub.f32 %v7189, %v7285
      %v7328 = vsub.f32 %v7194, %v7287
      %v7329 = vsub.f32 %v7199, %v7289
      %v7330 = vsub.f32 %v7204, %v7291
      %v7331 = vsub.f32 %v7209, %v7293
      %v7332 = vsub.f32 %v7214, %v7295
      %v7333 = vsub.f32 %v7219, %v7297
      %v7334 = vsub.f32 %v7224, %v7299
      %v7335 = vsub.f32 %v7229, %v7301
      %v7336 = vsub.f32 %v7234, %v7303
      %v7337 = vsub.f32 %v7239, %v7305
      %v7338 = vmul.f32 %v7306, 1.442695
      %v7339 = vpow.pop %v7338
      %v7340 = vmul.f32 %v7307, 1.442695
      %v7341 = vpow.pop %v7340
      %v7342 = vmul.f32 %v7308, 1.442695
      %v7343 = vpow.pop %v7342
      %v7344 = vmul.f32 %v7309, 1.442695
      %v7345 = vpow.pop %v7344
      %v7346 = vmul.f32 %v7310, 1.442695
      %v7347 = vpow.pop %v7346
      %v7348 = vmul.f32 %v7311, 1.442695
      %v7349 = vpow.pop %v7348
      %v7350 = vmul.f32 %v7312, 1.442695
      %v7351 = vpow.pop %v7350
      %v7352 = vmul.f32 %v7313, 1.442695
      %v7353 = vpow.pop %v7352
      %v7354 = vmul.f32 %v7314, 1.442695
      %v7355 = vpow.pop %v7354
      %v7356 = vmul.f32 %v7315, 1.442695
      %v7357 = vpow.pop %v7356
      %v7358 = vmul.f32 %v7316, 1.442695
      %v7359 = vpow.pop %v7358
      %v7360 = vmul.f32 %v7317, 1.442695
      %v7361 = vpow.pop %v7360
      %v7362 = vmul.f32 %v7318, 1.442695
      %v7363 = vpow.pop %v7362
      %v7364 = vmul.f32 %v7319, 1.442695
      %v7365 = vpow.pop %v7364
      %v7366 = vmul.f32 %v7320, 1.442695
      %v7367 = vpow.pop %v7366
      %v7368 = vmul.f32 %v7321, 1.442695
      %v7369 = vpow.pop %v7368
      %v7370 = vmul.f32 %v7322, 1.442695
      %v7371 = vpow.pop %v7370
      %v7372 = vmul.f32 %v7323, 1.442695
      %v7373 = vpow.pop %v7372
      %v7374 = vmul.f32 %v7324, 1.442695
      %v7375 = vpow.pop %v7374
      %v7376 = vmul.f32 %v7325, 1.442695
      %v7377 = vpow.pop %v7376
      %v7378 = vmul.f32 %v7326, 1.442695
      %v7379 = vpow.pop %v7378
      %v7380 = vmul.f32 %v7327, 1.442695
      %v7381 = vpow.pop %v7380
      %v7382 = vmul.f32 %v7328, 1.442695
      %v7383 = vpow.pop %v7382
      %v7384 = vmul.f32 %v7329, 1.442695
      %v7385 = vpow.pop %v7384
      %v7386 = vmul.f32 %v7330, 1.442695
      %v7387 = vpow.pop %v7386
      %v7388 = vmul.f32 %v7331, 1.442695
      %v7389 = vpow.pop %v7388
      %v7390 = vmul.f32 %v7332, 1.442695
      %v7391 = vpow.pop %v7390
      %v7392 = vmul.f32 %v7333, 1.442695
      %v7393 = vpow.pop %v7392
      %v7394 = vmul.f32 %v7334, 1.442695
      %v7395 = vpow.pop %v7394
      %v7396 = vmul.f32 %v7335, 1.442695
      %v7397 = vpow.pop %v7396
      %v7398 = vmul.f32 %v7336, 1.442695
      %v7399 = vpow.pop %v7398
      %v7400 = vmul.f32 %v7337, 1.442695
      %v7401 = vpow.pop %v7400
      %7402 = vadd.xlane.f32.xlu0 %v7339
      %v7403 = vpop.xlane.xlu0 %7402
      %7404 = vadd.xlane.f32.xlu0 %v7341
      %v7405 = vpop.xlane.xlu0 %7404
      %7406 = vadd.xlane.f32.xlu0 %v7343
      %v7407 = vpop.xlane.xlu0 %7406
      %7408 = vadd.xlane.f32.xlu0 %v7345
      %v7409 = vpop.xlane.xlu0 %7408
      %7410 = vadd.xlane.f32.xlu0 %v7347
      %v7411 = vpop.xlane.xlu0 %7410
      %7412 = vadd.xlane.f32.xlu0 %v7349
      %v7413 = vpop.xlane.xlu0 %7412
      %7414 = vadd.xlane.f32.xlu0 %v7351
      %v7415 = vpop.xlane.xlu0 %7414
      %7416 = vadd.xlane.f32.xlu0 %v7353
      %v7417 = vpop.xlane.xlu0 %7416
      %7418 = vadd.xlane.f32.xlu0 %v7355
      %v7419 = vpop.xlane.xlu0 %7418
      %7420 = vadd.xlane.f32.xlu0 %v7357
      %v7421 = vpop.xlane.xlu0 %7420
      %7422 = vadd.xlane.f32.xlu0 %v7359
      %v7423 = vpop.xlane.xlu0 %7422
      %7424 = vadd.xlane.f32.xlu0 %v7361
      %v7425 = vpop.xlane.xlu0 %7424
      %7426 = vadd.xlane.f32.xlu0 %v7363
      %v7427 = vpop.xlane.xlu0 %7426
      %7428 = vadd.xlane.f32.xlu0 %v7365
      %v7429 = vpop.xlane.xlu0 %7428
      %7430 = vadd.xlane.f32.xlu0 %v7367
      %v7431 = vpop.xlane.xlu0 %7430
      %7432 = vadd.xlane.f32.xlu0 %v7369
      %v7433 = vpop.xlane.xlu0 %7432
      %7434 = vadd.xlane.f32.xlu0 %v7371
      %v7435 = vpop.xlane.xlu0 %7434
      %7436 = vadd.xlane.f32.xlu0 %v7373
      %v7437 = vpop.xlane.xlu0 %7436
      %7438 = vadd.xlane.f32.xlu0 %v7375
      %v7439 = vpop.xlane.xlu0 %7438
      %7440 = vadd.xlane.f32.xlu0 %v7377
      %v7441 = vpop.xlane.xlu0 %7440
      %7442 = vadd.xlane.f32.xlu0 %v7379
      %v7443 = vpop.xlane.xlu0 %7442
      %7444 = vadd.xlane.f32.xlu0 %v7381
      %v7445 = vpop.xlane.xlu0 %7444
      %7446 = vadd.xlane.f32.xlu0 %v7383
      %v7447 = vpop.xlane.xlu0 %7446
      %7448 = vadd.xlane.f32.xlu0 %v7385
      %v7449 = vpop.xlane.xlu0 %7448
      %7450 = vadd.xlane.f32.xlu0 %v7387
      %v7451 = vpop.xlane.xlu0 %7450
      %7452 = vadd.xlane.f32.xlu0 %v7389
      %v7453 = vpop.xlane.xlu0 %7452
      %7454 = vadd.xlane.f32.xlu0 %v7391
      %v7455 = vpop.xlane.xlu0 %7454
      %7456 = vadd.xlane.f32.xlu0 %v7393
      %v7457 = vpop.xlane.xlu0 %7456
      %7458 = vadd.xlane.f32.xlu0 %v7395
      %v7459 = vpop.xlane.xlu0 %7458
      %7460 = vadd.xlane.f32.xlu0 %v7397
      %v7461 = vpop.xlane.xlu0 %7460
      %7462 = vadd.xlane.f32.xlu0 %v7399
      %v7463 = vpop.xlane.xlu0 %7462
      %7464 = vadd.xlane.f32.xlu0 %v7401
      %v7465 = vpop.xlane.xlu0 %7464
      %v7466 = vlog2.pop %v7403
      %v7467 = vmul.f32 %v7466, 0.6931472
      %v7468 = vlog2.pop %v7405
      %v7469 = vmul.f32 %v7468, 0.6931472
      %v7470 = vlog2.pop %v7407
      %v7471 = vmul.f32 %v7470, 0.6931472
      %v7472 = vlog2.pop %v7409
      %v7473 = vmul.f32 %v7472, 0.6931472
      %v7474 = vlog2.pop %v7411
      %v7475 = vmul.f32 %v7474, 0.6931472
      %v7476 = vlog2.pop %v7413
      %v7477 = vmul.f32 %v7476, 0.6931472
      %v7478 = vlog2.pop %v7415
      %v7479 = vmul.f32 %v7478, 0.6931472
      %v7480 = vlog2.pop %v7417
      %v7481 = vmul.f32 %v7480, 0.6931472
      %v7482 = vlog2.pop %v7419
      %v7483 = vmul.f32 %v7482, 0.6931472
      %v7484 = vlog2.pop %v7421
      %v7485 = vmul.f32 %v7484, 0.6931472
      %v7486 = vlog2.pop %v7423
      %v7487 = vmul.f32 %v7486, 0.6931472
      %v7488 = vlog2.pop %v7425
      %v7489 = vmul.f32 %v7488, 0.6931472
      %v7490 = vlog2.pop %v7427
      %v7491 = vmul.f32 %v7490, 0.6931472
      %v7492 = vlog2.pop %v7429
      %v7493 = vmul.f32 %v7492, 0.6931472
      %v7494 = vlog2.pop %v7431
      %v7495 = vmul.f32 %v7494, 0.6931472
      %v7496 = vlog2.pop %v7433
      %v7497 = vmul.f32 %v7496, 0.6931472
      %v7498 = vlog2.pop %v7435
      %v7499 = vmul.f32 %v7498, 0.6931472
      %v7500 = vlog2.pop %v7437
      %v7501 = vmul.f32 %v7500, 0.6931472
      %v7502 = vlog2.pop %v7439
      %v7503 = vmul.f32 %v7502, 0.6931472
      %v7504 = vlog2.pop %v7441
      %v7505 = vmul.f32 %v7504, 0.6931472
      %v7506 = vlog2.pop %v7443
      %v7507 = vmul.f32 %v7506, 0.6931472
      %v7508 = vlog2.pop %v7445
      %v7509 = vmul.f32 %v7508, 0.6931472
      %v7510 = vlog2.pop %v7447
      %v7511 = vmul.f32 %v7510, 0.6931472
      %v7512 = vlog2.pop %v7449
      %v7513 = vmul.f32 %v7512, 0.6931472
      %v7514 = vlog2.pop %v7451
      %v7515 = vmul.f32 %v7514, 0.6931472
      %v7516 = vlog2.pop %v7453
      %v7517 = vmul.f32 %v7516, 0.6931472
      %v7518 = vlog2.pop %v7455
      %v7519 = vmul.f32 %v7518, 0.6931472
      %v7520 = vlog2.pop %v7457
      %v7521 = vmul.f32 %v7520, 0.6931472
      %v7522 = vlog2.pop %v7459
      %v7523 = vmul.f32 %v7522, 0.6931472
      %v7524 = vlog2.pop %v7461
      %v7525 = vmul.f32 %v7524, 0.6931472
      %v7526 = vlog2.pop %v7463
      %v7527 = vmul.f32 %v7526, 0.6931472
      %v7528 = vlog2.pop %v7465
      %v7529 = vmul.f32 %v7528, 0.6931472
      %v7530 = vsub.f32 %v7306, %v7467
      %v7531 = vsub.f32 %v7307, %v7469
      %v7532 = vsub.f32 %v7308, %v7471
      %v7533 = vsub.f32 %v7309, %v7473
      %v7534 = vsub.f32 %v7310, %v7475
      %v7535 = vsub.f32 %v7311, %v7477
      %v7536 = vsub.f32 %v7312, %v7479
      %v7537 = vsub.f32 %v7313, %v7481
      %v7538 = vsub.f32 %v7314, %v7483
      %v7539 = vsub.f32 %v7315, %v7485
      %v7540 = vsub.f32 %v7316, %v7487
      %v7541 = vsub.f32 %v7317, %v7489
      %v7542 = vsub.f32 %v7318, %v7491
      %v7543 = vsub.f32 %v7319, %v7493
      %v7544 = vsub.f32 %v7320, %v7495
      %v7545 = vsub.f32 %v7321, %v7497
      %v7546 = vsub.f32 %v7322, %v7499
      %v7547 = vsub.f32 %v7323, %v7501
      %v7548 = vsub.f32 %v7324, %v7503
      %v7549 = vsub.f32 %v7325, %v7505
      %v7550 = vsub.f32 %v7326, %v7507
      %v7551 = vsub.f32 %v7327, %v7509
      %v7552 = vsub.f32 %v7328, %v7511
      %v7553 = vsub.f32 %v7329, %v7513
      %v7554 = vsub.f32 %v7330, %v7515
      %v7555 = vsub.f32 %v7331, %v7517
      %v7556 = vsub.f32 %v7332, %v7519
      %v7557 = vsub.f32 %v7333, %v7521
      %v7558 = vsub.f32 %v7334, %v7523
      %v7559 = vsub.f32 %v7335, %v7525
      %v7560 = vsub.f32 %v7336, %v7527
      %v7561 = vsub.f32 %v7337, %v7529
      %7562 = vst [vmem:[%s199] sm:$0xff] %v7530
      %7563 = vst [vmem:[%s199 + $0x8] sm:$0xff] %v7531
      %7564 = vst [vmem:[%s199 + $0x10] sm:$0xff] %v7532
      %7565 = vst [vmem:[%s199 + $0x18] sm:$0xff] %v7533
      %7566 = vst [vmem:[%s199 + $0x20] sm:$0xff] %v7534
      %7567 = vst [vmem:[%s199 + $0x28] sm:$0xff] %v7535
      %7568 = vst [vmem:[%s199 + $0x30] sm:$0xff] %v7536
      %7569 = vst [vmem:[%s199 + $0x38] sm:$0xff] %v7537
      %7570 = vst [vmem:[%s199 + $0x40] sm:$0xff] %v7538
      %7571 = vst [vmem:[%s199 + $0x48] sm:$0xff] %v7539
      %7572 = vst [vmem:[%s199 + $0x50] sm:$0xff] %v7540
      %7573 = vst [vmem:[%s199 + $0x58] sm:$0xff] %v7541
      %7574 = vst [vmem:[%s199 + $0x60] sm:$0xff] %v7542
      %7575 = vst [vmem:[%s199 + $0x68] sm:$0xff] %v7543
      %7576 = vst [vmem:[%s199 + $0x70] sm:$0xff] %v7544
      %7577 = vst [vmem:[%s199 + $0x78] sm:$0xff] %v7545
      %7578 = vst [vmem:[%s199 + $0x80] sm:$0xff] %v7546
      %7579 = vst [vmem:[%s199 + $0x88] sm:$0xff] %v7547
      %7580 = vst [vmem:[%s199 + $0x90] sm:$0xff] %v7548
      %7581 = vst [vmem:[%s199 + $0x98] sm:$0xff] %v7549
      %7582 = vst [vmem:[%s199 + $0xa0] sm:$0xff] %v7550
      %7583 = vst [vmem:[%s199 + $0xa8] sm:$0xff] %v7551
      %7584 = vst [vmem:[%s199 + $0xb0] sm:$0xff] %v7552
      %7585 = vst [vmem:[%s199 + $0xb8] sm:$0xff] %v7553
      %7586 = vst [vmem:[%s199 + $0xc0] sm:$0xff] %v7554
      %7587 = vst [vmem:[%s199 + $0xc8] sm:$0xff] %v7555
      %7588 = vst [vmem:[%s199 + $0xd0] sm:$0xff] %v7556
      %7589 = vst [vmem:[%s199 + $0xd8] sm:$0xff] %v7557
      %7590 = vst [vmem:[%s199 + $0xe0] sm:$0xff] %v7558
      %7591 = vst [vmem:[%s199 + $0xe8] sm:$0xff] %v7559
      %7592 = vst [vmem:[%s199 + $0xf0] sm:$0xff] %v7560
      %7593 = vst [vmem:[%s199 + $0xf8] sm:$0xff] %v7561
      %s7594 = smul.u32 32, %s15
      %p7595 = scmp.lt.s32.totalorder %s7594, 63
      %s7596 = scalar_select %p7595, %s7594, 63
      %s7597 = smul.addr %s7596, 8
      %s7598 = scalar_lea.vmem %s4, %s7597
      // Predicated region
      $region37: #{policy_step.1} parent=35 // pred_check
        %p7599 = pneg %p122
      $region38: #{policy_step.1} parent=35 // pred_check_branch
        %7601 = sbr.rel (%p7599) target = $region40
      $region39: #{policy_step.1} parent=35 // pred_region
        %s7602 = smul.u32 32, %s15
      $region40: #{policy_step.1} parent=35 // pred_fallthru
        _
    $region36: #{policy_step.1} parent=5 // pred_fallthru
      _
    %p7603 = scmp.le.s32.totalorder 2, %s10
    // Predicated region
    $region41: #{policy_step.1} parent=5 // pred_check
      %p7604 = pneg %p7603
    $region42: #{policy_step.1} parent=5 // pred_check_branch
      %7606 = sbr.rel (%p7604) target = $region44
    $region43: #{policy_step.1} parent=5 // pred_region
      %s7607 = ssub.s32 %s10, 2
      // Predicated region
      $region45: #{policy_step.1} parent=43 // pred_check
        %p7608 = pneg %p128
      $region46: #{policy_step.1} parent=43 // pred_check_branch
        %7610 = sbr.rel (%p7608) target = $region48
      $region47: #{policy_step.1} parent=43 // pred_region
        %s7611 = smul.u32 32, %s16
        %p7612 = scmp.lt.s32.totalorder %s7611, 63
        %s7613 = scalar_select %p7612, %s7611, 63
        %s7614 = smul.addr %s7613, 8
        %s7615 = scalar_lea.vmem %s4, %s7614
      $region48: #{policy_step.1} parent=43 // pred_fallthru
        _
    $region44: #{policy_step.1} parent=5 // pred_fallthru
      _
  $region6: #{policy_step.1} parent=0 // loop_footer
    %s14 = sadd.s32 1, %s10
  $region7: #{policy_step.1} parent=0 // loop_footer_branch
    %9 = sbr.rel target = $region3
  $region8: #{policy_step.1} parent=0 // loop_exit
    _

</llo_original>
